<compile_context>
chip_gen: v7x
topology: tpu7x:2x2x1
jax: 0.10.0
libtpu: 0.0.40
codegen_flags: <defaults>
</compile_context>

<pallas_src>
import functools

import jax
import jax.numpy as jnp
from jax.experimental import pallas as pl
from jax.experimental.pallas import tpu as pltpu

LANE = 128


# ----------------------------------------------------------------------------
# Static layer table (mirrors PredictionModel.__init__).  ConvTranspose3d with
# stride=1 / output_padding=0 is folded into an equivalent Conv3d: spatially
# flipped kernel, swapped channel axes, padding k - 1 - p.  ph/pw below are the
# *equivalent* paddings; depth padding is 0 for every layer.
# ----------------------------------------------------------------------------
def build_geometry(c, p, d, h, w):
    specs = [
        dict(name="enc1", kd=3, kh=5, kw=5, cin=c,     cout=2 * c, ph=0, pw=0, transposed=False, relu=True),
        dict(name="enc2", kd=3, kh=5, kw=5, cin=2 * c, cout=2 * c, ph=2, pw=2, transposed=False, relu=True),
        dict(name="enc3", kd=3, kh=5, kw=5, cin=2 * c, cout=4 * c, ph=0, pw=0, transposed=False, relu=True),
        dict(name="enc4", kd=2, kh=5, kw=5, cin=4 * c, cout=8 * c, ph=2, pw=2, transposed=False, relu=True),
        dict(name="dec1", kd=1, kh=5, kw=5, cin=8 * c, cout=4 * c, ph=4, pw=4, transposed=True,  relu=True),
        dict(name="dec2", kd=1, kh=5, kw=5, cin=4 * c, cout=2 * c, ph=2, pw=2, transposed=True,  relu=True),
        dict(name="dec3", kd=1, kh=5, kw=5, cin=2 * c, cout=2 * c, ph=4, pw=4, transposed=True,  relu=True),
        dict(name="dec4", kd=1, kh=5, kw=5, cin=2 * c, cout=c,     ph=2, pw=2, transposed=True,  relu=True),
        dict(name="pred1", kd=1, kh=3, kw=3, cin=c,    cout=p,     ph=1, pw=1, transposed=False, relu=False),
        dict(name="pred2", kd=1, kh=3, kw=3, cin=p,    cout=p,     ph=1, pw=1, transposed=False, relu=True),
    ]
    for s in specs:
        s["d_in"], s["h_in"], s["w_in"] = d, h, w
        s["d_out"] = d - s["kd"] + 1
        s["h_out"] = h + 2 * s["ph"] - s["kh"] + 1
        s["w_out"] = w + 2 * s["pw"] - s["kw"] + 1
        s["h_pad"] = h + 2 * s["ph"]
        # flat (D*H_pad) scratch rows and flat accumulator rows
        s["m_rows"] = s["d_in"] * s["h_pad"]
        s["m_flat"] = (s["d_out"] - 1) * s["h_pad"] + s["h_out"]
        d, h, w = s["d_out"], s["h_out"], s["w_out"]
    return specs


# ----------------------------------------------------------------------------
# Hoisted weight preparation (runs once, outside the jitted forward).
#
# KH-stacked banded matrix per kd, lane-padded to 128 on both K-blocks and N:
#   B[kd, kh*128 + ci*W_in + w_in, co*W_out + w_out]
#     = wt[kd, kh, w_in - w_out + pw, ci, co]   (0 if the W-tap is out of range,
#        0 in the lane-padding rows/cols)
# With activations stored lane-fused as (D*H_pad, 128), the (kh, kw, ci)
# contraction plus the W zero-padding becomes ONE MXU matmul per (layer, kd).
# ----------------------------------------------------------------------------
def make_banded_stacked(w_eq, w_in, pw, lane=LANE):
    kd, kh, kw, cin, cout = w_eq.shape
    w_out = w_in + 2 * pw - kw + 1
    assert cin * w_in <= lane and cout * w_out <= lane
    wi = jnp.arange(w_in)[:, None]               # (W_in, 1)
    wo = jnp.arange(w_out)[None, :]              # (1, W_out)
    kx = wi - wo + pw                            # (W_in, W_out)
    valid = (kx >= 0) & (kx < kw)
    kxc = jnp.clip(kx, 0, kw - 1)
    g = w_eq[:, :, kxc, :, :]                    # (KD, KH, W_in, W_out, Cin, Cout)
    g = jnp.where(valid[None, None, :, :, None, None], g, 0.0)
    g = jnp.transpose(g, (0, 1, 4, 2, 5, 3))     # (KD, KH, Cin, W_in, Cout, W_out)
    g = g.reshape(kd, kh, cin * w_in, cout * w_out)
    g = jnp.pad(g, ((0, 0), (0, 0),
                    (0, lane - cin * w_in), (0, lane - cout * w_out)))
    return g.reshape(kd, kh * lane, lane)        # (KD, KH*128, 128)


def prepare_params(params, geom):
    c = geom[0]["cin"]
    d = geom[0]["d_in"]
    w = geom[0]["w_in"]
    p = geom[-1]["cout"]
    w_last = geom[-1]["w_out"]

    w_col = params["w_col"].astype(jnp.float32)
    w_row = params["w_row"].astype(jnp.float32)
    inv_col = jnp.linalg.inv(w_col)
    inv_row = jnp.linalg.inv(w_row)

    # Arranger as two lane-dense 2-D matmuls on the (D*H, 128) slab:
    #   y = kron(I_D, W_row) @ (x_pad @ pad(kron(I_C, W_col)))
    acol = jnp.kron(jnp.eye(c, dtype=jnp.float32), w_col)       # (C*W, C*W)
    acol = jnp.pad(acol, ((0, LANE - c * w), (0, LANE - c * w)))  # (128, 128)
    arow = jnp.kron(jnp.eye(d, dtype=jnp.float32), w_row)       # (D*H, D*H)
    # Inverse arranger on the (H, 128) predictor slab:
    icol = jnp.kron(jnp.eye(p, dtype=jnp.float32), inv_col)     # (P*W, P*W)
    icol = jnp.pad(icol, ((0, LANE - p * w_last), (0, LANE - p * w_last)))
    irow = inv_row                                               # (H, H)

    bmats = []
    for s in geom:
        wt = params[s["name"]].astype(jnp.float32)
        if s["transposed"]:
            # (Cin, Cout, KD, KH, KW) -> flip spatial -> (KD, KH, KW, Cin, Cout)
            wt = jnp.transpose(jnp.flip(wt, axis=(2, 3, 4)), (2, 3, 4, 0, 1))
        bmats.append(
            make_banded_stacked(wt, s["w_in"], s["pw"]).astype(jnp.bfloat16))

    return dict(acol=acol, arow=arow, icol=icol, irow=irow, bmats=bmats)


# ----------------------------------------------------------------------------
# Fused kernel.
# ----------------------------------------------------------------------------
def _pad_row_ranges(s):
    """Static (start, stop) ranges of H-padding rows in the flat scratch."""
    hp, ph, hin, din = s["h_pad"], s["ph"], s["h_in"], s["d_in"]
    if ph == 0:
        return []
    ranges = [(0, ph)]
    for dd in range(din - 1):
        ranges.append((dd * hp + ph + hin, (dd + 1) * hp + ph))
    ranges.append(((din - 1) * hp + ph + hin, din * hp))
    return ranges


def _fused_forward_kernel(layers, x_ref, acol_ref, arow_ref, icol_ref, irow_ref,
                          *rest):
    nl = len(layers)
    b_refs = rest[:nl]
    o_ref = rest[nl]
    act_refs = rest[nl + 1:]

    # Zero ONLY the H-padding rows of each scratch (interior rows are fully
    # rewritten below).  Cheap, and correct under megacore grid partitioning.
    for li, lay in enumerate(layers):
        for (a, b) in _pad_row_ranges(lay):
            act_refs[li][a:b, :] = jnp.zeros((b - a, LANE), jnp.float32)

    # ---------------- arranger: kron(I_D, W_row) @ x @ pad(kron(I_C, W_col)) --
    x2 = x_ref[0]                                                    # (D*H, 128)
    t = jnp.dot(x2, acol_ref[...], preferred_element_type=jnp.float32)
    y = jnp.dot(arow_ref[...], t, preferred_element_type=jnp.float32)
    act_refs[0][...] = y            # enc1 has ph == 0 -> every row is interior

    # ---------------- encoder / decoder / predictor convs --------------------
    final = None
    for li, lay in enumerate(layers):
        in_ref = act_refs[li]                       # (D_in*H_pad, 128) f32
        b_ref = b_refs[li]                          # (KD, KH*128, 128) bf16
        hp = lay["h_pad"]
        m_flat = lay["m_flat"]

        acc = jnp.zeros((m_flat, LANE), jnp.float32)
        for kd in range(lay["kd"]):
            base = kd * hp
            pieces = [
                in_ref[base + kh: base + kh + m_flat, :].astype(jnp.bfloat16)
                for kh in range(lay["kh"])
            ]
            xcat = jnp.concatenate(pieces, axis=1) if lay["kh"] > 1 else pieces[0]
            acc = acc + jnp.dot(xcat, b_ref[kd],
                                preferred_element_type=jnp.float32)
        if lay["relu"]:
            acc = jnp.maximum(acc, 0.0)

        ho = lay["h_out"]
        if li + 1 < nl:
            nxt = layers[li + 1]
            hp_n, ph_n = nxt["h_pad"], nxt["ph"]
            out_scr = act_refs[li + 1]
            for dd in range(lay["d_out"]):
                out_scr[dd * hp_n + ph_n: dd * hp_n + ph_n + ho, :] = \
                    acc[dd * hp: dd * hp + ho, :]
        else:
            final = acc[:ho, :]                                      # (H, 128)

    # ---------------- inverse arranger: inv_row @ out @ pad(kron(I_P, inv_col))
    t2 = jnp.dot(final, icol_ref[...], preferred_element_type=jnp.float32)
    out = jnp.dot(irow_ref[...], t2, preferred_element_type=jnp.float32)
    o_ref[0] = out


# ----------------------------------------------------------------------------
# Forward wrapper (one pallas_call for the whole model).
# ----------------------------------------------------------------------------
def prediction_model_forward(prep, x, time_seq=None, *, geom):
    del time_seq                                   # unused, exactly as in PyTorch
    n, c, d, h, w = x.shape
    gl = geom[-1]
    p = gl["cout"]
    df, hf, wf = gl["d_out"], gl["h_out"], gl["w_out"]

    # (N, C, D, H, W) -> (N, D*H, C*W) -> lane-pad to 128 (rows=(d,h), lanes=(c,w))
    x2 = jnp.transpose(x, (0, 2, 3, 1, 4)).reshape(n, d * h, c * w)
    x2 = jnp.pad(x2, ((0, 0), (0, 0), (0, LANE - c * w)))

    kernel = functools.partial(_fused_forward_kernel, geom)

    in_specs = [
        pl.BlockSpec((1, d * h, LANE), lambda i: (i, 0, 0)),
        pl.BlockSpec(prep["acol"].shape, lambda i: (0, 0)),
        pl.BlockSpec(prep["arow"].shape, lambda i: (0, 0)),
        pl.BlockSpec(prep["icol"].shape, lambda i: (0, 0)),
        pl.BlockSpec(prep["irow"].shape, lambda i: (0, 0)),
    ] + [pl.BlockSpec(b.shape, lambda i: (0, 0, 0)) for b in prep["bmats"]]

    scratch_shapes = [
        pltpu.VMEM((s["m_rows"], LANE), jnp.float32) for s in geom
    ]

    out = pl.pallas_call(
        kernel,
        out_shape=jax.ShapeDtypeStruct((n, hf, LANE), jnp.float32),
        grid=(n,),
        in_specs=in_specs,
        out_specs=pl.BlockSpec((1, hf, LANE), lambda i: (i, 0, 0)),
        scratch_shapes=scratch_shapes,
        compiler_params=pltpu.CompilerParams(
            dimension_semantics=("parallel",),
            vmem_limit_bytes=32 * 1024 * 1024,
        ),
    )(x2, prep["acol"], prep["arow"], prep["icol"], prep["irow"], *prep["bmats"])

    # (N, H, 128) -> drop lane padding -> (N, P, 1, H, W)
    out = out[:, :, :p * wf]
    out = out.reshape(n, hf, p, wf).transpose(0, 2, 1, 3).reshape(n, p, df, hf, wf)
    return out


# ----------------------------------------------------------------------------
# Parameter init (deterministic; shapes follow the PyTorch __init__).
# ----------------------------------------------------------------------------
def init_params(key, in_channels, predict_matrix_num, matrix_row, matrix_column):
    keys = jax.random.split(key, 12)
    c, p = in_channels, predict_matrix_num

    def conv_w(k, shape, scale=0.1):
        return (scale * jax.random.normal(k, shape)).astype(jnp.float32)

    return {
        # RE_neural_network weights: eye(...) in __init__; tiny perturbation so
        # the matmuls / inverses are non-trivial yet well conditioned.
        "w_col": jnp.eye(matrix_column, dtype=jnp.float32)
        + 0.05 * jax.random.normal(keys[0], (matrix_column, matrix_column)),
        "w_row": jnp.eye(matrix_row, dtype=jnp.float32)
        + 0.05 * jax.random.normal(keys[1], (matrix_row, matrix_row)),
        # Encoder Conv3d weights, layout (KD, KH, KW, Cin, Cout)
        "enc1": conv_w(keys[2], (3, 5, 5, c, 2 * c)),
        "enc2": conv_w(keys[3], (3, 5, 5, 2 * c, 2 * c)),
        "enc3": conv_w(keys[4], (3, 5, 5, 2 * c, 4 * c)),
        "enc4": conv_w(keys[5], (2, 5, 5, 4 * c, 8 * c)),
        # Decoder ConvTranspose3d weights, PyTorch layout (Cin, Cout, KD, KH, KW)
        "dec1": conv_w(keys[6], (8 * c, 4 * c, 1, 5, 5)),
        "dec2": conv_w(keys[7], (4 * c, 2 * c, 1, 5, 5)),
        "dec3": conv_w(keys[8], (2 * c, 2 * c, 1, 5, 5)),
        "dec4": conv_w(keys[9], (2 * c, c, 1, 5, 5)),
        # Predictor Conv3d weights
        "pred1": conv_w(keys[10], (1, 3, 3, c, p)),
        "pred2": conv_w(keys[11], (1, 3, 3, p, p)),
    }


# ----------------------------------------------------------------------------
# Pure-JAX/XLA reference (numerical self-check only).
# ----------------------------------------------------------------------------
def _ref_conv3d(x, w_eq, pad):
    w_oidhw = jnp.transpose(w_eq, (4, 3, 0, 1, 2))
    return jax.lax.conv_general_dilated(
        x, w_oidhw,
        window_strides=(1, 1, 1),
        padding=[(q, q) for q in pad],
        dimension_numbers=("NCDHW", "OIDHW", "NCDHW"),
    )


def reference_forward(params, x, geom):
    w_col = params["w_col"].astype(jnp.float32)
    w_row = params["w_row"].astype(jnp.float32)
    out = jnp.einsum("hk,ncdkw,wv->ncdhv", w_row, x, w_col)
    for s in geom:
        wt = params[s["name"]].astype(jnp.float32)
        if s["transposed"]:
            wt = jnp.transpose(jnp.flip(wt, axis=(2, 3, 4)), (2, 3, 4, 0, 1))
        # match the kernel's bf16 weight rounding (activations stay f32)
        wt = wt.astype(jnp.bfloat16).astype(jnp.float32)
        out = _ref_conv3d(out, wt, (0, s["ph"], s["pw"]))
        if s["relu"]:
            out = jnp.maximum(out, 0.0)
    inv_col = jnp.linalg.inv(w_col)
    inv_row = jnp.linalg.inv(w_row)
    return jnp.einsum("hk,npdkw,wv->npdhv", inv_row, out, inv_col)


if __name__ == "__main__":
    # batch=2, in_channels=2, predict_matrix_num=2, depth D=8 (encoder depth
    # kernels 3,3,3,2 reduce D from 8 to exactly 1), matrix_row=matrix_column=16.
    N, C, D, H, W = 2, 2, 8, 16, 16
    P = 2

    key = jax.random.PRNGKey(0)
    kx, kp = jax.random.split(key)
    x = jax.random.normal(kx, (N, C, D, H, W), jnp.float32)
    time_seq = jnp.arange(D, dtype=jnp.float32)   # unused, mirrors the signature
    params = init_params(kp, C, P, H, W)

    geom = build_geometry(C, P, D, H, W)
    prep = prepare_params(params, geom)           # hoisted weight prep, runs once

    fwd = jax.jit(functools.partial(prediction_model_forward, geom=geom))
    out = jax.block_until_ready(fwd(prep, x, time_seq))

    assert out.shape == (N, P, 1, H, W), out.shape
    assert bool(jnp.all(jnp.isfinite(out)))

    # Numerical self-check (kernel uses bf16 weights / bf16 matmul inputs with
    # f32 activations + f32 accumulation).
    ref = jax.block_until_ready(reference_forward(params, x, geom))
    rel_err = float(jnp.max(jnp.abs(out - ref)) / (jnp.max(jnp.abs(ref)) + 1e-6))
    assert rel_err < 0.1, rel_err

    print("KERNEL_OK")
</pallas_src>

<mosaic_0001>
module attributes {stable_mosaic.version = 11 : i64} {
  func.func @_fused_forward_kernel(%arg0: i32, %arg1: memref<1x128x128xf32, #tpu.memory_space<vmem>>, %arg2: memref<128x128xf32, #tpu.memory_space<vmem>>, %arg3: memref<128x128xf32, #tpu.memory_space<vmem>>, %arg4: memref<128x128xf32, #tpu.memory_space<vmem>>, %arg5: memref<16x16xf32, #tpu.memory_space<vmem>>, %arg6: memref<3x640x128xbf16, #tpu.memory_space<vmem>>, %arg7: memref<3x640x128xbf16, #tpu.memory_space<vmem>>, %arg8: memref<3x640x128xbf16, #tpu.memory_space<vmem>>, %arg9: memref<2x640x128xbf16, #tpu.memory_space<vmem>>, %arg10: memref<1x640x128xbf16, #tpu.memory_space<vmem>>, %arg11: memref<1x640x128xbf16, #tpu.memory_space<vmem>>, %arg12: memref<1x640x128xbf16, #tpu.memory_space<vmem>>, %arg13: memref<1x640x128xbf16, #tpu.memory_space<vmem>>, %arg14: memref<1x384x128xbf16, #tpu.memory_space<vmem>>, %arg15: memref<1x384x128xbf16, #tpu.memory_space<vmem>>, %arg16: memref<1x16x128xf32, #tpu.memory_space<vmem>>, %arg17: memref<128x128xf32, #tpu.memory_space<vmem>>, %arg18: memref<96x128xf32, #tpu.memory_space<vmem>>, %arg19: memref<48x128xf32, #tpu.memory_space<vmem>>, %arg20: memref<24x128xf32, #tpu.memory_space<vmem>>, %arg21: memref<16x128xf32, #tpu.memory_space<vmem>>, %arg22: memref<16x128xf32, #tpu.memory_space<vmem>>, %arg23: memref<20x128xf32, #tpu.memory_space<vmem>>, %arg24: memref<20x128xf32, #tpu.memory_space<vmem>>, %arg25: memref<18x128xf32, #tpu.memory_space<vmem>>, %arg26: memref<18x128xf32, #tpu.memory_space<vmem>>) attributes {dimension_semantics = [#tpu.dimension_semantics<parallel>], iteration_bounds = array<i64: 2>, scalar_prefetch = 0 : i64, scratch_operands = 10 : i64, tpu.core_type = #tpu.core_type<tc>, window_params = [{transform_indices = @transform_0, window_bounds = array<i64: 1, 128, 128>}, {pipeline_mode = #tpu.pipeline_mode<synchronous>, transform_indices = @transform_1, window_bounds = array<i64: 128, 128>}, {pipeline_mode = #tpu.pipeline_mode<synchronous>, transform_indices = @transform_2, window_bounds = array<i64: 128, 128>}, {pipeline_mode = #tpu.pipeline_mode<synchronous>, transform_indices = @transform_3, window_bounds = array<i64: 128, 128>}, {pipeline_mode = #tpu.pipeline_mode<synchronous>, transform_indices = @transform_4, window_bounds = array<i64: 16, 16>}, {pipeline_mode = #tpu.pipeline_mode<synchronous>, transform_indices = @transform_5, window_bounds = array<i64: 3, 640, 128>}, {pipeline_mode = #tpu.pipeline_mode<synchronous>, transform_indices = @transform_6, window_bounds = array<i64: 3, 640, 128>}, {pipeline_mode = #tpu.pipeline_mode<synchronous>, transform_indices = @transform_7, window_bounds = array<i64: 3, 640, 128>}, {pipeline_mode = #tpu.pipeline_mode<synchronous>, transform_indices = @transform_8, window_bounds = array<i64: 2, 640, 128>}, {pipeline_mode = #tpu.pipeline_mode<synchronous>, transform_indices = @transform_9, window_bounds = array<i64: 1, 640, 128>}, {pipeline_mode = #tpu.pipeline_mode<synchronous>, transform_indices = @transform_10, window_bounds = array<i64: 1, 640, 128>}, {pipeline_mode = #tpu.pipeline_mode<synchronous>, transform_indices = @transform_11, window_bounds = array<i64: 1, 640, 128>}, {pipeline_mode = #tpu.pipeline_mode<synchronous>, transform_indices = @transform_12, window_bounds = array<i64: 1, 640, 128>}, {pipeline_mode = #tpu.pipeline_mode<synchronous>, transform_indices = @transform_13, window_bounds = array<i64: 1, 384, 128>}, {pipeline_mode = #tpu.pipeline_mode<synchronous>, transform_indices = @transform_14, window_bounds = array<i64: 1, 384, 128>}, {transform_indices = @transform_15, window_bounds = array<i64: 1, 16, 128>}]} {
    %cst = arith.constant 0.000000e+00 : f32
    %0 = vector.broadcast %cst : f32 to vector<2x128xf32>
    %c0 = arith.constant 0 : index
    %c0_0 = arith.constant 0 : index
    %1 = vector.load %arg18[%c0, %c0_0] : memref<96x128xf32, #tpu.memory_space<vmem>>, vector<2x128xf32>
    tpu.vector_store %arg18[%c0, %c0_0], %0 {strides = array<i32>} : memref<96x128xf32, #tpu.memory_space<vmem>>, vector<2x128xf32>,
    %cst_1 = arith.constant 0.000000e+00 : f32
    %2 = vector.broadcast %cst_1 : f32 to vector<4x128xf32>
    %c14 = arith.constant 14 : index
    %c0_2 = arith.constant 0 : index
    %3 = vector.load %arg18[%c14, %c0_2] : memref<96x128xf32, #tpu.memory_space<vmem>>, vector<4x128xf32>
    tpu.vector_store %arg18[%c14, %c0_2], %2 {strides = array<i32>} : memref<96x128xf32, #tpu.memory_space<vmem>>, vector<4x128xf32>,
    %cst_3 = arith.constant 0.000000e+00 : f32
    %4 = vector.broadcast %cst_3 : f32 to vector<4x128xf32>
    %c30 = arith.constant 30 : index
    %c0_4 = arith.constant 0 : index
    %5 = vector.load %arg18[%c30, %c0_4] : memref<96x128xf32, #tpu.memory_space<vmem>>, vector<4x128xf32>
    tpu.vector_store %arg18[%c30, %c0_4], %4 {strides = array<i32>} : memref<96x128xf32, #tpu.memory_space<vmem>>, vector<4x128xf32>,
    %cst_5 = arith.constant 0.000000e+00 : f32
    %6 = vector.broadcast %cst_5 : f32 to vector<4x128xf32>
    %c46 = arith.constant 46 : index
    %c0_6 = arith.constant 0 : index
    %7 = vector.load %arg18[%c46, %c0_6] : memref<96x128xf32, #tpu.memory_space<vmem>>, vector<4x128xf32>
    tpu.vector_store %arg18[%c46, %c0_6], %6 {strides = array<i32>} : memref<96x128xf32, #tpu.memory_space<vmem>>, vector<4x128xf32>,
    %cst_7 = arith.constant 0.000000e+00 : f32
    %8 = vector.broadcast %cst_7 : f32 to vector<4x128xf32>
    %c62 = arith.constant 62 : index
    %c0_8 = arith.constant 0 : index
    %9 = vector.load %arg18[%c62, %c0_8] : memref<96x128xf32, #tpu.memory_space<vmem>>, vector<4x128xf32>
    tpu.vector_store %arg18[%c62, %c0_8], %8 {strides = array<i32>} : memref<96x128xf32, #tpu.memory_space<vmem>>, vector<4x128xf32>,
    %cst_9 = arith.constant 0.000000e+00 : f32
    %10 = vector.broadcast %cst_9 : f32 to vector<4x128xf32>
    %c78 = arith.constant 78 : index
    %c0_10 = arith.constant 0 : index
    %11 = vector.load %arg18[%c78, %c0_10] : memref<96x128xf32, #tpu.memory_space<vmem>>, vector<4x128xf32>
    tpu.vector_store %arg18[%c78, %c0_10], %10 {strides = array<i32>} : memref<96x128xf32, #tpu.memory_space<vmem>>, vector<4x128xf32>,
    %cst_11 = arith.constant 0.000000e+00 : f32
    %12 = vector.broadcast %cst_11 : f32 to vector<2x128xf32>
    %c94 = arith.constant 94 : index
    %c0_12 = arith.constant 0 : index
    %13 = vector.load %arg18[%c94, %c0_12] : memref<96x128xf32, #tpu.memory_space<vmem>>, vector<2x128xf32>
    tpu.vector_store %arg18[%c94, %c0_12], %12 {strides = array<i32>} : memref<96x128xf32, #tpu.memory_space<vmem>>, vector<2x128xf32>,
    %cst_13 = arith.constant 0.000000e+00 : f32
    %14 = vector.broadcast %cst_13 : f32 to vector<2x128xf32>
    %c0_14 = arith.constant 0 : index
    %c0_15 = arith.constant 0 : index
    %15 = vector.load %arg20[%c0_14, %c0_15] : memref<24x128xf32, #tpu.memory_space<vmem>>, vector<2x128xf32>
    tpu.vector_store %arg20[%c0_14, %c0_15], %14 {strides = array<i32>} : memref<24x128xf32, #tpu.memory_space<vmem>>, vector<2x128xf32>,
    %cst_16 = arith.constant 0.000000e+00 : f32
    %16 = vector.broadcast %cst_16 : f32 to vector<4x128xf32>
    %c10 = arith.constant 10 : index
    %c0_17 = arith.constant 0 : index
    %17 = vector.load %arg20[%c10, %c0_17] : memref<24x128xf32, #tpu.memory_space<vmem>>, vector<4x128xf32>
    tpu.vector_store %arg20[%c10, %c0_17], %16 {strides = array<i32>} : memref<24x128xf32, #tpu.memory_space<vmem>>, vector<4x128xf32>,
    %cst_18 = arith.constant 0.000000e+00 : f32
    %18 = vector.broadcast %cst_18 : f32 to vector<2x128xf32>
    %c22 = arith.constant 22 : index
    %c0_19 = arith.constant 0 : index
    %19 = vector.load %arg20[%c22, %c0_19] : memref<24x128xf32, #tpu.memory_space<vmem>>, vector<2x128xf32>
    tpu.vector_store %arg20[%c22, %c0_19], %18 {strides = array<i32>} : memref<24x128xf32, #tpu.memory_space<vmem>>, vector<2x128xf32>,
    %cst_20 = arith.constant 0.000000e+00 : f32
    %20 = vector.broadcast %cst_20 : f32 to vector<4x128xf32>
    %c0_21 = arith.constant 0 : index
    %c0_22 = arith.constant 0 : index
    %21 = vector.load %arg21[%c0_21, %c0_22] : memref<16x128xf32, #tpu.memory_space<vmem>>, vector<4x128xf32>
    tpu.vector_store %arg21[%c0_21, %c0_22], %20 {strides = array<i32>} : memref<16x128xf32, #tpu.memory_space<vmem>>, vector<4x128xf32>,
    %cst_23 = arith.constant 0.000000e+00 : f32
    %22 = vector.broadcast %cst_23 : f32 to vector<4x128xf32>
    %c12 = arith.constant 12 : index
    %c0_24 = arith.constant 0 : index
    %23 = vector.load %arg21[%c12, %c0_24] : memref<16x128xf32, #tpu.memory_space<vmem>>, vector<4x128xf32>
    tpu.vector_store %arg21[%c12, %c0_24], %22 {strides = array<i32>} : memref<16x128xf32, #tpu.memory_space<vmem>>, vector<4x128xf32>,
    %cst_25 = arith.constant 0.000000e+00 : f32
    %24 = vector.broadcast %cst_25 : f32 to vector<2x128xf32>
    %c0_26 = arith.constant 0 : index
    %c0_27 = arith.constant 0 : index
    %25 = vector.load %arg22[%c0_26, %c0_27] : memref<16x128xf32, #tpu.memory_space<vmem>>, vector<2x128xf32>
    tpu.vector_store %arg22[%c0_26, %c0_27], %24 {strides = array<i32>} : memref<16x128xf32, #tpu.memory_space<vmem>>, vector<2x128xf32>,
    %cst_28 = arith.constant 0.000000e+00 : f32
    %26 = vector.broadcast %cst_28 : f32 to vector<2x128xf32>
    %c14_29 = arith.constant 14 : index
    %c0_30 = arith.constant 0 : index
    %27 = vector.load %arg22[%c14_29, %c0_30] : memref<16x128xf32, #tpu.memory_space<vmem>>, vector<2x128xf32>
    tpu.vector_store %arg22[%c14_29, %c0_30], %26 {strides = array<i32>} : memref<16x128xf32, #tpu.memory_space<vmem>>, vector<2x128xf32>,
    %cst_31 = arith.constant 0.000000e+00 : f32
    %28 = vector.broadcast %cst_31 : f32 to vector<4x128xf32>
    %c0_32 = arith.constant 0 : index
    %c0_33 = arith.constant 0 : index
    %29 = vector.load %arg23[%c0_32, %c0_33] : memref<20x128xf32, #tpu.memory_space<vmem>>, vector<4x128xf32>
    tpu.vector_store %arg23[%c0_32, %c0_33], %28 {strides = array<i32>} : memref<20x128xf32, #tpu.memory_space<vmem>>, vector<4x128xf32>,
    %cst_34 = arith.constant 0.000000e+00 : f32
    %30 = vector.broadcast %cst_34 : f32 to vector<4x128xf32>
    %c16 = arith.constant 16 : index
    %c0_35 = arith.constant 0 : index
    %31 = vector.load %arg23[%c16, %c0_35] : memref<20x128xf32, #tpu.memory_space<vmem>>, vector<4x128xf32>
    tpu.vector_store %arg23[%c16, %c0_35], %30 {strides = array<i32>} : memref<20x128xf32, #tpu.memory_space<vmem>>, vector<4x128xf32>,
    %cst_36 = arith.constant 0.000000e+00 : f32
    %32 = vector.broadcast %cst_36 : f32 to vector<2x128xf32>
    %c0_37 = arith.constant 0 : index
    %c0_38 = arith.constant 0 : index
    %33 = vector.load %arg24[%c0_37, %c0_38] : memref<20x128xf32, #tpu.memory_space<vmem>>, vector<2x128xf32>
    tpu.vector_store %arg24[%c0_37, %c0_38], %32 {strides = array<i32>} : memref<20x128xf32, #tpu.memory_space<vmem>>, vector<2x128xf32>,
    %cst_39 = arith.constant 0.000000e+00 : f32
    %34 = vector.broadcast %cst_39 : f32 to vector<2x128xf32>
    %c18 = arith.constant 18 : index
    %c0_40 = arith.constant 0 : index
    %35 = vector.load %arg24[%c18, %c0_40] : memref<20x128xf32, #tpu.memory_space<vmem>>, vector<2x128xf32>
    tpu.vector_store %arg24[%c18, %c0_40], %34 {strides = array<i32>} : memref<20x128xf32, #tpu.memory_space<vmem>>, vector<2x128xf32>,
    %cst_41 = arith.constant 0.000000e+00 : f32
    %36 = vector.broadcast %cst_41 : f32 to vector<1x128xf32>
    %c0_42 = arith.constant 0 : index
    %c0_43 = arith.constant 0 : index
    %37 = vector.load %arg25[%c0_42, %c0_43] : memref<18x128xf32, #tpu.memory_space<vmem>>, vector<1x128xf32>
    tpu.vector_store %arg25[%c0_42, %c0_43], %36 {strides = array<i32>} : memref<18x128xf32, #tpu.memory_space<vmem>>, vector<1x128xf32>,
    %cst_44 = arith.constant 0.000000e+00 : f32
    %38 = vector.broadcast %cst_44 : f32 to vector<1x128xf32>
    %c17 = arith.constant 17 : index
    %c0_45 = arith.constant 0 : index
    %39 = vector.load %arg25[%c17, %c0_45] : memref<18x128xf32, #tpu.memory_space<vmem>>, vector<1x128xf32>
    tpu.vector_store %arg25[%c17, %c0_45], %38 {strides = array<i32>} : memref<18x128xf32, #tpu.memory_space<vmem>>, vector<1x128xf32>,
    %cst_46 = arith.constant 0.000000e+00 : f32
    %40 = vector.broadcast %cst_46 : f32 to vector<1x128xf32>
    %c0_47 = arith.constant 0 : index
    %c0_48 = arith.constant 0 : index
    %41 = vector.load %arg26[%c0_47, %c0_48] : memref<18x128xf32, #tpu.memory_space<vmem>>, vector<1x128xf32>
    tpu.vector_store %arg26[%c0_47, %c0_48], %40 {strides = array<i32>} : memref<18x128xf32, #tpu.memory_space<vmem>>, vector<1x128xf32>,
    %cst_49 = arith.constant 0.000000e+00 : f32
    %42 = vector.broadcast %cst_49 : f32 to vector<1x128xf32>
    %c17_50 = arith.constant 17 : index
    %c0_51 = arith.constant 0 : index
    %43 = vector.load %arg26[%c17_50, %c0_51] : memref<18x128xf32, #tpu.memory_space<vmem>>, vector<1x128xf32>
    tpu.vector_store %arg26[%c17_50, %c0_51], %42 {strides = array<i32>} : memref<18x128xf32, #tpu.memory_space<vmem>>, vector<1x128xf32>,
    %c0_52 = arith.constant 0 : index
    %c0_53 = arith.constant 0 : index
    %c0_54 = arith.constant 0 : index
    %44 = vector.load %arg1[%c0_52, %c0_53, %c0_54] : memref<1x128x128xf32, #tpu.memory_space<vmem>>, vector<1x128x128xf32>
    %45 = vector.shape_cast %44 : vector<1x128x128xf32> to vector<128x128xf32>
    %c0_55 = arith.constant 0 : index
    %c0_56 = arith.constant 0 : index
    %46 = vector.load %arg2[%c0_55, %c0_56] : memref<128x128xf32, #tpu.memory_space<vmem>>, vector<128x128xf32>
    %cst_57 = arith.constant dense<0.000000e+00> : vector<128x128xf32>
    %47 = tpu.matmul %45, %46, %cst_57 {dimension_numbers = #tpu.dot_dimension_numbers<[1], [0], [0], [1], [0, 0, 1, 1], [], []>} : vector<128x128xf32>, vector<128x128xf32>, vector<128x128xf32> -> vector<128x128xf32>
    %c0_58 = arith.constant 0 : index
    %c0_59 = arith.constant 0 : index
    %48 = vector.load %arg3[%c0_58, %c0_59] : memref<128x128xf32, #tpu.memory_space<vmem>>, vector<128x128xf32>
    %cst_60 = arith.constant dense<0.000000e+00> : vector<128x128xf32>
    %49 = tpu.matmul %48, %47, %cst_60 {dimension_numbers = #tpu.dot_dimension_numbers<[1], [0], [0], [1], [0, 0, 1, 1], [], []>} : vector<128x128xf32>, vector<128x128xf32>, vector<128x128xf32> -> vector<128x128xf32>
    %c0_61 = arith.constant 0 : index
    %c0_62 = arith.constant 0 : index
    %50 = vector.load %arg17[%c0_61, %c0_62] : memref<128x128xf32, #tpu.memory_space<vmem>>, vector<128x128xf32>
    tpu.vector_store %arg17[%c0_61, %c0_62], %49 {strides = array<i32>} : memref<128x128xf32, #tpu.memory_space<vmem>>, vector<128x128xf32>,
    %cst_63 = arith.constant 0.000000e+00 : f32
    %51 = vector.broadcast %cst_63 : f32 to vector<92x128xf32>
    %c0_64 = arith.constant 0 : index
    %c0_65 = arith.constant 0 : index
    %52 = vector.load %arg17[%c0_64, %c0_65] : memref<128x128xf32, #tpu.memory_space<vmem>>, vector<92x128xf32>
    %53 = arith.truncf %52 : vector<92x128xf32> to vector<92x128xbf16>
    %c1 = arith.constant 1 : index
    %c0_66 = arith.constant 0 : index
    %54 = vector.load %arg17[%c1, %c0_66] : memref<128x128xf32, #tpu.memory_space<vmem>>, vector<92x128xf32>
    %55 = arith.truncf %54 : vector<92x128xf32> to vector<92x128xbf16>
    %c2 = arith.constant 2 : index
    %c0_67 = arith.constant 0 : index
    %56 = vector.load %arg17[%c2, %c0_67] : memref<128x128xf32, #tpu.memory_space<vmem>>, vector<92x128xf32>
    %57 = arith.truncf %56 : vector<92x128xf32> to vector<92x128xbf16>
    %c3 = arith.constant 3 : index
    %c0_68 = arith.constant 0 : index
    %58 = vector.load %arg17[%c3, %c0_68] : memref<128x128xf32, #tpu.memory_space<vmem>>, vector<92x128xf32>
    %59 = arith.truncf %58 : vector<92x128xf32> to vector<92x128xbf16>
    %c4 = arith.constant 4 : index
    %c0_69 = arith.constant 0 : index
    %60 = vector.load %arg17[%c4, %c0_69] : memref<128x128xf32, #tpu.memory_space<vmem>>, vector<92x128xf32>
    %61 = arith.truncf %60 : vector<92x128xf32> to vector<92x128xbf16>
    %62 = tpu.concatenate %53, %55, %57, %59, %61 in 1 : vector<92x128xbf16>, vector<92x128xbf16>, vector<92x128xbf16>, vector<92x128xbf16>, vector<92x128xbf16> -> vector<92x640xbf16>
    %c0_70 = arith.constant 0 : index
    %c0_71 = arith.constant 0 : index
    %c0_72 = arith.constant 0 : index
    %63 = vector.load %arg6[%c0_70, %c0_71, %c0_72] : memref<3x640x128xbf16, #tpu.memory_space<vmem>>, vector<1x640x128xbf16>
    %64 = vector.shape_cast %63 : vector<1x640x128xbf16> to vector<640x128xbf16>
    %cst_73 = arith.constant dense<0.000000e+00> : vector<92x128xf32>
    %65 = tpu.matmul %62, %64, %cst_73 {dimension_numbers = #tpu.dot_dimension_numbers<[1], [0], [0], [1], [0, 0, 1, 1], [], []>} : vector<92x640xbf16>, vector<640x128xbf16>, vector<92x128xf32> -> vector<92x128xf32>
    %66 = arith.addf %51, %65 : vector<92x128xf32>
    %c16_74 = arith.constant 16 : index
    %c0_75 = arith.constant 0 : index
    %67 = vector.load %arg17[%c16_74, %c0_75] : memref<128x128xf32, #tpu.memory_space<vmem>>, vector<92x128xf32>
    %68 = arith.truncf %67 : vector<92x128xf32> to vector<92x128xbf16>
    %c17_76 = arith.constant 17 : index
    %c0_77 = arith.constant 0 : index
    %69 = vector.load %arg17[%c17_76, %c0_77] : memref<128x128xf32, #tpu.memory_space<vmem>>, vector<92x128xf32>
    %70 = arith.truncf %69 : vector<92x128xf32> to vector<92x128xbf16>
    %c18_78 = arith.constant 18 : index
    %c0_79 = arith.constant 0 : index
    %71 = vector.load %arg17[%c18_78, %c0_79] : memref<128x128xf32, #tpu.memory_space<vmem>>, vector<92x128xf32>
    %72 = arith.truncf %71 : vector<92x128xf32> to vector<92x128xbf16>
    %c19 = arith.constant 19 : index
    %c0_80 = arith.constant 0 : index
    %73 = vector.load %arg17[%c19, %c0_80] : memref<128x128xf32, #tpu.memory_space<vmem>>, vector<92x128xf32>
    %74 = arith.truncf %73 : vector<92x128xf32> to vector<92x128xbf16>
    %c20 = arith.constant 20 : index
    %c0_81 = arith.constant 0 : index
    %75 = vector.load %arg17[%c20, %c0_81] : memref<128x128xf32, #tpu.memory_space<vmem>>, vector<92x128xf32>
    %76 = arith.truncf %75 : vector<92x128xf32> to vector<92x128xbf16>
    %77 = tpu.concatenate %68, %70, %72, %74, %76 in 1 : vector<92x128xbf16>, vector<92x128xbf16>, vector<92x128xbf16>, vector<92x128xbf16>, vector<92x128xbf16> -> vector<92x640xbf16>
    %c1_82 = arith.constant 1 : index
    %c0_83 = arith.constant 0 : index
    %c0_84 = arith.constant 0 : index
    %78 = vector.load %arg6[%c1_82, %c0_83, %c0_84] : memref<3x640x128xbf16, #tpu.memory_space<vmem>>, vector<1x640x128xbf16>
    %79 = vector.shape_cast %78 : vector<1x640x128xbf16> to vector<640x128xbf16>
    %cst_85 = arith.constant dense<0.000000e+00> : vector<92x128xf32>
    %80 = tpu.matmul %77, %79, %cst_85 {dimension_numbers = #tpu.dot_dimension_numbers<[1], [0], [0], [1], [0, 0, 1, 1], [], []>} : vector<92x640xbf16>, vector<640x128xbf16>, vector<92x128xf32> -> vector<92x128xf32>
    %81 = arith.addf %66, %80 : vector<92x128xf32>
    %c32 = arith.constant 32 : index
    %c0_86 = arith.constant 0 : index
    %82 = vector.load %arg17[%c32, %c0_86] : memref<128x128xf32, #tpu.memory_space<vmem>>, vector<92x128xf32>
    %83 = arith.truncf %82 : vector<92x128xf32> to vector<92x128xbf16>
    %c33 = arith.constant 33 : index
    %c0_87 = arith.constant 0 : index
    %84 = vector.load %arg17[%c33, %c0_87] : memref<128x128xf32, #tpu.memory_space<vmem>>, vector<92x128xf32>
    %85 = arith.truncf %84 : vector<92x128xf32> to vector<92x128xbf16>
    %c34 = arith.constant 34 : index
    %c0_88 = arith.constant 0 : index
    %86 = vector.load %arg17[%c34, %c0_88] : memref<128x128xf32, #tpu.memory_space<vmem>>, vector<92x128xf32>
    %87 = arith.truncf %86 : vector<92x128xf32> to vector<92x128xbf16>
    %c35 = arith.constant 35 : index
    %c0_89 = arith.constant 0 : index
    %88 = vector.load %arg17[%c35, %c0_89] : memref<128x128xf32, #tpu.memory_space<vmem>>, vector<92x128xf32>
    %89 = arith.truncf %88 : vector<92x128xf32> to vector<92x128xbf16>
    %c36 = arith.constant 36 : index
    %c0_90 = arith.constant 0 : index
    %90 = vector.load %arg17[%c36, %c0_90] : memref<128x128xf32, #tpu.memory_space<vmem>>, vector<92x128xf32>
    %91 = arith.truncf %90 : vector<92x128xf32> to vector<92x128xbf16>
    %92 = tpu.concatenate %83, %85, %87, %89, %91 in 1 : vector<92x128xbf16>, vector<92x128xbf16>, vector<92x128xbf16>, vector<92x128xbf16>, vector<92x128xbf16> -> vector<92x640xbf16>
    %c2_91 = arith.constant 2 : index
    %c0_92 = arith.constant 0 : index
    %c0_93 = arith.constant 0 : index
    %93 = vector.load %arg6[%c2_91, %c0_92, %c0_93] : memref<3x640x128xbf16, #tpu.memory_space<vmem>>, vector<1x640x128xbf16>
    %94 = vector.shape_cast %93 : vector<1x640x128xbf16> to vector<640x128xbf16>
    %cst_94 = arith.constant dense<0.000000e+00> : vector<92x128xf32>
    %95 = tpu.matmul %92, %94, %cst_94 {dimension_numbers = #tpu.dot_dimension_numbers<[1], [0], [0], [1], [0, 0, 1, 1], [], []>} : vector<92x640xbf16>, vector<640x128xbf16>, vector<92x128xf32> -> vector<92x128xf32>
    %96 = arith.addf %81, %95 : vector<92x128xf32>
    %cst_95 = arith.constant 0.000000e+00 : f32
    %97 = vector.broadcast %cst_95 : f32 to vector<92x128xf32>
    %98 = arith.maximumf %96, %97 : vector<92x128xf32>
    %99 = vector.extract_strided_slice %98 {offsets = [0, 0], sizes = [12, 128], strides = [1, 1]} : vector<92x128xf32> to vector<12x128xf32>
    %c2_96 = arith.constant 2 : index
    %c0_97 = arith.constant 0 : index
    %100 = vector.load %arg18[%c2_96, %c0_97] : memref<96x128xf32, #tpu.memory_space<vmem>>, vector<12x128xf32>
    tpu.vector_store %arg18[%c2_96, %c0_97], %99 {strides = array<i32>} : memref<96x128xf32, #tpu.memory_space<vmem>>, vector<12x128xf32>,
    %101 = vector.extract_strided_slice %98 {offsets = [16, 0], sizes = [12, 128], strides = [1, 1]} : vector<92x128xf32> to vector<12x128xf32>
    %c18_98 = arith.constant 18 : index
    %c0_99 = arith.constant 0 : index
    %102 = vector.load %arg18[%c18_98, %c0_99] : memref<96x128xf32, #tpu.memory_space<vmem>>, vector<12x128xf32>
    tpu.vector_store %arg18[%c18_98, %c0_99], %101 {strides = array<i32>} : memref<96x128xf32, #tpu.memory_space<vmem>>, vector<12x128xf32>,
    %103 = vector.extract_strided_slice %98 {offsets = [32, 0], sizes = [12, 128], strides = [1, 1]} : vector<92x128xf32> to vector<12x128xf32>
    %c34_100 = arith.constant 34 : index
    %c0_101 = arith.constant 0 : index
    %104 = vector.load %arg18[%c34_100, %c0_101] : memref<96x128xf32, #tpu.memory_space<vmem>>, vector<12x128xf32>
    tpu.vector_store %arg18[%c34_100, %c0_101], %103 {strides = array<i32>} : memref<96x128xf32, #tpu.memory_space<vmem>>, vector<12x128xf32>,
    %105 = vector.extract_strided_slice %98 {offsets = [48, 0], sizes = [12, 128], strides = [1, 1]} : vector<92x128xf32> to vector<12x128xf32>
    %c50 = arith.constant 50 : index
    %c0_102 = arith.constant 0 : index
    %106 = vector.load %arg18[%c50, %c0_102] : memref<96x128xf32, #tpu.memory_space<vmem>>, vector<12x128xf32>
    tpu.vector_store %arg18[%c50, %c0_102], %105 {strides = array<i32>} : memref<96x128xf32, #tpu.memory_space<vmem>>, vector<12x128xf32>,
    %107 = vector.extract_strided_slice %98 {offsets = [64, 0], sizes = [12, 128], strides = [1, 1]} : vector<92x128xf32> to vector<12x128xf32>
    %c66 = arith.constant 66 : index
    %c0_103 = arith.constant 0 : index
    %108 = vector.load %arg18[%c66, %c0_103] : memref<96x128xf32, #tpu.memory_space<vmem>>, vector<12x128xf32>
    tpu.vector_store %arg18[%c66, %c0_103], %107 {strides = array<i32>} : memref<96x128xf32, #tpu.memory_space<vmem>>, vector<12x128xf32>,
    %109 = vector.extract_strided_slice %98 {offsets = [80, 0], sizes = [12, 128], strides = [1, 1]} : vector<92x128xf32> to vector<12x128xf32>
    %c82 = arith.constant 82 : index
    %c0_104 = arith.constant 0 : index
    %110 = vector.load %arg18[%c82, %c0_104] : memref<96x128xf32, #tpu.memory_space<vmem>>, vector<12x128xf32>
    tpu.vector_store %arg18[%c82, %c0_104], %109 {strides = array<i32>} : memref<96x128xf32, #tpu.memory_space<vmem>>, vector<12x128xf32>,
    %cst_105 = arith.constant 0.000000e+00 : f32
    %111 = vector.broadcast %cst_105 : f32 to vector<60x128xf32>
    %c0_106 = arith.constant 0 : index
    %c0_107 = arith.constant 0 : index
    %112 = vector.load %arg18[%c0_106, %c0_107] : memref<96x128xf32, #tpu.memory_space<vmem>>, vector<60x128xf32>
    %113 = arith.truncf %112 : vector<60x128xf32> to vector<60x128xbf16>
    %c1_108 = arith.constant 1 : index
    %c0_109 = arith.constant 0 : index
    %114 = vector.load %arg18[%c1_108, %c0_109] : memref<96x128xf32, #tpu.memory_space<vmem>>, vector<60x128xf32>
    %115 = arith.truncf %114 : vector<60x128xf32> to vector<60x128xbf16>
    %c2_110 = arith.constant 2 : index
    %c0_111 = arith.constant 0 : index
    %116 = vector.load %arg18[%c2_110, %c0_111] : memref<96x128xf32, #tpu.memory_space<vmem>>, vector<60x128xf32>
    %117 = arith.truncf %116 : vector<60x128xf32> to vector<60x128xbf16>
    %c3_112 = arith.constant 3 : index
    %c0_113 = arith.constant 0 : index
    %118 = vector.load %arg18[%c3_112, %c0_113] : memref<96x128xf32, #tpu.memory_space<vmem>>, vector<60x128xf32>
    %119 = arith.truncf %118 : vector<60x128xf32> to vector<60x128xbf16>
    %c4_114 = arith.constant 4 : index
    %c0_115 = arith.constant 0 : index
    %120 = vector.load %arg18[%c4_114, %c0_115] : memref<96x128xf32, #tpu.memory_space<vmem>>, vector<60x128xf32>
    %121 = arith.truncf %120 : vector<60x128xf32> to vector<60x128xbf16>
    %122 = tpu.concatenate %113, %115, %117, %119, %121 in 1 : vector<60x128xbf16>, vector<60x128xbf16>, vector<60x128xbf16>, vector<60x128xbf16>, vector<60x128xbf16> -> vector<60x640xbf16>
    %c0_116 = arith.constant 0 : index
    %c0_117 = arith.constant 0 : index
    %c0_118 = arith.constant 0 : index
    %123 = vector.load %arg7[%c0_116, %c0_117, %c0_118] : memref<3x640x128xbf16, #tpu.memory_space<vmem>>, vector<1x640x128xbf16>
    %124 = vector.shape_cast %123 : vector<1x640x128xbf16> to vector<640x128xbf16>
    %cst_119 = arith.constant dense<0.000000e+00> : vector<60x128xf32>
    %125 = tpu.matmul %122, %124, %cst_119 {dimension_numbers = #tpu.dot_dimension_numbers<[1], [0], [0], [1], [0, 0, 1, 1], [], []>} : vector<60x640xbf16>, vector<640x128xbf16>, vector<60x128xf32> -> vector<60x128xf32>
    %126 = arith.addf %111, %125 : vector<60x128xf32>
    %c16_120 = arith.constant 16 : index
    %c0_121 = arith.constant 0 : index
    %127 = vector.load %arg18[%c16_120, %c0_121] : memref<96x128xf32, #tpu.memory_space<vmem>>, vector<60x128xf32>
    %128 = arith.truncf %127 : vector<60x128xf32> to vector<60x128xbf16>
    %c17_122 = arith.constant 17 : index
    %c0_123 = arith.constant 0 : index
    %129 = vector.load %arg18[%c17_122, %c0_123] : memref<96x128xf32, #tpu.memory_space<vmem>>, vector<60x128xf32>
    %130 = arith.truncf %129 : vector<60x128xf32> to vector<60x128xbf16>
    %c18_124 = arith.constant 18 : index
    %c0_125 = arith.constant 0 : index
    %131 = vector.load %arg18[%c18_124, %c0_125] : memref<96x128xf32, #tpu.memory_space<vmem>>, vector<60x128xf32>
    %132 = arith.truncf %131 : vector<60x128xf32> to vector<60x128xbf16>
    %c19_126 = arith.constant 19 : index
    %c0_127 = arith.constant 0 : index
    %133 = vector.load %arg18[%c19_126, %c0_127] : memref<96x128xf32, #tpu.memory_space<vmem>>, vector<60x128xf32>
    %134 = arith.truncf %133 : vector<60x128xf32> to vector<60x128xbf16>
    %c20_128 = arith.constant 20 : index
    %c0_129 = arith.constant 0 : index
    %135 = vector.load %arg18[%c20_128, %c0_129] : memref<96x128xf32, #tpu.memory_space<vmem>>, vector<60x128xf32>
    %136 = arith.truncf %135 : vector<60x128xf32> to vector<60x128xbf16>
    %137 = tpu.concatenate %128, %130, %132, %134, %136 in 1 : vector<60x128xbf16>, vector<60x128xbf16>, vector<60x128xbf16>, vector<60x128xbf16>, vector<60x128xbf16> -> vector<60x640xbf16>
    %c1_130 = arith.constant 1 : index
    %c0_131 = arith.constant 0 : index
    %c0_132 = arith.constant 0 : index
    %138 = vector.load %arg7[%c1_130, %c0_131, %c0_132] : memref<3x640x128xbf16, #tpu.memory_space<vmem>>, vector<1x640x128xbf16>
    %139 = vector.shape_cast %138 : vector<1x640x128xbf16> to vector<640x128xbf16>
    %cst_133 = arith.constant dense<0.000000e+00> : vector<60x128xf32>
    %140 = tpu.matmul %137, %139, %cst_133 {dimension_numbers = #tpu.dot_dimension_numbers<[1], [0], [0], [1], [0, 0, 1, 1], [], []>} : vector<60x640xbf16>, vector<640x128xbf16>, vector<60x128xf32> -> vector<60x128xf32>
    %141 = arith.addf %126, %140 : vector<60x128xf32>
    %c32_134 = arith.constant 32 : index
    %c0_135 = arith.constant 0 : index
    %142 = vector.load %arg18[%c32_134, %c0_135] : memref<96x128xf32, #tpu.memory_space<vmem>>, vector<60x128xf32>
    %143 = arith.truncf %142 : vector<60x128xf32> to vector<60x128xbf16>
    %c33_136 = arith.constant 33 : index
    %c0_137 = arith.constant 0 : index
    %144 = vector.load %arg18[%c33_136, %c0_137] : memref<96x128xf32, #tpu.memory_space<vmem>>, vector<60x128xf32>
    %145 = arith.truncf %144 : vector<60x128xf32> to vector<60x128xbf16>
    %c34_138 = arith.constant 34 : index
    %c0_139 = arith.constant 0 : index
    %146 = vector.load %arg18[%c34_138, %c0_139] : memref<96x128xf32, #tpu.memory_space<vmem>>, vector<60x128xf32>
    %147 = arith.truncf %146 : vector<60x128xf32> to vector<60x128xbf16>
    %c35_140 = arith.constant 35 : index
    %c0_141 = arith.constant 0 : index
    %148 = vector.load %arg18[%c35_140, %c0_141] : memref<96x128xf32, #tpu.memory_space<vmem>>, vector<60x128xf32>
    %149 = arith.truncf %148 : vector<60x128xf32> to vector<60x128xbf16>
    %c36_142 = arith.constant 36 : index
    %c0_143 = arith.constant 0 : index
    %150 = vector.load %arg18[%c36_142, %c0_143] : memref<96x128xf32, #tpu.memory_space<vmem>>, vector<60x128xf32>
    %151 = arith.truncf %150 : vector<60x128xf32> to vector<60x128xbf16>
    %152 = tpu.concatenate %143, %145, %147, %149, %151 in 1 : vector<60x128xbf16>, vector<60x128xbf16>, vector<60x128xbf16>, vector<60x128xbf16>, vector<60x128xbf16> -> vector<60x640xbf16>
    %c2_144 = arith.constant 2 : index
    %c0_145 = arith.constant 0 : index
    %c0_146 = arith.constant 0 : index
    %153 = vector.load %arg7[%c2_144, %c0_145, %c0_146] : memref<3x640x128xbf16, #tpu.memory_space<vmem>>, vector<1x640x128xbf16>
    %154 = vector.shape_cast %153 : vector<1x640x128xbf16> to vector<640x128xbf16>
    %cst_147 = arith.constant dense<0.000000e+00> : vector<60x128xf32>
    %155 = tpu.matmul %152, %154, %cst_147 {dimension_numbers = #tpu.dot_dimension_numbers<[1], [0], [0], [1], [0, 0, 1, 1], [], []>} : vector<60x640xbf16>, vector<640x128xbf16>, vector<60x128xf32> -> vector<60x128xf32>
    %156 = arith.addf %141, %155 : vector<60x128xf32>
    %cst_148 = arith.constant 0.000000e+00 : f32
    %157 = vector.broadcast %cst_148 : f32 to vector<60x128xf32>
    %158 = arith.maximumf %156, %157 : vector<60x128xf32>
    %159 = vector.extract_strided_slice %158 {offsets = [0, 0], sizes = [12, 128], strides = [1, 1]} : vector<60x128xf32> to vector<12x128xf32>
    %c0_149 = arith.constant 0 : index
    %c0_150 = arith.constant 0 : index
    %160 = vector.load %arg19[%c0_149, %c0_150] : memref<48x128xf32, #tpu.memory_space<vmem>>, vector<12x128xf32>
    tpu.vector_store %arg19[%c0_149, %c0_150], %159 {strides = array<i32>} : memref<48x128xf32, #tpu.memory_space<vmem>>, vector<12x128xf32>,
    %161 = vector.extract_strided_slice %158 {offsets = [16, 0], sizes = [12, 128], strides = [1, 1]} : vector<60x128xf32> to vector<12x128xf32>
    %c12_151 = arith.constant 12 : index
    %c0_152 = arith.constant 0 : index
    %162 = vector.load %arg19[%c12_151, %c0_152] : memref<48x128xf32, #tpu.memory_space<vmem>>, vector<12x128xf32>
    tpu.vector_store %arg19[%c12_151, %c0_152], %161 {strides = array<i32>} : memref<48x128xf32, #tpu.memory_space<vmem>>, vector<12x128xf32>,
    %163 = vector.extract_strided_slice %158 {offsets = [32, 0], sizes = [12, 128], strides = [1, 1]} : vector<60x128xf32> to vector<12x128xf32>
    %c24 = arith.constant 24 : index
    %c0_153 = arith.constant 0 : index
    %164 = vector.load %arg19[%c24, %c0_153] : memref<48x128xf32, #tpu.memory_space<vmem>>, vector<12x128xf32>
    tpu.vector_store %arg19[%c24, %c0_153], %163 {strides = array<i32>} : memref<48x128xf32, #tpu.memory_space<vmem>>, vector<12x128xf32>,
    %165 = vector.extract_strided_slice %158 {offsets = [48, 0], sizes = [12, 128], strides = [1, 1]} : vector<60x128xf32> to vector<12x128xf32>
    %c36_154 = arith.constant 36 : index
    %c0_155 = arith.constant 0 : index
    %166 = vector.load %arg19[%c36_154, %c0_155] : memref<48x128xf32, #tpu.memory_space<vmem>>, vector<12x128xf32>
    tpu.vector_store %arg19[%c36_154, %c0_155], %165 {strides = array<i32>} : memref<48x128xf32, #tpu.memory_space<vmem>>, vector<12x128xf32>,
    %cst_156 = arith.constant 0.000000e+00 : f32
    %167 = vector.broadcast %cst_156 : f32 to vector<20x128xf32>
    %c0_157 = arith.constant 0 : index
    %c0_158 = arith.constant 0 : index
    %168 = vector.load %arg19[%c0_157, %c0_158] : memref<48x128xf32, #tpu.memory_space<vmem>>, vector<20x128xf32>
    %169 = arith.truncf %168 : vector<20x128xf32> to vector<20x128xbf16>
    %c1_159 = arith.constant 1 : index
    %c0_160 = arith.constant 0 : index
    %170 = vector.load %arg19[%c1_159, %c0_160] : memref<48x128xf32, #tpu.memory_space<vmem>>, vector<20x128xf32>
    %171 = arith.truncf %170 : vector<20x128xf32> to vector<20x128xbf16>
    %c2_161 = arith.constant 2 : index
    %c0_162 = arith.constant 0 : index
    %172 = vector.load %arg19[%c2_161, %c0_162] : memref<48x128xf32, #tpu.memory_space<vmem>>, vector<20x128xf32>
    %173 = arith.truncf %172 : vector<20x128xf32> to vector<20x128xbf16>
    %c3_163 = arith.constant 3 : index
    %c0_164 = arith.constant 0 : index
    %174 = vector.load %arg19[%c3_163, %c0_164] : memref<48x128xf32, #tpu.memory_space<vmem>>, vector<20x128xf32>
    %175 = arith.truncf %174 : vector<20x128xf32> to vector<20x128xbf16>
    %c4_165 = arith.constant 4 : index
    %c0_166 = arith.constant 0 : index
    %176 = vector.load %arg19[%c4_165, %c0_166] : memref<48x128xf32, #tpu.memory_space<vmem>>, vector<20x128xf32>
    %177 = arith.truncf %176 : vector<20x128xf32> to vector<20x128xbf16>
    %178 = tpu.concatenate %169, %171, %173, %175, %177 in 1 : vector<20x128xbf16>, vector<20x128xbf16>, vector<20x128xbf16>, vector<20x128xbf16>, vector<20x128xbf16> -> vector<20x640xbf16>
    %c0_167 = arith.constant 0 : index
    %c0_168 = arith.constant 0 : index
    %c0_169 = arith.constant 0 : index
    %179 = vector.load %arg8[%c0_167, %c0_168, %c0_169] : memref<3x640x128xbf16, #tpu.memory_space<vmem>>, vector<1x640x128xbf16>
    %180 = vector.shape_cast %179 : vector<1x640x128xbf16> to vector<640x128xbf16>
    %cst_170 = arith.constant dense<0.000000e+00> : vector<20x128xf32>
    %181 = tpu.matmul %178, %180, %cst_170 {dimension_numbers = #tpu.dot_dimension_numbers<[1], [0], [0], [1], [0, 0, 1, 1], [], []>} : vector<20x640xbf16>, vector<640x128xbf16>, vector<20x128xf32> -> vector<20x128xf32>
    %182 = arith.addf %167, %181 : vector<20x128xf32>
    %c12_171 = arith.constant 12 : index
    %c0_172 = arith.constant 0 : index
    %183 = vector.load %arg19[%c12_171, %c0_172] : memref<48x128xf32, #tpu.memory_space<vmem>>, vector<20x128xf32>
    %184 = arith.truncf %183 : vector<20x128xf32> to vector<20x128xbf16>
    %c13 = arith.constant 13 : index
    %c0_173 = arith.constant 0 : index
    %185 = vector.load %arg19[%c13, %c0_173] : memref<48x128xf32, #tpu.memory_space<vmem>>, vector<20x128xf32>
    %186 = arith.truncf %185 : vector<20x128xf32> to vector<20x128xbf16>
    %c14_174 = arith.constant 14 : index
    %c0_175 = arith.constant 0 : index
    %187 = vector.load %arg19[%c14_174, %c0_175] : memref<48x128xf32, #tpu.memory_space<vmem>>, vector<20x128xf32>
    %188 = arith.truncf %187 : vector<20x128xf32> to vector<20x128xbf16>
    %c15 = arith.constant 15 : index
    %c0_176 = arith.constant 0 : index
    %189 = vector.load %arg19[%c15, %c0_176] : memref<48x128xf32, #tpu.memory_space<vmem>>, vector<20x128xf32>
    %190 = arith.truncf %189 : vector<20x128xf32> to vector<20x128xbf16>
    %c16_177 = arith.constant 16 : index
    %c0_178 = arith.constant 0 : index
    %191 = vector.load %arg19[%c16_177, %c0_178] : memref<48x128xf32, #tpu.memory_space<vmem>>, vector<20x128xf32>
    %192 = arith.truncf %191 : vector<20x128xf32> to vector<20x128xbf16>
    %193 = tpu.concatenate %184, %186, %188, %190, %192 in 1 : vector<20x128xbf16>, vector<20x128xbf16>, vector<20x128xbf16>, vector<20x128xbf16>, vector<20x128xbf16> -> vector<20x640xbf16>
    %c1_179 = arith.constant 1 : index
    %c0_180 = arith.constant 0 : index
    %c0_181 = arith.constant 0 : index
    %194 = vector.load %arg8[%c1_179, %c0_180, %c0_181] : memref<3x640x128xbf16, #tpu.memory_space<vmem>>, vector<1x640x128xbf16>
    %195 = vector.shape_cast %194 : vector<1x640x128xbf16> to vector<640x128xbf16>
    %cst_182 = arith.constant dense<0.000000e+00> : vector<20x128xf32>
    %196 = tpu.matmul %193, %195, %cst_182 {dimension_numbers = #tpu.dot_dimension_numbers<[1], [0], [0], [1], [0, 0, 1, 1], [], []>} : vector<20x640xbf16>, vector<640x128xbf16>, vector<20x128xf32> -> vector<20x128xf32>
    %197 = arith.addf %182, %196 : vector<20x128xf32>
    %c24_183 = arith.constant 24 : index
    %c0_184 = arith.constant 0 : index
    %198 = vector.load %arg19[%c24_183, %c0_184] : memref<48x128xf32, #tpu.memory_space<vmem>>, vector<20x128xf32>
    %199 = arith.truncf %198 : vector<20x128xf32> to vector<20x128xbf16>
    %c25 = arith.constant 25 : index
    %c0_185 = arith.constant 0 : index
    %200 = vector.load %arg19[%c25, %c0_185] : memref<48x128xf32, #tpu.memory_space<vmem>>, vector<20x128xf32>
    %201 = arith.truncf %200 : vector<20x128xf32> to vector<20x128xbf16>
    %c26 = arith.constant 26 : index
    %c0_186 = arith.constant 0 : index
    %202 = vector.load %arg19[%c26, %c0_186] : memref<48x128xf32, #tpu.memory_space<vmem>>, vector<20x128xf32>
    %203 = arith.truncf %202 : vector<20x128xf32> to vector<20x128xbf16>
    %c27 = arith.constant 27 : index
    %c0_187 = arith.constant 0 : index
    %204 = vector.load %arg19[%c27, %c0_187] : memref<48x128xf32, #tpu.memory_space<vmem>>, vector<20x128xf32>
    %205 = arith.truncf %204 : vector<20x128xf32> to vector<20x128xbf16>
    %c28 = arith.constant 28 : index
    %c0_188 = arith.constant 0 : index
    %206 = vector.load %arg19[%c28, %c0_188] : memref<48x128xf32, #tpu.memory_space<vmem>>, vector<20x128xf32>
    %207 = arith.truncf %206 : vector<20x128xf32> to vector<20x128xbf16>
    %208 = tpu.concatenate %199, %201, %203, %205, %207 in 1 : vector<20x128xbf16>, vector<20x128xbf16>, vector<20x128xbf16>, vector<20x128xbf16>, vector<20x128xbf16> -> vector<20x640xbf16>
    %c2_189 = arith.constant 2 : index
    %c0_190 = arith.constant 0 : index
    %c0_191 = arith.constant 0 : index
    %209 = vector.load %arg8[%c2_189, %c0_190, %c0_191] : memref<3x640x128xbf16, #tpu.memory_space<vmem>>, vector<1x640x128xbf16>
    %210 = vector.shape_cast %209 : vector<1x640x128xbf16> to vector<640x128xbf16>
    %cst_192 = arith.constant dense<0.000000e+00> : vector<20x128xf32>
    %211 = tpu.matmul %208, %210, %cst_192 {dimension_numbers = #tpu.dot_dimension_numbers<[1], [0], [0], [1], [0, 0, 1, 1], [], []>} : vector<20x640xbf16>, vector<640x128xbf16>, vector<20x128xf32> -> vector<20x128xf32>
    %212 = arith.addf %197, %211 : vector<20x128xf32>
    %cst_193 = arith.constant 0.000000e+00 : f32
    %213 = vector.broadcast %cst_193 : f32 to vector<20x128xf32>
    %214 = arith.maximumf %212, %213 : vector<20x128xf32>
    %215 = vector.extract_strided_slice %214 {offsets = [0, 0], sizes = [8, 128], strides = [1, 1]} : vector<20x128xf32> to vector<8x128xf32>
    %c2_194 = arith.constant 2 : index
    %c0_195 = arith.constant 0 : index
    %216 = vector.load %arg20[%c2_194, %c0_195] : memref<24x128xf32, #tpu.memory_space<vmem>>, vector<8x128xf32>
    tpu.vector_store %arg20[%c2_194, %c0_195], %215 {strides = array<i32>} : memref<24x128xf32, #tpu.memory_space<vmem>>, vector<8x128xf32>,
    %217 = vector.extract_strided_slice %214 {offsets = [12, 0], sizes = [8, 128], strides = [1, 1]} : vector<20x128xf32> to vector<8x128xf32>
    %c14_196 = arith.constant 14 : index
    %c0_197 = arith.constant 0 : index
    %218 = vector.load %arg20[%c14_196, %c0_197] : memref<24x128xf32, #tpu.memory_space<vmem>>, vector<8x128xf32>
    tpu.vector_store %arg20[%c14_196, %c0_197], %217 {strides = array<i32>} : memref<24x128xf32, #tpu.memory_space<vmem>>, vector<8x128xf32>,
    %cst_198 = arith.constant 0.000000e+00 : f32
    %219 = vector.broadcast %cst_198 : f32 to vector<8x128xf32>
    %c0_199 = arith.constant 0 : index
    %c0_200 = arith.constant 0 : index
    %220 = vector.load %arg20[%c0_199, %c0_200] : memref<24x128xf32, #tpu.memory_space<vmem>>, vector<8x128xf32>
    %221 = arith.truncf %220 : vector<8x128xf32> to vector<8x128xbf16>
    %c1_201 = arith.constant 1 : index
    %c0_202 = arith.constant 0 : index
    %222 = vector.load %arg20[%c1_201, %c0_202] : memref<24x128xf32, #tpu.memory_space<vmem>>, vector<8x128xf32>
    %223 = arith.truncf %222 : vector<8x128xf32> to vector<8x128xbf16>
    %c2_203 = arith.constant 2 : index
    %c0_204 = arith.constant 0 : index
    %224 = vector.load %arg20[%c2_203, %c0_204] : memref<24x128xf32, #tpu.memory_space<vmem>>, vector<8x128xf32>
    %225 = arith.truncf %224 : vector<8x128xf32> to vector<8x128xbf16>
    %c3_205 = arith.constant 3 : index
    %c0_206 = arith.constant 0 : index
    %226 = vector.load %arg20[%c3_205, %c0_206] : memref<24x128xf32, #tpu.memory_space<vmem>>, vector<8x128xf32>
    %227 = arith.truncf %226 : vector<8x128xf32> to vector<8x128xbf16>
    %c4_207 = arith.constant 4 : index
    %c0_208 = arith.constant 0 : index
    %228 = vector.load %arg20[%c4_207, %c0_208] : memref<24x128xf32, #tpu.memory_space<vmem>>, vector<8x128xf32>
    %229 = arith.truncf %228 : vector<8x128xf32> to vector<8x128xbf16>
    %230 = tpu.concatenate %221, %223, %225, %227, %229 in 1 : vector<8x128xbf16>, vector<8x128xbf16>, vector<8x128xbf16>, vector<8x128xbf16>, vector<8x128xbf16> -> vector<8x640xbf16>
    %c0_209 = arith.constant 0 : index
    %c0_210 = arith.constant 0 : index
    %c0_211 = arith.constant 0 : index
    %231 = vector.load %arg9[%c0_209, %c0_210, %c0_211] : memref<2x640x128xbf16, #tpu.memory_space<vmem>>, vector<1x640x128xbf16>
    %232 = vector.shape_cast %231 : vector<1x640x128xbf16> to vector<640x128xbf16>
    %cst_212 = arith.constant dense<0.000000e+00> : vector<8x128xf32>
    %233 = tpu.matmul %230, %232, %cst_212 {dimension_numbers = #tpu.dot_dimension_numbers<[1], [0], [0], [1], [0, 0, 1, 1], [], []>} : vector<8x640xbf16>, vector<640x128xbf16>, vector<8x128xf32> -> vector<8x128xf32>
    %234 = arith.addf %219, %233 : vector<8x128xf32>
    %c12_213 = arith.constant 12 : index
    %c0_214 = arith.constant 0 : index
    %235 = vector.load %arg20[%c12_213, %c0_214] : memref<24x128xf32, #tpu.memory_space<vmem>>, vector<8x128xf32>
    %236 = arith.truncf %235 : vector<8x128xf32> to vector<8x128xbf16>
    %c13_215 = arith.constant 13 : index
    %c0_216 = arith.constant 0 : index
    %237 = vector.load %arg20[%c13_215, %c0_216] : memref<24x128xf32, #tpu.memory_space<vmem>>, vector<8x128xf32>
    %238 = arith.truncf %237 : vector<8x128xf32> to vector<8x128xbf16>
    %c14_217 = arith.constant 14 : index
    %c0_218 = arith.constant 0 : index
    %239 = vector.load %arg20[%c14_217, %c0_218] : memref<24x128xf32, #tpu.memory_space<vmem>>, vector<8x128xf32>
    %240 = arith.truncf %239 : vector<8x128xf32> to vector<8x128xbf16>
    %c15_219 = arith.constant 15 : index
    %c0_220 = arith.constant 0 : index
    %241 = vector.load %arg20[%c15_219, %c0_220] : memref<24x128xf32, #tpu.memory_space<vmem>>, vector<8x128xf32>
    %242 = arith.truncf %241 : vector<8x128xf32> to vector<8x128xbf16>
    %c16_221 = arith.constant 16 : index
    %c0_222 = arith.constant 0 : index
    %243 = vector.load %arg20[%c16_221, %c0_222] : memref<24x128xf32, #tpu.memory_space<vmem>>, vector<8x128xf32>
    %244 = arith.truncf %243 : vector<8x128xf32> to vector<8x128xbf16>
    %245 = tpu.concatenate %236, %238, %240, %242, %244 in 1 : vector<8x128xbf16>, vector<8x128xbf16>, vector<8x128xbf16>, vector<8x128xbf16>, vector<8x128xbf16> -> vector<8x640xbf16>
    %c1_223 = arith.constant 1 : index
    %c0_224 = arith.constant 0 : index
    %c0_225 = arith.constant 0 : index
    %246 = vector.load %arg9[%c1_223, %c0_224, %c0_225] : memref<2x640x128xbf16, #tpu.memory_space<vmem>>, vector<1x640x128xbf16>
    %247 = vector.shape_cast %246 : vector<1x640x128xbf16> to vector<640x128xbf16>
    %cst_226 = arith.constant dense<0.000000e+00> : vector<8x128xf32>
    %248 = tpu.matmul %245, %247, %cst_226 {dimension_numbers = #tpu.dot_dimension_numbers<[1], [0], [0], [1], [0, 0, 1, 1], [], []>} : vector<8x640xbf16>, vector<640x128xbf16>, vector<8x128xf32> -> vector<8x128xf32>
    %249 = arith.addf %234, %248 : vector<8x128xf32>
    %cst_227 = arith.constant 0.000000e+00 : f32
    %250 = vector.broadcast %cst_227 : f32 to vector<8x128xf32>
    %251 = arith.maximumf %249, %250 : vector<8x128xf32>
    %c4_228 = arith.constant 4 : index
    %c0_229 = arith.constant 0 : index
    %252 = vector.load %arg21[%c4_228, %c0_229] : memref<16x128xf32, #tpu.memory_space<vmem>>, vector<8x128xf32>
    tpu.vector_store %arg21[%c4_228, %c0_229], %251 {strides = array<i32>} : memref<16x128xf32, #tpu.memory_space<vmem>>, vector<8x128xf32>,
    %cst_230 = arith.constant 0.000000e+00 : f32
    %253 = vector.broadcast %cst_230 : f32 to vector<12x128xf32>
    %c0_231 = arith.constant 0 : index
    %c0_232 = arith.constant 0 : index
    %254 = vector.load %arg21[%c0_231, %c0_232] : memref<16x128xf32, #tpu.memory_space<vmem>>, vector<12x128xf32>
    %255 = arith.truncf %254 : vector<12x128xf32> to vector<12x128xbf16>
    %c1_233 = arith.constant 1 : index
    %c0_234 = arith.constant 0 : index
    %256 = vector.load %arg21[%c1_233, %c0_234] : memref<16x128xf32, #tpu.memory_space<vmem>>, vector<12x128xf32>
    %257 = arith.truncf %256 : vector<12x128xf32> to vector<12x128xbf16>
    %c2_235 = arith.constant 2 : index
    %c0_236 = arith.constant 0 : index
    %258 = vector.load %arg21[%c2_235, %c0_236] : memref<16x128xf32, #tpu.memory_space<vmem>>, vector<12x128xf32>
    %259 = arith.truncf %258 : vector<12x128xf32> to vector<12x128xbf16>
    %c3_237 = arith.constant 3 : index
    %c0_238 = arith.constant 0 : index
    %260 = vector.load %arg21[%c3_237, %c0_238] : memref<16x128xf32, #tpu.memory_space<vmem>>, vector<12x128xf32>
    %261 = arith.truncf %260 : vector<12x128xf32> to vector<12x128xbf16>
    %c4_239 = arith.constant 4 : index
    %c0_240 = arith.constant 0 : index
    %262 = vector.load %arg21[%c4_239, %c0_240] : memref<16x128xf32, #tpu.memory_space<vmem>>, vector<12x128xf32>
    %263 = arith.truncf %262 : vector<12x128xf32> to vector<12x128xbf16>
    %264 = tpu.concatenate %255, %257, %259, %261, %263 in 1 : vector<12x128xbf16>, vector<12x128xbf16>, vector<12x128xbf16>, vector<12x128xbf16>, vector<12x128xbf16> -> vector<12x640xbf16>
    %c0_241 = arith.constant 0 : index
    %c0_242 = arith.constant 0 : index
    %c0_243 = arith.constant 0 : index
    %265 = vector.load %arg10[%c0_241, %c0_242, %c0_243] : memref<1x640x128xbf16, #tpu.memory_space<vmem>>, vector<1x640x128xbf16>
    %266 = vector.shape_cast %265 : vector<1x640x128xbf16> to vector<640x128xbf16>
    %cst_244 = arith.constant dense<0.000000e+00> : vector<12x128xf32>
    %267 = tpu.matmul %264, %266, %cst_244 {dimension_numbers = #tpu.dot_dimension_numbers<[1], [0], [0], [1], [0, 0, 1, 1], [], []>} : vector<12x640xbf16>, vector<640x128xbf16>, vector<12x128xf32> -> vector<12x128xf32>
    %268 = arith.addf %253, %267 : vector<12x128xf32>
    %cst_245 = arith.constant 0.000000e+00 : f32
    %269 = vector.broadcast %cst_245 : f32 to vector<12x128xf32>
    %270 = arith.maximumf %268, %269 : vector<12x128xf32>
    %c2_246 = arith.constant 2 : index
    %c0_247 = arith.constant 0 : index
    %271 = vector.load %arg22[%c2_246, %c0_247] : memref<16x128xf32, #tpu.memory_space<vmem>>, vector<12x128xf32>
    tpu.vector_store %arg22[%c2_246, %c0_247], %270 {strides = array<i32>} : memref<16x128xf32, #tpu.memory_space<vmem>>, vector<12x128xf32>,
    %cst_248 = arith.constant 0.000000e+00 : f32
    %272 = vector.broadcast %cst_248 : f32 to vector<12x128xf32>
    %c0_249 = arith.constant 0 : index
    %c0_250 = arith.constant 0 : index
    %273 = vector.load %arg22[%c0_249, %c0_250] : memref<16x128xf32, #tpu.memory_space<vmem>>, vector<12x128xf32>
    %274 = arith.truncf %273 : vector<12x128xf32> to vector<12x128xbf16>
    %c1_251 = arith.constant 1 : index
    %c0_252 = arith.constant 0 : index
    %275 = vector.load %arg22[%c1_251, %c0_252] : memref<16x128xf32, #tpu.memory_space<vmem>>, vector<12x128xf32>
    %276 = arith.truncf %275 : vector<12x128xf32> to vector<12x128xbf16>
    %c2_253 = arith.constant 2 : index
    %c0_254 = arith.constant 0 : index
    %277 = vector.load %arg22[%c2_253, %c0_254] : memref<16x128xf32, #tpu.memory_space<vmem>>, vector<12x128xf32>
    %278 = arith.truncf %277 : vector<12x128xf32> to vector<12x128xbf16>
    %c3_255 = arith.constant 3 : index
    %c0_256 = arith.constant 0 : index
    %279 = vector.load %arg22[%c3_255, %c0_256] : memref<16x128xf32, #tpu.memory_space<vmem>>, vector<12x128xf32>
    %280 = arith.truncf %279 : vector<12x128xf32> to vector<12x128xbf16>
    %c4_257 = arith.constant 4 : index
    %c0_258 = arith.constant 0 : index
    %281 = vector.load %arg22[%c4_257, %c0_258] : memref<16x128xf32, #tpu.memory_space<vmem>>, vector<12x128xf32>
    %282 = arith.truncf %281 : vector<12x128xf32> to vector<12x128xbf16>
    %283 = tpu.concatenate %274, %276, %278, %280, %282 in 1 : vector<12x128xbf16>, vector<12x128xbf16>, vector<12x128xbf16>, vector<12x128xbf16>, vector<12x128xbf16> -> vector<12x640xbf16>
    %c0_259 = arith.constant 0 : index
    %c0_260 = arith.constant 0 : index
    %c0_261 = arith.constant 0 : index
    %284 = vector.load %arg11[%c0_259, %c0_260, %c0_261] : memref<1x640x128xbf16, #tpu.memory_space<vmem>>, vector<1x640x128xbf16>
    %285 = vector.shape_cast %284 : vector<1x640x128xbf16> to vector<640x128xbf16>
    %cst_262 = arith.constant dense<0.000000e+00> : vector<12x128xf32>
    %286 = tpu.matmul %283, %285, %cst_262 {dimension_numbers = #tpu.dot_dimension_numbers<[1], [0], [0], [1], [0, 0, 1, 1], [], []>} : vector<12x640xbf16>, vector<640x128xbf16>, vector<12x128xf32> -> vector<12x128xf32>
    %287 = arith.addf %272, %286 : vector<12x128xf32>
    %cst_263 = arith.constant 0.000000e+00 : f32
    %288 = vector.broadcast %cst_263 : f32 to vector<12x128xf32>
    %289 = arith.maximumf %287, %288 : vector<12x128xf32>
    %c4_264 = arith.constant 4 : index
    %c0_265 = arith.constant 0 : index
    %290 = vector.load %arg23[%c4_264, %c0_265] : memref<20x128xf32, #tpu.memory_space<vmem>>, vector<12x128xf32>
    tpu.vector_store %arg23[%c4_264, %c0_265], %289 {strides = array<i32>} : memref<20x128xf32, #tpu.memory_space<vmem>>, vector<12x128xf32>,
    %cst_266 = arith.constant 0.000000e+00 : f32
    %291 = vector.broadcast %cst_266 : f32 to vector<16x128xf32>
    %c0_267 = arith.constant 0 : index
    %c0_268 = arith.constant 0 : index
    %292 = vector.load %arg23[%c0_267, %c0_268] : memref<20x128xf32, #tpu.memory_space<vmem>>, vector<16x128xf32>
    %293 = arith.truncf %292 : vector<16x128xf32> to vector<16x128xbf16>
    %c1_269 = arith.constant 1 : index
    %c0_270 = arith.constant 0 : index
    %294 = vector.load %arg23[%c1_269, %c0_270] : memref<20x128xf32, #tpu.memory_space<vmem>>, vector<16x128xf32>
    %295 = arith.truncf %294 : vector<16x128xf32> to vector<16x128xbf16>
    %c2_271 = arith.constant 2 : index
    %c0_272 = arith.constant 0 : index
    %296 = vector.load %arg23[%c2_271, %c0_272] : memref<20x128xf32, #tpu.memory_space<vmem>>, vector<16x128xf32>
    %297 = arith.truncf %296 : vector<16x128xf32> to vector<16x128xbf16>
    %c3_273 = arith.constant 3 : index
    %c0_274 = arith.constant 0 : index
    %298 = vector.load %arg23[%c3_273, %c0_274] : memref<20x128xf32, #tpu.memory_space<vmem>>, vector<16x128xf32>
    %299 = arith.truncf %298 : vector<16x128xf32> to vector<16x128xbf16>
    %c4_275 = arith.constant 4 : index
    %c0_276 = arith.constant 0 : index
    %300 = vector.load %arg23[%c4_275, %c0_276] : memref<20x128xf32, #tpu.memory_space<vmem>>, vector<16x128xf32>
    %301 = arith.truncf %300 : vector<16x128xf32> to vector<16x128xbf16>
    %302 = tpu.concatenate %293, %295, %297, %299, %301 in 1 : vector<16x128xbf16>, vector<16x128xbf16>, vector<16x128xbf16>, vector<16x128xbf16>, vector<16x128xbf16> -> vector<16x640xbf16>
    %c0_277 = arith.constant 0 : index
    %c0_278 = arith.constant 0 : index
    %c0_279 = arith.constant 0 : index
    %303 = vector.load %arg12[%c0_277, %c0_278, %c0_279] : memref<1x640x128xbf16, #tpu.memory_space<vmem>>, vector<1x640x128xbf16>
    %304 = vector.shape_cast %303 : vector<1x640x128xbf16> to vector<640x128xbf16>
    %cst_280 = arith.constant dense<0.000000e+00> : vector<16x128xf32>
    %305 = tpu.matmul %302, %304, %cst_280 {dimension_numbers = #tpu.dot_dimension_numbers<[1], [0], [0], [1], [0, 0, 1, 1], [], []>} : vector<16x640xbf16>, vector<640x128xbf16>, vector<16x128xf32> -> vector<16x128xf32>
    %306 = arith.addf %291, %305 : vector<16x128xf32>
    %cst_281 = arith.constant 0.000000e+00 : f32
    %307 = vector.broadcast %cst_281 : f32 to vector<16x128xf32>
    %308 = arith.maximumf %306, %307 : vector<16x128xf32>
    %c2_282 = arith.constant 2 : index
    %c0_283 = arith.constant 0 : index
    %309 = vector.load %arg24[%c2_282, %c0_283] : memref<20x128xf32, #tpu.memory_space<vmem>>, vector<16x128xf32>
    tpu.vector_store %arg24[%c2_282, %c0_283], %308 {strides = array<i32>} : memref<20x128xf32, #tpu.memory_space<vmem>>, vector<16x128xf32>,
    %cst_284 = arith.constant 0.000000e+00 : f32
    %310 = vector.broadcast %cst_284 : f32 to vector<16x128xf32>
    %c0_285 = arith.constant 0 : index
    %c0_286 = arith.constant 0 : index
    %311 = vector.load %arg24[%c0_285, %c0_286] : memref<20x128xf32, #tpu.memory_space<vmem>>, vector<16x128xf32>
    %312 = arith.truncf %311 : vector<16x128xf32> to vector<16x128xbf16>
    %c1_287 = arith.constant 1 : index
    %c0_288 = arith.constant 0 : index
    %313 = vector.load %arg24[%c1_287, %c0_288] : memref<20x128xf32, #tpu.memory_space<vmem>>, vector<16x128xf32>
    %314 = arith.truncf %313 : vector<16x128xf32> to vector<16x128xbf16>
    %c2_289 = arith.constant 2 : index
    %c0_290 = arith.constant 0 : index
    %315 = vector.load %arg24[%c2_289, %c0_290] : memref<20x128xf32, #tpu.memory_space<vmem>>, vector<16x128xf32>
    %316 = arith.truncf %315 : vector<16x128xf32> to vector<16x128xbf16>
    %c3_291 = arith.constant 3 : index
    %c0_292 = arith.constant 0 : index
    %317 = vector.load %arg24[%c3_291, %c0_292] : memref<20x128xf32, #tpu.memory_space<vmem>>, vector<16x128xf32>
    %318 = arith.truncf %317 : vector<16x128xf32> to vector<16x128xbf16>
    %c4_293 = arith.constant 4 : index
    %c0_294 = arith.constant 0 : index
    %319 = vector.load %arg24[%c4_293, %c0_294] : memref<20x128xf32, #tpu.memory_space<vmem>>, vector<16x128xf32>
    %320 = arith.truncf %319 : vector<16x128xf32> to vector<16x128xbf16>
    %321 = tpu.concatenate %312, %314, %316, %318, %320 in 1 : vector<16x128xbf16>, vector<16x128xbf16>, vector<16x128xbf16>, vector<16x128xbf16>, vector<16x128xbf16> -> vector<16x640xbf16>
    %c0_295 = arith.constant 0 : index
    %c0_296 = arith.constant 0 : index
    %c0_297 = arith.constant 0 : index
    %322 = vector.load %arg13[%c0_295, %c0_296, %c0_297] : memref<1x640x128xbf16, #tpu.memory_space<vmem>>, vector<1x640x128xbf16>
    %323 = vector.shape_cast %322 : vector<1x640x128xbf16> to vector<640x128xbf16>
    %cst_298 = arith.constant dense<0.000000e+00> : vector<16x128xf32>
    %324 = tpu.matmul %321, %323, %cst_298 {dimension_numbers = #tpu.dot_dimension_numbers<[1], [0], [0], [1], [0, 0, 1, 1], [], []>} : vector<16x640xbf16>, vector<640x128xbf16>, vector<16x128xf32> -> vector<16x128xf32>
    %325 = arith.addf %310, %324 : vector<16x128xf32>
    %cst_299 = arith.constant 0.000000e+00 : f32
    %326 = vector.broadcast %cst_299 : f32 to vector<16x128xf32>
    %327 = arith.maximumf %325, %326 : vector<16x128xf32>
    %c1_300 = arith.constant 1 : index
    %c0_301 = arith.constant 0 : index
    %328 = vector.load %arg25[%c1_300, %c0_301] : memref<18x128xf32, #tpu.memory_space<vmem>>, vector<16x128xf32>
    tpu.vector_store %arg25[%c1_300, %c0_301], %327 {strides = array<i32>} : memref<18x128xf32, #tpu.memory_space<vmem>>, vector<16x128xf32>,
    %cst_302 = arith.constant 0.000000e+00 : f32
    %329 = vector.broadcast %cst_302 : f32 to vector<16x128xf32>
    %c0_303 = arith.constant 0 : index
    %c0_304 = arith.constant 0 : index
    %330 = vector.load %arg25[%c0_303, %c0_304] : memref<18x128xf32, #tpu.memory_space<vmem>>, vector<16x128xf32>
    %331 = arith.truncf %330 : vector<16x128xf32> to vector<16x128xbf16>
    %c1_305 = arith.constant 1 : index
    %c0_306 = arith.constant 0 : index
    %332 = vector.load %arg25[%c1_305, %c0_306] : memref<18x128xf32, #tpu.memory_space<vmem>>, vector<16x128xf32>
    %333 = arith.truncf %332 : vector<16x128xf32> to vector<16x128xbf16>
    %c2_307 = arith.constant 2 : index
    %c0_308 = arith.constant 0 : index
    %334 = vector.load %arg25[%c2_307, %c0_308] : memref<18x128xf32, #tpu.memory_space<vmem>>, vector<16x128xf32>
    %335 = arith.truncf %334 : vector<16x128xf32> to vector<16x128xbf16>
    %336 = tpu.concatenate %331, %333, %335 in 1 : vector<16x128xbf16>, vector<16x128xbf16>, vector<16x128xbf16> -> vector<16x384xbf16>
    %c0_309 = arith.constant 0 : index
    %c0_310 = arith.constant 0 : index
    %c0_311 = arith.constant 0 : index
    %337 = vector.load %arg14[%c0_309, %c0_310, %c0_311] : memref<1x384x128xbf16, #tpu.memory_space<vmem>>, vector<1x384x128xbf16>
    %338 = vector.shape_cast %337 : vector<1x384x128xbf16> to vector<384x128xbf16>
    %cst_312 = arith.constant dense<0.000000e+00> : vector<16x128xf32>
    %339 = tpu.matmul %336, %338, %cst_312 {dimension_numbers = #tpu.dot_dimension_numbers<[1], [0], [0], [1], [0, 0, 1, 1], [], []>} : vector<16x384xbf16>, vector<384x128xbf16>, vector<16x128xf32> -> vector<16x128xf32>
    %340 = arith.addf %329, %339 : vector<16x128xf32>
    %c1_313 = arith.constant 1 : index
    %c0_314 = arith.constant 0 : index
    %341 = vector.load %arg26[%c1_313, %c0_314] : memref<18x128xf32, #tpu.memory_space<vmem>>, vector<16x128xf32>
    tpu.vector_store %arg26[%c1_313, %c0_314], %340 {strides = array<i32>} : memref<18x128xf32, #tpu.memory_space<vmem>>, vector<16x128xf32>,
    %cst_315 = arith.constant 0.000000e+00 : f32
    %342 = vector.broadcast %cst_315 : f32 to vector<16x128xf32>
    %c0_316 = arith.constant 0 : index
    %c0_317 = arith.constant 0 : index
    %343 = vector.load %arg26[%c0_316, %c0_317] : memref<18x128xf32, #tpu.memory_space<vmem>>, vector<16x128xf32>
    %344 = arith.truncf %343 : vector<16x128xf32> to vector<16x128xbf16>
    %c1_318 = arith.constant 1 : index
    %c0_319 = arith.constant 0 : index
    %345 = vector.load %arg26[%c1_318, %c0_319] : memref<18x128xf32, #tpu.memory_space<vmem>>, vector<16x128xf32>
    %346 = arith.truncf %345 : vector<16x128xf32> to vector<16x128xbf16>
    %c2_320 = arith.constant 2 : index
    %c0_321 = arith.constant 0 : index
    %347 = vector.load %arg26[%c2_320, %c0_321] : memref<18x128xf32, #tpu.memory_space<vmem>>, vector<16x128xf32>
    %348 = arith.truncf %347 : vector<16x128xf32> to vector<16x128xbf16>
    %349 = tpu.concatenate %344, %346, %348 in 1 : vector<16x128xbf16>, vector<16x128xbf16>, vector<16x128xbf16> -> vector<16x384xbf16>
    %c0_322 = arith.constant 0 : index
    %c0_323 = arith.constant 0 : index
    %c0_324 = arith.constant 0 : index
    %350 = vector.load %arg15[%c0_322, %c0_323, %c0_324] : memref<1x384x128xbf16, #tpu.memory_space<vmem>>, vector<1x384x128xbf16>
    %351 = vector.shape_cast %350 : vector<1x384x128xbf16> to vector<384x128xbf16>
    %cst_325 = arith.constant dense<0.000000e+00> : vector<16x128xf32>
    %352 = tpu.matmul %349, %351, %cst_325 {dimension_numbers = #tpu.dot_dimension_numbers<[1], [0], [0], [1], [0, 0, 1, 1], [], []>} : vector<16x384xbf16>, vector<384x128xbf16>, vector<16x128xf32> -> vector<16x128xf32>
    %353 = arith.addf %342, %352 : vector<16x128xf32>
    %cst_326 = arith.constant 0.000000e+00 : f32
    %354 = vector.broadcast %cst_326 : f32 to vector<16x128xf32>
    %355 = arith.maximumf %353, %354 : vector<16x128xf32>
    %c0_327 = arith.constant 0 : index
    %c0_328 = arith.constant 0 : index
    %356 = vector.load %arg4[%c0_327, %c0_328] : memref<128x128xf32, #tpu.memory_space<vmem>>, vector<128x128xf32>
    %cst_329 = arith.constant dense<0.000000e+00> : vector<16x128xf32>
    %357 = tpu.matmul %355, %356, %cst_329 {dimension_numbers = #tpu.dot_dimension_numbers<[1], [0], [0], [1], [0, 0, 1, 1], [], []>} : vector<16x128xf32>, vector<128x128xf32>, vector<16x128xf32> -> vector<16x128xf32>
    %c0_330 = arith.constant 0 : index
    %c0_331 = arith.constant 0 : index
    %358 = vector.load %arg5[%c0_330, %c0_331] : memref<16x16xf32, #tpu.memory_space<vmem>>, vector<16x16xf32>
    %cst_332 = arith.constant dense<0.000000e+00> : vector<16x128xf32>
    %359 = tpu.matmul %358, %357, %cst_332 {dimension_numbers = #tpu.dot_dimension_numbers<[1], [0], [0], [1], [0, 0, 1, 1], [], []>} : vector<16x16xf32>, vector<16x128xf32>, vector<16x128xf32> -> vector<16x128xf32>
    %c0_333 = arith.constant 0 : index
    %c0_334 = arith.constant 0 : index
    %c0_335 = arith.constant 0 : index
    %360 = vector.load %arg16[%c0_333, %c0_334, %c0_335] : memref<1x16x128xf32, #tpu.memory_space<vmem>>, vector<1x16x128xf32>
    %361 = vector.shape_cast %360 : vector<1x16x128xf32> to vector<16x128xf32>
    %362 = vector.shape_cast %359 : vector<16x128xf32> to vector<1x16x128xf32>
    tpu.vector_store %arg16[%c0_333, %c0_334, %c0_335], %362 {strides = array<i32>} : memref<1x16x128xf32, #tpu.memory_space<vmem>>, vector<1x16x128xf32>,
    return
  }
  func.func @transform_0(%arg0: i32) -> (i32, i32, i32) {
    %c0_i32 = arith.constant 0 : i32
    %c0_i32_0 = arith.constant 0 : i32
    %c0_i32_1 = arith.constant 0 : i32
    return %arg0, %c0_i32, %c0_i32_0 : i32, i32, i32
  }
  func.func @transform_1(%arg0: i32) -> (i32, i32) {
    %c0_i32 = arith.constant 0 : i32
    %c0_i32_0 = arith.constant 0 : i32
    %c0_i32_1 = arith.constant 0 : i32
    return %c0_i32, %c0_i32_0 : i32, i32
  }
  func.func @transform_2(%arg0: i32) -> (i32, i32) {
    %c0_i32 = arith.constant 0 : i32
    %c0_i32_0 = arith.constant 0 : i32
    %c0_i32_1 = arith.constant 0 : i32
    return %c0_i32, %c0_i32_0 : i32, i32
  }
  func.func @transform_3(%arg0: i32) -> (i32, i32) {
    %c0_i32 = arith.constant 0 : i32
    %c0_i32_0 = arith.constant 0 : i32
    %c0_i32_1 = arith.constant 0 : i32
    return %c0_i32, %c0_i32_0 : i32, i32
  }
  func.func @transform_4(%arg0: i32) -> (i32, i32) {
    %c0_i32 = arith.constant 0 : i32
    %c0_i32_0 = arith.constant 0 : i32
    %c0_i32_1 = arith.constant 0 : i32
    return %c0_i32, %c0_i32_0 : i32, i32
  }
  func.func @transform_5(%arg0: i32) -> (i32, i32, i32) {
    %c0_i32 = arith.constant 0 : i32
    %c0_i32_0 = arith.constant 0 : i32
    %c0_i32_1 = arith.constant 0 : i32
    %c0_i32_2 = arith.constant 0 : i32
    return %c0_i32, %c0_i32_0, %c0_i32_1 : i32, i32, i32
  }
  func.func @transform_6(%arg0: i32) -> (i32, i32, i32) {
    %c0_i32 = arith.constant 0 : i32
    %c0_i32_0 = arith.constant 0 : i32
    %c0_i32_1 = arith.constant 0 : i32
    %c0_i32_2 = arith.constant 0 : i32
    return %c0_i32, %c0_i32_0, %c0_i32_1 : i32, i32, i32
  }
  func.func @transform_7(%arg0: i32) -> (i32, i32, i32) {
    %c0_i32 = arith.constant 0 : i32
    %c0_i32_0 = arith.constant 0 : i32
    %c0_i32_1 = arith.constant 0 : i32
    %c0_i32_2 = arith.constant 0 : i32
    return %c0_i32, %c0_i32_0, %c0_i32_1 : i32, i32, i32
  }
  func.func @transform_8(%arg0: i32) -> (i32, i32, i32) {
    %c0_i32 = arith.constant 0 : i32
    %c0_i32_0 = arith.constant 0 : i32
    %c0_i32_1 = arith.constant 0 : i32
    %c0_i32_2 = arith.constant 0 : i32
    return %c0_i32, %c0_i32_0, %c0_i32_1 : i32, i32, i32
  }
  func.func @transform_9(%arg0: i32) -> (i32, i32, i32) {
    %c0_i32 = arith.constant 0 : i32
    %c0_i32_0 = arith.constant 0 : i32
    %c0_i32_1 = arith.constant 0 : i32
    %c0_i32_2 = arith.constant 0 : i32
    return %c0_i32, %c0_i32_0, %c0_i32_1 : i32, i32, i32
  }
  func.func @transform_10(%arg0: i32) -> (i32, i32, i32) {
    %c0_i32 = arith.constant 0 : i32
    %c0_i32_0 = arith.constant 0 : i32
    %c0_i32_1 = arith.constant 0 : i32
    %c0_i32_2 = arith.constant 0 : i32
    return %c0_i32, %c0_i32_0, %c0_i32_1 : i32, i32, i32
  }
  func.func @transform_11(%arg0: i32) -> (i32, i32, i32) {
    %c0_i32 = arith.constant 0 : i32
    %c0_i32_0 = arith.constant 0 : i32
    %c0_i32_1 = arith.constant 0 : i32
    %c0_i32_2 = arith.constant 0 : i32
    return %c0_i32, %c0_i32_0, %c0_i32_1 : i32, i32, i32
  }
  func.func @transform_12(%arg0: i32) -> (i32, i32, i32) {
    %c0_i32 = arith.constant 0 : i32
    %c0_i32_0 = arith.constant 0 : i32
    %c0_i32_1 = arith.constant 0 : i32
    %c0_i32_2 = arith.constant 0 : i32
    return %c0_i32, %c0_i32_0, %c0_i32_1 : i32, i32, i32
  }
  func.func @transform_13(%arg0: i32) -> (i32, i32, i32) {
    %c0_i32 = arith.constant 0 : i32
    %c0_i32_0 = arith.constant 0 : i32
    %c0_i32_1 = arith.constant 0 : i32
    %c0_i32_2 = arith.constant 0 : i32
    return %c0_i32, %c0_i32_0, %c0_i32_1 : i32, i32, i32
  }
  func.func @transform_14(%arg0: i32) -> (i32, i32, i32) {
    %c0_i32 = arith.constant 0 : i32
    %c0_i32_0 = arith.constant 0 : i32
    %c0_i32_1 = arith.constant 0 : i32
    %c0_i32_2 = arith.constant 0 : i32
    return %c0_i32, %c0_i32_0, %c0_i32_1 : i32, i32, i32
  }
  func.func @transform_15(%arg0: i32) -> (i32, i32, i32) {
    %c0_i32 = arith.constant 0 : i32
    %c0_i32_0 = arith.constant 0 : i32
    %c0_i32_1 = arith.constant 0 : i32
    return %arg0, %c0_i32, %c0_i32_0 : i32, i32, i32
  }
}

</mosaic_0001>

<llo_original>
// kernel: prediction_model_forward.1
$region0: #{prediction_model_forward.1}
  #allocation0 [shape = 'u32[]', space=smem, size = 0x4, offset = 0x4, fixed_abs, tag = 'smem constant byte address 0x4 - core index']
  #allocation1 [shape = 'u32[144,128]{1,0:T(1,128)}', space=vmem, size = 0x12000, scoped, tag = 'internal scratch']
  #allocation2 [shape = 'f32[128,128]{1,0:T(8,128)}', space=vmem, size = 0x10000, scoped, tag = 'scratch operand']
  #allocation3 [shape = 'f32[96,128]{1,0:T(8,128)}', space=vmem, size = 0xc000, scoped, tag = 'scratch operand']
  #allocation4 [shape = 'f32[48,128]{1,0:T(8,128)}', space=vmem, size = 0x6000, scoped, tag = 'scratch operand']
  #allocation5 [shape = 'f32[24,128]{1,0:T(8,128)}', space=vmem, size = 0x3000, scoped, tag = 'scratch operand']
  #allocation6 [shape = 'f32[16,128]{1,0:T(8,128)}', space=vmem, size = 0x2000, scoped, tag = 'scratch operand']
  #allocation7 [shape = 'f32[16,128]{1,0:T(8,128)}', space=vmem, size = 0x2000, scoped, tag = 'scratch operand']
  #allocation8 [shape = 'f32[20,128]{1,0:T(8,128)}', space=vmem, size = 0x3000, scoped, tag = 'scratch operand']
  #allocation9 [shape = 'f32[20,128]{1,0:T(8,128)}', space=vmem, size = 0x3000, scoped, tag = 'scratch operand']
  #allocation10 [shape = 'f32[18,128]{1,0:T(8,128)}', space=vmem, size = 0x3000, scoped, tag = 'scratch operand']
  #allocation11 [shape = 'f32[18,128]{1,0:T(8,128)}', space=vmem, size = 0x3000, scoped, tag = 'scratch operand']
  %s0 = inlined_call_operand.vmem [shape: f32[2,128,128], index: 0, kind: input, shape index: {}]
  %s1 = inlined_call_operand.hbm [shape: f32[128,128], index: 1, kind: input, shape index: {}]
  %s2 = inlined_call_operand.hbm [shape: f32[128,128], index: 2, kind: input, shape index: {}]
  %s3 = inlined_call_operand.hbm [shape: f32[128,128], index: 3, kind: input, shape index: {}]
  %s4 = inlined_call_operand.vmem [shape: f32[16,16], index: 4, kind: input, shape index: {}]
  %s5 = inlined_call_operand.vmem [shape: bf16[3,640,128], index: 5, kind: input, shape index: {}]
  %s6 = inlined_call_operand.vmem [shape: bf16[3,640,128], index: 6, kind: input, shape index: {}]
  %s7 = inlined_call_operand.hbm [shape: bf16[3,640,128], index: 7, kind: input, shape index: {}]
  %s8 = inlined_call_operand.hbm [shape: bf16[2,640,128], index: 8, kind: input, shape index: {}]
  %s9 = inlined_call_operand.vmem [shape: bf16[1,640,128], index: 9, kind: input, shape index: {}]
  %s10 = inlined_call_operand.hbm [shape: bf16[1,640,128], index: 10, kind: input, shape index: {}]
  %s11 = inlined_call_operand.hbm [shape: bf16[1,640,128], index: 11, kind: input, shape index: {}]
  %s12 = inlined_call_operand.hbm [shape: bf16[1,640,128], index: 12, kind: input, shape index: {}]
  %s13 = inlined_call_operand.hbm [shape: bf16[1,384,128], index: 13, kind: input, shape index: {}]
  %s14 = inlined_call_operand.hbm [shape: bf16[1,384,128], index: 14, kind: input, shape index: {}]
  %s15 = inlined_call_operand.vmem [shape: f32[2,16,128], index: 15, kind: output, shape index: {}]
  %s16 = sld [smem:[#allocation0]]
  $region133: #{prediction_model_forward.1} parent=0
    _
  %s18 = ssub.s32 1, %s16
  %s19 = scalar_select 0, %s18, %s16
  $region1: #{prediction_model_forward.1} parent=0
    #allocation12 [shape = 'u8[65536]{0}', space=vmem, size = 0x10000, scoped, tag = 'input window, operand 1, single buffered']
    #allocation13 [shape = 's32[2]{0}', space=sflag, size = 0x8, scoped, tag = 'scoped memory for prediction_model_forward.1']
    #allocation14 [shape = 'u8[65536]{0}', space=vmem, size = 0x10000, scoped, tag = 'input window, operand 2, single buffered']
    #allocation15 [shape = 's32[1]{0}', space=sflag, size = 0x4, scoped, tag = 'scoped memory for prediction_model_forward.1']
    #allocation16 [shape = 'u8[65536]{0}', space=vmem, size = 0x10000, scoped, tag = 'input window, operand 3, single buffered']
    #allocation17 [shape = 'u8[491520]{0}', space=vmem, size = 0x78000, scoped, tag = 'input window, operand 7, single buffered']
    #allocation18 [shape = 's32[1]{0}', space=sflag, size = 0x4, scoped, tag = 'scoped memory for prediction_model_forward.1']
    #allocation19 [shape = 'u8[327680]{0}', space=vmem, size = 0x50000, scoped, tag = 'input window, operand 8, single buffered']
    #allocation20 [shape = 'u8[163840]{0}', space=vmem, size = 0x28000, scoped, tag = 'input window, operand 10, single buffered']
    #allocation21 [shape = 's32[1]{0}', space=sflag, size = 0x4, scoped, tag = 'scoped memory for prediction_model_forward.1']
    #allocation22 [shape = 'u8[163840]{0}', space=vmem, size = 0x28000, scoped, tag = 'input window, operand 11, single buffered']
    #allocation23 [shape = 'u8[163840]{0}', space=vmem, size = 0x28000, scoped, tag = 'input window, operand 12, single buffered']
    #allocation24 [shape = 's32[1]{0}', space=sflag, size = 0x4, scoped, tag = 'scoped memory for prediction_model_forward.1']
    #allocation25 [shape = 'u8[98304]{0}', space=vmem, size = 0x18000, scoped, tag = 'input window, operand 13, single buffered']
    #allocation26 [shape = 'u8[98304]{0}', space=vmem, size = 0x18000, scoped, tag = 'input window, operand 14, single buffered']
    #allocation27 [shape = 's32[1]{0}', space=sflag, size = 0x4, scoped, tag = 'scoped memory for prediction_model_forward.1']
    %20 = vsyncpa [#allocation13], 0
    %21 = vsyncpa [#allocation15], 0
    %22 = vsyncpa [#allocation18], 0
    %23 = vsyncpa [#allocation21], 0
    %24 = vsyncpa [#allocation24], 0
    %25 = vsyncpa [#allocation27], 0
    loop: start=0, step=1, limit=4
    $region2: #{prediction_model_forward.1} parent=1 // loop_pre_header
      _
    $region3: #{prediction_model_forward.1} parent=1 // loop_header
      %s27 = sphi 0, %s31
      %p28 = scmp.ge.s32.totalorder %s27, 4
      %s37 = sphi 0, %s39
      %s40 = sphi 0, %s37
      %s41 = sphi 0, %s40
      %s57 = sphi 0, %s41
      %s61 = sphi 0, %s61
      %s63 = sphi 0, %s61
      %s64 = sphi 0, %s63
      %s78 = sphi 0, %s64
      %s82 = sphi 0, %s82
      %s84 = sphi 0, %s82
      %s85 = sphi 0, %s84
      %s99 = sphi 0, %s85
      %s103 = sphi 0, %s103
      %s105 = sphi 0, %s103
      %s106 = sphi 0, %s105
      %s120 = sphi 0, %s106
      %s124 = sphi 0, %s124
      %s126 = sphi 0, %s124
      %s127 = sphi 0, %s126
      %s141 = sphi 0, %s127
      %s145 = sphi 0, %s145
      %s147 = sphi 0, %s145
      %s148 = sphi 0, %s147
      %s162 = sphi 0, %s148
      %s166 = sphi 0, %s166
      %s168 = sphi 0, %s166
      %s169 = sphi 0, %s168
      %s183 = sphi 0, %s169
      %s187 = sphi 0, %s187
      %s189 = sphi 0, %s187
      %s190 = sphi 0, %s189
      %s204 = sphi 0, %s190
      %s208 = sphi 0, %s208
      %s210 = sphi 0, %s208
      %s211 = sphi 0, %s210
      %s225 = sphi 0, %s211
      %s229 = sphi 0, %s229
      %s231 = sphi 0, %s229
      %s232 = sphi 0, %s231
      %s246 = sphi 0, %s232
      %s250 = sphi 0, %s250
      %s252 = sphi 0, %s250
      %s253 = sphi 0, %s252
      %s267 = sphi 0, %s253
      %s271 = sphi 0, %s271
      %s273 = sphi 0, %s271
      %s274 = sphi 0, %s273
      %s288 = sphi 0, %s274
      %s292 = sphi 0, %s292
      %s294 = sphi 0, %s292
      %s295 = sphi 0, %s294
      %s309 = sphi 0, %s295
      %s313 = sphi 0, %s313
      %s315 = sphi 0, %s313
      %s316 = sphi 0, %s315
      %s330 = sphi 0, %s316
      %s334 = sphi 0, %s334
      %s336 = sphi 0, %s334
      %s337 = sphi 0, %s336
      %s351 = sphi 0, %s337
      %s357 = sphi 0, %s359
      %s360 = sphi 0, %s357
      %s361 = sphi 0, %s360
      %s377 = sphi 0, %s361
    $region4: #{prediction_model_forward.1} parent=1 // loop_header_branch
      %30 = sbr.rel (%p28) target = $region8
    $region5: #{prediction_model_forward.1} parent=1 // loop_body
      %s32 = ssub.s32 %s27, 1
      %s33 = ssub.s32 %s27, 2
      %s34 = sadd.s32 %s27, 1
      %s35 = ssub.s32 %s27, %s34
      %p36 = scmp.eq.s32.totalorder %s35, 0
      %s38 = sadd.s32 %s37, 1
      %s39 = scalar_select %p36, %s37, %s38
      %p42 = pneg %p36
      %p43 = scmp.eq.s32.totalorder %s27, 1
      %p44 = por %p42, %p43
      %p45 = scmp.ne.s32.totalorder %s37, %s40
      %p46 = scmp.eq.s32.totalorder %s27, 0
      %p47 = por %p45, %p46
      %p48 = scmp.ne.s32.totalorder %s37, %s40
      %p49 = scmp.eq.s32.totalorder %s32, 1
      %p50 = por %p48, %p49
      %p51 = scmp.ne.s32.totalorder %s40, %s41
      %p52 = scmp.eq.s32.totalorder %s32, 0
      %p53 = por %p51, %p52
      %p54 = scmp.ne.s32.totalorder %s40, %s41
      %p55 = scmp.eq.s32.totalorder %s33, 1
      %p56 = por %p54, %p55
      %p58 = scmp.ne.s32.totalorder %s41, %s57
      %p59 = scmp.eq.s32.totalorder %s33, 0
      %p60 = por %p58, %p59
      %s62 = sadd.s32 %s61, 1
      %p65 = scmp.eq.s32.totalorder %s27, 1
      %p66 = scmp.ne.s32.totalorder %s61, %s63
      %p67 = scmp.eq.s32.totalorder %s27, 0
      %p68 = por %p66, %p67
      %p69 = scmp.ne.s32.totalorder %s61, %s63
      %p70 = scmp.eq.s32.totalorder %s32, 1
      %p71 = por %p69, %p70
      %p72 = scmp.ne.s32.totalorder %s63, %s64
      %p73 = scmp.eq.s32.totalorder %s32, 0
      %p74 = por %p72, %p73
      %p75 = scmp.ne.s32.totalorder %s63, %s64
      %p76 = scmp.eq.s32.totalorder %s33, 1
      %p77 = por %p75, %p76
      %p79 = scmp.ne.s32.totalorder %s64, %s78
      %p80 = scmp.eq.s32.totalorder %s33, 0
      %p81 = por %p79, %p80
      %s83 = sadd.s32 %s82, 1
      %p86 = scmp.eq.s32.totalorder %s27, 1
      %p87 = scmp.ne.s32.totalorder %s82, %s84
      %p88 = scmp.eq.s32.totalorder %s27, 0
      %p89 = por %p87, %p88
      %p90 = scmp.ne.s32.totalorder %s82, %s84
      %p91 = scmp.eq.s32.totalorder %s32, 1
      %p92 = por %p90, %p91
      %p93 = scmp.ne.s32.totalorder %s84, %s85
      %p94 = scmp.eq.s32.totalorder %s32, 0
      %p95 = por %p93, %p94
      %p96 = scmp.ne.s32.totalorder %s84, %s85
      %p97 = scmp.eq.s32.totalorder %s33, 1
      %p98 = por %p96, %p97
      %p100 = scmp.ne.s32.totalorder %s85, %s99
      %p101 = scmp.eq.s32.totalorder %s33, 0
      %p102 = por %p100, %p101
      %s104 = sadd.s32 %s103, 1
      %p107 = scmp.eq.s32.totalorder %s27, 1
      %p108 = scmp.ne.s32.totalorder %s103, %s105
      %p109 = scmp.eq.s32.totalorder %s27, 0
      %p110 = por %p108, %p109
      %p111 = scmp.ne.s32.totalorder %s103, %s105
      %p112 = scmp.eq.s32.totalorder %s32, 1
      %p113 = por %p111, %p112
      %p114 = scmp.ne.s32.totalorder %s105, %s106
      %p115 = scmp.eq.s32.totalorder %s32, 0
      %p116 = por %p114, %p115
      %p117 = scmp.ne.s32.totalorder %s105, %s106
      %p118 = scmp.eq.s32.totalorder %s33, 1
      %p119 = por %p117, %p118
      %p121 = scmp.ne.s32.totalorder %s106, %s120
      %p122 = scmp.eq.s32.totalorder %s33, 0
      %p123 = por %p121, %p122
      %s125 = sadd.s32 %s124, 1
      %p128 = scmp.eq.s32.totalorder %s27, 1
      %p129 = scmp.ne.s32.totalorder %s124, %s126
      %p130 = scmp.eq.s32.totalorder %s27, 0
      %p131 = por %p129, %p130
      %p132 = scmp.ne.s32.totalorder %s124, %s126
      %p133 = scmp.eq.s32.totalorder %s32, 1
      %p134 = por %p132, %p133
      %p135 = scmp.ne.s32.totalorder %s126, %s127
      %p136 = scmp.eq.s32.totalorder %s32, 0
      %p137 = por %p135, %p136
      %p138 = scmp.ne.s32.totalorder %s126, %s127
      %p139 = scmp.eq.s32.totalorder %s33, 1
      %p140 = por %p138, %p139
      %p142 = scmp.ne.s32.totalorder %s127, %s141
      %p143 = scmp.eq.s32.totalorder %s33, 0
      %p144 = por %p142, %p143
      %s146 = sadd.s32 %s145, 1
      %p149 = scmp.eq.s32.totalorder %s27, 1
      %p150 = scmp.ne.s32.totalorder %s145, %s147
      %p151 = scmp.eq.s32.totalorder %s27, 0
      %p152 = por %p150, %p151
      %p153 = scmp.ne.s32.totalorder %s145, %s147
      %p154 = scmp.eq.s32.totalorder %s32, 1
      %p155 = por %p153, %p154
      %p156 = scmp.ne.s32.totalorder %s147, %s148
      %p157 = scmp.eq.s32.totalorder %s32, 0
      %p158 = por %p156, %p157
      %p159 = scmp.ne.s32.totalorder %s147, %s148
      %p160 = scmp.eq.s32.totalorder %s33, 1
      %p161 = por %p159, %p160
      %p163 = scmp.ne.s32.totalorder %s148, %s162
      %p164 = scmp.eq.s32.totalorder %s33, 0
      %p165 = por %p163, %p164
      %s167 = sadd.s32 %s166, 1
      %p170 = scmp.eq.s32.totalorder %s27, 1
      %p171 = scmp.ne.s32.totalorder %s166, %s168
      %p172 = scmp.eq.s32.totalorder %s27, 0
      %p173 = por %p171, %p172
      %p174 = scmp.ne.s32.totalorder %s166, %s168
      %p175 = scmp.eq.s32.totalorder %s32, 1
      %p176 = por %p174, %p175
      %p177 = scmp.ne.s32.totalorder %s168, %s169
      %p178 = scmp.eq.s32.totalorder %s32, 0
      %p179 = por %p177, %p178
      %p180 = scmp.ne.s32.totalorder %s168, %s169
      %p181 = scmp.eq.s32.totalorder %s33, 1
      %p182 = por %p180, %p181
      %p184 = scmp.ne.s32.totalorder %s169, %s183
      %p185 = scmp.eq.s32.totalorder %s33, 0
      %p186 = por %p184, %p185
      %s188 = sadd.s32 %s187, 1
      %p191 = scmp.eq.s32.totalorder %s27, 1
      %p192 = scmp.ne.s32.totalorder %s187, %s189
      %p193 = scmp.eq.s32.totalorder %s27, 0
      %p194 = por %p192, %p193
      %p195 = scmp.ne.s32.totalorder %s187, %s189
      %p196 = scmp.eq.s32.totalorder %s32, 1
      %p197 = por %p195, %p196
      %p198 = scmp.ne.s32.totalorder %s189, %s190
      %p199 = scmp.eq.s32.totalorder %s32, 0
      %p200 = por %p198, %p199
      %p201 = scmp.ne.s32.totalorder %s189, %s190
      %p202 = scmp.eq.s32.totalorder %s33, 1
      %p203 = por %p201, %p202
      %p205 = scmp.ne.s32.totalorder %s190, %s204
      %p206 = scmp.eq.s32.totalorder %s33, 0
      %p207 = por %p205, %p206
      %s209 = sadd.s32 %s208, 1
      %p212 = scmp.eq.s32.totalorder %s27, 1
      %p213 = scmp.ne.s32.totalorder %s208, %s210
      %p214 = scmp.eq.s32.totalorder %s27, 0
      %p215 = por %p213, %p214
      %p216 = scmp.ne.s32.totalorder %s208, %s210
      %p217 = scmp.eq.s32.totalorder %s32, 1
      %p218 = por %p216, %p217
      %p219 = scmp.ne.s32.totalorder %s210, %s211
      %p220 = scmp.eq.s32.totalorder %s32, 0
      %p221 = por %p219, %p220
      %p222 = scmp.ne.s32.totalorder %s210, %s211
      %p223 = scmp.eq.s32.totalorder %s33, 1
      %p224 = por %p222, %p223
      %p226 = scmp.ne.s32.totalorder %s211, %s225
      %p227 = scmp.eq.s32.totalorder %s33, 0
      %p228 = por %p226, %p227
      %s230 = sadd.s32 %s229, 1
      %p233 = scmp.eq.s32.totalorder %s27, 1
      %p234 = scmp.ne.s32.totalorder %s229, %s231
      %p235 = scmp.eq.s32.totalorder %s27, 0
      %p236 = por %p234, %p235
      %p237 = scmp.ne.s32.totalorder %s229, %s231
      %p238 = scmp.eq.s32.totalorder %s32, 1
      %p239 = por %p237, %p238
      %p240 = scmp.ne.s32.totalorder %s231, %s232
      %p241 = scmp.eq.s32.totalorder %s32, 0
      %p242 = por %p240, %p241
      %p243 = scmp.ne.s32.totalorder %s231, %s232
      %p244 = scmp.eq.s32.totalorder %s33, 1
      %p245 = por %p243, %p244
      %p247 = scmp.ne.s32.totalorder %s232, %s246
      %p248 = scmp.eq.s32.totalorder %s33, 0
      %p249 = por %p247, %p248
      %s251 = sadd.s32 %s250, 1
      %p254 = scmp.eq.s32.totalorder %s27, 1
      %p255 = scmp.ne.s32.totalorder %s250, %s252
      %p256 = scmp.eq.s32.totalorder %s27, 0
      %p257 = por %p255, %p256
      %p258 = scmp.ne.s32.totalorder %s250, %s252
      %p259 = scmp.eq.s32.totalorder %s32, 1
      %p260 = por %p258, %p259
      %p261 = scmp.ne.s32.totalorder %s252, %s253
      %p262 = scmp.eq.s32.totalorder %s32, 0
      %p263 = por %p261, %p262
      %p264 = scmp.ne.s32.totalorder %s252, %s253
      %p265 = scmp.eq.s32.totalorder %s33, 1
      %p266 = por %p264, %p265
      %p268 = scmp.ne.s32.totalorder %s253, %s267
      %p269 = scmp.eq.s32.totalorder %s33, 0
      %p270 = por %p268, %p269
      %s272 = sadd.s32 %s271, 1
      %p275 = scmp.eq.s32.totalorder %s27, 1
      %p276 = scmp.ne.s32.totalorder %s271, %s273
      %p277 = scmp.eq.s32.totalorder %s27, 0
      %p278 = por %p276, %p277
      %p279 = scmp.ne.s32.totalorder %s271, %s273
      %p280 = scmp.eq.s32.totalorder %s32, 1
      %p281 = por %p279, %p280
      %p282 = scmp.ne.s32.totalorder %s273, %s274
      %p283 = scmp.eq.s32.totalorder %s32, 0
      %p284 = por %p282, %p283
      %p285 = scmp.ne.s32.totalorder %s273, %s274
      %p286 = scmp.eq.s32.totalorder %s33, 1
      %p287 = por %p285, %p286
      %p289 = scmp.ne.s32.totalorder %s274, %s288
      %p290 = scmp.eq.s32.totalorder %s33, 0
      %p291 = por %p289, %p290
      %s293 = sadd.s32 %s292, 1
      %p296 = scmp.eq.s32.totalorder %s27, 1
      %p297 = scmp.ne.s32.totalorder %s292, %s294
      %p298 = scmp.eq.s32.totalorder %s27, 0
      %p299 = por %p297, %p298
      %p300 = scmp.ne.s32.totalorder %s292, %s294
      %p301 = scmp.eq.s32.totalorder %s32, 1
      %p302 = por %p300, %p301
      %p303 = scmp.ne.s32.totalorder %s294, %s295
      %p304 = scmp.eq.s32.totalorder %s32, 0
      %p305 = por %p303, %p304
      %p306 = scmp.ne.s32.totalorder %s294, %s295
      %p307 = scmp.eq.s32.totalorder %s33, 1
      %p308 = por %p306, %p307
      %p310 = scmp.ne.s32.totalorder %s295, %s309
      %p311 = scmp.eq.s32.totalorder %s33, 0
      %p312 = por %p310, %p311
      %s314 = sadd.s32 %s313, 1
      %p317 = scmp.eq.s32.totalorder %s27, 1
      %p318 = scmp.ne.s32.totalorder %s313, %s315
      %p319 = scmp.eq.s32.totalorder %s27, 0
      %p320 = por %p318, %p319
      %p321 = scmp.ne.s32.totalorder %s313, %s315
      %p322 = scmp.eq.s32.totalorder %s32, 1
      %p323 = por %p321, %p322
      %p324 = scmp.ne.s32.totalorder %s315, %s316
      %p325 = scmp.eq.s32.totalorder %s32, 0
      %p326 = por %p324, %p325
      %p327 = scmp.ne.s32.totalorder %s315, %s316
      %p328 = scmp.eq.s32.totalorder %s33, 1
      %p329 = por %p327, %p328
      %p331 = scmp.ne.s32.totalorder %s316, %s330
      %p332 = scmp.eq.s32.totalorder %s33, 0
      %p333 = por %p331, %p332
      %s335 = sadd.s32 %s334, 1
      %p338 = scmp.eq.s32.totalorder %s27, 1
      %p339 = scmp.ne.s32.totalorder %s334, %s336
      %p340 = scmp.eq.s32.totalorder %s27, 0
      %p341 = por %p339, %p340
      %p342 = scmp.ne.s32.totalorder %s334, %s336
      %p343 = scmp.eq.s32.totalorder %s32, 1
      %p344 = por %p342, %p343
      %p345 = scmp.ne.s32.totalorder %s336, %s337
      %p346 = scmp.eq.s32.totalorder %s32, 0
      %p347 = por %p345, %p346
      %p348 = scmp.ne.s32.totalorder %s336, %s337
      %p349 = scmp.eq.s32.totalorder %s33, 1
      %p350 = por %p348, %p349
      %p352 = scmp.ne.s32.totalorder %s337, %s351
      %p353 = scmp.eq.s32.totalorder %s33, 0
      %p354 = por %p352, %p353
      %s355 = ssub.s32 %s27, %s34
      %p356 = scmp.eq.s32.totalorder %s355, 0
      %s358 = sadd.s32 %s357, 1
      %s359 = scalar_select %p356, %s357, %s358
      %p362 = pneg %p356
      %p363 = scmp.eq.s32.totalorder %s27, 1
      %p364 = por %p362, %p363
      %p365 = scmp.ne.s32.totalorder %s357, %s360
      %p366 = scmp.eq.s32.totalorder %s27, 0
      %p367 = por %p365, %p366
      %p368 = scmp.ne.s32.totalorder %s357, %s360
      %p369 = scmp.eq.s32.totalorder %s32, 1
      %p370 = por %p368, %p369
      %p371 = scmp.ne.s32.totalorder %s360, %s361
      %p372 = scmp.eq.s32.totalorder %s32, 0
      %p373 = por %p371, %p372
      %p374 = scmp.ne.s32.totalorder %s360, %s361
      %p375 = scmp.eq.s32.totalorder %s33, 1
      %p376 = por %p374, %p375
      %p378 = scmp.ne.s32.totalorder %s361, %s377
      %p379 = scmp.eq.s32.totalorder %s33, 0
      %p380 = por %p378, %p379
      %p381 = scmp.le.s32.totalorder 1, %s27
      %p382 = scmp.lt.s32.totalorder %s27, 3
      %p383 = pnand %p381, %p382
      %p384 = pneg %p383
      // Predicated region
      $region9: #{prediction_model_forward.1} parent=5 // pred_check
        _
      $region10: #{prediction_model_forward.1} parent=5 // pred_check_branch
        %386 = sbr.rel (%p383) target = $region12
      $region11: #{prediction_model_forward.1} parent=5 // pred_region
        %s387 = ssub.s32 %s27, 1
        // Predicated region
        $region13: #{prediction_model_forward.1} parent=11 // pred_check
          %p388 = pneg %p74
        $region14: #{prediction_model_forward.1} parent=11 // pred_check_branch
          %390 = sbr.rel (%p388) target = $region16
        $region15: #{prediction_model_forward.1} parent=11 // pred_region
          %s392 = ssub.s32 2048, 2048
          %393 = vsyncadd [#allocation13], %s392
          %s394 = sshll.u32 [#allocation12], 4
          %s395 = int_to_ptr.vmem [resolvable:$true] %s394
          %400 = dma.hbm_to_vmem [thread:$0]  %s1, 2048, %s395, [#allocation13], 128, 128, 8
        $region16: #{prediction_model_forward.1} parent=11 // pred_fallthru
          _
        // Predicated region
        $region17: #{prediction_model_forward.1} parent=11 // pred_check
          %p401 = pneg %p95
        $region18: #{prediction_model_forward.1} parent=11 // pred_check_branch
          %403 = sbr.rel (%p401) target = $region20
        $region19: #{prediction_model_forward.1} parent=11 // pred_region
          %s405 = ssub.s32 2048, 2048
          %406 = vsyncadd [#allocation15], %s405
          %s407 = sshll.u32 [#allocation14], 4
          %s408 = int_to_ptr.vmem [resolvable:$true] %s407
          %413 = dma.hbm_to_vmem [thread:$0]  %s2, 2048, %s408, [#allocation15], 128, 128, 8
        $region20: #{prediction_model_forward.1} parent=11 // pred_fallthru
          _
        // Predicated region
        $region21: #{prediction_model_forward.1} parent=11 // pred_check
          %p414 = pneg %p116
        $region22: #{prediction_model_forward.1} parent=11 // pred_check_branch
          %416 = sbr.rel (%p414) target = $region24
        $region23: #{prediction_model_forward.1} parent=11 // pred_region
          %s418 = ssub.s32 2048, 2048
          %419 = vsyncadd [#allocation15], %s418
          %s420 = sshll.u32 [#allocation16], 4
          %s421 = int_to_ptr.vmem [resolvable:$true] %s420
          %426 = dma.hbm_to_vmem [thread:$0]  %s3, 2048, %s421, [#allocation15], 128, 128, 8
        $region24: #{prediction_model_forward.1} parent=11 // pred_fallthru
          _
        // Predicated region
        $region25: #{prediction_model_forward.1} parent=11 // pred_check
          %p427 = pneg %p137
        $region26: #{prediction_model_forward.1} parent=11 // pred_check_branch
          %429 = sbr.rel (%p427) target = $region28
        $region27: #{prediction_model_forward.1} parent=11 // pred_region
          _
        $region28: #{prediction_model_forward.1} parent=11 // pred_fallthru
          _
        // Predicated region
        $region29: #{prediction_model_forward.1} parent=11 // pred_check
          %p430 = pneg %p158
        $region30: #{prediction_model_forward.1} parent=11 // pred_check_branch
          %432 = sbr.rel (%p430) target = $region32
        $region31: #{prediction_model_forward.1} parent=11 // pred_region
          _
        $region32: #{prediction_model_forward.1} parent=11 // pred_fallthru
          _
        // Predicated region
        $region33: #{prediction_model_forward.1} parent=11 // pred_check
          %p433 = pneg %p179
        $region34: #{prediction_model_forward.1} parent=11 // pred_check_branch
          %435 = sbr.rel (%p433) target = $region36
        $region35: #{prediction_model_forward.1} parent=11 // pred_region
          _
        $region36: #{prediction_model_forward.1} parent=11 // pred_fallthru
          _
        // Predicated region
        $region37: #{prediction_model_forward.1} parent=11 // pred_check
          %p436 = pneg %p200
        $region38: #{prediction_model_forward.1} parent=11 // pred_check_branch
          %438 = sbr.rel (%p436) target = $region40
        $region39: #{prediction_model_forward.1} parent=11 // pred_region
          %s440 = ssub.s32 15360, 15360
          %441 = vsyncadd [#allocation18], %s440
          %s442 = sshll.u32 [#allocation17], 4
          %s443 = int_to_ptr.vmem [resolvable:$true] %s442
          %448 = dma.hbm_to_vmem [thread:$0]  %s7, 15360, %s443, [#allocation18], 64, 64, 4
        $region40: #{prediction_model_forward.1} parent=11 // pred_fallthru
          _
        // Predicated region
        $region41: #{prediction_model_forward.1} parent=11 // pred_check
          %p449 = pneg %p221
        $region42: #{prediction_model_forward.1} parent=11 // pred_check_branch
          %451 = sbr.rel (%p449) target = $region44
        $region43: #{prediction_model_forward.1} parent=11 // pred_region
          %s453 = ssub.s32 10240, 10240
          %454 = vsyncadd [#allocation18], %s453
          %s455 = sshll.u32 [#allocation19], 4
          %s456 = int_to_ptr.vmem [resolvable:$true] %s455
          %461 = dma.hbm_to_vmem [thread:$0]  %s8, 10240, %s456, [#allocation18], 64, 64, 4
        $region44: #{prediction_model_forward.1} parent=11 // pred_fallthru
          _
        // Predicated region
        $region45: #{prediction_model_forward.1} parent=11 // pred_check
          %p462 = pneg %p242
        $region46: #{prediction_model_forward.1} parent=11 // pred_check_branch
          %464 = sbr.rel (%p462) target = $region48
        $region47: #{prediction_model_forward.1} parent=11 // pred_region
          _
        $region48: #{prediction_model_forward.1} parent=11 // pred_fallthru
          _
        // Predicated region
        $region49: #{prediction_model_forward.1} parent=11 // pred_check
          %p465 = pneg %p263
        $region50: #{prediction_model_forward.1} parent=11 // pred_check_branch
          %467 = sbr.rel (%p465) target = $region52
        $region51: #{prediction_model_forward.1} parent=11 // pred_region
          %s469 = ssub.s32 5120, 5120
          %470 = vsyncadd [#allocation21], %s469
          %s471 = sshll.u32 [#allocation20], 4
          %s472 = int_to_ptr.vmem [resolvable:$true] %s471
          %477 = dma.hbm_to_vmem [thread:$0]  %s10, 5120, %s472, [#allocation21], 64, 64, 4
        $region52: #{prediction_model_forward.1} parent=11 // pred_fallthru
          _
        // Predicated region
        $region53: #{prediction_model_forward.1} parent=11 // pred_check
          %p478 = pneg %p284
        $region54: #{prediction_model_forward.1} parent=11 // pred_check_branch
          %480 = sbr.rel (%p478) target = $region56
        $region55: #{prediction_model_forward.1} parent=11 // pred_region
          %s482 = ssub.s32 5120, 5120
          %483 = vsyncadd [#allocation21], %s482
          %s484 = sshll.u32 [#allocation22], 4
          %s485 = int_to_ptr.vmem [resolvable:$true] %s484
          %490 = dma.hbm_to_vmem [thread:$0]  %s11, 5120, %s485, [#allocation21], 64, 64, 4
        $region56: #{prediction_model_forward.1} parent=11 // pred_fallthru
          _
        // Predicated region
        $region57: #{prediction_model_forward.1} parent=11 // pred_check
          %p491 = pneg %p305
        $region58: #{prediction_model_forward.1} parent=11 // pred_check_branch
          %493 = sbr.rel (%p491) target = $region60
        $region59: #{prediction_model_forward.1} parent=11 // pred_region
          %s495 = ssub.s32 5120, 5120
          %496 = vsyncadd [#allocation24], %s495
          %s497 = sshll.u32 [#allocation23], 4
          %s498 = int_to_ptr.vmem [resolvable:$true] %s497
          %503 = dma.hbm_to_vmem [thread:$0]  %s12, 5120, %s498, [#allocation24], 64, 64, 4
        $region60: #{prediction_model_forward.1} parent=11 // pred_fallthru
          _
        // Predicated region
        $region61: #{prediction_model_forward.1} parent=11 // pred_check
          %p504 = pneg %p326
        $region62: #{prediction_model_forward.1} parent=11 // pred_check_branch
          %506 = sbr.rel (%p504) target = $region64
        $region63: #{prediction_model_forward.1} parent=11 // pred_region
          %s508 = ssub.s32 3072, 3072
          %509 = vsyncadd [#allocation24], %s508
          %s510 = sshll.u32 [#allocation25], 4
          %s511 = int_to_ptr.vmem [resolvable:$true] %s510
          %516 = dma.hbm_to_vmem [thread:$0]  %s13, 3072, %s511, [#allocation24], 64, 64, 4
        $region64: #{prediction_model_forward.1} parent=11 // pred_fallthru
          _
        // Predicated region
        $region65: #{prediction_model_forward.1} parent=11 // pred_check
          %p517 = pneg %p347
        $region66: #{prediction_model_forward.1} parent=11 // pred_check_branch
          %519 = sbr.rel (%p517) target = $region68
        $region67: #{prediction_model_forward.1} parent=11 // pred_region
          %s521 = ssub.s32 3072, 3072
          %522 = vsyncadd [#allocation27], %s521
          %s523 = sshll.u32 [#allocation26], 4
          %s524 = int_to_ptr.vmem [resolvable:$true] %s523
          %529 = dma.hbm_to_vmem [thread:$0]  %s14, 3072, %s524, [#allocation27], 64, 64, 4
        $region68: #{prediction_model_forward.1} parent=11 // pred_fallthru
          _
      $region12: #{prediction_model_forward.1} parent=5 // pred_fallthru
        _
      %p530 = scmp.lt.s32.totalorder %s27, 2
      // Predicated region
      $region69: #{prediction_model_forward.1} parent=5 // pred_check
        %p531 = pneg %p530
      $region70: #{prediction_model_forward.1} parent=5 // pred_check_branch
        %533 = sbr.rel (%p531) target = $region72
      $region71: #{prediction_model_forward.1} parent=5 // pred_region
        // Predicated region
        $region73: #{prediction_model_forward.1} parent=71 // pred_check
          %p534 = pneg %p47
        $region74: #{prediction_model_forward.1} parent=71 // pred_check_branch
          %536 = sbr.rel (%p534) target = $region76
        $region75: #{prediction_model_forward.1} parent=71 // pred_region
          %p537 = scmp.lt.s32.totalorder %s27, 1
          %s538 = scalar_select %p537, %s27, 1
          %s539 = smul.addr %s538, 16
          %s540 = smul.addr %s539, 8
          %s541 = scalar_lea.vmem %s0, %s540
        $region76: #{prediction_model_forward.1} parent=71 // pred_fallthru
          _
      $region72: #{prediction_model_forward.1} parent=5 // pred_fallthru
        _
      %p542 = scmp.le.s32.totalorder 1, %s27
      %p543 = scmp.lt.s32.totalorder %s27, 3
      %p544 = pnand %p542, %p543
      %p545 = pneg %p544
      // Predicated region
      $region77: #{prediction_model_forward.1} parent=5 // pred_check
        _
      $region78: #{prediction_model_forward.1} parent=5 // pred_check_branch
        %547 = sbr.rel (%p544) target = $region80
      $region79: #{prediction_model_forward.1} parent=5 // pred_region
        %s548 = ssub.s32 %s27, 1
        // Predicated region
        $region81: #{prediction_model_forward.1} parent=79 // pred_check
          %p549 = pneg %p74
        $region82: #{prediction_model_forward.1} parent=79 // pred_check_branch
          %551 = sbr.rel (%p549) target = $region84
        $region83: #{prediction_model_forward.1} parent=79 // pred_region
          %552 = dma.done [#allocation13], 2048
        $region84: #{prediction_model_forward.1} parent=79 // pred_fallthru
          _
        // Predicated region
        $region85: #{prediction_model_forward.1} parent=79 // pred_check
          %p553 = pneg %p95
        $region86: #{prediction_model_forward.1} parent=79 // pred_check_branch
          %555 = sbr.rel (%p553) target = $region88
        $region87: #{prediction_model_forward.1} parent=79 // pred_region
          %556 = dma.done [#allocation15], 2048
        $region88: #{prediction_model_forward.1} parent=79 // pred_fallthru
          _
        // Predicated region
        $region89: #{prediction_model_forward.1} parent=79 // pred_check
          %p557 = pneg %p116
        $region90: #{prediction_model_forward.1} parent=79 // pred_check_branch
          %559 = sbr.rel (%p557) target = $region92
        $region91: #{prediction_model_forward.1} parent=79 // pred_region
          %560 = dma.done [#allocation15], 2048
        $region92: #{prediction_model_forward.1} parent=79 // pred_fallthru
          _
        // Predicated region
        $region93: #{prediction_model_forward.1} parent=79 // pred_check
          %p561 = pneg %p200
        $region94: #{prediction_model_forward.1} parent=79 // pred_check_branch
          %563 = sbr.rel (%p561) target = $region96
        $region95: #{prediction_model_forward.1} parent=79 // pred_region
          %564 = dma.done [#allocation18], 15360
        $region96: #{prediction_model_forward.1} parent=79 // pred_fallthru
          _
        // Predicated region
        $region97: #{prediction_model_forward.1} parent=79 // pred_check
          %p565 = pneg %p221
        $region98: #{prediction_model_forward.1} parent=79 // pred_check_branch
          %567 = sbr.rel (%p565) target = $region100
        $region99: #{prediction_model_forward.1} parent=79 // pred_region
          %568 = dma.done [#allocation18], 10240
        $region100: #{prediction_model_forward.1} parent=79 // pred_fallthru
          _
        // Predicated region
        $region101: #{prediction_model_forward.1} parent=79 // pred_check
          %p569 = pneg %p263
        $region102: #{prediction_model_forward.1} parent=79 // pred_check_branch
          %571 = sbr.rel (%p569) target = $region104
        $region103: #{prediction_model_forward.1} parent=79 // pred_region
          %572 = dma.done [#allocation21], 5120
        $region104: #{prediction_model_forward.1} parent=79 // pred_fallthru
          _
        // Predicated region
        $region105: #{prediction_model_forward.1} parent=79 // pred_check
          %p573 = pneg %p284
        $region106: #{prediction_model_forward.1} parent=79 // pred_check_branch
          %575 = sbr.rel (%p573) target = $region108
        $region107: #{prediction_model_forward.1} parent=79 // pred_region
          %576 = dma.done [#allocation21], 5120
        $region108: #{prediction_model_forward.1} parent=79 // pred_fallthru
          _
        // Predicated region
        $region109: #{prediction_model_forward.1} parent=79 // pred_check
          %p577 = pneg %p305
        $region110: #{prediction_model_forward.1} parent=79 // pred_check_branch
          %579 = sbr.rel (%p577) target = $region112
        $region111: #{prediction_model_forward.1} parent=79 // pred_region
          %580 = dma.done [#allocation24], 5120
        $region112: #{prediction_model_forward.1} parent=79 // pred_fallthru
          _
        // Predicated region
        $region113: #{prediction_model_forward.1} parent=79 // pred_check
          %p581 = pneg %p326
        $region114: #{prediction_model_forward.1} parent=79 // pred_check_branch
          %583 = sbr.rel (%p581) target = $region116
        $region115: #{prediction_model_forward.1} parent=79 // pred_region
          %584 = dma.done [#allocation24], 3072
        $region116: #{prediction_model_forward.1} parent=79 // pred_fallthru
          _
        // Predicated region
        $region117: #{prediction_model_forward.1} parent=79 // pred_check
          %p585 = pneg %p347
        $region118: #{prediction_model_forward.1} parent=79 // pred_check_branch
          %587 = sbr.rel (%p585) target = $region120
        $region119: #{prediction_model_forward.1} parent=79 // pred_region
          %588 = dma.done [#allocation27], 3072
        $region120: #{prediction_model_forward.1} parent=79 // pred_fallthru
          _
        %p589 = scmp.lt.s32.totalorder %s32, 1
        %s590 = scalar_select %p589, %s32, 1
        %s591 = smul.addr %s590, 16
        %s592 = smul.addr %s591, 8
        %s593 = scalar_lea.vmem %s0, %s592
        %p594 = pneg %p53
        %p595 = pneg %p50
        %p596 = pneg %p74
        %p597 = pneg %p71
        %p598 = pneg %p95
        %p599 = pneg %p92
        %p600 = pneg %p116
        %p601 = pneg %p113
        %p602 = pneg %p137
        %p603 = pneg %p134
        %p604 = pneg %p158
        %p605 = pneg %p155
        %p606 = pneg %p179
        %p607 = pneg %p176
        %p608 = pneg %p200
        %p609 = pneg %p197
        %p610 = pneg %p221
        %p611 = pneg %p218
        %p612 = pneg %p242
        %p613 = pneg %p239
        %p614 = pneg %p263
        %p615 = pneg %p260
        %p616 = pneg %p284
        %p617 = pneg %p281
        %p618 = pneg %p305
        %p619 = pneg %p302
        %p620 = pneg %p326
        %p621 = pneg %p323
        %p622 = pneg %p347
        %p623 = pneg %p344
        %p624 = pneg %p373
        %p625 = pneg %p370
        %p626 = scmp.lt.s32.totalorder %s32, 1
        %s627 = scalar_select %p626, %s32, 1
        %s628 = smul.addr %s627, 2
        %s629 = smul.addr %s628, 8
        %s630 = scalar_lea.vmem %s15, %s629
        %p631 = scmp.lt.s32.totalorder %s32, 1
        %s632 = scalar_select %p631, %s32, 1
        %s633 = smul.addr %s632, 16
        %s634 = smul.addr %s633, 8
        %s635 = scalar_lea.vmem %s0, %s634
        %p636 = scmp.lt.s32.totalorder %s32, 1
        %s637 = scalar_select %p636, %s32, 1
        %s638 = smul.addr %s637, 2
        %s639 = smul.addr %s638, 8
        %s640 = scalar_lea.vmem %s15, %s639
        %642 = vst [vmem:[#allocation3] sm:$0x3] 0.0
        %643 = vst [vmem:[#allocation3 + $0xe] sm:$0xf] 0.0
        %644 = vst [vmem:[#allocation3 + $0x1e] sm:$0xf] 0.0
        %645 = vst [vmem:[#allocation3 + $0x2e] sm:$0xf] 0.0
        %646 = vst [vmem:[#allocation3 + $0x3e] sm:$0xf] 0.0
        %647 = vst [vmem:[#allocation3 + $0x4e] sm:$0xf] 0.0
        %648 = vst [vmem:[#allocation3 + $0x5e] sm:$0x3] 0.0
        %649 = vst [vmem:[#allocation5] sm:$0x3] 0.0
        %650 = vst [vmem:[#allocation5 + $0xa] sm:$0xf] 0.0
        %651 = vst [vmem:[#allocation5 + $0x16] sm:$0x3] 0.0
        %652 = vst [vmem:[#allocation6] sm:$0xf] 0.0
        %653 = vst [vmem:[#allocation6 + $0xc] sm:$0xf] 0.0
        %654 = vst [vmem:[#allocation7] sm:$0x3] 0.0
        %655 = vst [vmem:[#allocation7 + $0xe] sm:$0x3] 0.0
        %656 = vst [vmem:[#allocation8] sm:$0xf] 0.0
        %657 = vst [vmem:[#allocation8 + $0x10] sm:$0xf] 0.0
        %658 = vst [vmem:[#allocation9] sm:$0x3] 0.0
        %659 = vst [vmem:[#allocation9 + $0x12] sm:$0x3] 0.0
        %660 = vst [vmem:[#allocation10] sm:$0x1] 0.0
        %661 = vst [vmem:[#allocation10 + $0x11] sm:$0x1] 0.0
        %662 = vst [vmem:[#allocation11] sm:$0x1] 0.0
        %663 = vst [vmem:[#allocation11 + $0x11] sm:$0x1] 0.0
        %v664 = vld [vmem:[%s635] sm:$0xff]
        %v665 = vld [vmem:[%s635 + $0x8] sm:$0xff]
        %v666 = vld [vmem:[%s635 + $0x10] sm:$0xff]
        %v667 = vld [vmem:[%s635 + $0x18] sm:$0xff]
        %v668 = vld [vmem:[%s635 + $0x20] sm:$0xff]
        %v669 = vld [vmem:[%s635 + $0x28] sm:$0xff]
        %v670 = vld [vmem:[%s635 + $0x30] sm:$0xff]
        %v671 = vld [vmem:[%s635 + $0x38] sm:$0xff]
        %v672 = vld [vmem:[%s635 + $0x40] sm:$0xff]
        %v673 = vld [vmem:[%s635 + $0x48] sm:$0xff]
        %v674 = vld [vmem:[%s635 + $0x50] sm:$0xff]
        %v675 = vld [vmem:[%s635 + $0x58] sm:$0xff]
        %v676 = vld [vmem:[%s635 + $0x60] sm:$0xff]
        %v677 = vld [vmem:[%s635 + $0x68] sm:$0xff]
        %v678 = vld [vmem:[%s635 + $0x70] sm:$0xff]
        %v679 = vld [vmem:[%s635 + $0x78] sm:$0xff]
        %v680 = vld [vmem:[#allocation12] sm:$0xff]
        %v681 = vld [vmem:[#allocation12 + $0x8] sm:$0xff]
        %v682 = vld [vmem:[#allocation12 + $0x10] sm:$0xff]
        %v683 = vld [vmem:[#allocation12 + $0x18] sm:$0xff]
        %v684 = vld [vmem:[#allocation12 + $0x20] sm:$0xff]
        %v685 = vld [vmem:[#allocation12 + $0x28] sm:$0xff]
        %v686 = vld [vmem:[#allocation12 + $0x30] sm:$0xff]
        %v687 = vld [vmem:[#allocation12 + $0x38] sm:$0xff]
        %v688 = vld [vmem:[#allocation12 + $0x40] sm:$0xff]
        %v689 = vld [vmem:[#allocation12 + $0x48] sm:$0xff]
        %v690 = vld [vmem:[#allocation12 + $0x50] sm:$0xff]
        %v691 = vld [vmem:[#allocation12 + $0x58] sm:$0xff]
        %v692 = vld [vmem:[#allocation12 + $0x60] sm:$0xff]
        %v693 = vld [vmem:[#allocation12 + $0x68] sm:$0xff]
        %v694 = vld [vmem:[#allocation12 + $0x70] sm:$0xff]
        %v695 = vld [vmem:[#allocation12 + $0x78] sm:$0xff]
        %696 = vmatprep.subr.mxu0 0.0
        %697 = vmatpush1.msra.mxu0 %v680
        %698 = vmatprep.subr.mxu0 0.0
        %699 = vmatpush1.msra.mxu0 %v681
        %700 = vmatprep.subr.mxu0 0.0
        %701 = vmatpush1.msra.mxu0 %v682
        %702 = vmatprep.subr.mxu0 0.0
        %703 = vmatpush1.msra.mxu0 %v683
        %704 = vmatprep.subr.mxu0 0.0
        %705 = vmatpush1.msra.mxu0 %v684
        %706 = vmatprep.subr.mxu0 0.0
        %707 = vmatpush1.msra.mxu0 %v685
        %708 = vmatprep.subr.mxu0 0.0
        %709 = vmatpush1.msra.mxu0 %v686
        %710 = vmatprep.subr.mxu0 0.0
        %711 = vmatpush1.msra.mxu0 %v687
        %712 = vmatprep.subr.mxu0 0.0
        %713 = vmatpush1.msra.mxu0 %v688
        %714 = vmatprep.subr.mxu0 0.0
        %715 = vmatpush1.msra.mxu0 %v689
        %716 = vmatprep.subr.mxu0 0.0
        %717 = vmatpush1.msra.mxu0 %v690
        %718 = vmatprep.subr.mxu0 0.0
        %719 = vmatpush1.msra.mxu0 %v691
        %720 = vmatprep.subr.mxu0 0.0
        %721 = vmatpush1.msra.mxu0 %v692
        %722 = vmatprep.subr.mxu0 0.0
        %723 = vmatpush1.msra.mxu0 %v693
        %724 = vmatprep.subr.mxu0 0.0
        %725 = vmatpush1.msra.mxu0 %v694
        %726 = vmatprep.subr.mxu0 0.0
        %727 = vmatpush1.msra.mxu0 %v695
        %728 = vmatprep.subr.mxu0 0.0
        %729 = vmatpush1.msra.mxu0 0.0
        %730 = vmatprep.subr.mxu0 0.0
        %731 = vmatpush1.msra.mxu0 0.0
        %732 = vmatprep.subr.mxu0 0.0
        %733 = vmatpush1.msra.mxu0 0.0
        %734 = vmatprep.subr.mxu0 0.0
        %735 = vmatpush1.msra.mxu0 0.0
        %736 = vmatprep.subr.mxu0 0.0
        %737 = vmatpush1.msra.mxu0 0.0
        %738 = vmatprep.subr.mxu0 0.0
        %739 = vmatpush1.msra.mxu0 0.0
        %740 = vmatprep.subr.mxu0 0.0
        %741 = vmatpush1.msra.mxu0 0.0
        %742 = vmatprep.subr.mxu0 0.0
        %743 = vmatpush1.msra.mxu0 0.0
        %744 = vmatprep.subr.mxu0 0.0
        %745 = vmatpush1.msra.mxu0 0.0
        %746 = vmatprep.subr.mxu0 0.0
        %747 = vmatpush1.msra.mxu0 0.0
        %748 = vmatprep.subr.mxu0 0.0
        %749 = vmatpush1.msra.mxu0 0.0
        %750 = vmatprep.subr.mxu0 0.0
        %751 = vmatpush1.msra.mxu0 0.0
        %752 = vmatprep.subr.mxu0 0.0
        %753 = vmatpush1.msra.mxu0 0.0
        %754 = vmatprep.subr.mxu0 0.0
        %755 = vmatpush1.msra.mxu0 0.0
        %756 = vmatprep.subr.mxu0 0.0
        %757 = vmatpush1.msra.mxu0 0.0
        %758 = vmatprep.subr.mxu0 0.0
        %759 = vmatpush1.msra.mxu0 0.0
        %760 = vmatprep.mubr.f32.mxu0 0.0
        %761 = vmatmul.mubr.f32.gmra.mrb[0].mxu0 %v664
        %v762 = vpop.f32.mrb[0].mxu0
        %v763 = vadd.f32 0.0, %v762
        %v764 = vpop.f32.mrb[0].mxu0
        %765 = vmatprep.mubr.f32.mxu0 0.0
        %766 = vmatmul.mubr.f32.gmra.mrb[0].mxu0 %v665
        %v767 = vpop.f32.mrb[0].mxu0
        %v768 = vadd.f32 0.0, %v767
        %v769 = vpop.f32.mrb[0].mxu0
        %770 = vmatprep.mubr.f32.mxu0 0.0
        %771 = vmatmul.mubr.f32.gmra.mrb[0].mxu0 %v666
        %v772 = vpop.f32.mrb[0].mxu0
        %v773 = vadd.f32 0.0, %v772
        %v774 = vpop.f32.mrb[0].mxu0
        %775 = vmatprep.mubr.f32.mxu0 0.0
        %776 = vmatmul.mubr.f32.gmra.mrb[0].mxu0 %v667
        %v777 = vpop.f32.mrb[0].mxu0
        %v778 = vadd.f32 0.0, %v777
        %v779 = vpop.f32.mrb[0].mxu0
        %780 = vmatprep.mubr.f32.mxu0 0.0
        %781 = vmatmul.mubr.f32.gmra.mrb[0].mxu0 %v668
        %v782 = vpop.f32.mrb[0].mxu0
        %v783 = vadd.f32 0.0, %v782
        %v784 = vpop.f32.mrb[0].mxu0
        %785 = vmatprep.mubr.f32.mxu0 0.0
        %786 = vmatmul.mubr.f32.gmra.mrb[0].mxu0 %v669
        %v787 = vpop.f32.mrb[0].mxu0
        %v788 = vadd.f32 0.0, %v787
        %v789 = vpop.f32.mrb[0].mxu0
        %790 = vmatprep.mubr.f32.mxu0 0.0
        %791 = vmatmul.mubr.f32.gmra.mrb[0].mxu0 %v670
        %v792 = vpop.f32.mrb[0].mxu0
        %v793 = vadd.f32 0.0, %v792
        %v794 = vpop.f32.mrb[0].mxu0
        %795 = vmatprep.mubr.f32.mxu0 0.0
        %796 = vmatmul.mubr.f32.gmra.mrb[0].mxu0 %v671
        %v797 = vpop.f32.mrb[0].mxu0
        %v798 = vadd.f32 0.0, %v797
        %v799 = vpop.f32.mrb[0].mxu0
        %800 = vmatprep.mubr.f32.mxu0 0.0
        %801 = vmatmul.mubr.f32.gmra.mrb[0].mxu0 %v672
        %v802 = vpop.f32.mrb[0].mxu0
        %v803 = vadd.f32 0.0, %v802
        %v804 = vpop.f32.mrb[0].mxu0
        %805 = vmatprep.mubr.f32.mxu0 0.0
        %806 = vmatmul.mubr.f32.gmra.mrb[0].mxu0 %v673
        %v807 = vpop.f32.mrb[0].mxu0
        %v808 = vadd.f32 0.0, %v807
        %v809 = vpop.f32.mrb[0].mxu0
        %810 = vmatprep.mubr.f32.mxu0 0.0
        %811 = vmatmul.mubr.f32.gmra.mrb[0].mxu0 %v674
        %v812 = vpop.f32.mrb[0].mxu0
        %v813 = vadd.f32 0.0, %v812
        %v814 = vpop.f32.mrb[0].mxu0
        %815 = vmatprep.mubr.f32.mxu0 0.0
        %816 = vmatmul.mubr.f32.gmra.mrb[0].mxu0 %v675
        %v817 = vpop.f32.mrb[0].mxu0
        %v818 = vadd.f32 0.0, %v817
        %v819 = vpop.f32.mrb[0].mxu0
        %820 = vmatprep.mubr.f32.mxu0 0.0
        %821 = vmatmul.mubr.f32.gmra.mrb[0].mxu0 %v676
        %v822 = vpop.f32.mrb[0].mxu0
        %v823 = vadd.f32 0.0, %v822
        %v824 = vpop.f32.mrb[0].mxu0
        %825 = vmatprep.mubr.f32.mxu0 0.0
        %826 = vmatmul.mubr.f32.gmra.mrb[0].mxu0 %v677
        %v827 = vpop.f32.mrb[0].mxu0
        %v828 = vadd.f32 0.0, %v827
        %v829 = vpop.f32.mrb[0].mxu0
        %830 = vmatprep.mubr.f32.mxu0 0.0
        %831 = vmatmul.mubr.f32.gmra.mrb[0].mxu0 %v678
        %v832 = vpop.f32.mrb[0].mxu0
        %v833 = vadd.f32 0.0, %v832
        %v834 = vpop.f32.mrb[0].mxu0
        %835 = vmatprep.mubr.f32.mxu0 0.0
        %836 = vmatmul.mubr.f32.gmra.mrb[0].mxu0 %v679
        %v837 = vpop.f32.mrb[0].mxu0
        %v838 = vadd.f32 0.0, %v837
        %v839 = vpop.f32.mrb[0].mxu0
        %840 = vdwg.mxu0
        %v841 = vld [vmem:[#allocation14] sm:$0xff]
        %v842 = vld [vmem:[#allocation14 + $0x8] sm:$0xff]
        %v843 = vld [vmem:[#allocation14 + $0x10] sm:$0xff]
        %v844 = vld [vmem:[#allocation14 + $0x18] sm:$0xff]
        %v845 = vld [vmem:[#allocation14 + $0x20] sm:$0xff]
        %v846 = vld [vmem:[#allocation14 + $0x28] sm:$0xff]
        %v847 = vld [vmem:[#allocation14 + $0x30] sm:$0xff]
        %v848 = vld [vmem:[#allocation14 + $0x38] sm:$0xff]
        %v849 = vld [vmem:[#allocation14 + $0x40] sm:$0xff]
        %v850 = vld [vmem:[#allocation14 + $0x48] sm:$0xff]
        %v851 = vld [vmem:[#allocation14 + $0x50] sm:$0xff]
        %v852 = vld [vmem:[#allocation14 + $0x58] sm:$0xff]
        %v853 = vld [vmem:[#allocation14 + $0x60] sm:$0xff]
        %v854 = vld [vmem:[#allocation14 + $0x68] sm:$0xff]
        %v855 = vld [vmem:[#allocation14 + $0x70] sm:$0xff]
        %v856 = vld [vmem:[#allocation14 + $0x78] sm:$0xff]
        %857 = vmatprep.subr.mxu0 0.0
        %858 = vmatpush1.msra.mxu0 %v763
        %859 = vmatprep.subr.mxu0 0.0
        %860 = vmatpush1.msra.mxu0 %v768
        %861 = vmatprep.subr.mxu0 0.0
        %862 = vmatpush1.msra.mxu0 %v773
        %863 = vmatprep.subr.mxu0 0.0
        %864 = vmatpush1.msra.mxu0 %v778
        %865 = vmatprep.subr.mxu0 0.0
        %866 = vmatpush1.msra.mxu0 %v783
        %867 = vmatprep.subr.mxu0 0.0
        %868 = vmatpush1.msra.mxu0 %v788
        %869 = vmatprep.subr.mxu0 0.0
        %870 = vmatpush1.msra.mxu0 %v793
        %871 = vmatprep.subr.mxu0 0.0
        %872 = vmatpush1.msra.mxu0 %v798
        %873 = vmatprep.subr.mxu0 0.0
        %874 = vmatpush1.msra.mxu0 %v803
        %875 = vmatprep.subr.mxu0 0.0
        %876 = vmatpush1.msra.mxu0 %v808
        %877 = vmatprep.subr.mxu0 0.0
        %878 = vmatpush1.msra.mxu0 %v813
        %879 = vmatprep.subr.mxu0 0.0
        %880 = vmatpush1.msra.mxu0 %v818
        %881 = vmatprep.subr.mxu0 0.0
        %882 = vmatpush1.msra.mxu0 %v823
        %883 = vmatprep.subr.mxu0 0.0
        %884 = vmatpush1.msra.mxu0 %v828
        %885 = vmatprep.subr.mxu0 0.0
        %886 = vmatpush1.msra.mxu0 %v833
        %887 = vmatprep.subr.mxu0 0.0
        %888 = vmatpush1.msra.mxu0 %v838
        %889 = vmatprep.subr.mxu0 0.0
        %890 = vmatpush1.msra.mxu0 0.0
        %891 = vmatprep.subr.mxu0 0.0
        %892 = vmatpush1.msra.mxu0 0.0
        %893 = vmatprep.subr.mxu0 0.0
        %894 = vmatpush1.msra.mxu0 0.0
        %895 = vmatprep.subr.mxu0 0.0
        %896 = vmatpush1.msra.mxu0 0.0
        %897 = vmatprep.subr.mxu0 0.0
        %898 = vmatpush1.msra.mxu0 0.0
        %899 = vmatprep.subr.mxu0 0.0
        %900 = vmatpush1.msra.mxu0 0.0
        %901 = vmatprep.subr.mxu0 0.0
        %902 = vmatpush1.msra.mxu0 0.0
        %903 = vmatprep.subr.mxu0 0.0
        %904 = vmatpush1.msra.mxu0 0.0
        %905 = vmatprep.subr.mxu0 0.0
        %906 = vmatpush1.msra.mxu0 0.0
        %907 = vmatprep.subr.mxu0 0.0
        %908 = vmatpush1.msra.mxu0 0.0
        %909 = vmatprep.subr.mxu0 0.0
        %910 = vmatpush1.msra.mxu0 0.0
        %911 = vmatprep.subr.mxu0 0.0
        %912 = vmatpush1.msra.mxu0 0.0
        %913 = vmatprep.subr.mxu0 0.0
        %914 = vmatpush1.msra.mxu0 0.0
        %915 = vmatprep.subr.mxu0 0.0
        %916 = vmatpush1.msra.mxu0 0.0
        %917 = vmatprep.subr.mxu0 0.0
        %918 = vmatpush1.msra.mxu0 0.0
        %919 = vmatprep.subr.mxu0 0.0
        %920 = vmatpush1.msra.mxu0 0.0
        %921 = vmatprep.mubr.f32.mxu0 0.0
        %922 = vmatmul.mubr.f32.gmra.mrb[0].mxu0 %v841
        %v923 = vpop.f32.mrb[0].mxu0
        %v924 = vadd.f32 0.0, %v923
        %v925 = vpop.f32.mrb[0].mxu0
        %926 = vmatprep.mubr.f32.mxu0 0.0
        %927 = vmatmul.mubr.f32.gmra.mrb[0].mxu0 %v842
        %v928 = vpop.f32.mrb[0].mxu0
        %v929 = vadd.f32 0.0, %v928
        %v930 = vpop.f32.mrb[0].mxu0
        %931 = vmatprep.mubr.f32.mxu0 0.0
        %932 = vmatmul.mubr.f32.gmra.mrb[0].mxu0 %v843
        %v933 = vpop.f32.mrb[0].mxu0
        %v934 = vadd.f32 0.0, %v933
        %v935 = vpop.f32.mrb[0].mxu0
        %936 = vmatprep.mubr.f32.mxu0 0.0
        %937 = vmatmul.mubr.f32.gmra.mrb[0].mxu0 %v844
        %v938 = vpop.f32.mrb[0].mxu0
        %v939 = vadd.f32 0.0, %v938
        %v940 = vpop.f32.mrb[0].mxu0
        %941 = vmatprep.mubr.f32.mxu0 0.0
        %942 = vmatmul.mubr.f32.gmra.mrb[0].mxu0 %v845
        %v943 = vpop.f32.mrb[0].mxu0
        %v944 = vadd.f32 0.0, %v943
        %v945 = vpop.f32.mrb[0].mxu0
        %946 = vmatprep.mubr.f32.mxu0 0.0
        %947 = vmatmul.mubr.f32.gmra.mrb[0].mxu0 %v846
        %v948 = vpop.f32.mrb[0].mxu0
        %v949 = vadd.f32 0.0, %v948
        %v950 = vpop.f32.mrb[0].mxu0
        %951 = vmatprep.mubr.f32.mxu0 0.0
        %952 = vmatmul.mubr.f32.gmra.mrb[0].mxu0 %v847
        %v953 = vpop.f32.mrb[0].mxu0
        %v954 = vadd.f32 0.0, %v953
        %v955 = vpop.f32.mrb[0].mxu0
        %956 = vmatprep.mubr.f32.mxu0 0.0
        %957 = vmatmul.mubr.f32.gmra.mrb[0].mxu0 %v848
        %v958 = vpop.f32.mrb[0].mxu0
        %v959 = vadd.f32 0.0, %v958
        %v960 = vpop.f32.mrb[0].mxu0
        %961 = vmatprep.mubr.f32.mxu0 0.0
        %962 = vmatmul.mubr.f32.gmra.mrb[0].mxu0 %v849
        %v963 = vpop.f32.mrb[0].mxu0
        %v964 = vadd.f32 0.0, %v963
        %v965 = vpop.f32.mrb[0].mxu0
        %966 = vmatprep.mubr.f32.mxu0 0.0
        %967 = vmatmul.mubr.f32.gmra.mrb[0].mxu0 %v850
        %v968 = vpop.f32.mrb[0].mxu0
        %v969 = vadd.f32 0.0, %v968
        %v970 = vpop.f32.mrb[0].mxu0
        %971 = vmatprep.mubr.f32.mxu0 0.0
        %972 = vmatmul.mubr.f32.gmra.mrb[0].mxu0 %v851
        %v973 = vpop.f32.mrb[0].mxu0
        %v974 = vadd.f32 0.0, %v973
        %v975 = vpop.f32.mrb[0].mxu0
        %976 = vmatprep.mubr.f32.mxu0 0.0
        %977 = vmatmul.mubr.f32.gmra.mrb[0].mxu0 %v852
        %v978 = vpop.f32.mrb[0].mxu0
        %v979 = vadd.f32 0.0, %v978
        %v980 = vpop.f32.mrb[0].mxu0
        %981 = vmatprep.mubr.f32.mxu0 0.0
        %982 = vmatmul.mubr.f32.gmra.mrb[0].mxu0 %v853
        %v983 = vpop.f32.mrb[0].mxu0
        %v984 = vadd.f32 0.0, %v983
        %v985 = vpop.f32.mrb[0].mxu0
        %986 = vmatprep.mubr.f32.mxu0 0.0
        %987 = vmatmul.mubr.f32.gmra.mrb[0].mxu0 %v854
        %v988 = vpop.f32.mrb[0].mxu0
        %v989 = vadd.f32 0.0, %v988
        %v990 = vpop.f32.mrb[0].mxu0
        %991 = vmatprep.mubr.f32.mxu0 0.0
        %992 = vmatmul.mubr.f32.gmra.mrb[0].mxu0 %v855
        %v993 = vpop.f32.mrb[0].mxu0
        %v994 = vadd.f32 0.0, %v993
        %v995 = vpop.f32.mrb[0].mxu0
        %996 = vmatprep.mubr.f32.mxu0 0.0
        %997 = vmatmul.mubr.f32.gmra.mrb[0].mxu0 %v856
        %v998 = vpop.f32.mrb[0].mxu0
        %v999 = vadd.f32 0.0, %v998
        %v1000 = vpop.f32.mrb[0].mxu0
        %1001 = vdwg.mxu0
        %1002 = vst [vmem:[#allocation2] sm:$0xff] %v924
        %1003 = vst [vmem:[#allocation2 + $0x8] sm:$0xff] %v929
        %1004 = vst [vmem:[#allocation2 + $0x10] sm:$0xff] %v934
        %1005 = vst [vmem:[#allocation2 + $0x18] sm:$0xff] %v939
        %1006 = vst [vmem:[#allocation2 + $0x20] sm:$0xff] %v944
        %1007 = vst [vmem:[#allocation2 + $0x28] sm:$0xff] %v949
        %1008 = vst [vmem:[#allocation2 + $0x30] sm:$0xff] %v954
        %1009 = vst [vmem:[#allocation2 + $0x38] sm:$0xff] %v959
        %1010 = vst [vmem:[#allocation2 + $0x40] sm:$0xff] %v964
        %1011 = vst [vmem:[#allocation2 + $0x48] sm:$0xff] %v969
        %1012 = vst [vmem:[#allocation2 + $0x50] sm:$0xff] %v974
        %1013 = vst [vmem:[#allocation2 + $0x58] sm:$0xff] %v979
        %1014 = vst [vmem:[#allocation2 + $0x60] sm:$0xff] %v984
        %1015 = vst [vmem:[#allocation2 + $0x68] sm:$0xff] %v989
        %1016 = vst [vmem:[#allocation2 + $0x70] sm:$0xff] %v994
        %1017 = vst [vmem:[#allocation2 + $0x78] sm:$0xff] %v999
        %v1018 = vld [vmem:[#allocation2] sm:$0xff]
        %v1019 = vld [vmem:[#allocation2 + $0x8] sm:$0xff]
        %v1020 = vld [vmem:[#allocation2 + $0x10] sm:$0xff]
        %v1021 = vld [vmem:[#allocation2 + $0x18] sm:$0xff]
        %v1022 = vld [vmem:[#allocation2 + $0x20] sm:$0xff]
        %v1023 = vld [vmem:[#allocation2 + $0x28] sm:$0xff]
        %v1024 = vld [vmem:[#allocation2 + $0x30] sm:$0xff]
        %v1025 = vld [vmem:[#allocation2 + $0x38] sm:$0xff]
        %v1026 = vld [vmem:[#allocation2 + $0x40] sm:$0xff]
        %v1027 = vld [vmem:[#allocation2 + $0x48] sm:$0xff]
        %v1028 = vld [vmem:[#allocation2 + $0x50] sm:$0xff]
        %v1029 = vld [vmem:[#allocation2 + $0x58] sm:$0xf]
        %v1030 = vpack.c.bf16 %v1019, %v1018
        %v1031 = vpack.c.bf16 %v1021, %v1020
        %v1032 = vpack.c.bf16 %v1023, %v1022
        %v1033 = vpack.c.bf16 %v1025, %v1024
        %v1034 = vpack.c.bf16 %v1027, %v1026
        %v1035 = vpack.c.bf16 %v1029, %v1028
        %v1036 = vld [vmem:[#allocation2 + $0x1] sm:$0xff]
        %v1037 = vld [vmem:[#allocation2 + $0x9] sm:$0xff]
        %v1038 = vld [vmem:[#allocation2 + $0x11] sm:$0xff]
        %v1039 = vld [vmem:[#allocation2 + $0x19] sm:$0xff]
        %v1040 = vld [vmem:[#allocation2 + $0x21] sm:$0xff]
        %v1041 = vld [vmem:[#allocation2 + $0x29] sm:$0xff]
        %v1042 = vld [vmem:[#allocation2 + $0x31] sm:$0xff]
        %v1043 = vld [vmem:[#allocation2 + $0x39] sm:$0xff]
        %v1044 = vld [vmem:[#allocation2 + $0x41] sm:$0xff]
        %v1045 = vld [vmem:[#allocation2 + $0x49] sm:$0xff]
        %v1046 = vld [vmem:[#allocation2 + $0x51] sm:$0xff]
        %v1047 = vld [vmem:[#allocation2 + $0x59] sm:$0xf]
        %v1048 = vpack.c.bf16 %v1037, %v1036
        %v1049 = vpack.c.bf16 %v1039, %v1038
        %v1050 = vpack.c.bf16 %v1041, %v1040
        %v1051 = vpack.c.bf16 %v1043, %v1042
        %v1052 = vpack.c.bf16 %v1045, %v1044
        %v1053 = vpack.c.bf16 %v1047, %v1046
        %v1054 = vld [vmem:[#allocation2 + $0x2] sm:$0xff]
        %v1055 = vld [vmem:[#allocation2 + $0xa] sm:$0xff]
        %v1056 = vld [vmem:[#allocation2 + $0x12] sm:$0xff]
        %v1057 = vld [vmem:[#allocation2 + $0x1a] sm:$0xff]
        %v1058 = vld [vmem:[#allocation2 + $0x22] sm:$0xff]
        %v1059 = vld [vmem:[#allocation2 + $0x2a] sm:$0xff]
        %v1060 = vld [vmem:[#allocation2 + $0x32] sm:$0xff]
        %v1061 = vld [vmem:[#allocation2 + $0x3a] sm:$0xff]
        %v1062 = vld [vmem:[#allocation2 + $0x42] sm:$0xff]
        %v1063 = vld [vmem:[#allocation2 + $0x4a] sm:$0xff]
        %v1064 = vld [vmem:[#allocation2 + $0x52] sm:$0xff]
        %v1065 = vld [vmem:[#allocation2 + $0x5a] sm:$0xf]
        %v1066 = vpack.c.bf16 %v1055, %v1054
        %v1067 = vpack.c.bf16 %v1057, %v1056
        %v1068 = vpack.c.bf16 %v1059, %v1058
        %v1069 = vpack.c.bf16 %v1061, %v1060
        %v1070 = vpack.c.bf16 %v1063, %v1062
        %v1071 = vpack.c.bf16 %v1065, %v1064
        %v1072 = vld [vmem:[#allocation2 + $0x3] sm:$0xff]
        %v1073 = vld [vmem:[#allocation2 + $0xb] sm:$0xff]
        %v1074 = vld [vmem:[#allocation2 + $0x13] sm:$0xff]
        %v1075 = vld [vmem:[#allocation2 + $0x1b] sm:$0xff]
        %v1076 = vld [vmem:[#allocation2 + $0x23] sm:$0xff]
        %v1077 = vld [vmem:[#allocation2 + $0x2b] sm:$0xff]
        %v1078 = vld [vmem:[#allocation2 + $0x33] sm:$0xff]
        %v1079 = vld [vmem:[#allocation2 + $0x3b] sm:$0xff]
        %v1080 = vld [vmem:[#allocation2 + $0x43] sm:$0xff]
        %v1081 = vld [vmem:[#allocation2 + $0x4b] sm:$0xff]
        %v1082 = vld [vmem:[#allocation2 + $0x53] sm:$0xff]
        %v1083 = vld [vmem:[#allocation2 + $0x5b] sm:$0xf]
        %v1084 = vpack.c.bf16 %v1073, %v1072
        %v1085 = vpack.c.bf16 %v1075, %v1074
        %v1086 = vpack.c.bf16 %v1077, %v1076
        %v1087 = vpack.c.bf16 %v1079, %v1078
        %v1088 = vpack.c.bf16 %v1081, %v1080
        %v1089 = vpack.c.bf16 %v1083, %v1082
        %v1090 = vld [vmem:[#allocation2 + $0x4] sm:$0xff]
        %v1091 = vld [vmem:[#allocation2 + $0xc] sm:$0xff]
        %v1092 = vld [vmem:[#allocation2 + $0x14] sm:$0xff]
        %v1093 = vld [vmem:[#allocation2 + $0x1c] sm:$0xff]
        %v1094 = vld [vmem:[#allocation2 + $0x24] sm:$0xff]
        %v1095 = vld [vmem:[#allocation2 + $0x2c] sm:$0xff]
        %v1096 = vld [vmem:[#allocation2 + $0x34] sm:$0xff]
        %v1097 = vld [vmem:[#allocation2 + $0x3c] sm:$0xff]
        %v1098 = vld [vmem:[#allocation2 + $0x44] sm:$0xff]
        %v1099 = vld [vmem:[#allocation2 + $0x4c] sm:$0xff]
        %v1100 = vld [vmem:[#allocation2 + $0x54] sm:$0xff]
        %v1101 = vld [vmem:[#allocation2 + $0x5c] sm:$0xf]
        %v1102 = vpack.c.bf16 %v1091, %v1090
        %v1103 = vpack.c.bf16 %v1093, %v1092
        %v1104 = vpack.c.bf16 %v1095, %v1094
        %v1105 = vpack.c.bf16 %v1097, %v1096
        %v1106 = vpack.c.bf16 %v1099, %v1098
        %v1107 = vpack.c.bf16 %v1101, %v1100
        %v1108 = vld [vmem:[%s5] sm:$0xf]
        %v1109 = vld [vmem:[%s5 + $0x4] sm:$0xf]
        %v1110 = vld [vmem:[%s5 + $0x8] sm:$0xf]
        %v1111 = vld [vmem:[%s5 + $0xc] sm:$0xf]
        %v1112 = vld [vmem:[%s5 + $0x10] sm:$0xf]
        %v1113 = vld [vmem:[%s5 + $0x14] sm:$0xf]
        %v1114 = vld [vmem:[%s5 + $0x18] sm:$0xf]
        %v1115 = vld [vmem:[%s5 + $0x1c] sm:$0xf]
        %v1116 = vld [vmem:[%s5 + $0x20] sm:$0xf]
        %v1117 = vld [vmem:[%s5 + $0x24] sm:$0xf]
        %v1118 = vld [vmem:[%s5 + $0x28] sm:$0xf]
        %v1119 = vld [vmem:[%s5 + $0x2c] sm:$0xf]
        %v1120 = vld [vmem:[%s5 + $0x30] sm:$0xf]
        %v1121 = vld [vmem:[%s5 + $0x34] sm:$0xf]
        %v1122 = vld [vmem:[%s5 + $0x38] sm:$0xf]
        %v1123 = vld [vmem:[%s5 + $0x3c] sm:$0xf]
        %v1124 = vld [vmem:[%s5 + $0x40] sm:$0xf]
        %v1125 = vld [vmem:[%s5 + $0x44] sm:$0xf]
        %v1126 = vld [vmem:[%s5 + $0x48] sm:$0xf]
        %v1127 = vld [vmem:[%s5 + $0x4c] sm:$0xf]
        %v1128 = vld [vmem:[%s5 + $0x50] sm:$0xf]
        %v1129 = vld [vmem:[%s5 + $0x54] sm:$0xf]
        %v1130 = vld [vmem:[%s5 + $0x58] sm:$0xf]
        %v1131 = vld [vmem:[%s5 + $0x5c] sm:$0xf]
        %v1132 = vld [vmem:[%s5 + $0x60] sm:$0xf]
        %v1133 = vld [vmem:[%s5 + $0x64] sm:$0xf]
        %v1134 = vld [vmem:[%s5 + $0x68] sm:$0xf]
        %v1135 = vld [vmem:[%s5 + $0x6c] sm:$0xf]
        %v1136 = vld [vmem:[%s5 + $0x70] sm:$0xf]
        %v1137 = vld [vmem:[%s5 + $0x74] sm:$0xf]
        %v1138 = vld [vmem:[%s5 + $0x78] sm:$0xf]
        %v1139 = vld [vmem:[%s5 + $0x7c] sm:$0xf]
        %v1140 = vld [vmem:[%s5 + $0x80] sm:$0xf]
        %v1141 = vld [vmem:[%s5 + $0x84] sm:$0xf]
        %v1142 = vld [vmem:[%s5 + $0x88] sm:$0xf]
        %v1143 = vld [vmem:[%s5 + $0x8c] sm:$0xf]
        %v1144 = vld [vmem:[%s5 + $0x90] sm:$0xf]
        %v1145 = vld [vmem:[%s5 + $0x94] sm:$0xf]
        %v1146 = vld [vmem:[%s5 + $0x98] sm:$0xf]
        %v1147 = vld [vmem:[%s5 + $0x9c] sm:$0xf]
        %v1148 = vld [vmem:[%s5 + $0xa0] sm:$0xf]
        %v1149 = vld [vmem:[%s5 + $0xa4] sm:$0xf]
        %v1150 = vld [vmem:[%s5 + $0xa8] sm:$0xf]
        %v1151 = vld [vmem:[%s5 + $0xac] sm:$0xf]
        %v1152 = vld [vmem:[%s5 + $0xb0] sm:$0xf]
        %v1153 = vld [vmem:[%s5 + $0xb4] sm:$0xf]
        %v1154 = vld [vmem:[%s5 + $0xb8] sm:$0xf]
        %v1155 = vld [vmem:[%s5 + $0xbc] sm:$0xf]
        %v1156 = vld [vmem:[%s5 + $0xc0] sm:$0xf]
        %v1157 = vld [vmem:[%s5 + $0xc4] sm:$0xf]
        %v1158 = vld [vmem:[%s5 + $0xc8] sm:$0xf]
        %v1159 = vld [vmem:[%s5 + $0xcc] sm:$0xf]
        %v1160 = vld [vmem:[%s5 + $0xd0] sm:$0xf]
        %v1161 = vld [vmem:[%s5 + $0xd4] sm:$0xf]
        %v1162 = vld [vmem:[%s5 + $0xd8] sm:$0xf]
        %v1163 = vld [vmem:[%s5 + $0xdc] sm:$0xf]
        %v1164 = vld [vmem:[%s5 + $0xe0] sm:$0xf]
        %v1165 = vld [vmem:[%s5 + $0xe4] sm:$0xf]
        %v1166 = vld [vmem:[%s5 + $0xe8] sm:$0xf]
        %v1167 = vld [vmem:[%s5 + $0xec] sm:$0xf]
        %v1168 = vld [vmem:[%s5 + $0xf0] sm:$0xf]
        %v1169 = vld [vmem:[%s5 + $0xf4] sm:$0xf]
        %v1170 = vld [vmem:[%s5 + $0xf8] sm:$0xf]
        %v1171 = vld [vmem:[%s5 + $0xfc] sm:$0xf]
        %v1172 = vld [vmem:[%s5 + $0x100] sm:$0xf]
        %v1173 = vld [vmem:[%s5 + $0x104] sm:$0xf]
        %v1174 = vld [vmem:[%s5 + $0x108] sm:$0xf]
        %v1175 = vld [vmem:[%s5 + $0x10c] sm:$0xf]
        %v1176 = vld [vmem:[%s5 + $0x110] sm:$0xf]
        %v1177 = vld [vmem:[%s5 + $0x114] sm:$0xf]
        %v1178 = vld [vmem:[%s5 + $0x118] sm:$0xf]
        %v1179 = vld [vmem:[%s5 + $0x11c] sm:$0xf]
        %v1180 = vld [vmem:[%s5 + $0x120] sm:$0xf]
        %v1181 = vld [vmem:[%s5 + $0x124] sm:$0xf]
        %v1182 = vld [vmem:[%s5 + $0x128] sm:$0xf]
        %v1183 = vld [vmem:[%s5 + $0x12c] sm:$0xf]
        %v1184 = vld [vmem:[%s5 + $0x130] sm:$0xf]
        %v1185 = vld [vmem:[%s5 + $0x134] sm:$0xf]
        %v1186 = vld [vmem:[%s5 + $0x138] sm:$0xf]
        %v1187 = vld [vmem:[%s5 + $0x13c] sm:$0xf]
        %v1188 = vld [vmem:[#allocation2 + $0x58] sm:$0xff]
        %v1189 = vld [vmem:[#allocation2 + $0x60] sm:$0xff]
        %v1190 = vld [vmem:[#allocation2 + $0x68] sm:$0xf]
        %v1191 = vpack.c.bf16 %v1188, %v1028
        %v1192 = vpack.c.bf16 %v1190, %v1189
        %v1193 = vld [vmem:[#allocation2 + $0x59] sm:$0xff]
        %v1194 = vld [vmem:[#allocation2 + $0x61] sm:$0xff]
        %v1195 = vld [vmem:[#allocation2 + $0x69] sm:$0xf]
        %v1196 = vpack.c.bf16 %v1193, %v1046
        %v1197 = vpack.c.bf16 %v1195, %v1194
        %v1198 = vld [vmem:[#allocation2 + $0x5a] sm:$0xff]
        %v1199 = vld [vmem:[#allocation2 + $0x62] sm:$0xff]
        %v1200 = vld [vmem:[#allocation2 + $0x6a] sm:$0xf]
        %v1201 = vpack.c.bf16 %v1198, %v1064
        %v1202 = vpack.c.bf16 %v1200, %v1199
        %v1203 = vld [vmem:[#allocation2 + $0x5b] sm:$0xff]
        %v1204 = vld [vmem:[#allocation2 + $0x63] sm:$0xff]
        %v1205 = vld [vmem:[#allocation2 + $0x6b] sm:$0xf]
        %v1206 = vpack.c.bf16 %v1203, %v1082
        %v1207 = vpack.c.bf16 %v1205, %v1204
        %v1208 = vld [vmem:[#allocation2 + $0x5c] sm:$0xff]
        %v1209 = vld [vmem:[#allocation2 + $0x64] sm:$0xff]
        %v1210 = vld [vmem:[#allocation2 + $0x6c] sm:$0xf]
        %v1211 = vpack.c.bf16 %v1208, %v1100
        %v1212 = vpack.c.bf16 %v1210, %v1209
        %s1213 = scalar_lea.vmem %s5, 320
        %v1214 = vld [vmem:[%s1213] sm:$0xf]
        %v1215 = vld [vmem:[%s1213 + $0x4] sm:$0xf]
        %v1216 = vld [vmem:[%s1213 + $0x8] sm:$0xf]
        %v1217 = vld [vmem:[%s1213 + $0xc] sm:$0xf]
        %v1218 = vld [vmem:[%s1213 + $0x10] sm:$0xf]
        %v1219 = vld [vmem:[%s1213 + $0x14] sm:$0xf]
        %v1220 = vld [vmem:[%s1213 + $0x18] sm:$0xf]
        %v1221 = vld [vmem:[%s1213 + $0x1c] sm:$0xf]
        %v1222 = vld [vmem:[%s1213 + $0x20] sm:$0xf]
        %v1223 = vld [vmem:[%s1213 + $0x24] sm:$0xf]
        %v1224 = vld [vmem:[%s1213 + $0x28] sm:$0xf]
        %v1225 = vld [vmem:[%s1213 + $0x2c] sm:$0xf]
        %v1226 = vld [vmem:[%s1213 + $0x30] sm:$0xf]
        %v1227 = vld [vmem:[%s1213 + $0x34] sm:$0xf]
        %v1228 = vld [vmem:[%s1213 + $0x38] sm:$0xf]
        %v1229 = vld [vmem:[%s1213 + $0x3c] sm:$0xf]
        %v1230 = vld [vmem:[%s1213 + $0x40] sm:$0xf]
        %v1231 = vld [vmem:[%s1213 + $0x44] sm:$0xf]
        %v1232 = vld [vmem:[%s1213 + $0x48] sm:$0xf]
        %v1233 = vld [vmem:[%s1213 + $0x4c] sm:$0xf]
        %v1234 = vld [vmem:[%s1213 + $0x50] sm:$0xf]
        %v1235 = vld [vmem:[%s1213 + $0x54] sm:$0xf]
        %v1236 = vld [vmem:[%s1213 + $0x58] sm:$0xf]
        %v1237 = vld [vmem:[%s1213 + $0x5c] sm:$0xf]
        %v1238 = vld [vmem:[%s1213 + $0x60] sm:$0xf]
        %v1239 = vld [vmem:[%s1213 + $0x64] sm:$0xf]
        %v1240 = vld [vmem:[%s1213 + $0x68] sm:$0xf]
        %v1241 = vld [vmem:[%s1213 + $0x6c] sm:$0xf]
        %v1242 = vld [vmem:[%s1213 + $0x70] sm:$0xf]
        %v1243 = vld [vmem:[%s1213 + $0x74] sm:$0xf]
        %v1244 = vld [vmem:[%s1213 + $0x78] sm:$0xf]
        %v1245 = vld [vmem:[%s1213 + $0x7c] sm:$0xf]
        %v1246 = vld [vmem:[%s1213 + $0x80] sm:$0xf]
        %v1247 = vld [vmem:[%s1213 + $0x84] sm:$0xf]
        %v1248 = vld [vmem:[%s1213 + $0x88] sm:$0xf]
        %v1249 = vld [vmem:[%s1213 + $0x8c] sm:$0xf]
        %v1250 = vld [vmem:[%s1213 + $0x90] sm:$0xf]
        %v1251 = vld [vmem:[%s1213 + $0x94] sm:$0xf]
        %v1252 = vld [vmem:[%s1213 + $0x98] sm:$0xf]
        %v1253 = vld [vmem:[%s1213 + $0x9c] sm:$0xf]
        %v1254 = vld [vmem:[%s1213 + $0xa0] sm:$0xf]
        %v1255 = vld [vmem:[%s1213 + $0xa4] sm:$0xf]
        %v1256 = vld [vmem:[%s1213 + $0xa8] sm:$0xf]
        %v1257 = vld [vmem:[%s1213 + $0xac] sm:$0xf]
        %v1258 = vld [vmem:[%s1213 + $0xb0] sm:$0xf]
        %v1259 = vld [vmem:[%s1213 + $0xb4] sm:$0xf]
        %v1260 = vld [vmem:[%s1213 + $0xb8] sm:$0xf]
        %v1261 = vld [vmem:[%s1213 + $0xbc] sm:$0xf]
        %v1262 = vld [vmem:[%s1213 + $0xc0] sm:$0xf]
        %v1263 = vld [vmem:[%s1213 + $0xc4] sm:$0xf]
        %v1264 = vld [vmem:[%s1213 + $0xc8] sm:$0xf]
        %v1265 = vld [vmem:[%s1213 + $0xcc] sm:$0xf]
        %v1266 = vld [vmem:[%s1213 + $0xd0] sm:$0xf]
        %v1267 = vld [vmem:[%s1213 + $0xd4] sm:$0xf]
        %v1268 = vld [vmem:[%s1213 + $0xd8] sm:$0xf]
        %v1269 = vld [vmem:[%s1213 + $0xdc] sm:$0xf]
        %v1270 = vld [vmem:[%s1213 + $0xe0] sm:$0xf]
        %v1271 = vld [vmem:[%s1213 + $0xe4] sm:$0xf]
        %v1272 = vld [vmem:[%s1213 + $0xe8] sm:$0xf]
        %v1273 = vld [vmem:[%s1213 + $0xec] sm:$0xf]
        %v1274 = vld [vmem:[%s1213 + $0xf0] sm:$0xf]
        %v1275 = vld [vmem:[%s1213 + $0xf4] sm:$0xf]
        %v1276 = vld [vmem:[%s1213 + $0xf8] sm:$0xf]
        %v1277 = vld [vmem:[%s1213 + $0xfc] sm:$0xf]
        %v1278 = vld [vmem:[%s1213 + $0x100] sm:$0xf]
        %v1279 = vld [vmem:[%s1213 + $0x104] sm:$0xf]
        %v1280 = vld [vmem:[%s1213 + $0x108] sm:$0xf]
        %v1281 = vld [vmem:[%s1213 + $0x10c] sm:$0xf]
        %v1282 = vld [vmem:[%s1213 + $0x110] sm:$0xf]
        %v1283 = vld [vmem:[%s1213 + $0x114] sm:$0xf]
        %v1284 = vld [vmem:[%s1213 + $0x118] sm:$0xf]
        %v1285 = vld [vmem:[%s1213 + $0x11c] sm:$0xf]
        %v1286 = vld [vmem:[%s1213 + $0x120] sm:$0xf]
        %v1287 = vld [vmem:[%s1213 + $0x124] sm:$0xf]
        %v1288 = vld [vmem:[%s1213 + $0x128] sm:$0xf]
        %v1289 = vld [vmem:[%s1213 + $0x12c] sm:$0xf]
        %v1290 = vld [vmem:[%s1213 + $0x130] sm:$0xf]
        %v1291 = vld [vmem:[%s1213 + $0x134] sm:$0xf]
        %v1292 = vld [vmem:[%s1213 + $0x138] sm:$0xf]
        %v1293 = vld [vmem:[%s1213 + $0x13c] sm:$0xf]
        %v1374 = vunpack.c.l.b16 %v1214
        %v1375 = vunpack.c.l.b16 %v1215
        %v1376 = vunpack.c.l.b16 %v1216
        %v1377 = vunpack.c.l.b16 %v1217
        %v1378 = vunpack.c.l.b16 %v1218
        %v1379 = vunpack.c.l.b16 %v1219
        %v1380 = vunpack.c.l.b16 %v1220
        %v1381 = vunpack.c.l.b16 %v1221
        %v1382 = vunpack.c.l.b16 %v1222
        %v1383 = vunpack.c.l.b16 %v1223
        %v1384 = vunpack.c.l.b16 %v1224
        %v1385 = vunpack.c.l.b16 %v1225
        %v1386 = vunpack.c.l.b16 %v1226
        %v1387 = vunpack.c.l.b16 %v1227
        %v1388 = vunpack.c.l.b16 %v1228
        %v1389 = vunpack.c.l.b16 %v1229
        %v1390 = vunpack.c.l.b16 %v1230
        %v1391 = vunpack.c.l.b16 %v1231
        %v1392 = vunpack.c.l.b16 %v1232
        %v1393 = vunpack.c.l.b16 %v1233
        %v1394 = vunpack.c.l.b16 %v1234
        %v1395 = vunpack.c.l.b16 %v1235
        %v1396 = vunpack.c.l.b16 %v1236
        %v1397 = vunpack.c.l.b16 %v1237
        %v1398 = vunpack.c.l.b16 %v1238
        %v1399 = vunpack.c.l.b16 %v1239
        %v1400 = vunpack.c.l.b16 %v1240
        %v1401 = vunpack.c.l.b16 %v1241
        %v1402 = vunpack.c.l.b16 %v1242
        %v1403 = vunpack.c.l.b16 %v1243
        %v1404 = vunpack.c.l.b16 %v1244
        %v1405 = vunpack.c.l.b16 %v1245
        %v1406 = vunpack.c.l.b16 %v1246
        %v1407 = vunpack.c.l.b16 %v1247
        %v1408 = vunpack.c.l.b16 %v1248
        %v1409 = vunpack.c.l.b16 %v1249
        %v1410 = vunpack.c.l.b16 %v1250
        %v1411 = vunpack.c.l.b16 %v1251
        %v1412 = vunpack.c.l.b16 %v1252
        %v1413 = vunpack.c.l.b16 %v1253
        %v1414 = vunpack.c.l.b16 %v1254
        %v1415 = vunpack.c.l.b16 %v1255
        %v1416 = vunpack.c.l.b16 %v1256
        %v1417 = vunpack.c.l.b16 %v1257
        %v1418 = vunpack.c.l.b16 %v1258
        %v1419 = vunpack.c.l.b16 %v1259
        %v1420 = vunpack.c.l.b16 %v1260
        %v1421 = vunpack.c.l.b16 %v1261
        %v1422 = vunpack.c.l.b16 %v1262
        %v1423 = vunpack.c.l.b16 %v1263
        %v1424 = vunpack.c.l.b16 %v1264
        %v1425 = vunpack.c.l.b16 %v1265
        %v1426 = vunpack.c.l.b16 %v1266
        %v1427 = vunpack.c.l.b16 %v1267
        %v1428 = vunpack.c.l.b16 %v1268
        %v1429 = vunpack.c.l.b16 %v1269
        %v1430 = vunpack.c.l.b16 %v1270
        %v1431 = vunpack.c.l.b16 %v1271
        %v1432 = vunpack.c.l.b16 %v1272
        %v1433 = vunpack.c.l.b16 %v1273
        %v1434 = vunpack.c.l.b16 %v1274
        %v1435 = vunpack.c.l.b16 %v1275
        %v1436 = vunpack.c.l.b16 %v1276
        %v1437 = vunpack.c.l.b16 %v1277
        %v1438 = vunpack.c.l.b16 %v1278
        %v1439 = vunpack.c.l.b16 %v1279
        %v1440 = vunpack.c.l.b16 %v1280
        %v1441 = vunpack.c.l.b16 %v1281
        %v1442 = vunpack.c.l.b16 %v1282
        %v1443 = vunpack.c.l.b16 %v1283
        %v1444 = vunpack.c.l.b16 %v1284
        %v1445 = vunpack.c.l.b16 %v1285
        %v1446 = vunpack.c.l.b16 %v1286
        %v1447 = vunpack.c.l.b16 %v1287
        %v1448 = vunpack.c.l.b16 %v1288
        %v1449 = vunpack.c.l.b16 %v1289
        %v1450 = vunpack.c.l.b16 %v1290
        %v1451 = vunpack.c.l.b16 %v1291
        %v1452 = vunpack.c.l.b16 %v1292
        %v1453 = vunpack.c.l.b16 %v1293
        %v1454 = vpack.c.b16 %v1375, %v1374
        %v1455 = vpack.c.b16 %v1377, %v1376
        %v1456 = vpack.c.b16 %v1379, %v1378
        %v1457 = vpack.c.b16 %v1381, %v1380
        %v1458 = vpack.c.b16 %v1383, %v1382
        %v1459 = vpack.c.b16 %v1385, %v1384
        %v1460 = vpack.c.b16 %v1387, %v1386
        %v1461 = vpack.c.b16 %v1389, %v1388
        %v1462 = vpack.c.b16 %v1391, %v1390
        %v1463 = vpack.c.b16 %v1393, %v1392
        %v1464 = vpack.c.b16 %v1395, %v1394
        %v1465 = vpack.c.b16 %v1397, %v1396
        %v1466 = vpack.c.b16 %v1399, %v1398
        %v1467 = vpack.c.b16 %v1401, %v1400
        %v1468 = vpack.c.b16 %v1403, %v1402
        %v1469 = vpack.c.b16 %v1405, %v1404
        %v1470 = vpack.c.b16 %v1407, %v1406
        %v1471 = vpack.c.b16 %v1409, %v1408
        %v1472 = vpack.c.b16 %v1411, %v1410
        %v1473 = vpack.c.b16 %v1413, %v1412
        %v1474 = vpack.c.b16 %v1415, %v1414
        %v1475 = vpack.c.b16 %v1417, %v1416
        %v1476 = vpack.c.b16 %v1419, %v1418
        %v1477 = vpack.c.b16 %v1421, %v1420
        %v1478 = vpack.c.b16 %v1423, %v1422
        %v1479 = vpack.c.b16 %v1425, %v1424
        %v1480 = vpack.c.b16 %v1427, %v1426
        %v1481 = vpack.c.b16 %v1429, %v1428
        %v1482 = vpack.c.b16 %v1431, %v1430
        %v1483 = vpack.c.b16 %v1433, %v1432
        %v1484 = vpack.c.b16 %v1435, %v1434
        %v1485 = vpack.c.b16 %v1437, %v1436
        %v1486 = vpack.c.b16 %v1439, %v1438
        %v1487 = vpack.c.b16 %v1441, %v1440
        %v1488 = vpack.c.b16 %v1443, %v1442
        %v1489 = vpack.c.b16 %v1445, %v1444
        %v1490 = vpack.c.b16 %v1447, %v1446
        %v1491 = vpack.c.b16 %v1449, %v1448
        %v1492 = vpack.c.b16 %v1451, %v1450
        %v1493 = vpack.c.b16 %v1453, %v1452
        %1534 = vmatprep.subr.bf16.mxu0 0
        %1535 = vmatpush1.bf16.msra.mxu0 %v1454
        %1536 = vmatprep.subr.bf16.mxu0 0
        %1537 = vmatpush1.bf16.msra.mxu0 %v1455
        %1538 = vmatprep.subr.bf16.mxu0 0
        %1539 = vmatpush1.bf16.msra.mxu0 %v1456
        %1540 = vmatprep.subr.bf16.mxu0 0
        %1541 = vmatpush1.bf16.msra.mxu0 %v1457
        %1542 = vmatprep.subr.bf16.mxu0 0
        %1543 = vmatpush1.bf16.msra.mxu0 %v1458
        %1544 = vmatprep.subr.bf16.mxu0 0
        %1545 = vmatpush1.bf16.msra.mxu0 %v1459
        %1546 = vmatprep.subr.bf16.mxu0 0
        %1547 = vmatpush1.bf16.msra.mxu0 %v1460
        %1548 = vmatprep.subr.bf16.mxu0 0
        %1549 = vmatpush1.bf16.msra.mxu0 %v1461
        %1550 = vmatprep.subr.bf16.mxu0 0
        %1551 = vmatpush1.bf16.msra.mxu0 %v1462
        %1552 = vmatprep.subr.bf16.mxu0 0
        %1553 = vmatpush1.bf16.msra.mxu0 %v1463
        %1554 = vmatprep.subr.bf16.mxu0 0
        %1555 = vmatpush1.bf16.msra.mxu0 %v1464
        %1556 = vmatprep.subr.bf16.mxu0 0
        %1557 = vmatpush1.bf16.msra.mxu0 %v1465
        %1558 = vmatprep.subr.bf16.mxu0 0
        %1559 = vmatpush1.bf16.msra.mxu0 %v1466
        %1560 = vmatprep.subr.bf16.mxu0 0
        %1561 = vmatpush1.bf16.msra.mxu0 %v1467
        %1562 = vmatprep.subr.bf16.mxu0 0
        %1563 = vmatpush1.bf16.msra.mxu0 %v1468
        %1564 = vmatprep.subr.bf16.mxu0 0
        %1565 = vmatpush1.bf16.msra.mxu0 %v1469
        %1566 = vmatprep.mubr.bf16.mxu0 %v1049
        %1567 = vmatmul.mubr.bf16.gmra.mrb[0].mxu0 %v1031
        %v1568 = vpop.f32.mrb[0].mxu0
        %v1569 = vadd.f32 0.0, %v1568
        %v1570 = vpop.f32.mrb[0].mxu0
        %v1571 = vpop.f32.mrb[0].mxu0
        %v1572 = vadd.f32 0.0, %v1571
        %v1573 = vpop.f32.mrb[0].mxu0
        %1574 = vmatprep.mubr.bf16.mxu0 %v1050
        %1575 = vmatmul.mubr.bf16.gmra.mrb[0].mxu0 %v1032
        %v1576 = vpop.f32.mrb[0].mxu0
        %v1577 = vadd.f32 0.0, %v1576
        %v1578 = vpop.f32.mrb[0].mxu0
        %v1579 = vpop.f32.mrb[0].mxu0
        %v1580 = vadd.f32 0.0, %v1579
        %v1581 = vpop.f32.mrb[0].mxu0
        %1582 = vmatprep.mubr.bf16.mxu0 %v1051
        %1583 = vmatmul.mubr.bf16.gmra.mrb[0].mxu0 %v1033
        %v1584 = vpop.f32.mrb[0].mxu0
        %v1585 = vadd.f32 0.0, %v1584
        %v1586 = vpop.f32.mrb[0].mxu0
        %v1587 = vpop.f32.mrb[0].mxu0
        %v1588 = vadd.f32 0.0, %v1587
        %v1589 = vpop.f32.mrb[0].mxu0
        %1590 = vmatprep.mubr.bf16.mxu0 %v1052
        %1591 = vmatmul.mubr.bf16.gmra.mrb[0].mxu0 %v1034
        %v1592 = vpop.f32.mrb[0].mxu0
        %v1593 = vadd.f32 0.0, %v1592
        %v1594 = vpop.f32.mrb[0].mxu0
        %v1595 = vpop.f32.mrb[0].mxu0
        %v1596 = vadd.f32 0.0, %v1595
        %v1597 = vpop.f32.mrb[0].mxu0
        %1598 = vmatprep.mubr.bf16.mxu0 %v1196
        %1599 = vmatmul.mubr.bf16.gmra.mrb[0].mxu0 %v1191
        %v1600 = vpop.f32.mrb[0].mxu0
        %v1601 = vadd.f32 0.0, %v1600
        %v1602 = vpop.f32.mrb[0].mxu0
        %v1603 = vpop.f32.mrb[0].mxu0
        %v1604 = vadd.f32 0.0, %v1603
        %v1605 = vpop.f32.mrb[0].mxu0
        %1606 = vmatprep.mubr.bf16.mxu0 %v1197
        %1607 = vmatmul.mubr.bf16.gmra.mrb[0].mxu0 %v1192
        %v1608 = vpop.f32.mrb[0].mxu0
        %v1609 = vadd.f32 0.0, %v1608
        %v1610 = vpop.f32.mrb[0].mxu0
        %v1611 = vpop.f32.mrb[0].mxu0
        %v1612 = vadd.f32 0.0, %v1611
        %v1613 = vpop.f32.mrb[0].mxu0
        %1614 = vdwg.mxu0
        %1615 = vmatprep.subr.bf16.mxu0 0
        %1616 = vmatpush1.bf16.msra.mxu0 %v1470
        %1617 = vmatprep.subr.bf16.mxu0 0
        %1618 = vmatpush1.bf16.msra.mxu0 %v1471
        %1619 = vmatprep.subr.bf16.mxu0 0
        %1620 = vmatpush1.bf16.msra.mxu0 %v1472
        %1621 = vmatprep.subr.bf16.mxu0 0
        %1622 = vmatpush1.bf16.msra.mxu0 %v1473
        %1623 = vmatprep.subr.bf16.mxu0 0
        %1624 = vmatpush1.bf16.msra.mxu0 %v1474
        %1625 = vmatprep.subr.bf16.mxu0 0
        %1626 = vmatpush1.bf16.msra.mxu0 %v1475
        %1627 = vmatprep.subr.bf16.mxu0 0
        %1628 = vmatpush1.bf16.msra.mxu0 %v1476
        %1629 = vmatprep.subr.bf16.mxu0 0
        %1630 = vmatpush1.bf16.msra.mxu0 %v1477
        %1631 = vmatprep.subr.bf16.mxu0 0
        %1632 = vmatpush1.bf16.msra.mxu0 %v1478
        %1633 = vmatprep.subr.bf16.mxu0 0
        %1634 = vmatpush1.bf16.msra.mxu0 %v1479
        %1635 = vmatprep.subr.bf16.mxu0 0
        %1636 = vmatpush1.bf16.msra.mxu0 %v1480
        %1637 = vmatprep.subr.bf16.mxu0 0
        %1638 = vmatpush1.bf16.msra.mxu0 %v1481
        %1639 = vmatprep.subr.bf16.mxu0 0
        %1640 = vmatpush1.bf16.msra.mxu0 %v1482
        %1641 = vmatprep.subr.bf16.mxu0 0
        %1642 = vmatpush1.bf16.msra.mxu0 %v1483
        %1643 = vmatprep.subr.bf16.mxu0 0
        %1644 = vmatpush1.bf16.msra.mxu0 %v1484
        %1645 = vmatprep.subr.bf16.mxu0 0
        %1646 = vmatpush1.bf16.msra.mxu0 %v1485
        %1647 = vmatprep.mubr.bf16.mxu0 %v1085
        %1648 = vmatmul.mubr.bf16.gmra.mrb[0].mxu0 %v1067
        %v1649 = vpop.f32.mrb[0].mxu0
        %v1650 = vadd.f32 %v1569, %v1649
        %v1651 = vpop.f32.mrb[0].mxu0
        %v1652 = vpop.f32.mrb[0].mxu0
        %v1653 = vadd.f32 %v1572, %v1652
        %v1654 = vpop.f32.mrb[0].mxu0
        %1655 = vmatprep.mubr.bf16.mxu0 %v1086
        %1656 = vmatmul.mubr.bf16.gmra.mrb[0].mxu0 %v1068
        %v1657 = vpop.f32.mrb[0].mxu0
        %v1658 = vadd.f32 %v1577, %v1657
        %v1659 = vpop.f32.mrb[0].mxu0
        %v1660 = vpop.f32.mrb[0].mxu0
        %v1661 = vadd.f32 %v1580, %v1660
        %v1662 = vpop.f32.mrb[0].mxu0
        %1663 = vmatprep.mubr.bf16.mxu0 %v1087
        %1664 = vmatmul.mubr.bf16.gmra.mrb[0].mxu0 %v1069
        %v1665 = vpop.f32.mrb[0].mxu0
        %v1666 = vadd.f32 %v1585, %v1665
        %v1667 = vpop.f32.mrb[0].mxu0
        %v1668 = vpop.f32.mrb[0].mxu0
        %v1669 = vadd.f32 %v1588, %v1668
        %v1670 = vpop.f32.mrb[0].mxu0
        %1671 = vmatprep.mubr.bf16.mxu0 %v1088
        %1672 = vmatmul.mubr.bf16.gmra.mrb[0].mxu0 %v1070
        %v1673 = vpop.f32.mrb[0].mxu0
        %v1674 = vadd.f32 %v1593, %v1673
        %v1675 = vpop.f32.mrb[0].mxu0
        %v1676 = vpop.f32.mrb[0].mxu0
        %v1677 = vadd.f32 %v1596, %v1676
        %v1678 = vpop.f32.mrb[0].mxu0
        %1679 = vmatprep.mubr.bf16.mxu0 %v1206
        %1680 = vmatmul.mubr.bf16.gmra.mrb[0].mxu0 %v1201
        %v1681 = vpop.f32.mrb[0].mxu0
        %v1682 = vadd.f32 %v1601, %v1681
        %v1683 = vpop.f32.mrb[0].mxu0
        %v1684 = vpop.f32.mrb[0].mxu0
        %v1685 = vadd.f32 %v1604, %v1684
        %v1686 = vpop.f32.mrb[0].mxu0
        %1687 = vmatprep.mubr.bf16.mxu0 %v1207
        %1688 = vmatmul.mubr.bf16.gmra.mrb[0].mxu0 %v1202
        %v1689 = vpop.f32.mrb[0].mxu0
        %v1690 = vadd.f32 %v1609, %v1689
        %v1691 = vpop.f32.mrb[0].mxu0
        %v1692 = vpop.f32.mrb[0].mxu0
        %v1693 = vadd.f32 %v1612, %v1692
        %v1694 = vpop.f32.mrb[0].mxu0
        %1695 = vdwg.mxu0
        %1696 = vmatprep.subr.bf16.mxu0 0
        %1697 = vmatpush1.bf16.msra.mxu0 %v1486
        %1698 = vmatprep.subr.bf16.mxu0 0
        %1699 = vmatpush1.bf16.msra.mxu0 %v1487
        %1700 = vmatprep.subr.bf16.mxu0 0
        %1701 = vmatpush1.bf16.msra.mxu0 %v1488
        %1702 = vmatprep.subr.bf16.mxu0 0
        %1703 = vmatpush1.bf16.msra.mxu0 %v1489
        %1704 = vmatprep.subr.bf16.mxu0 0
        %1705 = vmatpush1.bf16.msra.mxu0 %v1490
        %1706 = vmatprep.subr.bf16.mxu0 0
        %1707 = vmatpush1.bf16.msra.mxu0 %v1491
        %1708 = vmatprep.subr.bf16.mxu0 0
        %1709 = vmatpush1.bf16.msra.mxu0 %v1492
        %1710 = vmatprep.subr.bf16.mxu0 0
        %1711 = vmatpush1.bf16.msra.mxu0 %v1493
        %1712 = vmatprep.subr.bf16.mxu0 0
        %1713 = vmatpush1.bf16.msra.mxu0 0
        %1714 = vmatprep.subr.bf16.mxu0 0
        %1715 = vmatpush1.bf16.msra.mxu0 0
        %1716 = vmatprep.subr.bf16.mxu0 0
        %1717 = vmatpush1.bf16.msra.mxu0 0
        %1718 = vmatprep.subr.bf16.mxu0 0
        %1719 = vmatpush1.bf16.msra.mxu0 0
        %1720 = vmatprep.subr.bf16.mxu0 0
        %1721 = vmatpush1.bf16.msra.mxu0 0
        %1722 = vmatprep.subr.bf16.mxu0 0
        %1723 = vmatpush1.bf16.msra.mxu0 0
        %1724 = vmatprep.subr.bf16.mxu0 0
        %1725 = vmatpush1.bf16.msra.mxu0 0
        %1726 = vmatprep.subr.bf16.mxu0 0
        %1727 = vmatpush1.bf16.msra.mxu0 0
        %1728 = vmatprep.mubr.bf16.mxu0 0
        %1729 = vmatmul.mubr.bf16.gmra.mrb[0].mxu0 %v1103
        %v1730 = vpop.f32.mrb[0].mxu0
        %v1731 = vadd.f32 %v1650, %v1730
        %v1732 = vpop.f32.mrb[0].mxu0
        %v1733 = vpop.f32.mrb[0].mxu0
        %v1734 = vadd.f32 %v1653, %v1733
        %v1735 = vpop.f32.mrb[0].mxu0
        %1736 = vmatprep.mubr.bf16.mxu0 0
        %1737 = vmatmul.mubr.bf16.gmra.mrb[0].mxu0 %v1104
        %v1738 = vpop.f32.mrb[0].mxu0
        %v1739 = vadd.f32 %v1658, %v1738
        %v1740 = vpop.f32.mrb[0].mxu0
        %v1741 = vpop.f32.mrb[0].mxu0
        %v1742 = vadd.f32 %v1661, %v1741
        %v1743 = vpop.f32.mrb[0].mxu0
        %1744 = vmatprep.mubr.bf16.mxu0 0
        %1745 = vmatmul.mubr.bf16.gmra.mrb[0].mxu0 %v1105
        %v1746 = vpop.f32.mrb[0].mxu0
        %v1747 = vadd.f32 %v1666, %v1746
        %v1748 = vpop.f32.mrb[0].mxu0
        %v1749 = vpop.f32.mrb[0].mxu0
        %v1750 = vadd.f32 %v1669, %v1749
        %v1751 = vpop.f32.mrb[0].mxu0
        %1752 = vmatprep.mubr.bf16.mxu0 0
        %1753 = vmatmul.mubr.bf16.gmra.mrb[0].mxu0 %v1106
        %v1754 = vpop.f32.mrb[0].mxu0
        %v1755 = vadd.f32 %v1674, %v1754
        %v1756 = vpop.f32.mrb[0].mxu0
        %v1757 = vpop.f32.mrb[0].mxu0
        %v1758 = vadd.f32 %v1677, %v1757
        %v1759 = vpop.f32.mrb[0].mxu0
        %1760 = vmatprep.mubr.bf16.mxu0 0
        %1761 = vmatmul.mubr.bf16.gmra.mrb[0].mxu0 %v1211
        %v1762 = vpop.f32.mrb[0].mxu0
        %v1763 = vadd.f32 %v1682, %v1762
        %v1764 = vpop.f32.mrb[0].mxu0
        %v1765 = vpop.f32.mrb[0].mxu0
        %v1766 = vadd.f32 %v1685, %v1765
        %v1767 = vpop.f32.mrb[0].mxu0
        %1768 = vmatprep.mubr.bf16.mxu0 0
        %1769 = vmatmul.mubr.bf16.gmra.mrb[0].mxu0 %v1212
        %v1770 = vpop.f32.mrb[0].mxu0
        %v1771 = vadd.f32 %v1690, %v1770
        %v1772 = vpop.f32.mrb[0].mxu0
        %v1773 = vpop.f32.mrb[0].mxu0
        %v1774 = vadd.f32 %v1693, %v1773
        %v1775 = vpop.f32.mrb[0].mxu0
        %1776 = vdwg.mxu0
        %v1857 = vunpack.c.l.b16 %v1108
        %v1858 = vunpack.c.l.b16 %v1109
        %v1859 = vunpack.c.l.b16 %v1110
        %v1860 = vunpack.c.l.b16 %v1111
        %v1861 = vunpack.c.l.b16 %v1112
        %v1862 = vunpack.c.l.b16 %v1113
        %v1863 = vunpack.c.l.b16 %v1114
        %v1864 = vunpack.c.l.b16 %v1115
        %v1865 = vunpack.c.l.b16 %v1116
        %v1866 = vunpack.c.l.b16 %v1117
        %v1867 = vunpack.c.l.b16 %v1118
        %v1868 = vunpack.c.l.b16 %v1119
        %v1869 = vunpack.c.l.b16 %v1120
        %v1870 = vunpack.c.l.b16 %v1121
        %v1871 = vunpack.c.l.b16 %v1122
        %v1872 = vunpack.c.l.b16 %v1123
        %v1873 = vunpack.c.l.b16 %v1124
        %v1874 = vunpack.c.l.b16 %v1125
        %v1875 = vunpack.c.l.b16 %v1126
        %v1876 = vunpack.c.l.b16 %v1127
        %v1877 = vunpack.c.l.b16 %v1128
        %v1878 = vunpack.c.l.b16 %v1129
        %v1879 = vunpack.c.l.b16 %v1130
        %v1880 = vunpack.c.l.b16 %v1131
        %v1881 = vunpack.c.l.b16 %v1132
        %v1882 = vunpack.c.l.b16 %v1133
        %v1883 = vunpack.c.l.b16 %v1134
        %v1884 = vunpack.c.l.b16 %v1135
        %v1885 = vunpack.c.l.b16 %v1136
        %v1886 = vunpack.c.l.b16 %v1137
        %v1887 = vunpack.c.l.b16 %v1138
        %v1888 = vunpack.c.l.b16 %v1139
        %v1889 = vunpack.c.l.b16 %v1140
        %v1890 = vunpack.c.l.b16 %v1141
        %v1891 = vunpack.c.l.b16 %v1142
        %v1892 = vunpack.c.l.b16 %v1143
        %v1893 = vunpack.c.l.b16 %v1144
        %v1894 = vunpack.c.l.b16 %v1145
        %v1895 = vunpack.c.l.b16 %v1146
        %v1896 = vunpack.c.l.b16 %v1147
        %v1897 = vunpack.c.l.b16 %v1148
        %v1898 = vunpack.c.l.b16 %v1149
        %v1899 = vunpack.c.l.b16 %v1150
        %v1900 = vunpack.c.l.b16 %v1151
        %v1901 = vunpack.c.l.b16 %v1152
        %v1902 = vunpack.c.l.b16 %v1153
        %v1903 = vunpack.c.l.b16 %v1154
        %v1904 = vunpack.c.l.b16 %v1155
        %v1905 = vunpack.c.l.b16 %v1156
        %v1906 = vunpack.c.l.b16 %v1157
        %v1907 = vunpack.c.l.b16 %v1158
        %v1908 = vunpack.c.l.b16 %v1159
        %v1909 = vunpack.c.l.b16 %v1160
        %v1910 = vunpack.c.l.b16 %v1161
        %v1911 = vunpack.c.l.b16 %v1162
        %v1912 = vunpack.c.l.b16 %v1163
        %v1913 = vunpack.c.l.b16 %v1164
        %v1914 = vunpack.c.l.b16 %v1165
        %v1915 = vunpack.c.l.b16 %v1166
        %v1916 = vunpack.c.l.b16 %v1167
        %v1917 = vunpack.c.l.b16 %v1168
        %v1918 = vunpack.c.l.b16 %v1169
        %v1919 = vunpack.c.l.b16 %v1170
        %v1920 = vunpack.c.l.b16 %v1171
        %v1921 = vunpack.c.l.b16 %v1172
        %v1922 = vunpack.c.l.b16 %v1173
        %v1923 = vunpack.c.l.b16 %v1174
        %v1924 = vunpack.c.l.b16 %v1175
        %v1925 = vunpack.c.l.b16 %v1176
        %v1926 = vunpack.c.l.b16 %v1177
        %v1927 = vunpack.c.l.b16 %v1178
        %v1928 = vunpack.c.l.b16 %v1179
        %v1929 = vunpack.c.l.b16 %v1180
        %v1930 = vunpack.c.l.b16 %v1181
        %v1931 = vunpack.c.l.b16 %v1182
        %v1932 = vunpack.c.l.b16 %v1183
        %v1933 = vunpack.c.l.b16 %v1184
        %v1934 = vunpack.c.l.b16 %v1185
        %v1935 = vunpack.c.l.b16 %v1186
        %v1936 = vunpack.c.l.b16 %v1187
        %v1937 = vpack.c.b16 %v1858, %v1857
        %v1938 = vpack.c.b16 %v1860, %v1859
        %v1939 = vpack.c.b16 %v1862, %v1861
        %v1940 = vpack.c.b16 %v1864, %v1863
        %v1941 = vpack.c.b16 %v1866, %v1865
        %v1942 = vpack.c.b16 %v1868, %v1867
        %v1943 = vpack.c.b16 %v1870, %v1869
        %v1944 = vpack.c.b16 %v1872, %v1871
        %v1945 = vpack.c.b16 %v1874, %v1873
        %v1946 = vpack.c.b16 %v1876, %v1875
        %v1947 = vpack.c.b16 %v1878, %v1877
        %v1948 = vpack.c.b16 %v1880, %v1879
        %v1949 = vpack.c.b16 %v1882, %v1881
        %v1950 = vpack.c.b16 %v1884, %v1883
        %v1951 = vpack.c.b16 %v1886, %v1885
        %v1952 = vpack.c.b16 %v1888, %v1887
        %v1953 = vpack.c.b16 %v1890, %v1889
        %v1954 = vpack.c.b16 %v1892, %v1891
        %v1955 = vpack.c.b16 %v1894, %v1893
        %v1956 = vpack.c.b16 %v1896, %v1895
        %v1957 = vpack.c.b16 %v1898, %v1897
        %v1958 = vpack.c.b16 %v1900, %v1899
        %v1959 = vpack.c.b16 %v1902, %v1901
        %v1960 = vpack.c.b16 %v1904, %v1903
        %v1961 = vpack.c.b16 %v1906, %v1905
        %v1962 = vpack.c.b16 %v1908, %v1907
        %v1963 = vpack.c.b16 %v1910, %v1909
        %v1964 = vpack.c.b16 %v1912, %v1911
        %v1965 = vpack.c.b16 %v1914, %v1913
        %v1966 = vpack.c.b16 %v1916, %v1915
        %v1967 = vpack.c.b16 %v1918, %v1917
        %v1968 = vpack.c.b16 %v1920, %v1919
        %v1969 = vpack.c.b16 %v1922, %v1921
        %v1970 = vpack.c.b16 %v1924, %v1923
        %v1971 = vpack.c.b16 %v1926, %v1925
        %v1972 = vpack.c.b16 %v1928, %v1927
        %v1973 = vpack.c.b16 %v1930, %v1929
        %v1974 = vpack.c.b16 %v1932, %v1931
        %v1975 = vpack.c.b16 %v1934, %v1933
        %v1976 = vpack.c.b16 %v1936, %v1935
        %2017 = vmatprep.subr.bf16.mxu0 0
        %2018 = vmatpush1.bf16.msra.mxu0 %v1937
        %2019 = vmatprep.subr.bf16.mxu0 0
        %2020 = vmatpush1.bf16.msra.mxu0 %v1938
        %2021 = vmatprep.subr.bf16.mxu0 0
        %2022 = vmatpush1.bf16.msra.mxu0 %v1939
        %2023 = vmatprep.subr.bf16.mxu0 0
        %2024 = vmatpush1.bf16.msra.mxu0 %v1940
        %2025 = vmatprep.subr.bf16.mxu0 0
        %2026 = vmatpush1.bf16.msra.mxu0 %v1941
        %2027 = vmatprep.subr.bf16.mxu0 0
        %2028 = vmatpush1.bf16.msra.mxu0 %v1942
        %2029 = vmatprep.subr.bf16.mxu0 0
        %2030 = vmatpush1.bf16.msra.mxu0 %v1943
        %2031 = vmatprep.subr.bf16.mxu0 0
        %2032 = vmatpush1.bf16.msra.mxu0 %v1944
        %2033 = vmatprep.subr.bf16.mxu0 0
        %2034 = vmatpush1.bf16.msra.mxu0 %v1945
        %2035 = vmatprep.subr.bf16.mxu0 0
        %2036 = vmatpush1.bf16.msra.mxu0 %v1946
        %2037 = vmatprep.subr.bf16.mxu0 0
        %2038 = vmatpush1.bf16.msra.mxu0 %v1947
        %2039 = vmatprep.subr.bf16.mxu0 0
        %2040 = vmatpush1.bf16.msra.mxu0 %v1948
        %2041 = vmatprep.subr.bf16.mxu0 0
        %2042 = vmatpush1.bf16.msra.mxu0 %v1949
        %2043 = vmatprep.subr.bf16.mxu0 0
        %2044 = vmatpush1.bf16.msra.mxu0 %v1950
        %2045 = vmatprep.subr.bf16.mxu0 0
        %2046 = vmatpush1.bf16.msra.mxu0 %v1951
        %2047 = vmatprep.subr.bf16.mxu0 0
        %2048 = vmatpush1.bf16.msra.mxu0 %v1952
        %2049 = vmatprep.mubr.bf16.mxu0 %v1048
        %2050 = vmatmul.mubr.bf16.gmra.mrb[0].mxu0 %v1030
        %v2051 = vpop.f32.mrb[0].mxu0
        %v2052 = vadd.f32 %v1731, %v2051
        %v2053 = vpop.f32.mrb[0].mxu0
        %v2054 = vpop.f32.mrb[0].mxu0
        %v2055 = vadd.f32 %v1734, %v2054
        %v2056 = vpop.f32.mrb[0].mxu0
        %2057 = vmatprep.mubr.bf16.mxu0 %v1049
        %2058 = vmatmul.mubr.bf16.gmra.mrb[0].mxu0 %v1031
        %v2059 = vpop.f32.mrb[0].mxu0
        %v2060 = vadd.f32 %v1739, %v2059
        %v2061 = vpop.f32.mrb[0].mxu0
        %v2062 = vpop.f32.mrb[0].mxu0
        %v2063 = vadd.f32 %v1742, %v2062
        %v2064 = vpop.f32.mrb[0].mxu0
        %2065 = vmatprep.mubr.bf16.mxu0 %v1050
        %2066 = vmatmul.mubr.bf16.gmra.mrb[0].mxu0 %v1032
        %v2067 = vpop.f32.mrb[0].mxu0
        %v2068 = vadd.f32 %v1747, %v2067
        %v2069 = vpop.f32.mrb[0].mxu0
        %v2070 = vpop.f32.mrb[0].mxu0
        %v2071 = vadd.f32 %v1750, %v2070
        %v2072 = vpop.f32.mrb[0].mxu0
        %2073 = vmatprep.mubr.bf16.mxu0 %v1051
        %2074 = vmatmul.mubr.bf16.gmra.mrb[0].mxu0 %v1033
        %v2075 = vpop.f32.mrb[0].mxu0
        %v2076 = vadd.f32 %v1755, %v2075
        %v2077 = vpop.f32.mrb[0].mxu0
        %v2078 = vpop.f32.mrb[0].mxu0
        %v2079 = vadd.f32 %v1758, %v2078
        %v2080 = vpop.f32.mrb[0].mxu0
        %2081 = vmatprep.mubr.bf16.mxu0 %v1052
        %2082 = vmatmul.mubr.bf16.gmra.mrb[0].mxu0 %v1034
        %v2083 = vpop.f32.mrb[0].mxu0
        %v2084 = vadd.f32 %v1763, %v2083
        %v2085 = vpop.f32.mrb[0].mxu0
        %v2086 = vpop.f32.mrb[0].mxu0
        %v2087 = vadd.f32 %v1766, %v2086
        %v2088 = vpop.f32.mrb[0].mxu0
        %2089 = vmatprep.mubr.bf16.mxu0 %v1053
        %2090 = vmatmul.mubr.bf16.gmra.mrb[0].mxu0 %v1035
        %v2091 = vpop.f32.mrb[0].mxu0
        %v2092 = vadd.f32 %v1771, %v2091
        %v2093 = vpop.f32.mrb[0].mxu0
        %v2094 = vpop.f32.mrb[0].mxu0
        %v2095 = vadd.f32 %v1774, %v2094
        %v2096 = vpop.f32.mrb[0].mxu0
        %2097 = vdwg.mxu0
        %2098 = vmatprep.subr.bf16.mxu0 0
        %2099 = vmatpush1.bf16.msra.mxu0 %v1953
        %2100 = vmatprep.subr.bf16.mxu0 0
        %2101 = vmatpush1.bf16.msra.mxu0 %v1954
        %2102 = vmatprep.subr.bf16.mxu0 0
        %2103 = vmatpush1.bf16.msra.mxu0 %v1955
        %2104 = vmatprep.subr.bf16.mxu0 0
        %2105 = vmatpush1.bf16.msra.mxu0 %v1956
        %2106 = vmatprep.subr.bf16.mxu0 0
        %2107 = vmatpush1.bf16.msra.mxu0 %v1957
        %2108 = vmatprep.subr.bf16.mxu0 0
        %2109 = vmatpush1.bf16.msra.mxu0 %v1958
        %2110 = vmatprep.subr.bf16.mxu0 0
        %2111 = vmatpush1.bf16.msra.mxu0 %v1959
        %2112 = vmatprep.subr.bf16.mxu0 0
        %2113 = vmatpush1.bf16.msra.mxu0 %v1960
        %2114 = vmatprep.subr.bf16.mxu0 0
        %2115 = vmatpush1.bf16.msra.mxu0 %v1961
        %2116 = vmatprep.subr.bf16.mxu0 0
        %2117 = vmatpush1.bf16.msra.mxu0 %v1962
        %2118 = vmatprep.subr.bf16.mxu0 0
        %2119 = vmatpush1.bf16.msra.mxu0 %v1963
        %2120 = vmatprep.subr.bf16.mxu0 0
        %2121 = vmatpush1.bf16.msra.mxu0 %v1964
        %2122 = vmatprep.subr.bf16.mxu0 0
        %2123 = vmatpush1.bf16.msra.mxu0 %v1965
        %2124 = vmatprep.subr.bf16.mxu0 0
        %2125 = vmatpush1.bf16.msra.mxu0 %v1966
        %2126 = vmatprep.subr.bf16.mxu0 0
        %2127 = vmatpush1.bf16.msra.mxu0 %v1967
        %2128 = vmatprep.subr.bf16.mxu0 0
        %2129 = vmatpush1.bf16.msra.mxu0 %v1968
        %2130 = vmatprep.mubr.bf16.mxu0 %v1084
        %2131 = vmatmul.mubr.bf16.gmra.mrb[0].mxu0 %v1066
        %v2132 = vpop.f32.mrb[0].mxu0
        %v2133 = vadd.f32 %v2052, %v2132
        %v2134 = vpop.f32.mrb[0].mxu0
        %v2135 = vpop.f32.mrb[0].mxu0
        %v2136 = vadd.f32 %v2055, %v2135
        %v2137 = vpop.f32.mrb[0].mxu0
        %2138 = vmatprep.mubr.bf16.mxu0 %v1085
        %2139 = vmatmul.mubr.bf16.gmra.mrb[0].mxu0 %v1067
        %v2140 = vpop.f32.mrb[0].mxu0
        %v2141 = vadd.f32 %v2060, %v2140
        %v2142 = vpop.f32.mrb[0].mxu0
        %v2143 = vpop.f32.mrb[0].mxu0
        %v2144 = vadd.f32 %v2063, %v2143
        %v2145 = vpop.f32.mrb[0].mxu0
        %2146 = vmatprep.mubr.bf16.mxu0 %v1086
        %2147 = vmatmul.mubr.bf16.gmra.mrb[0].mxu0 %v1068
        %v2148 = vpop.f32.mrb[0].mxu0
        %v2149 = vadd.f32 %v2068, %v2148
        %v2150 = vpop.f32.mrb[0].mxu0
        %v2151 = vpop.f32.mrb[0].mxu0
        %v2152 = vadd.f32 %v2071, %v2151
        %v2153 = vpop.f32.mrb[0].mxu0
        %2154 = vmatprep.mubr.bf16.mxu0 %v1087
        %2155 = vmatmul.mubr.bf16.gmra.mrb[0].mxu0 %v1069
        %v2156 = vpop.f32.mrb[0].mxu0
        %v2157 = vadd.f32 %v2076, %v2156
        %v2158 = vpop.f32.mrb[0].mxu0
        %v2159 = vpop.f32.mrb[0].mxu0
        %v2160 = vadd.f32 %v2079, %v2159
        %v2161 = vpop.f32.mrb[0].mxu0
        %2162 = vmatprep.mubr.bf16.mxu0 %v1088
        %2163 = vmatmul.mubr.bf16.gmra.mrb[0].mxu0 %v1070
        %v2164 = vpop.f32.mrb[0].mxu0
        %v2165 = vadd.f32 %v2084, %v2164
        %v2166 = vpop.f32.mrb[0].mxu0
        %v2167 = vpop.f32.mrb[0].mxu0
        %v2168 = vadd.f32 %v2087, %v2167
        %v2169 = vpop.f32.mrb[0].mxu0
        %2170 = vmatprep.mubr.bf16.mxu0 %v1089
        %2171 = vmatmul.mubr.bf16.gmra.mrb[0].mxu0 %v1071
        %v2172 = vpop.f32.mrb[0].mxu0
        %v2173 = vadd.f32 %v2092, %v2172
        %v2174 = vpop.f32.mrb[0].mxu0
        %v2175 = vpop.f32.mrb[0].mxu0
        %v2176 = vadd.f32 %v2095, %v2175
        %v2177 = vpop.f32.mrb[0].mxu0
        %2178 = vdwg.mxu0
        %2179 = vmatprep.subr.bf16.mxu0 0
        %2180 = vmatpush1.bf16.msra.mxu0 %v1969
        %2181 = vmatprep.subr.bf16.mxu0 0
        %2182 = vmatpush1.bf16.msra.mxu0 %v1970
        %2183 = vmatprep.subr.bf16.mxu0 0
        %2184 = vmatpush1.bf16.msra.mxu0 %v1971
        %2185 = vmatprep.subr.bf16.mxu0 0
        %2186 = vmatpush1.bf16.msra.mxu0 %v1972
        %2187 = vmatprep.subr.bf16.mxu0 0
        %2188 = vmatpush1.bf16.msra.mxu0 %v1973
        %2189 = vmatprep.subr.bf16.mxu0 0
        %2190 = vmatpush1.bf16.msra.mxu0 %v1974
        %2191 = vmatprep.subr.bf16.mxu0 0
        %2192 = vmatpush1.bf16.msra.mxu0 %v1975
        %2193 = vmatprep.subr.bf16.mxu0 0
        %2194 = vmatpush1.bf16.msra.mxu0 %v1976
        %2195 = vmatprep.subr.bf16.mxu0 0
        %2196 = vmatpush1.bf16.msra.mxu0 0
        %2197 = vmatprep.subr.bf16.mxu0 0
        %2198 = vmatpush1.bf16.msra.mxu0 0
        %2199 = vmatprep.subr.bf16.mxu0 0
        %2200 = vmatpush1.bf16.msra.mxu0 0
        %2201 = vmatprep.subr.bf16.mxu0 0
        %2202 = vmatpush1.bf16.msra.mxu0 0
        %2203 = vmatprep.subr.bf16.mxu0 0
        %2204 = vmatpush1.bf16.msra.mxu0 0
        %2205 = vmatprep.subr.bf16.mxu0 0
        %2206 = vmatpush1.bf16.msra.mxu0 0
        %2207 = vmatprep.subr.bf16.mxu0 0
        %2208 = vmatpush1.bf16.msra.mxu0 0
        %2209 = vmatprep.subr.bf16.mxu0 0
        %2210 = vmatpush1.bf16.msra.mxu0 0
        %2211 = vmatprep.mubr.bf16.mxu0 0
        %2212 = vmatmul.mubr.bf16.gmra.mrb[0].mxu0 %v1102
        %v2213 = vpop.f32.mrb[0].mxu0
        %v2214 = vadd.f32 %v2133, %v2213
        %v2215 = vpop.f32.mrb[0].mxu0
        %v2216 = vpop.f32.mrb[0].mxu0
        %v2217 = vadd.f32 %v2136, %v2216
        %v2218 = vpop.f32.mrb[0].mxu0
        %2219 = vmatprep.mubr.bf16.mxu0 0
        %2220 = vmatmul.mubr.bf16.gmra.mrb[0].mxu0 %v1103
        %v2221 = vpop.f32.mrb[0].mxu0
        %v2222 = vadd.f32 %v2141, %v2221
        %v2223 = vpop.f32.mrb[0].mxu0
        %v2224 = vpop.f32.mrb[0].mxu0
        %v2225 = vadd.f32 %v2144, %v2224
        %v2226 = vpop.f32.mrb[0].mxu0
        %2227 = vmatprep.mubr.bf16.mxu0 0
        %2228 = vmatmul.mubr.bf16.gmra.mrb[0].mxu0 %v1104
        %v2229 = vpop.f32.mrb[0].mxu0
        %v2230 = vadd.f32 %v2149, %v2229
        %v2231 = vpop.f32.mrb[0].mxu0
        %v2232 = vpop.f32.mrb[0].mxu0
        %v2233 = vadd.f32 %v2152, %v2232
        %v2234 = vpop.f32.mrb[0].mxu0
        %2235 = vmatprep.mubr.bf16.mxu0 0
        %2236 = vmatmul.mubr.bf16.gmra.mrb[0].mxu0 %v1105
        %v2237 = vpop.f32.mrb[0].mxu0
        %v2238 = vadd.f32 %v2157, %v2237
        %v2239 = vpop.f32.mrb[0].mxu0
        %v2240 = vpop.f32.mrb[0].mxu0
        %v2241 = vadd.f32 %v2160, %v2240
        %v2242 = vpop.f32.mrb[0].mxu0
        %2243 = vmatprep.mubr.bf16.mxu0 0
        %2244 = vmatmul.mubr.bf16.gmra.mrb[0].mxu0 %v1106
        %v2245 = vpop.f32.mrb[0].mxu0
        %v2246 = vadd.f32 %v2165, %v2245
        %v2247 = vpop.f32.mrb[0].mxu0
        %v2248 = vpop.f32.mrb[0].mxu0
        %v2249 = vadd.f32 %v2168, %v2248
        %v2250 = vpop.f32.mrb[0].mxu0
        %2251 = vmatprep.mubr.bf16.mxu0 0
        %2252 = vmatmul.mubr.bf16.gmra.mrb[0].mxu0 %v1107
        %v2253 = vpop.f32.mrb[0].mxu0
        %v2254 = vadd.f32 %v2173, %v2253
        %v2255 = vpop.f32.mrb[0].mxu0
        %v2256 = vpop.f32.mrb[0].mxu0
        %v2257 = vadd.f32 %v2176, %v2256
        %v2258 = vpop.f32.mrb[0].mxu0
        %2259 = vdwg.mxu0
        %v2260 = vld [vmem:[#allocation2 + $0x20] sm:$0xff]
        %v2261 = vld [vmem:[#allocation2 + $0x28] sm:$0xff]
        %v2262 = vld [vmem:[#allocation2 + $0x30] sm:$0xff]
        %v2263 = vld [vmem:[#allocation2 + $0x38] sm:$0xff]
        %v2264 = vld [vmem:[#allocation2 + $0x40] sm:$0xff]
        %v2265 = vld [vmem:[#allocation2 + $0x48] sm:$0xff]
        %v2266 = vld [vmem:[#allocation2 + $0x50] sm:$0xff]
        %v2267 = vld [vmem:[#allocation2 + $0x58] sm:$0xff]
        %v2268 = vld [vmem:[#allocation2 + $0x60] sm:$0xff]
        %v2269 = vld [vmem:[#allocation2 + $0x68] sm:$0xff]
        %v2270 = vld [vmem:[#allocation2 + $0x70] sm:$0xff]
        %v2271 = vld [vmem:[#allocation2 + $0x78] sm:$0xf]
        %v2272 = vpack.c.bf16 %v2261, %v2260
        %v2273 = vpack.c.bf16 %v2263, %v2262
        %v2274 = vpack.c.bf16 %v2265, %v2264
        %v2275 = vpack.c.bf16 %v2267, %v2266
        %v2276 = vpack.c.bf16 %v2269, %v2268
        %v2277 = vpack.c.bf16 %v2271, %v2270
        %v2278 = vld [vmem:[#allocation2 + $0x21] sm:$0xff]
        %v2279 = vld [vmem:[#allocation2 + $0x29] sm:$0xff]
        %v2280 = vld [vmem:[#allocation2 + $0x31] sm:$0xff]
        %v2281 = vld [vmem:[#allocation2 + $0x39] sm:$0xff]
        %v2282 = vld [vmem:[#allocation2 + $0x41] sm:$0xff]
        %v2283 = vld [vmem:[#allocation2 + $0x49] sm:$0xff]
        %v2284 = vld [vmem:[#allocation2 + $0x51] sm:$0xff]
        %v2285 = vld [vmem:[#allocation2 + $0x59] sm:$0xff]
        %v2286 = vld [vmem:[#allocation2 + $0x61] sm:$0xff]
        %v2287 = vld [vmem:[#allocation2 + $0x69] sm:$0xff]
        %v2288 = vld [vmem:[#allocation2 + $0x71] sm:$0xff]
        %v2289 = vld [vmem:[#allocation2 + $0x79] sm:$0xf]
        %v2290 = vpack.c.bf16 %v2279, %v2278
        %v2291 = vpack.c.bf16 %v2281, %v2280
        %v2292 = vpack.c.bf16 %v2283, %v2282
        %v2293 = vpack.c.bf16 %v2285, %v2284
        %v2294 = vpack.c.bf16 %v2287, %v2286
        %v2295 = vpack.c.bf16 %v2289, %v2288
        %v2296 = vld [vmem:[#allocation2 + $0x22] sm:$0xff]
        %v2297 = vld [vmem:[#allocation2 + $0x2a] sm:$0xff]
        %v2298 = vld [vmem:[#allocation2 + $0x32] sm:$0xff]
        %v2299 = vld [vmem:[#allocation2 + $0x3a] sm:$0xff]
        %v2300 = vld [vmem:[#allocation2 + $0x42] sm:$0xff]
        %v2301 = vld [vmem:[#allocation2 + $0x4a] sm:$0xff]
        %v2302 = vld [vmem:[#allocation2 + $0x52] sm:$0xff]
        %v2303 = vld [vmem:[#allocation2 + $0x5a] sm:$0xff]
        %v2304 = vld [vmem:[#allocation2 + $0x62] sm:$0xff]
        %v2305 = vld [vmem:[#allocation2 + $0x6a] sm:$0xff]
        %v2306 = vld [vmem:[#allocation2 + $0x72] sm:$0xff]
        %v2307 = vld [vmem:[#allocation2 + $0x7a] sm:$0xf]
        %v2308 = vpack.c.bf16 %v2297, %v2296
        %v2309 = vpack.c.bf16 %v2299, %v2298
        %v2310 = vpack.c.bf16 %v2301, %v2300
        %v2311 = vpack.c.bf16 %v2303, %v2302
        %v2312 = vpack.c.bf16 %v2305, %v2304
        %v2313 = vpack.c.bf16 %v2307, %v2306
        %v2314 = vld [vmem:[#allocation2 + $0x23] sm:$0xff]
        %v2315 = vld [vmem:[#allocation2 + $0x2b] sm:$0xff]
        %v2316 = vld [vmem:[#allocation2 + $0x33] sm:$0xff]
        %v2317 = vld [vmem:[#allocation2 + $0x3b] sm:$0xff]
        %v2318 = vld [vmem:[#allocation2 + $0x43] sm:$0xff]
        %v2319 = vld [vmem:[#allocation2 + $0x4b] sm:$0xff]
        %v2320 = vld [vmem:[#allocation2 + $0x53] sm:$0xff]
        %v2321 = vld [vmem:[#allocation2 + $0x5b] sm:$0xff]
        %v2322 = vld [vmem:[#allocation2 + $0x63] sm:$0xff]
        %v2323 = vld [vmem:[#allocation2 + $0x6b] sm:$0xff]
        %v2324 = vld [vmem:[#allocation2 + $0x73] sm:$0xff]
        %v2325 = vld [vmem:[#allocation2 + $0x7b] sm:$0xf]
        %v2326 = vpack.c.bf16 %v2315, %v2314
        %v2327 = vpack.c.bf16 %v2317, %v2316
        %v2328 = vpack.c.bf16 %v2319, %v2318
        %v2329 = vpack.c.bf16 %v2321, %v2320
        %v2330 = vpack.c.bf16 %v2323, %v2322
        %v2331 = vpack.c.bf16 %v2325, %v2324
        %v2332 = vld [vmem:[#allocation2 + $0x24] sm:$0xff]
        %v2333 = vld [vmem:[#allocation2 + $0x2c] sm:$0xff]
        %v2334 = vld [vmem:[#allocation2 + $0x34] sm:$0xff]
        %v2335 = vld [vmem:[#allocation2 + $0x3c] sm:$0xff]
        %v2336 = vld [vmem:[#allocation2 + $0x44] sm:$0xff]
        %v2337 = vld [vmem:[#allocation2 + $0x4c] sm:$0xff]
        %v2338 = vld [vmem:[#allocation2 + $0x54] sm:$0xff]
        %v2339 = vld [vmem:[#allocation2 + $0x5c] sm:$0xff]
        %v2340 = vld [vmem:[#allocation2 + $0x64] sm:$0xff]
        %v2341 = vld [vmem:[#allocation2 + $0x6c] sm:$0xff]
        %v2342 = vld [vmem:[#allocation2 + $0x74] sm:$0xff]
        %v2343 = vld [vmem:[#allocation2 + $0x7c] sm:$0xf]
        %v2344 = vpack.c.bf16 %v2333, %v2332
        %v2345 = vpack.c.bf16 %v2335, %v2334
        %v2346 = vpack.c.bf16 %v2337, %v2336
        %v2347 = vpack.c.bf16 %v2339, %v2338
        %v2348 = vpack.c.bf16 %v2341, %v2340
        %v2349 = vpack.c.bf16 %v2343, %v2342
        %s2350 = scalar_lea.vmem %s5, 640
        %v2351 = vld [vmem:[%s2350] sm:$0xf]
        %v2352 = vld [vmem:[%s2350 + $0x4] sm:$0xf]
        %v2353 = vld [vmem:[%s2350 + $0x8] sm:$0xf]
        %v2354 = vld [vmem:[%s2350 + $0xc] sm:$0xf]
        %v2355 = vld [vmem:[%s2350 + $0x10] sm:$0xf]
        %v2356 = vld [vmem:[%s2350 + $0x14] sm:$0xf]
        %v2357 = vld [vmem:[%s2350 + $0x18] sm:$0xf]
        %v2358 = vld [vmem:[%s2350 + $0x1c] sm:$0xf]
        %v2359 = vld [vmem:[%s2350 + $0x20] sm:$0xf]
        %v2360 = vld [vmem:[%s2350 + $0x24] sm:$0xf]
        %v2361 = vld [vmem:[%s2350 + $0x28] sm:$0xf]
        %v2362 = vld [vmem:[%s2350 + $0x2c] sm:$0xf]
        %v2363 = vld [vmem:[%s2350 + $0x30] sm:$0xf]
        %v2364 = vld [vmem:[%s2350 + $0x34] sm:$0xf]
        %v2365 = vld [vmem:[%s2350 + $0x38] sm:$0xf]
        %v2366 = vld [vmem:[%s2350 + $0x3c] sm:$0xf]
        %v2367 = vld [vmem:[%s2350 + $0x40] sm:$0xf]
        %v2368 = vld [vmem:[%s2350 + $0x44] sm:$0xf]
        %v2369 = vld [vmem:[%s2350 + $0x48] sm:$0xf]
        %v2370 = vld [vmem:[%s2350 + $0x4c] sm:$0xf]
        %v2371 = vld [vmem:[%s2350 + $0x50] sm:$0xf]
        %v2372 = vld [vmem:[%s2350 + $0x54] sm:$0xf]
        %v2373 = vld [vmem:[%s2350 + $0x58] sm:$0xf]
        %v2374 = vld [vmem:[%s2350 + $0x5c] sm:$0xf]
        %v2375 = vld [vmem:[%s2350 + $0x60] sm:$0xf]
        %v2376 = vld [vmem:[%s2350 + $0x64] sm:$0xf]
        %v2377 = vld [vmem:[%s2350 + $0x68] sm:$0xf]
        %v2378 = vld [vmem:[%s2350 + $0x6c] sm:$0xf]
        %v2379 = vld [vmem:[%s2350 + $0x70] sm:$0xf]
        %v2380 = vld [vmem:[%s2350 + $0x74] sm:$0xf]
        %v2381 = vld [vmem:[%s2350 + $0x78] sm:$0xf]
        %v2382 = vld [vmem:[%s2350 + $0x7c] sm:$0xf]
        %v2383 = vld [vmem:[%s2350 + $0x80] sm:$0xf]
        %v2384 = vld [vmem:[%s2350 + $0x84] sm:$0xf]
        %v2385 = vld [vmem:[%s2350 + $0x88] sm:$0xf]
        %v2386 = vld [vmem:[%s2350 + $0x8c] sm:$0xf]
        %v2387 = vld [vmem:[%s2350 + $0x90] sm:$0xf]
        %v2388 = vld [vmem:[%s2350 + $0x94] sm:$0xf]
        %v2389 = vld [vmem:[%s2350 + $0x98] sm:$0xf]
        %v2390 = vld [vmem:[%s2350 + $0x9c] sm:$0xf]
        %v2391 = vld [vmem:[%s2350 + $0xa0] sm:$0xf]
        %v2392 = vld [vmem:[%s2350 + $0xa4] sm:$0xf]
        %v2393 = vld [vmem:[%s2350 + $0xa8] sm:$0xf]
        %v2394 = vld [vmem:[%s2350 + $0xac] sm:$0xf]
        %v2395 = vld [vmem:[%s2350 + $0xb0] sm:$0xf]
        %v2396 = vld [vmem:[%s2350 + $0xb4] sm:$0xf]
        %v2397 = vld [vmem:[%s2350 + $0xb8] sm:$0xf]
        %v2398 = vld [vmem:[%s2350 + $0xbc] sm:$0xf]
        %v2399 = vld [vmem:[%s2350 + $0xc0] sm:$0xf]
        %v2400 = vld [vmem:[%s2350 + $0xc4] sm:$0xf]
        %v2401 = vld [vmem:[%s2350 + $0xc8] sm:$0xf]
        %v2402 = vld [vmem:[%s2350 + $0xcc] sm:$0xf]
        %v2403 = vld [vmem:[%s2350 + $0xd0] sm:$0xf]
        %v2404 = vld [vmem:[%s2350 + $0xd4] sm:$0xf]
        %v2405 = vld [vmem:[%s2350 + $0xd8] sm:$0xf]
        %v2406 = vld [vmem:[%s2350 + $0xdc] sm:$0xf]
        %v2407 = vld [vmem:[%s2350 + $0xe0] sm:$0xf]
        %v2408 = vld [vmem:[%s2350 + $0xe4] sm:$0xf]
        %v2409 = vld [vmem:[%s2350 + $0xe8] sm:$0xf]
        %v2410 = vld [vmem:[%s2350 + $0xec] sm:$0xf]
        %v2411 = vld [vmem:[%s2350 + $0xf0] sm:$0xf]
        %v2412 = vld [vmem:[%s2350 + $0xf4] sm:$0xf]
        %v2413 = vld [vmem:[%s2350 + $0xf8] sm:$0xf]
        %v2414 = vld [vmem:[%s2350 + $0xfc] sm:$0xf]
        %v2415 = vld [vmem:[%s2350 + $0x100] sm:$0xf]
        %v2416 = vld [vmem:[%s2350 + $0x104] sm:$0xf]
        %v2417 = vld [vmem:[%s2350 + $0x108] sm:$0xf]
        %v2418 = vld [vmem:[%s2350 + $0x10c] sm:$0xf]
        %v2419 = vld [vmem:[%s2350 + $0x110] sm:$0xf]
        %v2420 = vld [vmem:[%s2350 + $0x114] sm:$0xf]
        %v2421 = vld [vmem:[%s2350 + $0x118] sm:$0xf]
        %v2422 = vld [vmem:[%s2350 + $0x11c] sm:$0xf]
        %v2423 = vld [vmem:[%s2350 + $0x120] sm:$0xf]
        %v2424 = vld [vmem:[%s2350 + $0x124] sm:$0xf]
        %v2425 = vld [vmem:[%s2350 + $0x128] sm:$0xf]
        %v2426 = vld [vmem:[%s2350 + $0x12c] sm:$0xf]
        %v2427 = vld [vmem:[%s2350 + $0x130] sm:$0xf]
        %v2428 = vld [vmem:[%s2350 + $0x134] sm:$0xf]
        %v2429 = vld [vmem:[%s2350 + $0x138] sm:$0xf]
        %v2430 = vld [vmem:[%s2350 + $0x13c] sm:$0xf]
        %v2511 = vunpack.c.l.b16 %v2351
        %v2512 = vunpack.c.l.b16 %v2352
        %v2513 = vunpack.c.l.b16 %v2353
        %v2514 = vunpack.c.l.b16 %v2354
        %v2515 = vunpack.c.l.b16 %v2355
        %v2516 = vunpack.c.l.b16 %v2356
        %v2517 = vunpack.c.l.b16 %v2357
        %v2518 = vunpack.c.l.b16 %v2358
        %v2519 = vunpack.c.l.b16 %v2359
        %v2520 = vunpack.c.l.b16 %v2360
        %v2521 = vunpack.c.l.b16 %v2361
        %v2522 = vunpack.c.l.b16 %v2362
        %v2523 = vunpack.c.l.b16 %v2363
        %v2524 = vunpack.c.l.b16 %v2364
        %v2525 = vunpack.c.l.b16 %v2365
        %v2526 = vunpack.c.l.b16 %v2366
        %v2527 = vunpack.c.l.b16 %v2367
        %v2528 = vunpack.c.l.b16 %v2368
        %v2529 = vunpack.c.l.b16 %v2369
        %v2530 = vunpack.c.l.b16 %v2370
        %v2531 = vunpack.c.l.b16 %v2371
        %v2532 = vunpack.c.l.b16 %v2372
        %v2533 = vunpack.c.l.b16 %v2373
        %v2534 = vunpack.c.l.b16 %v2374
        %v2535 = vunpack.c.l.b16 %v2375
        %v2536 = vunpack.c.l.b16 %v2376
        %v2537 = vunpack.c.l.b16 %v2377
        %v2538 = vunpack.c.l.b16 %v2378
        %v2539 = vunpack.c.l.b16 %v2379
        %v2540 = vunpack.c.l.b16 %v2380
        %v2541 = vunpack.c.l.b16 %v2381
        %v2542 = vunpack.c.l.b16 %v2382
        %v2543 = vunpack.c.l.b16 %v2383
        %v2544 = vunpack.c.l.b16 %v2384
        %v2545 = vunpack.c.l.b16 %v2385
        %v2546 = vunpack.c.l.b16 %v2386
        %v2547 = vunpack.c.l.b16 %v2387
        %v2548 = vunpack.c.l.b16 %v2388
        %v2549 = vunpack.c.l.b16 %v2389
        %v2550 = vunpack.c.l.b16 %v2390
        %v2551 = vunpack.c.l.b16 %v2391
        %v2552 = vunpack.c.l.b16 %v2392
        %v2553 = vunpack.c.l.b16 %v2393
        %v2554 = vunpack.c.l.b16 %v2394
        %v2555 = vunpack.c.l.b16 %v2395
        %v2556 = vunpack.c.l.b16 %v2396
        %v2557 = vunpack.c.l.b16 %v2397
        %v2558 = vunpack.c.l.b16 %v2398
        %v2559 = vunpack.c.l.b16 %v2399
        %v2560 = vunpack.c.l.b16 %v2400
        %v2561 = vunpack.c.l.b16 %v2401
        %v2562 = vunpack.c.l.b16 %v2402
        %v2563 = vunpack.c.l.b16 %v2403
        %v2564 = vunpack.c.l.b16 %v2404
        %v2565 = vunpack.c.l.b16 %v2405
        %v2566 = vunpack.c.l.b16 %v2406
        %v2567 = vunpack.c.l.b16 %v2407
        %v2568 = vunpack.c.l.b16 %v2408
        %v2569 = vunpack.c.l.b16 %v2409
        %v2570 = vunpack.c.l.b16 %v2410
        %v2571 = vunpack.c.l.b16 %v2411
        %v2572 = vunpack.c.l.b16 %v2412
        %v2573 = vunpack.c.l.b16 %v2413
        %v2574 = vunpack.c.l.b16 %v2414
        %v2575 = vunpack.c.l.b16 %v2415
        %v2576 = vunpack.c.l.b16 %v2416
        %v2577 = vunpack.c.l.b16 %v2417
        %v2578 = vunpack.c.l.b16 %v2418
        %v2579 = vunpack.c.l.b16 %v2419
        %v2580 = vunpack.c.l.b16 %v2420
        %v2581 = vunpack.c.l.b16 %v2421
        %v2582 = vunpack.c.l.b16 %v2422
        %v2583 = vunpack.c.l.b16 %v2423
        %v2584 = vunpack.c.l.b16 %v2424
        %v2585 = vunpack.c.l.b16 %v2425
        %v2586 = vunpack.c.l.b16 %v2426
        %v2587 = vunpack.c.l.b16 %v2427
        %v2588 = vunpack.c.l.b16 %v2428
        %v2589 = vunpack.c.l.b16 %v2429
        %v2590 = vunpack.c.l.b16 %v2430
        %v2591 = vpack.c.b16 %v2512, %v2511
        %v2592 = vpack.c.b16 %v2514, %v2513
        %v2593 = vpack.c.b16 %v2516, %v2515
        %v2594 = vpack.c.b16 %v2518, %v2517
        %v2595 = vpack.c.b16 %v2520, %v2519
        %v2596 = vpack.c.b16 %v2522, %v2521
        %v2597 = vpack.c.b16 %v2524, %v2523
        %v2598 = vpack.c.b16 %v2526, %v2525
        %v2599 = vpack.c.b16 %v2528, %v2527
        %v2600 = vpack.c.b16 %v2530, %v2529
        %v2601 = vpack.c.b16 %v2532, %v2531
        %v2602 = vpack.c.b16 %v2534, %v2533
        %v2603 = vpack.c.b16 %v2536, %v2535
        %v2604 = vpack.c.b16 %v2538, %v2537
        %v2605 = vpack.c.b16 %v2540, %v2539
        %v2606 = vpack.c.b16 %v2542, %v2541
        %v2607 = vpack.c.b16 %v2544, %v2543
        %v2608 = vpack.c.b16 %v2546, %v2545
        %v2609 = vpack.c.b16 %v2548, %v2547
        %v2610 = vpack.c.b16 %v2550, %v2549
        %v2611 = vpack.c.b16 %v2552, %v2551
        %v2612 = vpack.c.b16 %v2554, %v2553
        %v2613 = vpack.c.b16 %v2556, %v2555
        %v2614 = vpack.c.b16 %v2558, %v2557
        %v2615 = vpack.c.b16 %v2560, %v2559
        %v2616 = vpack.c.b16 %v2562, %v2561
        %v2617 = vpack.c.b16 %v2564, %v2563
        %v2618 = vpack.c.b16 %v2566, %v2565
        %v2619 = vpack.c.b16 %v2568, %v2567
        %v2620 = vpack.c.b16 %v2570, %v2569
        %v2621 = vpack.c.b16 %v2572, %v2571
        %v2622 = vpack.c.b16 %v2574, %v2573
        %v2623 = vpack.c.b16 %v2576, %v2575
        %v2624 = vpack.c.b16 %v2578, %v2577
        %v2625 = vpack.c.b16 %v2580, %v2579
        %v2626 = vpack.c.b16 %v2582, %v2581
        %v2627 = vpack.c.b16 %v2584, %v2583
        %v2628 = vpack.c.b16 %v2586, %v2585
        %v2629 = vpack.c.b16 %v2588, %v2587
        %v2630 = vpack.c.b16 %v2590, %v2589
        %2671 = vmatprep.subr.bf16.mxu0 0
        %2672 = vmatpush1.bf16.msra.mxu0 %v2591
        %2673 = vmatprep.subr.bf16.mxu0 0
        %2674 = vmatpush1.bf16.msra.mxu0 %v2592
        %2675 = vmatprep.subr.bf16.mxu0 0
        %2676 = vmatpush1.bf16.msra.mxu0 %v2593
        %2677 = vmatprep.subr.bf16.mxu0 0
        %2678 = vmatpush1.bf16.msra.mxu0 %v2594
        %2679 = vmatprep.subr.bf16.mxu0 0
        %2680 = vmatpush1.bf16.msra.mxu0 %v2595
        %2681 = vmatprep.subr.bf16.mxu0 0
        %2682 = vmatpush1.bf16.msra.mxu0 %v2596
        %2683 = vmatprep.subr.bf16.mxu0 0
        %2684 = vmatpush1.bf16.msra.mxu0 %v2597
        %2685 = vmatprep.subr.bf16.mxu0 0
        %2686 = vmatpush1.bf16.msra.mxu0 %v2598
        %2687 = vmatprep.subr.bf16.mxu0 0
        %2688 = vmatpush1.bf16.msra.mxu0 %v2599
        %2689 = vmatprep.subr.bf16.mxu0 0
        %2690 = vmatpush1.bf16.msra.mxu0 %v2600
        %2691 = vmatprep.subr.bf16.mxu0 0
        %2692 = vmatpush1.bf16.msra.mxu0 %v2601
        %2693 = vmatprep.subr.bf16.mxu0 0
        %2694 = vmatpush1.bf16.msra.mxu0 %v2602
        %2695 = vmatprep.subr.bf16.mxu0 0
        %2696 = vmatpush1.bf16.msra.mxu0 %v2603
        %2697 = vmatprep.subr.bf16.mxu0 0
        %2698 = vmatpush1.bf16.msra.mxu0 %v2604
        %2699 = vmatprep.subr.bf16.mxu0 0
        %2700 = vmatpush1.bf16.msra.mxu0 %v2605
        %2701 = vmatprep.subr.bf16.mxu0 0
        %2702 = vmatpush1.bf16.msra.mxu0 %v2606
        %2703 = vmatprep.mubr.bf16.mxu0 %v2290
        %2704 = vmatmul.mubr.bf16.gmra.mrb[0].mxu0 %v2272
        %v2705 = vpop.f32.mrb[0].mxu0
        %v2706 = vadd.f32 0.0, %v2705
        %v2707 = vpop.f32.mrb[0].mxu0
        %v2708 = vpop.f32.mrb[0].mxu0
        %v2709 = vadd.f32 0.0, %v2708
        %v2710 = vpop.f32.mrb[0].mxu0
        %2711 = vmatprep.mubr.bf16.mxu0 %v2291
        %2712 = vmatmul.mubr.bf16.gmra.mrb[0].mxu0 %v2273
        %v2713 = vpop.f32.mrb[0].mxu0
        %v2714 = vadd.f32 0.0, %v2713
        %v2715 = vpop.f32.mrb[0].mxu0
        %v2716 = vpop.f32.mrb[0].mxu0
        %v2717 = vadd.f32 0.0, %v2716
        %v2718 = vpop.f32.mrb[0].mxu0
        %2719 = vmatprep.mubr.bf16.mxu0 %v2292
        %2720 = vmatmul.mubr.bf16.gmra.mrb[0].mxu0 %v2274
        %v2721 = vpop.f32.mrb[0].mxu0
        %v2722 = vadd.f32 0.0, %v2721
        %v2723 = vpop.f32.mrb[0].mxu0
        %v2724 = vpop.f32.mrb[0].mxu0
        %v2725 = vadd.f32 0.0, %v2724
        %v2726 = vpop.f32.mrb[0].mxu0
        %2727 = vmatprep.mubr.bf16.mxu0 %v2293
        %2728 = vmatmul.mubr.bf16.gmra.mrb[0].mxu0 %v2275
        %v2729 = vpop.f32.mrb[0].mxu0
        %v2730 = vadd.f32 0.0, %v2729
        %v2731 = vpop.f32.mrb[0].mxu0
        %v2732 = vpop.f32.mrb[0].mxu0
        %v2733 = vadd.f32 0.0, %v2732
        %v2734 = vpop.f32.mrb[0].mxu0
        %2735 = vmatprep.mubr.bf16.mxu0 %v2294
        %2736 = vmatmul.mubr.bf16.gmra.mrb[0].mxu0 %v2276
        %v2737 = vpop.f32.mrb[0].mxu0
        %v2738 = vadd.f32 0.0, %v2737
        %v2739 = vpop.f32.mrb[0].mxu0
        %v2740 = vpop.f32.mrb[0].mxu0
        %v2741 = vadd.f32 0.0, %v2740
        %v2742 = vpop.f32.mrb[0].mxu0
        %2743 = vmatprep.mubr.bf16.mxu0 %v2295
        %2744 = vmatmul.mubr.bf16.gmra.mrb[0].mxu0 %v2277
        %v2745 = vpop.f32.mrb[0].mxu0
        %v2746 = vadd.f32 0.0, %v2745
        %v2747 = vpop.f32.mrb[0].mxu0
        %v2748 = vpop.f32.mrb[0].mxu0
        %v2749 = vadd.f32 0.0, %v2748
        %v2750 = vpop.f32.mrb[0].mxu0
        %2751 = vdwg.mxu0
        %2752 = vmatprep.subr.bf16.mxu0 0
        %2753 = vmatpush1.bf16.msra.mxu0 %v2607
        %2754 = vmatprep.subr.bf16.mxu0 0
        %2755 = vmatpush1.bf16.msra.mxu0 %v2608
        %2756 = vmatprep.subr.bf16.mxu0 0
        %2757 = vmatpush1.bf16.msra.mxu0 %v2609
        %2758 = vmatprep.subr.bf16.mxu0 0
        %2759 = vmatpush1.bf16.msra.mxu0 %v2610
        %2760 = vmatprep.subr.bf16.mxu0 0
        %2761 = vmatpush1.bf16.msra.mxu0 %v2611
        %2762 = vmatprep.subr.bf16.mxu0 0
        %2763 = vmatpush1.bf16.msra.mxu0 %v2612
        %2764 = vmatprep.subr.bf16.mxu0 0
        %2765 = vmatpush1.bf16.msra.mxu0 %v2613
        %2766 = vmatprep.subr.bf16.mxu0 0
        %2767 = vmatpush1.bf16.msra.mxu0 %v2614
        %2768 = vmatprep.subr.bf16.mxu0 0
        %2769 = vmatpush1.bf16.msra.mxu0 %v2615
        %2770 = vmatprep.subr.bf16.mxu0 0
        %2771 = vmatpush1.bf16.msra.mxu0 %v2616
        %2772 = vmatprep.subr.bf16.mxu0 0
        %2773 = vmatpush1.bf16.msra.mxu0 %v2617
        %2774 = vmatprep.subr.bf16.mxu0 0
        %2775 = vmatpush1.bf16.msra.mxu0 %v2618
        %2776 = vmatprep.subr.bf16.mxu0 0
        %2777 = vmatpush1.bf16.msra.mxu0 %v2619
        %2778 = vmatprep.subr.bf16.mxu0 0
        %2779 = vmatpush1.bf16.msra.mxu0 %v2620
        %2780 = vmatprep.subr.bf16.mxu0 0
        %2781 = vmatpush1.bf16.msra.mxu0 %v2621
        %2782 = vmatprep.subr.bf16.mxu0 0
        %2783 = vmatpush1.bf16.msra.mxu0 %v2622
        %2784 = vmatprep.mubr.bf16.mxu0 %v2326
        %2785 = vmatmul.mubr.bf16.gmra.mrb[0].mxu0 %v2308
        %v2786 = vpop.f32.mrb[0].mxu0
        %v2787 = vadd.f32 %v2706, %v2786
        %v2788 = vpop.f32.mrb[0].mxu0
        %v2789 = vpop.f32.mrb[0].mxu0
        %v2790 = vadd.f32 %v2709, %v2789
        %v2791 = vpop.f32.mrb[0].mxu0
        %2792 = vmatprep.mubr.bf16.mxu0 %v2327
        %2793 = vmatmul.mubr.bf16.gmra.mrb[0].mxu0 %v2309
        %v2794 = vpop.f32.mrb[0].mxu0
        %v2795 = vadd.f32 %v2714, %v2794
        %v2796 = vpop.f32.mrb[0].mxu0
        %v2797 = vpop.f32.mrb[0].mxu0
        %v2798 = vadd.f32 %v2717, %v2797
        %v2799 = vpop.f32.mrb[0].mxu0
        %2800 = vmatprep.mubr.bf16.mxu0 %v2328
        %2801 = vmatmul.mubr.bf16.gmra.mrb[0].mxu0 %v2310
        %v2802 = vpop.f32.mrb[0].mxu0
        %v2803 = vadd.f32 %v2722, %v2802
        %v2804 = vpop.f32.mrb[0].mxu0
        %v2805 = vpop.f32.mrb[0].mxu0
        %v2806 = vadd.f32 %v2725, %v2805
        %v2807 = vpop.f32.mrb[0].mxu0
        %2808 = vmatprep.mubr.bf16.mxu0 %v2329
        %2809 = vmatmul.mubr.bf16.gmra.mrb[0].mxu0 %v2311
        %v2810 = vpop.f32.mrb[0].mxu0
        %v2811 = vadd.f32 %v2730, %v2810
        %v2812 = vpop.f32.mrb[0].mxu0
        %v2813 = vpop.f32.mrb[0].mxu0
        %v2814 = vadd.f32 %v2733, %v2813
        %v2815 = vpop.f32.mrb[0].mxu0
        %2816 = vmatprep.mubr.bf16.mxu0 %v2330
        %2817 = vmatmul.mubr.bf16.gmra.mrb[0].mxu0 %v2312
        %v2818 = vpop.f32.mrb[0].mxu0
        %v2819 = vadd.f32 %v2738, %v2818
        %v2820 = vpop.f32.mrb[0].mxu0
        %v2821 = vpop.f32.mrb[0].mxu0
        %v2822 = vadd.f32 %v2741, %v2821
        %v2823 = vpop.f32.mrb[0].mxu0
        %2824 = vmatprep.mubr.bf16.mxu0 %v2331
        %2825 = vmatmul.mubr.bf16.gmra.mrb[0].mxu0 %v2313
        %v2826 = vpop.f32.mrb[0].mxu0
        %v2827 = vadd.f32 %v2746, %v2826
        %v2828 = vpop.f32.mrb[0].mxu0
        %v2829 = vpop.f32.mrb[0].mxu0
        %v2830 = vadd.f32 %v2749, %v2829
        %v2831 = vpop.f32.mrb[0].mxu0
        %2832 = vdwg.mxu0
        %2833 = vmatprep.subr.bf16.mxu0 0
        %2834 = vmatpush1.bf16.msra.mxu0 %v2623
        %2835 = vmatprep.subr.bf16.mxu0 0
        %2836 = vmatpush1.bf16.msra.mxu0 %v2624
        %2837 = vmatprep.subr.bf16.mxu0 0
        %2838 = vmatpush1.bf16.msra.mxu0 %v2625
        %2839 = vmatprep.subr.bf16.mxu0 0
        %2840 = vmatpush1.bf16.msra.mxu0 %v2626
        %2841 = vmatprep.subr.bf16.mxu0 0
        %2842 = vmatpush1.bf16.msra.mxu0 %v2627
        %2843 = vmatprep.subr.bf16.mxu0 0
        %2844 = vmatpush1.bf16.msra.mxu0 %v2628
        %2845 = vmatprep.subr.bf16.mxu0 0
        %2846 = vmatpush1.bf16.msra.mxu0 %v2629
        %2847 = vmatprep.subr.bf16.mxu0 0
        %2848 = vmatpush1.bf16.msra.mxu0 %v2630
        %2849 = vmatprep.subr.bf16.mxu0 0
        %2850 = vmatpush1.bf16.msra.mxu0 0
        %2851 = vmatprep.subr.bf16.mxu0 0
        %2852 = vmatpush1.bf16.msra.mxu0 0
        %2853 = vmatprep.subr.bf16.mxu0 0
        %2854 = vmatpush1.bf16.msra.mxu0 0
        %2855 = vmatprep.subr.bf16.mxu0 0
        %2856 = vmatpush1.bf16.msra.mxu0 0
        %2857 = vmatprep.subr.bf16.mxu0 0
        %2858 = vmatpush1.bf16.msra.mxu0 0
        %2859 = vmatprep.subr.bf16.mxu0 0
        %2860 = vmatpush1.bf16.msra.mxu0 0
        %2861 = vmatprep.subr.bf16.mxu0 0
        %2862 = vmatpush1.bf16.msra.mxu0 0
        %2863 = vmatprep.subr.bf16.mxu0 0
        %2864 = vmatpush1.bf16.msra.mxu0 0
        %2865 = vmatprep.mubr.bf16.mxu0 0
        %2866 = vmatmul.mubr.bf16.gmra.mrb[0].mxu0 %v2344
        %v2867 = vpop.f32.mrb[0].mxu0
        %v2868 = vadd.f32 %v2787, %v2867
        %v2869 = vpop.f32.mrb[0].mxu0
        %v2870 = vpop.f32.mrb[0].mxu0
        %v2871 = vadd.f32 %v2790, %v2870
        %v2872 = vpop.f32.mrb[0].mxu0
        %2873 = vmatprep.mubr.bf16.mxu0 0
        %2874 = vmatmul.mubr.bf16.gmra.mrb[0].mxu0 %v2345
        %v2875 = vpop.f32.mrb[0].mxu0
        %v2876 = vadd.f32 %v2795, %v2875
        %v2877 = vpop.f32.mrb[0].mxu0
        %v2878 = vpop.f32.mrb[0].mxu0
        %v2879 = vadd.f32 %v2798, %v2878
        %v2880 = vpop.f32.mrb[0].mxu0
        %2881 = vmatprep.mubr.bf16.mxu0 0
        %2882 = vmatmul.mubr.bf16.gmra.mrb[0].mxu0 %v2346
        %v2883 = vpop.f32.mrb[0].mxu0
        %v2884 = vadd.f32 %v2803, %v2883
        %v2885 = vpop.f32.mrb[0].mxu0
        %v2886 = vpop.f32.mrb[0].mxu0
        %v2887 = vadd.f32 %v2806, %v2886
        %v2888 = vpop.f32.mrb[0].mxu0
        %2889 = vmatprep.mubr.bf16.mxu0 0
        %2890 = vmatmul.mubr.bf16.gmra.mrb[0].mxu0 %v2347
        %v2891 = vpop.f32.mrb[0].mxu0
        %v2892 = vadd.f32 %v2811, %v2891
        %v2893 = vpop.f32.mrb[0].mxu0
        %v2894 = vpop.f32.mrb[0].mxu0
        %v2895 = vadd.f32 %v2814, %v2894
        %v2896 = vpop.f32.mrb[0].mxu0
        %2897 = vmatprep.mubr.bf16.mxu0 0
        %2898 = vmatmul.mubr.bf16.gmra.mrb[0].mxu0 %v2348
        %v2899 = vpop.f32.mrb[0].mxu0
        %v2900 = vadd.f32 %v2819, %v2899
        %v2901 = vpop.f32.mrb[0].mxu0
        %v2902 = vpop.f32.mrb[0].mxu0
        %v2903 = vadd.f32 %v2822, %v2902
        %v2904 = vpop.f32.mrb[0].mxu0
        %2905 = vmatprep.mubr.bf16.mxu0 0
        %2906 = vmatmul.mubr.bf16.gmra.mrb[0].mxu0 %v2349
        %v2907 = vpop.f32.mrb[0].mxu0
        %v2908 = vadd.f32 %v2827, %v2907
        %v2909 = vpop.f32.mrb[0].mxu0
        %v2910 = vpop.f32.mrb[0].mxu0
        %v2911 = vadd.f32 %v2830, %v2910
        %v2912 = vpop.f32.mrb[0].mxu0
        %2913 = vdwg.mxu0
        %v2914 = vadd.f32 %v2214, %v2868
        %v2915 = vadd.f32 %v2217, %v2871
        %v2916 = vadd.f32 %v2222, %v2876
        %v2917 = vadd.f32 %v2225, %v2879
        %v2918 = vadd.f32 %v2230, %v2884
        %v2919 = vadd.f32 %v2233, %v2887
        %v2920 = vadd.f32 %v2238, %v2892
        %v2921 = vadd.f32 %v2241, %v2895
        %v2922 = vadd.f32 %v2246, %v2900
        %v2923 = vadd.f32 %v2249, %v2903
        %v2924 = vadd.f32 %v2254, %v2908
        %v2925 = vadd.f32 %v2257, %v2911
        %v2926 = vmax.f32 %v2914, 0.0
        %v2927 = vmax.f32 %v2915, 0.0
        %v2928 = vmax.f32 %v2916, 0.0
        %v2929 = vmax.f32 %v2917, 0.0
        %v2930 = vmax.f32 %v2918, 0.0
        %v2931 = vmax.f32 %v2919, 0.0
        %v2932 = vmax.f32 %v2920, 0.0
        %v2933 = vmax.f32 %v2921, 0.0
        %v2934 = vmax.f32 %v2922, 0.0
        %v2935 = vmax.f32 %v2923, 0.0
        %v2936 = vmax.f32 %v2924, 0.0
        %v2937 = vmax.f32 %v2925, 0.0
        %2938 = vst [vmem:[#allocation3 + $0x2] sm:$0xff] %v2926
        %2939 = vst [vmem:[#allocation3 + $0xa] sm:$0xf] %v2927
        %2940 = vst [vmem:[#allocation3 + $0x12] sm:$0xff] %v2928
        %2941 = vst [vmem:[#allocation3 + $0x1a] sm:$0xf] %v2929
        %2942 = vst [vmem:[#allocation3 + $0x22] sm:$0xff] %v2930
        %2943 = vst [vmem:[#allocation3 + $0x2a] sm:$0xf] %v2931
        %2944 = vst [vmem:[#allocation3 + $0x32] sm:$0xff] %v2932
        %2945 = vst [vmem:[#allocation3 + $0x3a] sm:$0xf] %v2933
        %2946 = vst [vmem:[#allocation3 + $0x42] sm:$0xff] %v2934
        %2947 = vst [vmem:[#allocation3 + $0x4a] sm:$0xf] %v2935
        %2948 = vst [vmem:[#allocation3 + $0x52] sm:$0xff] %v2936
        %2949 = vst [vmem:[#allocation3 + $0x5a] sm:$0xf] %v2937
        %v2950 = vld [vmem:[#allocation3] sm:$0xff]
        %v2951 = vld [vmem:[#allocation3 + $0x8] sm:$0xff]
        %v2952 = vld [vmem:[#allocation3 + $0x10] sm:$0xff]
        %v2953 = vld [vmem:[#allocation3 + $0x18] sm:$0xff]
        %v2954 = vld [vmem:[#allocation3 + $0x20] sm:$0xff]
        %v2955 = vld [vmem:[#allocation3 + $0x28] sm:$0xff]
        %v2956 = vld [vmem:[#allocation3 + $0x30] sm:$0xff]
        %v2957 = vld [vmem:[#allocation3 + $0x38] sm:$0xf]
        %v2958 = vpack.c.bf16 %v2951, %v2950
        %v2959 = vpack.c.bf16 %v2953, %v2952
        %v2960 = vpack.c.bf16 %v2955, %v2954
        %v2961 = vpack.c.bf16 %v2957, %v2956
        %v2962 = vld [vmem:[#allocation3 + $0x1] sm:$0xff]
        %v2963 = vld [vmem:[#allocation3 + $0x9] sm:$0xff]
        %v2964 = vld [vmem:[#allocation3 + $0x11] sm:$0xff]
        %v2965 = vld [vmem:[#allocation3 + $0x19] sm:$0xff]
        %v2966 = vld [vmem:[#allocation3 + $0x21] sm:$0xff]
        %v2967 = vld [vmem:[#allocation3 + $0x29] sm:$0xff]
        %v2968 = vld [vmem:[#allocation3 + $0x31] sm:$0xff]
        %v2969 = vld [vmem:[#allocation3 + $0x39] sm:$0xf]
        %v2970 = vpack.c.bf16 %v2963, %v2962
        %v2971 = vpack.c.bf16 %v2965, %v2964
        %v2972 = vpack.c.bf16 %v2967, %v2966
        %v2973 = vpack.c.bf16 %v2969, %v2968
        %v2974 = vld [vmem:[#allocation3 + $0x2] sm:$0xff]
        %v2975 = vld [vmem:[#allocation3 + $0xa] sm:$0xff]
        %v2976 = vld [vmem:[#allocation3 + $0x12] sm:$0xff]
        %v2977 = vld [vmem:[#allocation3 + $0x1a] sm:$0xff]
        %v2978 = vld [vmem:[#allocation3 + $0x22] sm:$0xff]
        %v2979 = vld [vmem:[#allocation3 + $0x2a] sm:$0xff]
        %v2980 = vld [vmem:[#allocation3 + $0x32] sm:$0xff]
        %v2981 = vld [vmem:[#allocation3 + $0x3a] sm:$0xf]
        %v2982 = vpack.c.bf16 %v2975, %v2974
        %v2983 = vpack.c.bf16 %v2977, %v2976
        %v2984 = vpack.c.bf16 %v2979, %v2978
        %v2985 = vpack.c.bf16 %v2981, %v2980
        %v2986 = vld [vmem:[#allocation3 + $0x3] sm:$0xff]
        %v2987 = vld [vmem:[#allocation3 + $0xb] sm:$0xff]
        %v2988 = vld [vmem:[#allocation3 + $0x13] sm:$0xff]
        %v2989 = vld [vmem:[#allocation3 + $0x1b] sm:$0xff]
        %v2990 = vld [vmem:[#allocation3 + $0x23] sm:$0xff]
        %v2991 = vld [vmem:[#allocation3 + $0x2b] sm:$0xff]
        %v2992 = vld [vmem:[#allocation3 + $0x33] sm:$0xff]
        %v2993 = vld [vmem:[#allocation3 + $0x3b] sm:$0xf]
        %v2994 = vpack.c.bf16 %v2987, %v2986
        %v2995 = vpack.c.bf16 %v2989, %v2988
        %v2996 = vpack.c.bf16 %v2991, %v2990
        %v2997 = vpack.c.bf16 %v2993, %v2992
        %v2998 = vld [vmem:[#allocation3 + $0x4] sm:$0xff]
        %v2999 = vld [vmem:[#allocation3 + $0xc] sm:$0xff]
        %v3000 = vld [vmem:[#allocation3 + $0x14] sm:$0xff]
        %v3001 = vld [vmem:[#allocation3 + $0x1c] sm:$0xff]
        %v3002 = vld [vmem:[#allocation3 + $0x24] sm:$0xff]
        %v3003 = vld [vmem:[#allocation3 + $0x2c] sm:$0xff]
        %v3004 = vld [vmem:[#allocation3 + $0x34] sm:$0xff]
        %v3005 = vld [vmem:[#allocation3 + $0x3c] sm:$0xf]
        %v3006 = vpack.c.bf16 %v2999, %v2998
        %v3007 = vpack.c.bf16 %v3001, %v3000
        %v3008 = vpack.c.bf16 %v3003, %v3002
        %v3009 = vpack.c.bf16 %v3005, %v3004
        %v3010 = vld [vmem:[%s6] sm:$0xf]
        %v3011 = vld [vmem:[%s6 + $0x4] sm:$0xf]
        %v3012 = vld [vmem:[%s6 + $0x8] sm:$0xf]
        %v3013 = vld [vmem:[%s6 + $0xc] sm:$0xf]
        %v3014 = vld [vmem:[%s6 + $0x10] sm:$0xf]
        %v3015 = vld [vmem:[%s6 + $0x14] sm:$0xf]
        %v3016 = vld [vmem:[%s6 + $0x18] sm:$0xf]
        %v3017 = vld [vmem:[%s6 + $0x1c] sm:$0xf]
        %v3018 = vld [vmem:[%s6 + $0x20] sm:$0xf]
        %v3019 = vld [vmem:[%s6 + $0x24] sm:$0xf]
        %v3020 = vld [vmem:[%s6 + $0x28] sm:$0xf]
        %v3021 = vld [vmem:[%s6 + $0x2c] sm:$0xf]
        %v3022 = vld [vmem:[%s6 + $0x30] sm:$0xf]
        %v3023 = vld [vmem:[%s6 + $0x34] sm:$0xf]
        %v3024 = vld [vmem:[%s6 + $0x38] sm:$0xf]
        %v3025 = vld [vmem:[%s6 + $0x3c] sm:$0xf]
        %v3026 = vld [vmem:[%s6 + $0x40] sm:$0xf]
        %v3027 = vld [vmem:[%s6 + $0x44] sm:$0xf]
        %v3028 = vld [vmem:[%s6 + $0x48] sm:$0xf]
        %v3029 = vld [vmem:[%s6 + $0x4c] sm:$0xf]
        %v3030 = vld [vmem:[%s6 + $0x50] sm:$0xf]
        %v3031 = vld [vmem:[%s6 + $0x54] sm:$0xf]
        %v3032 = vld [vmem:[%s6 + $0x58] sm:$0xf]
        %v3033 = vld [vmem:[%s6 + $0x5c] sm:$0xf]
        %v3034 = vld [vmem:[%s6 + $0x60] sm:$0xf]
        %v3035 = vld [vmem:[%s6 + $0x64] sm:$0xf]
        %v3036 = vld [vmem:[%s6 + $0x68] sm:$0xf]
        %v3037 = vld [vmem:[%s6 + $0x6c] sm:$0xf]
        %v3038 = vld [vmem:[%s6 + $0x70] sm:$0xf]
        %v3039 = vld [vmem:[%s6 + $0x74] sm:$0xf]
        %v3040 = vld [vmem:[%s6 + $0x78] sm:$0xf]
        %v3041 = vld [vmem:[%s6 + $0x7c] sm:$0xf]
        %v3042 = vld [vmem:[%s6 + $0x80] sm:$0xf]
        %v3043 = vld [vmem:[%s6 + $0x84] sm:$0xf]
        %v3044 = vld [vmem:[%s6 + $0x88] sm:$0xf]
        %v3045 = vld [vmem:[%s6 + $0x8c] sm:$0xf]
        %v3046 = vld [vmem:[%s6 + $0x90] sm:$0xf]
        %v3047 = vld [vmem:[%s6 + $0x94] sm:$0xf]
        %v3048 = vld [vmem:[%s6 + $0x98] sm:$0xf]
        %v3049 = vld [vmem:[%s6 + $0x9c] sm:$0xf]
        %v3050 = vld [vmem:[%s6 + $0xa0] sm:$0xf]
        %v3051 = vld [vmem:[%s6 + $0xa4] sm:$0xf]
        %v3052 = vld [vmem:[%s6 + $0xa8] sm:$0xf]
        %v3053 = vld [vmem:[%s6 + $0xac] sm:$0xf]
        %v3054 = vld [vmem:[%s6 + $0xb0] sm:$0xf]
        %v3055 = vld [vmem:[%s6 + $0xb4] sm:$0xf]
        %v3056 = vld [vmem:[%s6 + $0xb8] sm:$0xf]
        %v3057 = vld [vmem:[%s6 + $0xbc] sm:$0xf]
        %v3058 = vld [vmem:[%s6 + $0xc0] sm:$0xf]
        %v3059 = vld [vmem:[%s6 + $0xc4] sm:$0xf]
        %v3060 = vld [vmem:[%s6 + $0xc8] sm:$0xf]
        %v3061 = vld [vmem:[%s6 + $0xcc] sm:$0xf]
        %v3062 = vld [vmem:[%s6 + $0xd0] sm:$0xf]
        %v3063 = vld [vmem:[%s6 + $0xd4] sm:$0xf]
        %v3064 = vld [vmem:[%s6 + $0xd8] sm:$0xf]
        %v3065 = vld [vmem:[%s6 + $0xdc] sm:$0xf]
        %v3066 = vld [vmem:[%s6 + $0xe0] sm:$0xf]
        %v3067 = vld [vmem:[%s6 + $0xe4] sm:$0xf]
        %v3068 = vld [vmem:[%s6 + $0xe8] sm:$0xf]
        %v3069 = vld [vmem:[%s6 + $0xec] sm:$0xf]
        %v3070 = vld [vmem:[%s6 + $0xf0] sm:$0xf]
        %v3071 = vld [vmem:[%s6 + $0xf4] sm:$0xf]
        %v3072 = vld [vmem:[%s6 + $0xf8] sm:$0xf]
        %v3073 = vld [vmem:[%s6 + $0xfc] sm:$0xf]
        %v3074 = vld [vmem:[%s6 + $0x100] sm:$0xf]
        %v3075 = vld [vmem:[%s6 + $0x104] sm:$0xf]
        %v3076 = vld [vmem:[%s6 + $0x108] sm:$0xf]
        %v3077 = vld [vmem:[%s6 + $0x10c] sm:$0xf]
        %v3078 = vld [vmem:[%s6 + $0x110] sm:$0xf]
        %v3079 = vld [vmem:[%s6 + $0x114] sm:$0xf]
        %v3080 = vld [vmem:[%s6 + $0x118] sm:$0xf]
        %v3081 = vld [vmem:[%s6 + $0x11c] sm:$0xf]
        %v3082 = vld [vmem:[%s6 + $0x120] sm:$0xf]
        %v3083 = vld [vmem:[%s6 + $0x124] sm:$0xf]
        %v3084 = vld [vmem:[%s6 + $0x128] sm:$0xf]
        %v3085 = vld [vmem:[%s6 + $0x12c] sm:$0xf]
        %v3086 = vld [vmem:[%s6 + $0x130] sm:$0xf]
        %v3087 = vld [vmem:[%s6 + $0x134] sm:$0xf]
        %v3088 = vld [vmem:[%s6 + $0x138] sm:$0xf]
        %v3089 = vld [vmem:[%s6 + $0x13c] sm:$0xf]
        %v3090 = vld [vmem:[#allocation3 + $0x38] sm:$0xff]
        %v3091 = vld [vmem:[#allocation3 + $0x40] sm:$0xff]
        %v3092 = vld [vmem:[#allocation3 + $0x48] sm:$0xf]
        %v3093 = vpack.c.bf16 %v3090, %v2956
        %v3094 = vpack.c.bf16 %v3092, %v3091
        %v3095 = vld [vmem:[#allocation3 + $0x39] sm:$0xff]
        %v3096 = vld [vmem:[#allocation3 + $0x41] sm:$0xff]
        %v3097 = vld [vmem:[#allocation3 + $0x49] sm:$0xf]
        %v3098 = vpack.c.bf16 %v3095, %v2968
        %v3099 = vpack.c.bf16 %v3097, %v3096
        %v3100 = vld [vmem:[#allocation3 + $0x3a] sm:$0xff]
        %v3101 = vld [vmem:[#allocation3 + $0x42] sm:$0xff]
        %v3102 = vld [vmem:[#allocation3 + $0x4a] sm:$0xf]
        %v3103 = vpack.c.bf16 %v3100, %v2980
        %v3104 = vpack.c.bf16 %v3102, %v3101
        %v3105 = vld [vmem:[#allocation3 + $0x3b] sm:$0xff]
        %v3106 = vld [vmem:[#allocation3 + $0x43] sm:$0xff]
        %v3107 = vld [vmem:[#allocation3 + $0x4b] sm:$0xf]
        %v3108 = vpack.c.bf16 %v3105, %v2992
        %v3109 = vpack.c.bf16 %v3107, %v3106
        %v3110 = vld [vmem:[#allocation3 + $0x3c] sm:$0xff]
        %v3111 = vld [vmem:[#allocation3 + $0x44] sm:$0xff]
        %v3112 = vld [vmem:[#allocation3 + $0x4c] sm:$0xf]
        %v3113 = vpack.c.bf16 %v3110, %v3004
        %v3114 = vpack.c.bf16 %v3112, %v3111
        %s3115 = scalar_lea.vmem %s6, 320
        %v3116 = vld [vmem:[%s3115] sm:$0xf]
        %v3117 = vld [vmem:[%s3115 + $0x4] sm:$0xf]
        %v3118 = vld [vmem:[%s3115 + $0x8] sm:$0xf]
        %v3119 = vld [vmem:[%s3115 + $0xc] sm:$0xf]
        %v3120 = vld [vmem:[%s3115 + $0x10] sm:$0xf]
        %v3121 = vld [vmem:[%s3115 + $0x14] sm:$0xf]
        %v3122 = vld [vmem:[%s3115 + $0x18] sm:$0xf]
        %v3123 = vld [vmem:[%s3115 + $0x1c] sm:$0xf]
        %v3124 = vld [vmem:[%s3115 + $0x20] sm:$0xf]
        %v3125 = vld [vmem:[%s3115 + $0x24] sm:$0xf]
        %v3126 = vld [vmem:[%s3115 + $0x28] sm:$0xf]
        %v3127 = vld [vmem:[%s3115 + $0x2c] sm:$0xf]
        %v3128 = vld [vmem:[%s3115 + $0x30] sm:$0xf]
        %v3129 = vld [vmem:[%s3115 + $0x34] sm:$0xf]
        %v3130 = vld [vmem:[%s3115 + $0x38] sm:$0xf]
        %v3131 = vld [vmem:[%s3115 + $0x3c] sm:$0xf]
        %v3132 = vld [vmem:[%s3115 + $0x40] sm:$0xf]
        %v3133 = vld [vmem:[%s3115 + $0x44] sm:$0xf]
        %v3134 = vld [vmem:[%s3115 + $0x48] sm:$0xf]
        %v3135 = vld [vmem:[%s3115 + $0x4c] sm:$0xf]
        %v3136 = vld [vmem:[%s3115 + $0x50] sm:$0xf]
        %v3137 = vld [vmem:[%s3115 + $0x54] sm:$0xf]
        %v3138 = vld [vmem:[%s3115 + $0x58] sm:$0xf]
        %v3139 = vld [vmem:[%s3115 + $0x5c] sm:$0xf]
        %v3140 = vld [vmem:[%s3115 + $0x60] sm:$0xf]
        %v3141 = vld [vmem:[%s3115 + $0x64] sm:$0xf]
        %v3142 = vld [vmem:[%s3115 + $0x68] sm:$0xf]
        %v3143 = vld [vmem:[%s3115 + $0x6c] sm:$0xf]
        %v3144 = vld [vmem:[%s3115 + $0x70] sm:$0xf]
        %v3145 = vld [vmem:[%s3115 + $0x74] sm:$0xf]
        %v3146 = vld [vmem:[%s3115 + $0x78] sm:$0xf]
        %v3147 = vld [vmem:[%s3115 + $0x7c] sm:$0xf]
        %v3148 = vld [vmem:[%s3115 + $0x80] sm:$0xf]
        %v3149 = vld [vmem:[%s3115 + $0x84] sm:$0xf]
        %v3150 = vld [vmem:[%s3115 + $0x88] sm:$0xf]
        %v3151 = vld [vmem:[%s3115 + $0x8c] sm:$0xf]
        %v3152 = vld [vmem:[%s3115 + $0x90] sm:$0xf]
        %v3153 = vld [vmem:[%s3115 + $0x94] sm:$0xf]
        %v3154 = vld [vmem:[%s3115 + $0x98] sm:$0xf]
        %v3155 = vld [vmem:[%s3115 + $0x9c] sm:$0xf]
        %v3156 = vld [vmem:[%s3115 + $0xa0] sm:$0xf]
        %v3157 = vld [vmem:[%s3115 + $0xa4] sm:$0xf]
        %v3158 = vld [vmem:[%s3115 + $0xa8] sm:$0xf]
        %v3159 = vld [vmem:[%s3115 + $0xac] sm:$0xf]
        %v3160 = vld [vmem:[%s3115 + $0xb0] sm:$0xf]
        %v3161 = vld [vmem:[%s3115 + $0xb4] sm:$0xf]
        %v3162 = vld [vmem:[%s3115 + $0xb8] sm:$0xf]
        %v3163 = vld [vmem:[%s3115 + $0xbc] sm:$0xf]
        %v3164 = vld [vmem:[%s3115 + $0xc0] sm:$0xf]
        %v3165 = vld [vmem:[%s3115 + $0xc4] sm:$0xf]
        %v3166 = vld [vmem:[%s3115 + $0xc8] sm:$0xf]
        %v3167 = vld [vmem:[%s3115 + $0xcc] sm:$0xf]
        %v3168 = vld [vmem:[%s3115 + $0xd0] sm:$0xf]
        %v3169 = vld [vmem:[%s3115 + $0xd4] sm:$0xf]
        %v3170 = vld [vmem:[%s3115 + $0xd8] sm:$0xf]
        %v3171 = vld [vmem:[%s3115 + $0xdc] sm:$0xf]
        %v3172 = vld [vmem:[%s3115 + $0xe0] sm:$0xf]
        %v3173 = vld [vmem:[%s3115 + $0xe4] sm:$0xf]
        %v3174 = vld [vmem:[%s3115 + $0xe8] sm:$0xf]
        %v3175 = vld [vmem:[%s3115 + $0xec] sm:$0xf]
        %v3176 = vld [vmem:[%s3115 + $0xf0] sm:$0xf]
        %v3177 = vld [vmem:[%s3115 + $0xf4] sm:$0xf]
        %v3178 = vld [vmem:[%s3115 + $0xf8] sm:$0xf]
        %v3179 = vld [vmem:[%s3115 + $0xfc] sm:$0xf]
        %v3180 = vld [vmem:[%s3115 + $0x100] sm:$0xf]
        %v3181 = vld [vmem:[%s3115 + $0x104] sm:$0xf]
        %v3182 = vld [vmem:[%s3115 + $0x108] sm:$0xf]
        %v3183 = vld [vmem:[%s3115 + $0x10c] sm:$0xf]
        %v3184 = vld [vmem:[%s3115 + $0x110] sm:$0xf]
        %v3185 = vld [vmem:[%s3115 + $0x114] sm:$0xf]
        %v3186 = vld [vmem:[%s3115 + $0x118] sm:$0xf]
        %v3187 = vld [vmem:[%s3115 + $0x11c] sm:$0xf]
        %v3188 = vld [vmem:[%s3115 + $0x120] sm:$0xf]
        %v3189 = vld [vmem:[%s3115 + $0x124] sm:$0xf]
        %v3190 = vld [vmem:[%s3115 + $0x128] sm:$0xf]
        %v3191 = vld [vmem:[%s3115 + $0x12c] sm:$0xf]
        %v3192 = vld [vmem:[%s3115 + $0x130] sm:$0xf]
        %v3193 = vld [vmem:[%s3115 + $0x134] sm:$0xf]
        %v3194 = vld [vmem:[%s3115 + $0x138] sm:$0xf]
        %v3195 = vld [vmem:[%s3115 + $0x13c] sm:$0xf]
        %v3276 = vunpack.c.l.b16 %v3116
        %v3277 = vunpack.c.l.b16 %v3117
        %v3278 = vunpack.c.l.b16 %v3118
        %v3279 = vunpack.c.l.b16 %v3119
        %v3280 = vunpack.c.l.b16 %v3120
        %v3281 = vunpack.c.l.b16 %v3121
        %v3282 = vunpack.c.l.b16 %v3122
        %v3283 = vunpack.c.l.b16 %v3123
        %v3284 = vunpack.c.l.b16 %v3124
        %v3285 = vunpack.c.l.b16 %v3125
        %v3286 = vunpack.c.l.b16 %v3126
        %v3287 = vunpack.c.l.b16 %v3127
        %v3288 = vunpack.c.l.b16 %v3128
        %v3289 = vunpack.c.l.b16 %v3129
        %v3290 = vunpack.c.l.b16 %v3130
        %v3291 = vunpack.c.l.b16 %v3131
        %v3292 = vunpack.c.l.b16 %v3132
        %v3293 = vunpack.c.l.b16 %v3133
        %v3294 = vunpack.c.l.b16 %v3134
        %v3295 = vunpack.c.l.b16 %v3135
        %v3296 = vunpack.c.l.b16 %v3136
        %v3297 = vunpack.c.l.b16 %v3137
        %v3298 = vunpack.c.l.b16 %v3138
        %v3299 = vunpack.c.l.b16 %v3139
        %v3300 = vunpack.c.l.b16 %v3140
        %v3301 = vunpack.c.l.b16 %v3141
        %v3302 = vunpack.c.l.b16 %v3142
        %v3303 = vunpack.c.l.b16 %v3143
        %v3304 = vunpack.c.l.b16 %v3144
        %v3305 = vunpack.c.l.b16 %v3145
        %v3306 = vunpack.c.l.b16 %v3146
        %v3307 = vunpack.c.l.b16 %v3147
        %v3308 = vunpack.c.l.b16 %v3148
        %v3309 = vunpack.c.l.b16 %v3149
        %v3310 = vunpack.c.l.b16 %v3150
        %v3311 = vunpack.c.l.b16 %v3151
        %v3312 = vunpack.c.l.b16 %v3152
        %v3313 = vunpack.c.l.b16 %v3153
        %v3314 = vunpack.c.l.b16 %v3154
        %v3315 = vunpack.c.l.b16 %v3155
        %v3316 = vunpack.c.l.b16 %v3156
        %v3317 = vunpack.c.l.b16 %v3157
        %v3318 = vunpack.c.l.b16 %v3158
        %v3319 = vunpack.c.l.b16 %v3159
        %v3320 = vunpack.c.l.b16 %v3160
        %v3321 = vunpack.c.l.b16 %v3161
        %v3322 = vunpack.c.l.b16 %v3162
        %v3323 = vunpack.c.l.b16 %v3163
        %v3324 = vunpack.c.l.b16 %v3164
        %v3325 = vunpack.c.l.b16 %v3165
        %v3326 = vunpack.c.l.b16 %v3166
        %v3327 = vunpack.c.l.b16 %v3167
        %v3328 = vunpack.c.l.b16 %v3168
        %v3329 = vunpack.c.l.b16 %v3169
        %v3330 = vunpack.c.l.b16 %v3170
        %v3331 = vunpack.c.l.b16 %v3171
        %v3332 = vunpack.c.l.b16 %v3172
        %v3333 = vunpack.c.l.b16 %v3173
        %v3334 = vunpack.c.l.b16 %v3174
        %v3335 = vunpack.c.l.b16 %v3175
        %v3336 = vunpack.c.l.b16 %v3176
        %v3337 = vunpack.c.l.b16 %v3177
        %v3338 = vunpack.c.l.b16 %v3178
        %v3339 = vunpack.c.l.b16 %v3179
        %v3340 = vunpack.c.l.b16 %v3180
        %v3341 = vunpack.c.l.b16 %v3181
        %v3342 = vunpack.c.l.b16 %v3182
        %v3343 = vunpack.c.l.b16 %v3183
        %v3344 = vunpack.c.l.b16 %v3184
        %v3345 = vunpack.c.l.b16 %v3185
        %v3346 = vunpack.c.l.b16 %v3186
        %v3347 = vunpack.c.l.b16 %v3187
        %v3348 = vunpack.c.l.b16 %v3188
        %v3349 = vunpack.c.l.b16 %v3189
        %v3350 = vunpack.c.l.b16 %v3190
        %v3351 = vunpack.c.l.b16 %v3191
        %v3352 = vunpack.c.l.b16 %v3192
        %v3353 = vunpack.c.l.b16 %v3193
        %v3354 = vunpack.c.l.b16 %v3194
        %v3355 = vunpack.c.l.b16 %v3195
        %v3356 = vpack.c.b16 %v3277, %v3276
        %v3357 = vpack.c.b16 %v3279, %v3278
        %v3358 = vpack.c.b16 %v3281, %v3280
        %v3359 = vpack.c.b16 %v3283, %v3282
        %v3360 = vpack.c.b16 %v3285, %v3284
        %v3361 = vpack.c.b16 %v3287, %v3286
        %v3362 = vpack.c.b16 %v3289, %v3288
        %v3363 = vpack.c.b16 %v3291, %v3290
        %v3364 = vpack.c.b16 %v3293, %v3292
        %v3365 = vpack.c.b16 %v3295, %v3294
        %v3366 = vpack.c.b16 %v3297, %v3296
        %v3367 = vpack.c.b16 %v3299, %v3298
        %v3368 = vpack.c.b16 %v3301, %v3300
        %v3369 = vpack.c.b16 %v3303, %v3302
        %v3370 = vpack.c.b16 %v3305, %v3304
        %v3371 = vpack.c.b16 %v3307, %v3306
        %v3372 = vpack.c.b16 %v3309, %v3308
        %v3373 = vpack.c.b16 %v3311, %v3310
        %v3374 = vpack.c.b16 %v3313, %v3312
        %v3375 = vpack.c.b16 %v3315, %v3314
        %v3376 = vpack.c.b16 %v3317, %v3316
        %v3377 = vpack.c.b16 %v3319, %v3318
        %v3378 = vpack.c.b16 %v3321, %v3320
        %v3379 = vpack.c.b16 %v3323, %v3322
        %v3380 = vpack.c.b16 %v3325, %v3324
        %v3381 = vpack.c.b16 %v3327, %v3326
        %v3382 = vpack.c.b16 %v3329, %v3328
        %v3383 = vpack.c.b16 %v3331, %v3330
        %v3384 = vpack.c.b16 %v3333, %v3332
        %v3385 = vpack.c.b16 %v3335, %v3334
        %v3386 = vpack.c.b16 %v3337, %v3336
        %v3387 = vpack.c.b16 %v3339, %v3338
        %v3388 = vpack.c.b16 %v3341, %v3340
        %v3389 = vpack.c.b16 %v3343, %v3342
        %v3390 = vpack.c.b16 %v3345, %v3344
        %v3391 = vpack.c.b16 %v3347, %v3346
        %v3392 = vpack.c.b16 %v3349, %v3348
        %v3393 = vpack.c.b16 %v3351, %v3350
        %v3394 = vpack.c.b16 %v3353, %v3352
        %v3395 = vpack.c.b16 %v3355, %v3354
        %3436 = vmatprep.subr.bf16.mxu0 0
        %3437 = vmatpush1.bf16.msra.mxu0 %v3356
        %3438 = vmatprep.subr.bf16.mxu0 0
        %3439 = vmatpush1.bf16.msra.mxu0 %v3357
        %3440 = vmatprep.subr.bf16.mxu0 0
        %3441 = vmatpush1.bf16.msra.mxu0 %v3358
        %3442 = vmatprep.subr.bf16.mxu0 0
        %3443 = vmatpush1.bf16.msra.mxu0 %v3359
        %3444 = vmatprep.subr.bf16.mxu0 0
        %3445 = vmatpush1.bf16.msra.mxu0 %v3360
        %3446 = vmatprep.subr.bf16.mxu0 0
        %3447 = vmatpush1.bf16.msra.mxu0 %v3361
        %3448 = vmatprep.subr.bf16.mxu0 0
        %3449 = vmatpush1.bf16.msra.mxu0 %v3362
        %3450 = vmatprep.subr.bf16.mxu0 0
        %3451 = vmatpush1.bf16.msra.mxu0 %v3363
        %3452 = vmatprep.subr.bf16.mxu0 0
        %3453 = vmatpush1.bf16.msra.mxu0 %v3364
        %3454 = vmatprep.subr.bf16.mxu0 0
        %3455 = vmatpush1.bf16.msra.mxu0 %v3365
        %3456 = vmatprep.subr.bf16.mxu0 0
        %3457 = vmatpush1.bf16.msra.mxu0 %v3366
        %3458 = vmatprep.subr.bf16.mxu0 0
        %3459 = vmatpush1.bf16.msra.mxu0 %v3367
        %3460 = vmatprep.subr.bf16.mxu0 0
        %3461 = vmatpush1.bf16.msra.mxu0 %v3368
        %3462 = vmatprep.subr.bf16.mxu0 0
        %3463 = vmatpush1.bf16.msra.mxu0 %v3369
        %3464 = vmatprep.subr.bf16.mxu0 0
        %3465 = vmatpush1.bf16.msra.mxu0 %v3370
        %3466 = vmatprep.subr.bf16.mxu0 0
        %3467 = vmatpush1.bf16.msra.mxu0 %v3371
        %3468 = vmatprep.mubr.bf16.mxu0 %v2971
        %3469 = vmatmul.mubr.bf16.gmra.mrb[0].mxu0 %v2959
        %v3470 = vpop.f32.mrb[0].mxu0
        %v3471 = vadd.f32 0.0, %v3470
        %v3472 = vpop.f32.mrb[0].mxu0
        %v3473 = vpop.f32.mrb[0].mxu0
        %v3474 = vadd.f32 0.0, %v3473
        %v3475 = vpop.f32.mrb[0].mxu0
        %3476 = vmatprep.mubr.bf16.mxu0 %v2972
        %3477 = vmatmul.mubr.bf16.gmra.mrb[0].mxu0 %v2960
        %v3478 = vpop.f32.mrb[0].mxu0
        %v3479 = vadd.f32 0.0, %v3478
        %v3480 = vpop.f32.mrb[0].mxu0
        %v3481 = vpop.f32.mrb[0].mxu0
        %v3482 = vadd.f32 0.0, %v3481
        %v3483 = vpop.f32.mrb[0].mxu0
        %3484 = vmatprep.mubr.bf16.mxu0 %v3098
        %3485 = vmatmul.mubr.bf16.gmra.mrb[0].mxu0 %v3093
        %v3486 = vpop.f32.mrb[0].mxu0
        %v3487 = vadd.f32 0.0, %v3486
        %v3488 = vpop.f32.mrb[0].mxu0
        %v3489 = vpop.f32.mrb[0].mxu0
        %v3490 = vadd.f32 0.0, %v3489
        %v3491 = vpop.f32.mrb[0].mxu0
        %3492 = vmatprep.mubr.bf16.mxu0 %v3099
        %3493 = vmatmul.mubr.bf16.gmra.mrb[0].mxu0 %v3094
        %v3494 = vpop.f32.mrb[0].mxu0
        %v3495 = vadd.f32 0.0, %v3494
        %v3496 = vpop.f32.mrb[0].mxu0
        %v3497 = vpop.f32.mrb[0].mxu0
        %v3498 = vadd.f32 0.0, %v3497
        %v3499 = vpop.f32.mrb[0].mxu0
        %3500 = vdwg.mxu0
        %3501 = vmatprep.subr.bf16.mxu0 0
        %3502 = vmatpush1.bf16.msra.mxu0 %v3372
        %3503 = vmatprep.subr.bf16.mxu0 0
        %3504 = vmatpush1.bf16.msra.mxu0 %v3373
        %3505 = vmatprep.subr.bf16.mxu0 0
        %3506 = vmatpush1.bf16.msra.mxu0 %v3374
        %3507 = vmatprep.subr.bf16.mxu0 0
        %3508 = vmatpush1.bf16.msra.mxu0 %v3375
        %3509 = vmatprep.subr.bf16.mxu0 0
        %3510 = vmatpush1.bf16.msra.mxu0 %v3376
        %3511 = vmatprep.subr.bf16.mxu0 0
        %3512 = vmatpush1.bf16.msra.mxu0 %v3377
        %3513 = vmatprep.subr.bf16.mxu0 0
        %3514 = vmatpush1.bf16.msra.mxu0 %v3378
        %3515 = vmatprep.subr.bf16.mxu0 0
        %3516 = vmatpush1.bf16.msra.mxu0 %v3379
        %3517 = vmatprep.subr.bf16.mxu0 0
        %3518 = vmatpush1.bf16.msra.mxu0 %v3380
        %3519 = vmatprep.subr.bf16.mxu0 0
        %3520 = vmatpush1.bf16.msra.mxu0 %v3381
        %3521 = vmatprep.subr.bf16.mxu0 0
        %3522 = vmatpush1.bf16.msra.mxu0 %v3382
        %3523 = vmatprep.subr.bf16.mxu0 0
        %3524 = vmatpush1.bf16.msra.mxu0 %v3383
        %3525 = vmatprep.subr.bf16.mxu0 0
        %3526 = vmatpush1.bf16.msra.mxu0 %v3384
        %3527 = vmatprep.subr.bf16.mxu0 0
        %3528 = vmatpush1.bf16.msra.mxu0 %v3385
        %3529 = vmatprep.subr.bf16.mxu0 0
        %3530 = vmatpush1.bf16.msra.mxu0 %v3386
        %3531 = vmatprep.subr.bf16.mxu0 0
        %3532 = vmatpush1.bf16.msra.mxu0 %v3387
        %3533 = vmatprep.mubr.bf16.mxu0 %v2995
        %3534 = vmatmul.mubr.bf16.gmra.mrb[0].mxu0 %v2983
        %v3535 = vpop.f32.mrb[0].mxu0
        %v3536 = vadd.f32 %v3471, %v3535
        %v3537 = vpop.f32.mrb[0].mxu0
        %v3538 = vpop.f32.mrb[0].mxu0
        %v3539 = vadd.f32 %v3474, %v3538
        %v3540 = vpop.f32.mrb[0].mxu0
        %3541 = vmatprep.mubr.bf16.mxu0 %v2996
        %3542 = vmatmul.mubr.bf16.gmra.mrb[0].mxu0 %v2984
        %v3543 = vpop.f32.mrb[0].mxu0
        %v3544 = vadd.f32 %v3479, %v3543
        %v3545 = vpop.f32.mrb[0].mxu0
        %v3546 = vpop.f32.mrb[0].mxu0
        %v3547 = vadd.f32 %v3482, %v3546
        %v3548 = vpop.f32.mrb[0].mxu0
        %3549 = vmatprep.mubr.bf16.mxu0 %v3108
        %3550 = vmatmul.mubr.bf16.gmra.mrb[0].mxu0 %v3103
        %v3551 = vpop.f32.mrb[0].mxu0
        %v3552 = vadd.f32 %v3487, %v3551
        %v3553 = vpop.f32.mrb[0].mxu0
        %v3554 = vpop.f32.mrb[0].mxu0
        %v3555 = vadd.f32 %v3490, %v3554
        %v3556 = vpop.f32.mrb[0].mxu0
        %3557 = vmatprep.mubr.bf16.mxu0 %v3109
        %3558 = vmatmul.mubr.bf16.gmra.mrb[0].mxu0 %v3104
        %v3559 = vpop.f32.mrb[0].mxu0
        %v3560 = vadd.f32 %v3495, %v3559
        %v3561 = vpop.f32.mrb[0].mxu0
        %v3562 = vpop.f32.mrb[0].mxu0
        %v3563 = vadd.f32 %v3498, %v3562
        %v3564 = vpop.f32.mrb[0].mxu0
        %3565 = vdwg.mxu0
        %3566 = vmatprep.subr.bf16.mxu0 0
        %3567 = vmatpush1.bf16.msra.mxu0 %v3388
        %3568 = vmatprep.subr.bf16.mxu0 0
        %3569 = vmatpush1.bf16.msra.mxu0 %v3389
        %3570 = vmatprep.subr.bf16.mxu0 0
        %3571 = vmatpush1.bf16.msra.mxu0 %v3390
        %3572 = vmatprep.subr.bf16.mxu0 0
        %3573 = vmatpush1.bf16.msra.mxu0 %v3391
        %3574 = vmatprep.subr.bf16.mxu0 0
        %3575 = vmatpush1.bf16.msra.mxu0 %v3392
        %3576 = vmatprep.subr.bf16.mxu0 0
        %3577 = vmatpush1.bf16.msra.mxu0 %v3393
        %3578 = vmatprep.subr.bf16.mxu0 0
        %3579 = vmatpush1.bf16.msra.mxu0 %v3394
        %3580 = vmatprep.subr.bf16.mxu0 0
        %3581 = vmatpush1.bf16.msra.mxu0 %v3395
        %3582 = vmatprep.subr.bf16.mxu0 0
        %3583 = vmatpush1.bf16.msra.mxu0 0
        %3584 = vmatprep.subr.bf16.mxu0 0
        %3585 = vmatpush1.bf16.msra.mxu0 0
        %3586 = vmatprep.subr.bf16.mxu0 0
        %3587 = vmatpush1.bf16.msra.mxu0 0
        %3588 = vmatprep.subr.bf16.mxu0 0
        %3589 = vmatpush1.bf16.msra.mxu0 0
        %3590 = vmatprep.subr.bf16.mxu0 0
        %3591 = vmatpush1.bf16.msra.mxu0 0
        %3592 = vmatprep.subr.bf16.mxu0 0
        %3593 = vmatpush1.bf16.msra.mxu0 0
        %3594 = vmatprep.subr.bf16.mxu0 0
        %3595 = vmatpush1.bf16.msra.mxu0 0
        %3596 = vmatprep.subr.bf16.mxu0 0
        %3597 = vmatpush1.bf16.msra.mxu0 0
        %3598 = vmatprep.mubr.bf16.mxu0 0
        %3599 = vmatmul.mubr.bf16.gmra.mrb[0].mxu0 %v3007
        %v3600 = vpop.f32.mrb[0].mxu0
        %v3601 = vadd.f32 %v3536, %v3600
        %v3602 = vpop.f32.mrb[0].mxu0
        %v3603 = vpop.f32.mrb[0].mxu0
        %v3604 = vadd.f32 %v3539, %v3603
        %v3605 = vpop.f32.mrb[0].mxu0
        %3606 = vmatprep.mubr.bf16.mxu0 0
        %3607 = vmatmul.mubr.bf16.gmra.mrb[0].mxu0 %v3008
        %v3608 = vpop.f32.mrb[0].mxu0
        %v3609 = vadd.f32 %v3544, %v3608
        %v3610 = vpop.f32.mrb[0].mxu0
        %v3611 = vpop.f32.mrb[0].mxu0
        %v3612 = vadd.f32 %v3547, %v3611
        %v3613 = vpop.f32.mrb[0].mxu0
        %3614 = vmatprep.mubr.bf16.mxu0 0
        %3615 = vmatmul.mubr.bf16.gmra.mrb[0].mxu0 %v3113
        %v3616 = vpop.f32.mrb[0].mxu0
        %v3617 = vadd.f32 %v3552, %v3616
        %v3618 = vpop.f32.mrb[0].mxu0
        %v3619 = vpop.f32.mrb[0].mxu0
        %v3620 = vadd.f32 %v3555, %v3619
        %v3621 = vpop.f32.mrb[0].mxu0
        %3622 = vmatprep.mubr.bf16.mxu0 0
        %3623 = vmatmul.mubr.bf16.gmra.mrb[0].mxu0 %v3114
        %v3624 = vpop.f32.mrb[0].mxu0
        %v3625 = vadd.f32 %v3560, %v3624
        %v3626 = vpop.f32.mrb[0].mxu0
        %v3627 = vpop.f32.mrb[0].mxu0
        %v3628 = vadd.f32 %v3563, %v3627
        %v3629 = vpop.f32.mrb[0].mxu0
        %3630 = vdwg.mxu0
        %v3711 = vunpack.c.l.b16 %v3010
        %v3712 = vunpack.c.l.b16 %v3011
        %v3713 = vunpack.c.l.b16 %v3012
        %v3714 = vunpack.c.l.b16 %v3013
        %v3715 = vunpack.c.l.b16 %v3014
        %v3716 = vunpack.c.l.b16 %v3015
        %v3717 = vunpack.c.l.b16 %v3016
        %v3718 = vunpack.c.l.b16 %v3017
        %v3719 = vunpack.c.l.b16 %v3018
        %v3720 = vunpack.c.l.b16 %v3019
        %v3721 = vunpack.c.l.b16 %v3020
        %v3722 = vunpack.c.l.b16 %v3021
        %v3723 = vunpack.c.l.b16 %v3022
        %v3724 = vunpack.c.l.b16 %v3023
        %v3725 = vunpack.c.l.b16 %v3024
        %v3726 = vunpack.c.l.b16 %v3025
        %v3727 = vunpack.c.l.b16 %v3026
        %v3728 = vunpack.c.l.b16 %v3027
        %v3729 = vunpack.c.l.b16 %v3028
        %v3730 = vunpack.c.l.b16 %v3029
        %v3731 = vunpack.c.l.b16 %v3030
        %v3732 = vunpack.c.l.b16 %v3031
        %v3733 = vunpack.c.l.b16 %v3032
        %v3734 = vunpack.c.l.b16 %v3033
        %v3735 = vunpack.c.l.b16 %v3034
        %v3736 = vunpack.c.l.b16 %v3035
        %v3737 = vunpack.c.l.b16 %v3036
        %v3738 = vunpack.c.l.b16 %v3037
        %v3739 = vunpack.c.l.b16 %v3038
        %v3740 = vunpack.c.l.b16 %v3039
        %v3741 = vunpack.c.l.b16 %v3040
        %v3742 = vunpack.c.l.b16 %v3041
        %v3743 = vunpack.c.l.b16 %v3042
        %v3744 = vunpack.c.l.b16 %v3043
        %v3745 = vunpack.c.l.b16 %v3044
        %v3746 = vunpack.c.l.b16 %v3045
        %v3747 = vunpack.c.l.b16 %v3046
        %v3748 = vunpack.c.l.b16 %v3047
        %v3749 = vunpack.c.l.b16 %v3048
        %v3750 = vunpack.c.l.b16 %v3049
        %v3751 = vunpack.c.l.b16 %v3050
        %v3752 = vunpack.c.l.b16 %v3051
        %v3753 = vunpack.c.l.b16 %v3052
        %v3754 = vunpack.c.l.b16 %v3053
        %v3755 = vunpack.c.l.b16 %v3054
        %v3756 = vunpack.c.l.b16 %v3055
        %v3757 = vunpack.c.l.b16 %v3056
        %v3758 = vunpack.c.l.b16 %v3057
        %v3759 = vunpack.c.l.b16 %v3058
        %v3760 = vunpack.c.l.b16 %v3059
        %v3761 = vunpack.c.l.b16 %v3060
        %v3762 = vunpack.c.l.b16 %v3061
        %v3763 = vunpack.c.l.b16 %v3062
        %v3764 = vunpack.c.l.b16 %v3063
        %v3765 = vunpack.c.l.b16 %v3064
        %v3766 = vunpack.c.l.b16 %v3065
        %v3767 = vunpack.c.l.b16 %v3066
        %v3768 = vunpack.c.l.b16 %v3067
        %v3769 = vunpack.c.l.b16 %v3068
        %v3770 = vunpack.c.l.b16 %v3069
        %v3771 = vunpack.c.l.b16 %v3070
        %v3772 = vunpack.c.l.b16 %v3071
        %v3773 = vunpack.c.l.b16 %v3072
        %v3774 = vunpack.c.l.b16 %v3073
        %v3775 = vunpack.c.l.b16 %v3074
        %v3776 = vunpack.c.l.b16 %v3075
        %v3777 = vunpack.c.l.b16 %v3076
        %v3778 = vunpack.c.l.b16 %v3077
        %v3779 = vunpack.c.l.b16 %v3078
        %v3780 = vunpack.c.l.b16 %v3079
        %v3781 = vunpack.c.l.b16 %v3080
        %v3782 = vunpack.c.l.b16 %v3081
        %v3783 = vunpack.c.l.b16 %v3082
        %v3784 = vunpack.c.l.b16 %v3083
        %v3785 = vunpack.c.l.b16 %v3084
        %v3786 = vunpack.c.l.b16 %v3085
        %v3787 = vunpack.c.l.b16 %v3086
        %v3788 = vunpack.c.l.b16 %v3087
        %v3789 = vunpack.c.l.b16 %v3088
        %v3790 = vunpack.c.l.b16 %v3089
        %v3791 = vpack.c.b16 %v3712, %v3711
        %v3792 = vpack.c.b16 %v3714, %v3713
        %v3793 = vpack.c.b16 %v3716, %v3715
        %v3794 = vpack.c.b16 %v3718, %v3717
        %v3795 = vpack.c.b16 %v3720, %v3719
        %v3796 = vpack.c.b16 %v3722, %v3721
        %v3797 = vpack.c.b16 %v3724, %v3723
        %v3798 = vpack.c.b16 %v3726, %v3725
        %v3799 = vpack.c.b16 %v3728, %v3727
        %v3800 = vpack.c.b16 %v3730, %v3729
        %v3801 = vpack.c.b16 %v3732, %v3731
        %v3802 = vpack.c.b16 %v3734, %v3733
        %v3803 = vpack.c.b16 %v3736, %v3735
        %v3804 = vpack.c.b16 %v3738, %v3737
        %v3805 = vpack.c.b16 %v3740, %v3739
        %v3806 = vpack.c.b16 %v3742, %v3741
        %v3807 = vpack.c.b16 %v3744, %v3743
        %v3808 = vpack.c.b16 %v3746, %v3745
        %v3809 = vpack.c.b16 %v3748, %v3747
        %v3810 = vpack.c.b16 %v3750, %v3749
        %v3811 = vpack.c.b16 %v3752, %v3751
        %v3812 = vpack.c.b16 %v3754, %v3753
        %v3813 = vpack.c.b16 %v3756, %v3755
        %v3814 = vpack.c.b16 %v3758, %v3757
        %v3815 = vpack.c.b16 %v3760, %v3759
        %v3816 = vpack.c.b16 %v3762, %v3761
        %v3817 = vpack.c.b16 %v3764, %v3763
        %v3818 = vpack.c.b16 %v3766, %v3765
        %v3819 = vpack.c.b16 %v3768, %v3767
        %v3820 = vpack.c.b16 %v3770, %v3769
        %v3821 = vpack.c.b16 %v3772, %v3771
        %v3822 = vpack.c.b16 %v3774, %v3773
        %v3823 = vpack.c.b16 %v3776, %v3775
        %v3824 = vpack.c.b16 %v3778, %v3777
        %v3825 = vpack.c.b16 %v3780, %v3779
        %v3826 = vpack.c.b16 %v3782, %v3781
        %v3827 = vpack.c.b16 %v3784, %v3783
        %v3828 = vpack.c.b16 %v3786, %v3785
        %v3829 = vpack.c.b16 %v3788, %v3787
        %v3830 = vpack.c.b16 %v3790, %v3789
        %3871 = vmatprep.subr.bf16.mxu0 0
        %3872 = vmatpush1.bf16.msra.mxu0 %v3791
        %3873 = vmatprep.subr.bf16.mxu0 0
        %3874 = vmatpush1.bf16.msra.mxu0 %v3792
        %3875 = vmatprep.subr.bf16.mxu0 0
        %3876 = vmatpush1.bf16.msra.mxu0 %v3793
        %3877 = vmatprep.subr.bf16.mxu0 0
        %3878 = vmatpush1.bf16.msra.mxu0 %v3794
        %3879 = vmatprep.subr.bf16.mxu0 0
        %3880 = vmatpush1.bf16.msra.mxu0 %v3795
        %3881 = vmatprep.subr.bf16.mxu0 0
        %3882 = vmatpush1.bf16.msra.mxu0 %v3796
        %3883 = vmatprep.subr.bf16.mxu0 0
        %3884 = vmatpush1.bf16.msra.mxu0 %v3797
        %3885 = vmatprep.subr.bf16.mxu0 0
        %3886 = vmatpush1.bf16.msra.mxu0 %v3798
        %3887 = vmatprep.subr.bf16.mxu0 0
        %3888 = vmatpush1.bf16.msra.mxu0 %v3799
        %3889 = vmatprep.subr.bf16.mxu0 0
        %3890 = vmatpush1.bf16.msra.mxu0 %v3800
        %3891 = vmatprep.subr.bf16.mxu0 0
        %3892 = vmatpush1.bf16.msra.mxu0 %v3801
        %3893 = vmatprep.subr.bf16.mxu0 0
        %3894 = vmatpush1.bf16.msra.mxu0 %v3802
        %3895 = vmatprep.subr.bf16.mxu0 0
        %3896 = vmatpush1.bf16.msra.mxu0 %v3803
        %3897 = vmatprep.subr.bf16.mxu0 0
        %3898 = vmatpush1.bf16.msra.mxu0 %v3804
        %3899 = vmatprep.subr.bf16.mxu0 0
        %3900 = vmatpush1.bf16.msra.mxu0 %v3805
        %3901 = vmatprep.subr.bf16.mxu0 0
        %3902 = vmatpush1.bf16.msra.mxu0 %v3806
        %3903 = vmatprep.mubr.bf16.mxu0 %v2970
        %3904 = vmatmul.mubr.bf16.gmra.mrb[0].mxu0 %v2958
        %v3905 = vpop.f32.mrb[0].mxu0
        %v3906 = vadd.f32 %v3601, %v3905
        %v3907 = vpop.f32.mrb[0].mxu0
        %v3908 = vpop.f32.mrb[0].mxu0
        %v3909 = vadd.f32 %v3604, %v3908
        %v3910 = vpop.f32.mrb[0].mxu0
        %3911 = vmatprep.mubr.bf16.mxu0 %v2971
        %3912 = vmatmul.mubr.bf16.gmra.mrb[0].mxu0 %v2959
        %v3913 = vpop.f32.mrb[0].mxu0
        %v3914 = vadd.f32 %v3609, %v3913
        %v3915 = vpop.f32.mrb[0].mxu0
        %v3916 = vpop.f32.mrb[0].mxu0
        %v3917 = vadd.f32 %v3612, %v3916
        %v3918 = vpop.f32.mrb[0].mxu0
        %3919 = vmatprep.mubr.bf16.mxu0 %v2972
        %3920 = vmatmul.mubr.bf16.gmra.mrb[0].mxu0 %v2960
        %v3921 = vpop.f32.mrb[0].mxu0
        %v3922 = vadd.f32 %v3617, %v3921
        %v3923 = vpop.f32.mrb[0].mxu0
        %v3924 = vpop.f32.mrb[0].mxu0
        %v3925 = vadd.f32 %v3620, %v3924
        %v3926 = vpop.f32.mrb[0].mxu0
        %3927 = vmatprep.mubr.bf16.mxu0 %v2973
        %3928 = vmatmul.mubr.bf16.gmra.mrb[0].mxu0 %v2961
        %v3929 = vpop.f32.mrb[0].mxu0
        %v3930 = vadd.f32 %v3625, %v3929
        %v3931 = vpop.f32.mrb[0].mxu0
        %v3932 = vpop.f32.mrb[0].mxu0
        %v3933 = vadd.f32 %v3628, %v3932
        %v3934 = vpop.f32.mrb[0].mxu0
        %3935 = vdwg.mxu0
        %3936 = vmatprep.subr.bf16.mxu0 0
        %3937 = vmatpush1.bf16.msra.mxu0 %v3807
        %3938 = vmatprep.subr.bf16.mxu0 0
        %3939 = vmatpush1.bf16.msra.mxu0 %v3808
        %3940 = vmatprep.subr.bf16.mxu0 0
        %3941 = vmatpush1.bf16.msra.mxu0 %v3809
        %3942 = vmatprep.subr.bf16.mxu0 0
        %3943 = vmatpush1.bf16.msra.mxu0 %v3810
        %3944 = vmatprep.subr.bf16.mxu0 0
        %3945 = vmatpush1.bf16.msra.mxu0 %v3811
        %3946 = vmatprep.subr.bf16.mxu0 0
        %3947 = vmatpush1.bf16.msra.mxu0 %v3812
        %3948 = vmatprep.subr.bf16.mxu0 0
        %3949 = vmatpush1.bf16.msra.mxu0 %v3813
        %3950 = vmatprep.subr.bf16.mxu0 0
        %3951 = vmatpush1.bf16.msra.mxu0 %v3814
        %3952 = vmatprep.subr.bf16.mxu0 0
        %3953 = vmatpush1.bf16.msra.mxu0 %v3815
        %3954 = vmatprep.subr.bf16.mxu0 0
        %3955 = vmatpush1.bf16.msra.mxu0 %v3816
        %3956 = vmatprep.subr.bf16.mxu0 0
        %3957 = vmatpush1.bf16.msra.mxu0 %v3817
        %3958 = vmatprep.subr.bf16.mxu0 0
        %3959 = vmatpush1.bf16.msra.mxu0 %v3818
        %3960 = vmatprep.subr.bf16.mxu0 0
        %3961 = vmatpush1.bf16.msra.mxu0 %v3819
        %3962 = vmatprep.subr.bf16.mxu0 0
        %3963 = vmatpush1.bf16.msra.mxu0 %v3820
        %3964 = vmatprep.subr.bf16.mxu0 0
        %3965 = vmatpush1.bf16.msra.mxu0 %v3821
        %3966 = vmatprep.subr.bf16.mxu0 0
        %3967 = vmatpush1.bf16.msra.mxu0 %v3822
        %3968 = vmatprep.mubr.bf16.mxu0 %v2994
        %3969 = vmatmul.mubr.bf16.gmra.mrb[0].mxu0 %v2982
        %v3970 = vpop.f32.mrb[0].mxu0
        %v3971 = vadd.f32 %v3906, %v3970
        %v3972 = vpop.f32.mrb[0].mxu0
        %v3973 = vpop.f32.mrb[0].mxu0
        %v3974 = vadd.f32 %v3909, %v3973
        %v3975 = vpop.f32.mrb[0].mxu0
        %3976 = vmatprep.mubr.bf16.mxu0 %v2995
        %3977 = vmatmul.mubr.bf16.gmra.mrb[0].mxu0 %v2983
        %v3978 = vpop.f32.mrb[0].mxu0
        %v3979 = vadd.f32 %v3914, %v3978
        %v3980 = vpop.f32.mrb[0].mxu0
        %v3981 = vpop.f32.mrb[0].mxu0
        %v3982 = vadd.f32 %v3917, %v3981
        %v3983 = vpop.f32.mrb[0].mxu0
        %3984 = vmatprep.mubr.bf16.mxu0 %v2996
        %3985 = vmatmul.mubr.bf16.gmra.mrb[0].mxu0 %v2984
        %v3986 = vpop.f32.mrb[0].mxu0
        %v3987 = vadd.f32 %v3922, %v3986
        %v3988 = vpop.f32.mrb[0].mxu0
        %v3989 = vpop.f32.mrb[0].mxu0
        %v3990 = vadd.f32 %v3925, %v3989
        %v3991 = vpop.f32.mrb[0].mxu0
        %3992 = vmatprep.mubr.bf16.mxu0 %v2997
        %3993 = vmatmul.mubr.bf16.gmra.mrb[0].mxu0 %v2985
        %v3994 = vpop.f32.mrb[0].mxu0
        %v3995 = vadd.f32 %v3930, %v3994
        %v3996 = vpop.f32.mrb[0].mxu0
        %v3997 = vpop.f32.mrb[0].mxu0
        %v3998 = vadd.f32 %v3933, %v3997
        %v3999 = vpop.f32.mrb[0].mxu0
        %4000 = vdwg.mxu0
        %4001 = vmatprep.subr.bf16.mxu0 0
        %4002 = vmatpush1.bf16.msra.mxu0 %v3823
        %4003 = vmatprep.subr.bf16.mxu0 0
        %4004 = vmatpush1.bf16.msra.mxu0 %v3824
        %4005 = vmatprep.subr.bf16.mxu0 0
        %4006 = vmatpush1.bf16.msra.mxu0 %v3825
        %4007 = vmatprep.subr.bf16.mxu0 0
        %4008 = vmatpush1.bf16.msra.mxu0 %v3826
        %4009 = vmatprep.subr.bf16.mxu0 0
        %4010 = vmatpush1.bf16.msra.mxu0 %v3827
        %4011 = vmatprep.subr.bf16.mxu0 0
        %4012 = vmatpush1.bf16.msra.mxu0 %v3828
        %4013 = vmatprep.subr.bf16.mxu0 0
        %4014 = vmatpush1.bf16.msra.mxu0 %v3829
        %4015 = vmatprep.subr.bf16.mxu0 0
        %4016 = vmatpush1.bf16.msra.mxu0 %v3830
        %4017 = vmatprep.subr.bf16.mxu0 0
        %4018 = vmatpush1.bf16.msra.mxu0 0
        %4019 = vmatprep.subr.bf16.mxu0 0
        %4020 = vmatpush1.bf16.msra.mxu0 0
        %4021 = vmatprep.subr.bf16.mxu0 0
        %4022 = vmatpush1.bf16.msra.mxu0 0
        %4023 = vmatprep.subr.bf16.mxu0 0
        %4024 = vmatpush1.bf16.msra.mxu0 0
        %4025 = vmatprep.subr.bf16.mxu0 0
        %4026 = vmatpush1.bf16.msra.mxu0 0
        %4027 = vmatprep.subr.bf16.mxu0 0
        %4028 = vmatpush1.bf16.msra.mxu0 0
        %4029 = vmatprep.subr.bf16.mxu0 0
        %4030 = vmatpush1.bf16.msra.mxu0 0
        %4031 = vmatprep.subr.bf16.mxu0 0
        %4032 = vmatpush1.bf16.msra.mxu0 0
        %4033 = vmatprep.mubr.bf16.mxu0 0
        %4034 = vmatmul.mubr.bf16.gmra.mrb[0].mxu0 %v3006
        %v4035 = vpop.f32.mrb[0].mxu0
        %v4036 = vadd.f32 %v3971, %v4035
        %v4037 = vpop.f32.mrb[0].mxu0
        %v4038 = vpop.f32.mrb[0].mxu0
        %v4039 = vadd.f32 %v3974, %v4038
        %v4040 = vpop.f32.mrb[0].mxu0
        %4041 = vmatprep.mubr.bf16.mxu0 0
        %4042 = vmatmul.mubr.bf16.gmra.mrb[0].mxu0 %v3007
        %v4043 = vpop.f32.mrb[0].mxu0
        %v4044 = vadd.f32 %v3979, %v4043
        %v4045 = vpop.f32.mrb[0].mxu0
        %v4046 = vpop.f32.mrb[0].mxu0
        %v4047 = vadd.f32 %v3982, %v4046
        %v4048 = vpop.f32.mrb[0].mxu0
        %4049 = vmatprep.mubr.bf16.mxu0 0
        %4050 = vmatmul.mubr.bf16.gmra.mrb[0].mxu0 %v3008
        %v4051 = vpop.f32.mrb[0].mxu0
        %v4052 = vadd.f32 %v3987, %v4051
        %v4053 = vpop.f32.mrb[0].mxu0
        %v4054 = vpop.f32.mrb[0].mxu0
        %v4055 = vadd.f32 %v3990, %v4054
        %v4056 = vpop.f32.mrb[0].mxu0
        %4057 = vmatprep.mubr.bf16.mxu0 0
        %4058 = vmatmul.mubr.bf16.gmra.mrb[0].mxu0 %v3009
        %v4059 = vpop.f32.mrb[0].mxu0
        %v4060 = vadd.f32 %v3995, %v4059
        %v4061 = vpop.f32.mrb[0].mxu0
        %v4062 = vpop.f32.mrb[0].mxu0
        %v4063 = vadd.f32 %v3998, %v4062
        %v4064 = vpop.f32.mrb[0].mxu0
        %4065 = vdwg.mxu0
        %v4066 = vld [vmem:[#allocation3 + $0x20] sm:$0xff]
        %v4067 = vld [vmem:[#allocation3 + $0x28] sm:$0xff]
        %v4068 = vld [vmem:[#allocation3 + $0x30] sm:$0xff]
        %v4069 = vld [vmem:[#allocation3 + $0x38] sm:$0xff]
        %v4070 = vld [vmem:[#allocation3 + $0x40] sm:$0xff]
        %v4071 = vld [vmem:[#allocation3 + $0x48] sm:$0xff]
        %v4072 = vld [vmem:[#allocation3 + $0x50] sm:$0xff]
        %v4073 = vld [vmem:[#allocation3 + $0x58] sm:$0xf]
        %v4074 = vpack.c.bf16 %v4067, %v4066
        %v4075 = vpack.c.bf16 %v4069, %v4068
        %v4076 = vpack.c.bf16 %v4071, %v4070
        %v4077 = vpack.c.bf16 %v4073, %v4072
        %v4078 = vld [vmem:[#allocation3 + $0x21] sm:$0xff]
        %v4079 = vld [vmem:[#allocation3 + $0x29] sm:$0xff]
        %v4080 = vld [vmem:[#allocation3 + $0x31] sm:$0xff]
        %v4081 = vld [vmem:[#allocation3 + $0x39] sm:$0xff]
        %v4082 = vld [vmem:[#allocation3 + $0x41] sm:$0xff]
        %v4083 = vld [vmem:[#allocation3 + $0x49] sm:$0xff]
        %v4084 = vld [vmem:[#allocation3 + $0x51] sm:$0xff]
        %v4085 = vld [vmem:[#allocation3 + $0x59] sm:$0xf]
        %v4086 = vpack.c.bf16 %v4079, %v4078
        %v4087 = vpack.c.bf16 %v4081, %v4080
        %v4088 = vpack.c.bf16 %v4083, %v4082
        %v4089 = vpack.c.bf16 %v4085, %v4084
        %v4090 = vld [vmem:[#allocation3 + $0x22] sm:$0xff]
        %v4091 = vld [vmem:[#allocation3 + $0x2a] sm:$0xff]
        %v4092 = vld [vmem:[#allocation3 + $0x32] sm:$0xff]
        %v4093 = vld [vmem:[#allocation3 + $0x3a] sm:$0xff]
        %v4094 = vld [vmem:[#allocation3 + $0x42] sm:$0xff]
        %v4095 = vld [vmem:[#allocation3 + $0x4a] sm:$0xff]
        %v4096 = vld [vmem:[#allocation3 + $0x52] sm:$0xff]
        %v4097 = vld [vmem:[#allocation3 + $0x5a] sm:$0xf]
        %v4098 = vpack.c.bf16 %v4091, %v4090
        %v4099 = vpack.c.bf16 %v4093, %v4092
        %v4100 = vpack.c.bf16 %v4095, %v4094
        %v4101 = vpack.c.bf16 %v4097, %v4096
        %v4102 = vld [vmem:[#allocation3 + $0x23] sm:$0xff]
        %v4103 = vld [vmem:[#allocation3 + $0x2b] sm:$0xff]
        %v4104 = vld [vmem:[#allocation3 + $0x33] sm:$0xff]
        %v4105 = vld [vmem:[#allocation3 + $0x3b] sm:$0xff]
        %v4106 = vld [vmem:[#allocation3 + $0x43] sm:$0xff]
        %v4107 = vld [vmem:[#allocation3 + $0x4b] sm:$0xff]
        %v4108 = vld [vmem:[#allocation3 + $0x53] sm:$0xff]
        %v4109 = vld [vmem:[#allocation3 + $0x5b] sm:$0xf]
        %v4110 = vpack.c.bf16 %v4103, %v4102
        %v4111 = vpack.c.bf16 %v4105, %v4104
        %v4112 = vpack.c.bf16 %v4107, %v4106
        %v4113 = vpack.c.bf16 %v4109, %v4108
        %v4114 = vld [vmem:[#allocation3 + $0x24] sm:$0xff]
        %v4115 = vld [vmem:[#allocation3 + $0x2c] sm:$0xff]
        %v4116 = vld [vmem:[#allocation3 + $0x34] sm:$0xff]
        %v4117 = vld [vmem:[#allocation3 + $0x3c] sm:$0xff]
        %v4118 = vld [vmem:[#allocation3 + $0x44] sm:$0xff]
        %v4119 = vld [vmem:[#allocation3 + $0x4c] sm:$0xff]
        %v4120 = vld [vmem:[#allocation3 + $0x54] sm:$0xff]
        %v4121 = vld [vmem:[#allocation3 + $0x5c] sm:$0xf]
        %v4122 = vpack.c.bf16 %v4115, %v4114
        %v4123 = vpack.c.bf16 %v4117, %v4116
        %v4124 = vpack.c.bf16 %v4119, %v4118
        %v4125 = vpack.c.bf16 %v4121, %v4120
        %s4126 = scalar_lea.vmem %s6, 640
        %v4127 = vld [vmem:[%s4126] sm:$0xf]
        %v4128 = vld [vmem:[%s4126 + $0x4] sm:$0xf]
        %v4129 = vld [vmem:[%s4126 + $0x8] sm:$0xf]
        %v4130 = vld [vmem:[%s4126 + $0xc] sm:$0xf]
        %v4131 = vld [vmem:[%s4126 + $0x10] sm:$0xf]
        %v4132 = vld [vmem:[%s4126 + $0x14] sm:$0xf]
        %v4133 = vld [vmem:[%s4126 + $0x18] sm:$0xf]
        %v4134 = vld [vmem:[%s4126 + $0x1c] sm:$0xf]
        %v4135 = vld [vmem:[%s4126 + $0x20] sm:$0xf]
        %v4136 = vld [vmem:[%s4126 + $0x24] sm:$0xf]
        %v4137 = vld [vmem:[%s4126 + $0x28] sm:$0xf]
        %v4138 = vld [vmem:[%s4126 + $0x2c] sm:$0xf]
        %v4139 = vld [vmem:[%s4126 + $0x30] sm:$0xf]
        %v4140 = vld [vmem:[%s4126 + $0x34] sm:$0xf]
        %v4141 = vld [vmem:[%s4126 + $0x38] sm:$0xf]
        %v4142 = vld [vmem:[%s4126 + $0x3c] sm:$0xf]
        %v4143 = vld [vmem:[%s4126 + $0x40] sm:$0xf]
        %v4144 = vld [vmem:[%s4126 + $0x44] sm:$0xf]
        %v4145 = vld [vmem:[%s4126 + $0x48] sm:$0xf]
        %v4146 = vld [vmem:[%s4126 + $0x4c] sm:$0xf]
        %v4147 = vld [vmem:[%s4126 + $0x50] sm:$0xf]
        %v4148 = vld [vmem:[%s4126 + $0x54] sm:$0xf]
        %v4149 = vld [vmem:[%s4126 + $0x58] sm:$0xf]
        %v4150 = vld [vmem:[%s4126 + $0x5c] sm:$0xf]
        %v4151 = vld [vmem:[%s4126 + $0x60] sm:$0xf]
        %v4152 = vld [vmem:[%s4126 + $0x64] sm:$0xf]
        %v4153 = vld [vmem:[%s4126 + $0x68] sm:$0xf]
        %v4154 = vld [vmem:[%s4126 + $0x6c] sm:$0xf]
        %v4155 = vld [vmem:[%s4126 + $0x70] sm:$0xf]
        %v4156 = vld [vmem:[%s4126 + $0x74] sm:$0xf]
        %v4157 = vld [vmem:[%s4126 + $0x78] sm:$0xf]
        %v4158 = vld [vmem:[%s4126 + $0x7c] sm:$0xf]
        %v4159 = vld [vmem:[%s4126 + $0x80] sm:$0xf]
        %v4160 = vld [vmem:[%s4126 + $0x84] sm:$0xf]
        %v4161 = vld [vmem:[%s4126 + $0x88] sm:$0xf]
        %v4162 = vld [vmem:[%s4126 + $0x8c] sm:$0xf]
        %v4163 = vld [vmem:[%s4126 + $0x90] sm:$0xf]
        %v4164 = vld [vmem:[%s4126 + $0x94] sm:$0xf]
        %v4165 = vld [vmem:[%s4126 + $0x98] sm:$0xf]
        %v4166 = vld [vmem:[%s4126 + $0x9c] sm:$0xf]
        %v4167 = vld [vmem:[%s4126 + $0xa0] sm:$0xf]
        %v4168 = vld [vmem:[%s4126 + $0xa4] sm:$0xf]
        %v4169 = vld [vmem:[%s4126 + $0xa8] sm:$0xf]
        %v4170 = vld [vmem:[%s4126 + $0xac] sm:$0xf]
        %v4171 = vld [vmem:[%s4126 + $0xb0] sm:$0xf]
        %v4172 = vld [vmem:[%s4126 + $0xb4] sm:$0xf]
        %v4173 = vld [vmem:[%s4126 + $0xb8] sm:$0xf]
        %v4174 = vld [vmem:[%s4126 + $0xbc] sm:$0xf]
        %v4175 = vld [vmem:[%s4126 + $0xc0] sm:$0xf]
        %v4176 = vld [vmem:[%s4126 + $0xc4] sm:$0xf]
        %v4177 = vld [vmem:[%s4126 + $0xc8] sm:$0xf]
        %v4178 = vld [vmem:[%s4126 + $0xcc] sm:$0xf]
        %v4179 = vld [vmem:[%s4126 + $0xd0] sm:$0xf]
        %v4180 = vld [vmem:[%s4126 + $0xd4] sm:$0xf]
        %v4181 = vld [vmem:[%s4126 + $0xd8] sm:$0xf]
        %v4182 = vld [vmem:[%s4126 + $0xdc] sm:$0xf]
        %v4183 = vld [vmem:[%s4126 + $0xe0] sm:$0xf]
        %v4184 = vld [vmem:[%s4126 + $0xe4] sm:$0xf]
        %v4185 = vld [vmem:[%s4126 + $0xe8] sm:$0xf]
        %v4186 = vld [vmem:[%s4126 + $0xec] sm:$0xf]
        %v4187 = vld [vmem:[%s4126 + $0xf0] sm:$0xf]
        %v4188 = vld [vmem:[%s4126 + $0xf4] sm:$0xf]
        %v4189 = vld [vmem:[%s4126 + $0xf8] sm:$0xf]
        %v4190 = vld [vmem:[%s4126 + $0xfc] sm:$0xf]
        %v4191 = vld [vmem:[%s4126 + $0x100] sm:$0xf]
        %v4192 = vld [vmem:[%s4126 + $0x104] sm:$0xf]
        %v4193 = vld [vmem:[%s4126 + $0x108] sm:$0xf]
        %v4194 = vld [vmem:[%s4126 + $0x10c] sm:$0xf]
        %v4195 = vld [vmem:[%s4126 + $0x110] sm:$0xf]
        %v4196 = vld [vmem:[%s4126 + $0x114] sm:$0xf]
        %v4197 = vld [vmem:[%s4126 + $0x118] sm:$0xf]
        %v4198 = vld [vmem:[%s4126 + $0x11c] sm:$0xf]
        %v4199 = vld [vmem:[%s4126 + $0x120] sm:$0xf]
        %v4200 = vld [vmem:[%s4126 + $0x124] sm:$0xf]
        %v4201 = vld [vmem:[%s4126 + $0x128] sm:$0xf]
        %v4202 = vld [vmem:[%s4126 + $0x12c] sm:$0xf]
        %v4203 = vld [vmem:[%s4126 + $0x130] sm:$0xf]
        %v4204 = vld [vmem:[%s4126 + $0x134] sm:$0xf]
        %v4205 = vld [vmem:[%s4126 + $0x138] sm:$0xf]
        %v4206 = vld [vmem:[%s4126 + $0x13c] sm:$0xf]
        %v4287 = vunpack.c.l.b16 %v4127
        %v4288 = vunpack.c.l.b16 %v4128
        %v4289 = vunpack.c.l.b16 %v4129
        %v4290 = vunpack.c.l.b16 %v4130
        %v4291 = vunpack.c.l.b16 %v4131
        %v4292 = vunpack.c.l.b16 %v4132
        %v4293 = vunpack.c.l.b16 %v4133
        %v4294 = vunpack.c.l.b16 %v4134
        %v4295 = vunpack.c.l.b16 %v4135
        %v4296 = vunpack.c.l.b16 %v4136
        %v4297 = vunpack.c.l.b16 %v4137
        %v4298 = vunpack.c.l.b16 %v4138
        %v4299 = vunpack.c.l.b16 %v4139
        %v4300 = vunpack.c.l.b16 %v4140
        %v4301 = vunpack.c.l.b16 %v4141
        %v4302 = vunpack.c.l.b16 %v4142
        %v4303 = vunpack.c.l.b16 %v4143
        %v4304 = vunpack.c.l.b16 %v4144
        %v4305 = vunpack.c.l.b16 %v4145
        %v4306 = vunpack.c.l.b16 %v4146
        %v4307 = vunpack.c.l.b16 %v4147
        %v4308 = vunpack.c.l.b16 %v4148
        %v4309 = vunpack.c.l.b16 %v4149
        %v4310 = vunpack.c.l.b16 %v4150
        %v4311 = vunpack.c.l.b16 %v4151
        %v4312 = vunpack.c.l.b16 %v4152
        %v4313 = vunpack.c.l.b16 %v4153
        %v4314 = vunpack.c.l.b16 %v4154
        %v4315 = vunpack.c.l.b16 %v4155
        %v4316 = vunpack.c.l.b16 %v4156
        %v4317 = vunpack.c.l.b16 %v4157
        %v4318 = vunpack.c.l.b16 %v4158
        %v4319 = vunpack.c.l.b16 %v4159
        %v4320 = vunpack.c.l.b16 %v4160
        %v4321 = vunpack.c.l.b16 %v4161
        %v4322 = vunpack.c.l.b16 %v4162
        %v4323 = vunpack.c.l.b16 %v4163
        %v4324 = vunpack.c.l.b16 %v4164
        %v4325 = vunpack.c.l.b16 %v4165
        %v4326 = vunpack.c.l.b16 %v4166
        %v4327 = vunpack.c.l.b16 %v4167
        %v4328 = vunpack.c.l.b16 %v4168
        %v4329 = vunpack.c.l.b16 %v4169
        %v4330 = vunpack.c.l.b16 %v4170
        %v4331 = vunpack.c.l.b16 %v4171
        %v4332 = vunpack.c.l.b16 %v4172
        %v4333 = vunpack.c.l.b16 %v4173
        %v4334 = vunpack.c.l.b16 %v4174
        %v4335 = vunpack.c.l.b16 %v4175
        %v4336 = vunpack.c.l.b16 %v4176
        %v4337 = vunpack.c.l.b16 %v4177
        %v4338 = vunpack.c.l.b16 %v4178
        %v4339 = vunpack.c.l.b16 %v4179
        %v4340 = vunpack.c.l.b16 %v4180
        %v4341 = vunpack.c.l.b16 %v4181
        %v4342 = vunpack.c.l.b16 %v4182
        %v4343 = vunpack.c.l.b16 %v4183
        %v4344 = vunpack.c.l.b16 %v4184
        %v4345 = vunpack.c.l.b16 %v4185
        %v4346 = vunpack.c.l.b16 %v4186
        %v4347 = vunpack.c.l.b16 %v4187
        %v4348 = vunpack.c.l.b16 %v4188
        %v4349 = vunpack.c.l.b16 %v4189
        %v4350 = vunpack.c.l.b16 %v4190
        %v4351 = vunpack.c.l.b16 %v4191
        %v4352 = vunpack.c.l.b16 %v4192
        %v4353 = vunpack.c.l.b16 %v4193
        %v4354 = vunpack.c.l.b16 %v4194
        %v4355 = vunpack.c.l.b16 %v4195
        %v4356 = vunpack.c.l.b16 %v4196
        %v4357 = vunpack.c.l.b16 %v4197
        %v4358 = vunpack.c.l.b16 %v4198
        %v4359 = vunpack.c.l.b16 %v4199
        %v4360 = vunpack.c.l.b16 %v4200
        %v4361 = vunpack.c.l.b16 %v4201
        %v4362 = vunpack.c.l.b16 %v4202
        %v4363 = vunpack.c.l.b16 %v4203
        %v4364 = vunpack.c.l.b16 %v4204
        %v4365 = vunpack.c.l.b16 %v4205
        %v4366 = vunpack.c.l.b16 %v4206
        %v4367 = vpack.c.b16 %v4288, %v4287
        %v4368 = vpack.c.b16 %v4290, %v4289
        %v4369 = vpack.c.b16 %v4292, %v4291
        %v4370 = vpack.c.b16 %v4294, %v4293
        %v4371 = vpack.c.b16 %v4296, %v4295
        %v4372 = vpack.c.b16 %v4298, %v4297
        %v4373 = vpack.c.b16 %v4300, %v4299
        %v4374 = vpack.c.b16 %v4302, %v4301
        %v4375 = vpack.c.b16 %v4304, %v4303
        %v4376 = vpack.c.b16 %v4306, %v4305
        %v4377 = vpack.c.b16 %v4308, %v4307
        %v4378 = vpack.c.b16 %v4310, %v4309
        %v4379 = vpack.c.b16 %v4312, %v4311
        %v4380 = vpack.c.b16 %v4314, %v4313
        %v4381 = vpack.c.b16 %v4316, %v4315
        %v4382 = vpack.c.b16 %v4318, %v4317
        %v4383 = vpack.c.b16 %v4320, %v4319
        %v4384 = vpack.c.b16 %v4322, %v4321
        %v4385 = vpack.c.b16 %v4324, %v4323
        %v4386 = vpack.c.b16 %v4326, %v4325
        %v4387 = vpack.c.b16 %v4328, %v4327
        %v4388 = vpack.c.b16 %v4330, %v4329
        %v4389 = vpack.c.b16 %v4332, %v4331
        %v4390 = vpack.c.b16 %v4334, %v4333
        %v4391 = vpack.c.b16 %v4336, %v4335
        %v4392 = vpack.c.b16 %v4338, %v4337
        %v4393 = vpack.c.b16 %v4340, %v4339
        %v4394 = vpack.c.b16 %v4342, %v4341
        %v4395 = vpack.c.b16 %v4344, %v4343
        %v4396 = vpack.c.b16 %v4346, %v4345
        %v4397 = vpack.c.b16 %v4348, %v4347
        %v4398 = vpack.c.b16 %v4350, %v4349
        %v4399 = vpack.c.b16 %v4352, %v4351
        %v4400 = vpack.c.b16 %v4354, %v4353
        %v4401 = vpack.c.b16 %v4356, %v4355
        %v4402 = vpack.c.b16 %v4358, %v4357
        %v4403 = vpack.c.b16 %v4360, %v4359
        %v4404 = vpack.c.b16 %v4362, %v4361
        %v4405 = vpack.c.b16 %v4364, %v4363
        %v4406 = vpack.c.b16 %v4366, %v4365
        %4447 = vmatprep.subr.bf16.mxu0 0
        %4448 = vmatpush1.bf16.msra.mxu0 %v4367
        %4449 = vmatprep.subr.bf16.mxu0 0
        %4450 = vmatpush1.bf16.msra.mxu0 %v4368
        %4451 = vmatprep.subr.bf16.mxu0 0
        %4452 = vmatpush1.bf16.msra.mxu0 %v4369
        %4453 = vmatprep.subr.bf16.mxu0 0
        %4454 = vmatpush1.bf16.msra.mxu0 %v4370
        %4455 = vmatprep.subr.bf16.mxu0 0
        %4456 = vmatpush1.bf16.msra.mxu0 %v4371
        %4457 = vmatprep.subr.bf16.mxu0 0
        %4458 = vmatpush1.bf16.msra.mxu0 %v4372
        %4459 = vmatprep.subr.bf16.mxu0 0
        %4460 = vmatpush1.bf16.msra.mxu0 %v4373
        %4461 = vmatprep.subr.bf16.mxu0 0
        %4462 = vmatpush1.bf16.msra.mxu0 %v4374
        %4463 = vmatprep.subr.bf16.mxu0 0
        %4464 = vmatpush1.bf16.msra.mxu0 %v4375
        %4465 = vmatprep.subr.bf16.mxu0 0
        %4466 = vmatpush1.bf16.msra.mxu0 %v4376
        %4467 = vmatprep.subr.bf16.mxu0 0
        %4468 = vmatpush1.bf16.msra.mxu0 %v4377
        %4469 = vmatprep.subr.bf16.mxu0 0
        %4470 = vmatpush1.bf16.msra.mxu0 %v4378
        %4471 = vmatprep.subr.bf16.mxu0 0
        %4472 = vmatpush1.bf16.msra.mxu0 %v4379
        %4473 = vmatprep.subr.bf16.mxu0 0
        %4474 = vmatpush1.bf16.msra.mxu0 %v4380
        %4475 = vmatprep.subr.bf16.mxu0 0
        %4476 = vmatpush1.bf16.msra.mxu0 %v4381
        %4477 = vmatprep.subr.bf16.mxu0 0
        %4478 = vmatpush1.bf16.msra.mxu0 %v4382
        %4479 = vmatprep.mubr.bf16.mxu0 %v4086
        %4480 = vmatmul.mubr.bf16.gmra.mrb[0].mxu0 %v4074
        %v4481 = vpop.f32.mrb[0].mxu0
        %v4482 = vadd.f32 0.0, %v4481
        %v4483 = vpop.f32.mrb[0].mxu0
        %v4484 = vpop.f32.mrb[0].mxu0
        %v4485 = vadd.f32 0.0, %v4484
        %v4486 = vpop.f32.mrb[0].mxu0
        %4487 = vmatprep.mubr.bf16.mxu0 %v4087
        %4488 = vmatmul.mubr.bf16.gmra.mrb[0].mxu0 %v4075
        %v4489 = vpop.f32.mrb[0].mxu0
        %v4490 = vadd.f32 0.0, %v4489
        %v4491 = vpop.f32.mrb[0].mxu0
        %v4492 = vpop.f32.mrb[0].mxu0
        %v4493 = vadd.f32 0.0, %v4492
        %v4494 = vpop.f32.mrb[0].mxu0
        %4495 = vmatprep.mubr.bf16.mxu0 %v4088
        %4496 = vmatmul.mubr.bf16.gmra.mrb[0].mxu0 %v4076
        %v4497 = vpop.f32.mrb[0].mxu0
        %v4498 = vadd.f32 0.0, %v4497
        %v4499 = vpop.f32.mrb[0].mxu0
        %v4500 = vpop.f32.mrb[0].mxu0
        %v4501 = vadd.f32 0.0, %v4500
        %v4502 = vpop.f32.mrb[0].mxu0
        %4503 = vmatprep.mubr.bf16.mxu0 %v4089
        %4504 = vmatmul.mubr.bf16.gmra.mrb[0].mxu0 %v4077
        %v4505 = vpop.f32.mrb[0].mxu0
        %v4506 = vadd.f32 0.0, %v4505
        %v4507 = vpop.f32.mrb[0].mxu0
        %v4508 = vpop.f32.mrb[0].mxu0
        %v4509 = vadd.f32 0.0, %v4508
        %v4510 = vpop.f32.mrb[0].mxu0
        %4511 = vdwg.mxu0
        %4512 = vmatprep.subr.bf16.mxu0 0
        %4513 = vmatpush1.bf16.msra.mxu0 %v4383
        %4514 = vmatprep.subr.bf16.mxu0 0
        %4515 = vmatpush1.bf16.msra.mxu0 %v4384
        %4516 = vmatprep.subr.bf16.mxu0 0
        %4517 = vmatpush1.bf16.msra.mxu0 %v4385
        %4518 = vmatprep.subr.bf16.mxu0 0
        %4519 = vmatpush1.bf16.msra.mxu0 %v4386
        %4520 = vmatprep.subr.bf16.mxu0 0
        %4521 = vmatpush1.bf16.msra.mxu0 %v4387
        %4522 = vmatprep.subr.bf16.mxu0 0
        %4523 = vmatpush1.bf16.msra.mxu0 %v4388
        %4524 = vmatprep.subr.bf16.mxu0 0
        %4525 = vmatpush1.bf16.msra.mxu0 %v4389
        %4526 = vmatprep.subr.bf16.mxu0 0
        %4527 = vmatpush1.bf16.msra.mxu0 %v4390
        %4528 = vmatprep.subr.bf16.mxu0 0
        %4529 = vmatpush1.bf16.msra.mxu0 %v4391
        %4530 = vmatprep.subr.bf16.mxu0 0
        %4531 = vmatpush1.bf16.msra.mxu0 %v4392
        %4532 = vmatprep.subr.bf16.mxu0 0
        %4533 = vmatpush1.bf16.msra.mxu0 %v4393
        %4534 = vmatprep.subr.bf16.mxu0 0
        %4535 = vmatpush1.bf16.msra.mxu0 %v4394
        %4536 = vmatprep.subr.bf16.mxu0 0
        %4537 = vmatpush1.bf16.msra.mxu0 %v4395
        %4538 = vmatprep.subr.bf16.mxu0 0
        %4539 = vmatpush1.bf16.msra.mxu0 %v4396
        %4540 = vmatprep.subr.bf16.mxu0 0
        %4541 = vmatpush1.bf16.msra.mxu0 %v4397
        %4542 = vmatprep.subr.bf16.mxu0 0
        %4543 = vmatpush1.bf16.msra.mxu0 %v4398
        %4544 = vmatprep.mubr.bf16.mxu0 %v4110
        %4545 = vmatmul.mubr.bf16.gmra.mrb[0].mxu0 %v4098
        %v4546 = vpop.f32.mrb[0].mxu0
        %v4547 = vadd.f32 %v4482, %v4546
        %v4548 = vpop.f32.mrb[0].mxu0
        %v4549 = vpop.f32.mrb[0].mxu0
        %v4550 = vadd.f32 %v4485, %v4549
        %v4551 = vpop.f32.mrb[0].mxu0
        %4552 = vmatprep.mubr.bf16.mxu0 %v4111
        %4553 = vmatmul.mubr.bf16.gmra.mrb[0].mxu0 %v4099
        %v4554 = vpop.f32.mrb[0].mxu0
        %v4555 = vadd.f32 %v4490, %v4554
        %v4556 = vpop.f32.mrb[0].mxu0
        %v4557 = vpop.f32.mrb[0].mxu0
        %v4558 = vadd.f32 %v4493, %v4557
        %v4559 = vpop.f32.mrb[0].mxu0
        %4560 = vmatprep.mubr.bf16.mxu0 %v4112
        %4561 = vmatmul.mubr.bf16.gmra.mrb[0].mxu0 %v4100
        %v4562 = vpop.f32.mrb[0].mxu0
        %v4563 = vadd.f32 %v4498, %v4562
        %v4564 = vpop.f32.mrb[0].mxu0
        %v4565 = vpop.f32.mrb[0].mxu0
        %v4566 = vadd.f32 %v4501, %v4565
        %v4567 = vpop.f32.mrb[0].mxu0
        %4568 = vmatprep.mubr.bf16.mxu0 %v4113
        %4569 = vmatmul.mubr.bf16.gmra.mrb[0].mxu0 %v4101
        %v4570 = vpop.f32.mrb[0].mxu0
        %v4571 = vadd.f32 %v4506, %v4570
        %v4572 = vpop.f32.mrb[0].mxu0
        %v4573 = vpop.f32.mrb[0].mxu0
        %v4574 = vadd.f32 %v4509, %v4573
        %v4575 = vpop.f32.mrb[0].mxu0
        %4576 = vdwg.mxu0
        %4577 = vmatprep.subr.bf16.mxu0 0
        %4578 = vmatpush1.bf16.msra.mxu0 %v4399
        %4579 = vmatprep.subr.bf16.mxu0 0
        %4580 = vmatpush1.bf16.msra.mxu0 %v4400
        %4581 = vmatprep.subr.bf16.mxu0 0
        %4582 = vmatpush1.bf16.msra.mxu0 %v4401
        %4583 = vmatprep.subr.bf16.mxu0 0
        %4584 = vmatpush1.bf16.msra.mxu0 %v4402
        %4585 = vmatprep.subr.bf16.mxu0 0
        %4586 = vmatpush1.bf16.msra.mxu0 %v4403
        %4587 = vmatprep.subr.bf16.mxu0 0
        %4588 = vmatpush1.bf16.msra.mxu0 %v4404
        %4589 = vmatprep.subr.bf16.mxu0 0
        %4590 = vmatpush1.bf16.msra.mxu0 %v4405
        %4591 = vmatprep.subr.bf16.mxu0 0
        %4592 = vmatpush1.bf16.msra.mxu0 %v4406
        %4593 = vmatprep.subr.bf16.mxu0 0
        %4594 = vmatpush1.bf16.msra.mxu0 0
        %4595 = vmatprep.subr.bf16.mxu0 0
        %4596 = vmatpush1.bf16.msra.mxu0 0
        %4597 = vmatprep.subr.bf16.mxu0 0
        %4598 = vmatpush1.bf16.msra.mxu0 0
        %4599 = vmatprep.subr.bf16.mxu0 0
        %4600 = vmatpush1.bf16.msra.mxu0 0
        %4601 = vmatprep.subr.bf16.mxu0 0
        %4602 = vmatpush1.bf16.msra.mxu0 0
        %4603 = vmatprep.subr.bf16.mxu0 0
        %4604 = vmatpush1.bf16.msra.mxu0 0
        %4605 = vmatprep.subr.bf16.mxu0 0
        %4606 = vmatpush1.bf16.msra.mxu0 0
        %4607 = vmatprep.subr.bf16.mxu0 0
        %4608 = vmatpush1.bf16.msra.mxu0 0
        %4609 = vmatprep.mubr.bf16.mxu0 0
        %4610 = vmatmul.mubr.bf16.gmra.mrb[0].mxu0 %v4122
        %v4611 = vpop.f32.mrb[0].mxu0
        %v4612 = vadd.f32 %v4547, %v4611
        %v4613 = vpop.f32.mrb[0].mxu0
        %v4614 = vpop.f32.mrb[0].mxu0
        %v4615 = vadd.f32 %v4550, %v4614
        %v4616 = vpop.f32.mrb[0].mxu0
        %4617 = vmatprep.mubr.bf16.mxu0 0
        %4618 = vmatmul.mubr.bf16.gmra.mrb[0].mxu0 %v4123
        %v4619 = vpop.f32.mrb[0].mxu0
        %v4620 = vadd.f32 %v4555, %v4619
        %v4621 = vpop.f32.mrb[0].mxu0
        %v4622 = vpop.f32.mrb[0].mxu0
        %v4623 = vadd.f32 %v4558, %v4622
        %v4624 = vpop.f32.mrb[0].mxu0
        %4625 = vmatprep.mubr.bf16.mxu0 0
        %4626 = vmatmul.mubr.bf16.gmra.mrb[0].mxu0 %v4124
        %v4627 = vpop.f32.mrb[0].mxu0
        %v4628 = vadd.f32 %v4563, %v4627
        %v4629 = vpop.f32.mrb[0].mxu0
        %v4630 = vpop.f32.mrb[0].mxu0
        %v4631 = vadd.f32 %v4566, %v4630
        %v4632 = vpop.f32.mrb[0].mxu0
        %4633 = vmatprep.mubr.bf16.mxu0 0
        %4634 = vmatmul.mubr.bf16.gmra.mrb[0].mxu0 %v4125
        %v4635 = vpop.f32.mrb[0].mxu0
        %v4636 = vadd.f32 %v4571, %v4635
        %v4637 = vpop.f32.mrb[0].mxu0
        %v4638 = vpop.f32.mrb[0].mxu0
        %v4639 = vadd.f32 %v4574, %v4638
        %v4640 = vpop.f32.mrb[0].mxu0
        %4641 = vdwg.mxu0
        %v4642 = vadd.f32 %v4036, %v4612
        %v4643 = vadd.f32 %v4039, %v4615
        %v4644 = vadd.f32 %v4044, %v4620
        %v4645 = vadd.f32 %v4047, %v4623
        %v4646 = vadd.f32 %v4052, %v4628
        %v4647 = vadd.f32 %v4055, %v4631
        %v4648 = vadd.f32 %v4060, %v4636
        %v4649 = vadd.f32 %v4063, %v4639
        %v4650 = vmax.f32 %v4642, 0.0
        %v4651 = vmax.f32 %v4643, 0.0
        %v4652 = vmax.f32 %v4644, 0.0
        %v4653 = vmax.f32 %v4645, 0.0
        %v4654 = vmax.f32 %v4646, 0.0
        %v4655 = vmax.f32 %v4647, 0.0
        %v4656 = vmax.f32 %v4648, 0.0
        %v4657 = vmax.f32 %v4649, 0.0
        %4658 = vst [vmem:[#allocation4] sm:$0xff] %v4650
        %4659 = vst [vmem:[#allocation4 + $0x8] sm:$0xf] %v4651
        %4660 = vst [vmem:[#allocation4 + $0xc] sm:$0xff] %v4652
        %4661 = vst [vmem:[#allocation4 + $0x14] sm:$0xf] %v4653
        %4662 = vst [vmem:[#allocation4 + $0x18] sm:$0xff] %v4654
        %4663 = vst [vmem:[#allocation4 + $0x20] sm:$0xf] %v4655
        %4664 = vst [vmem:[#allocation4 + $0x24] sm:$0xff] %v4656
        %4665 = vst [vmem:[#allocation4 + $0x2c] sm:$0xf] %v4657
        %v4666 = vld [vmem:[#allocation4] sm:$0xff]
        %v4667 = vld [vmem:[#allocation4 + $0x8] sm:$0xff]
        %v4668 = vld [vmem:[#allocation4 + $0x10] sm:$0xf]
        %v4669 = vpack.c.bf16 %v4667, %v4666
        %v4670 = vpack.c.bf16 %v4668, %v4668
        %v4671 = vld [vmem:[#allocation4 + $0x1] sm:$0xff]
        %v4672 = vld [vmem:[#allocation4 + $0x9] sm:$0xff]
        %v4673 = vld [vmem:[#allocation4 + $0x11] sm:$0xf]
        %v4674 = vpack.c.bf16 %v4672, %v4671
        %v4675 = vpack.c.bf16 %v4673, %v4673
        %v4676 = vld [vmem:[#allocation4 + $0x2] sm:$0xff]
        %v4677 = vld [vmem:[#allocation4 + $0xa] sm:$0xff]
        %v4678 = vld [vmem:[#allocation4 + $0x12] sm:$0xf]
        %v4679 = vpack.c.bf16 %v4677, %v4676
        %v4680 = vpack.c.bf16 %v4678, %v4678
        %v4681 = vld [vmem:[#allocation4 + $0x3] sm:$0xff]
        %v4682 = vld [vmem:[#allocation4 + $0xb] sm:$0xff]
        %v4683 = vld [vmem:[#allocation4 + $0x13] sm:$0xf]
        %v4684 = vpack.c.bf16 %v4682, %v4681
        %v4685 = vpack.c.bf16 %v4683, %v4683
        %v4686 = vld [vmem:[#allocation4 + $0x4] sm:$0xff]
        %v4687 = vld [vmem:[#allocation4 + $0xc] sm:$0xff]
        %v4688 = vld [vmem:[#allocation4 + $0x14] sm:$0xf]
        %v4689 = vpack.c.bf16 %v4687, %v4686
        %v4690 = vpack.c.bf16 %v4688, %v4688
        %v4691 = vld [vmem:[#allocation17] sm:$0xf]
        %v4692 = vld [vmem:[#allocation17 + $0x4] sm:$0xf]
        %v4693 = vld [vmem:[#allocation17 + $0x8] sm:$0xf]
        %v4694 = vld [vmem:[#allocation17 + $0xc] sm:$0xf]
        %v4695 = vld [vmem:[#allocation17 + $0x10] sm:$0xf]
        %v4696 = vld [vmem:[#allocation17 + $0x14] sm:$0xf]
        %v4697 = vld [vmem:[#allocation17 + $0x18] sm:$0xf]
        %v4698 = vld [vmem:[#allocation17 + $0x1c] sm:$0xf]
        %v4699 = vld [vmem:[#allocation17 + $0x20] sm:$0xf]
        %v4700 = vld [vmem:[#allocation17 + $0x24] sm:$0xf]
        %v4701 = vld [vmem:[#allocation17 + $0x28] sm:$0xf]
        %v4702 = vld [vmem:[#allocation17 + $0x2c] sm:$0xf]
        %v4703 = vld [vmem:[#allocation17 + $0x30] sm:$0xf]
        %v4704 = vld [vmem:[#allocation17 + $0x34] sm:$0xf]
        %v4705 = vld [vmem:[#allocation17 + $0x38] sm:$0xf]
        %v4706 = vld [vmem:[#allocation17 + $0x3c] sm:$0xf]
        %v4707 = vld [vmem:[#allocation17 + $0x40] sm:$0xf]
        %v4708 = vld [vmem:[#allocation17 + $0x44] sm:$0xf]
        %v4709 = vld [vmem:[#allocation17 + $0x48] sm:$0xf]
        %v4710 = vld [vmem:[#allocation17 + $0x4c] sm:$0xf]
        %v4711 = vld [vmem:[#allocation17 + $0x50] sm:$0xf]
        %v4712 = vld [vmem:[#allocation17 + $0x54] sm:$0xf]
        %v4713 = vld [vmem:[#allocation17 + $0x58] sm:$0xf]
        %v4714 = vld [vmem:[#allocation17 + $0x5c] sm:$0xf]
        %v4715 = vld [vmem:[#allocation17 + $0x60] sm:$0xf]
        %v4716 = vld [vmem:[#allocation17 + $0x64] sm:$0xf]
        %v4717 = vld [vmem:[#allocation17 + $0x68] sm:$0xf]
        %v4718 = vld [vmem:[#allocation17 + $0x6c] sm:$0xf]
        %v4719 = vld [vmem:[#allocation17 + $0x70] sm:$0xf]
        %v4720 = vld [vmem:[#allocation17 + $0x74] sm:$0xf]
        %v4721 = vld [vmem:[#allocation17 + $0x78] sm:$0xf]
        %v4722 = vld [vmem:[#allocation17 + $0x7c] sm:$0xf]
        %v4723 = vld [vmem:[#allocation17 + $0x80] sm:$0xf]
        %v4724 = vld [vmem:[#allocation17 + $0x84] sm:$0xf]
        %v4725 = vld [vmem:[#allocation17 + $0x88] sm:$0xf]
        %v4726 = vld [vmem:[#allocation17 + $0x8c] sm:$0xf]
        %v4727 = vld [vmem:[#allocation17 + $0x90] sm:$0xf]
        %v4728 = vld [vmem:[#allocation17 + $0x94] sm:$0xf]
        %v4729 = vld [vmem:[#allocation17 + $0x98] sm:$0xf]
        %v4730 = vld [vmem:[#allocation17 + $0x9c] sm:$0xf]
        %v4731 = vld [vmem:[#allocation17 + $0xa0] sm:$0xf]
        %v4732 = vld [vmem:[#allocation17 + $0xa4] sm:$0xf]
        %v4733 = vld [vmem:[#allocation17 + $0xa8] sm:$0xf]
        %v4734 = vld [vmem:[#allocation17 + $0xac] sm:$0xf]
        %v4735 = vld [vmem:[#allocation17 + $0xb0] sm:$0xf]
        %v4736 = vld [vmem:[#allocation17 + $0xb4] sm:$0xf]
        %v4737 = vld [vmem:[#allocation17 + $0xb8] sm:$0xf]
        %v4738 = vld [vmem:[#allocation17 + $0xbc] sm:$0xf]
        %v4739 = vld [vmem:[#allocation17 + $0xc0] sm:$0xf]
        %v4740 = vld [vmem:[#allocation17 + $0xc4] sm:$0xf]
        %v4741 = vld [vmem:[#allocation17 + $0xc8] sm:$0xf]
        %v4742 = vld [vmem:[#allocation17 + $0xcc] sm:$0xf]
        %v4743 = vld [vmem:[#allocation17 + $0xd0] sm:$0xf]
        %v4744 = vld [vmem:[#allocation17 + $0xd4] sm:$0xf]
        %v4745 = vld [vmem:[#allocation17 + $0xd8] sm:$0xf]
        %v4746 = vld [vmem:[#allocation17 + $0xdc] sm:$0xf]
        %v4747 = vld [vmem:[#allocation17 + $0xe0] sm:$0xf]
        %v4748 = vld [vmem:[#allocation17 + $0xe4] sm:$0xf]
        %v4749 = vld [vmem:[#allocation17 + $0xe8] sm:$0xf]
        %v4750 = vld [vmem:[#allocation17 + $0xec] sm:$0xf]
        %v4751 = vld [vmem:[#allocation17 + $0xf0] sm:$0xf]
        %v4752 = vld [vmem:[#allocation17 + $0xf4] sm:$0xf]
        %v4753 = vld [vmem:[#allocation17 + $0xf8] sm:$0xf]
        %v4754 = vld [vmem:[#allocation17 + $0xfc] sm:$0xf]
        %v4755 = vld [vmem:[#allocation17 + $0x100] sm:$0xf]
        %v4756 = vld [vmem:[#allocation17 + $0x104] sm:$0xf]
        %v4757 = vld [vmem:[#allocation17 + $0x108] sm:$0xf]
        %v4758 = vld [vmem:[#allocation17 + $0x10c] sm:$0xf]
        %v4759 = vld [vmem:[#allocation17 + $0x110] sm:$0xf]
        %v4760 = vld [vmem:[#allocation17 + $0x114] sm:$0xf]
        %v4761 = vld [vmem:[#allocation17 + $0x118] sm:$0xf]
        %v4762 = vld [vmem:[#allocation17 + $0x11c] sm:$0xf]
        %v4763 = vld [vmem:[#allocation17 + $0x120] sm:$0xf]
        %v4764 = vld [vmem:[#allocation17 + $0x124] sm:$0xf]
        %v4765 = vld [vmem:[#allocation17 + $0x128] sm:$0xf]
        %v4766 = vld [vmem:[#allocation17 + $0x12c] sm:$0xf]
        %v4767 = vld [vmem:[#allocation17 + $0x130] sm:$0xf]
        %v4768 = vld [vmem:[#allocation17 + $0x134] sm:$0xf]
        %v4769 = vld [vmem:[#allocation17 + $0x138] sm:$0xf]
        %v4770 = vld [vmem:[#allocation17 + $0x13c] sm:$0xf]
        %v4771 = vld [vmem:[#allocation4 + $0x14] sm:$0xff]
        %v4772 = vld [vmem:[#allocation4 + $0x1c] sm:$0xf]
        %v4773 = vpack.c.bf16 %v4771, %v4687
        %v4774 = vpack.c.bf16 %v4772, %v4772
        %v4775 = vld [vmem:[#allocation4 + $0xd] sm:$0xff]
        %v4776 = vld [vmem:[#allocation4 + $0x15] sm:$0xff]
        %v4777 = vld [vmem:[#allocation4 + $0x1d] sm:$0xf]
        %v4778 = vpack.c.bf16 %v4776, %v4775
        %v4779 = vpack.c.bf16 %v4777, %v4777
        %v4780 = vld [vmem:[#allocation4 + $0xe] sm:$0xff]
        %v4781 = vld [vmem:[#allocation4 + $0x16] sm:$0xff]
        %v4782 = vld [vmem:[#allocation4 + $0x1e] sm:$0xf]
        %v4783 = vpack.c.bf16 %v4781, %v4780
        %v4784 = vpack.c.bf16 %v4782, %v4782
        %v4785 = vld [vmem:[#allocation4 + $0xf] sm:$0xff]
        %v4786 = vld [vmem:[#allocation4 + $0x17] sm:$0xff]
        %v4787 = vld [vmem:[#allocation4 + $0x1f] sm:$0xf]
        %v4788 = vpack.c.bf16 %v4786, %v4785
        %v4789 = vpack.c.bf16 %v4787, %v4787
        %v4790 = vld [vmem:[#allocation4 + $0x10] sm:$0xff]
        %v4791 = vld [vmem:[#allocation4 + $0x18] sm:$0xff]
        %v4792 = vld [vmem:[#allocation4 + $0x20] sm:$0xf]
        %v4793 = vpack.c.bf16 %v4791, %v4790
        %v4794 = vpack.c.bf16 %v4792, %v4792
        %s4795 = scalar_lea.vmem [#allocation17], 320
        %v4796 = vld [vmem:[%s4795] sm:$0xf]
        %v4797 = vld [vmem:[%s4795 + $0x4] sm:$0xf]
        %v4798 = vld [vmem:[%s4795 + $0x8] sm:$0xf]
        %v4799 = vld [vmem:[%s4795 + $0xc] sm:$0xf]
        %v4800 = vld [vmem:[%s4795 + $0x10] sm:$0xf]
        %v4801 = vld [vmem:[%s4795 + $0x14] sm:$0xf]
        %v4802 = vld [vmem:[%s4795 + $0x18] sm:$0xf]
        %v4803 = vld [vmem:[%s4795 + $0x1c] sm:$0xf]
        %v4804 = vld [vmem:[%s4795 + $0x20] sm:$0xf]
        %v4805 = vld [vmem:[%s4795 + $0x24] sm:$0xf]
        %v4806 = vld [vmem:[%s4795 + $0x28] sm:$0xf]
        %v4807 = vld [vmem:[%s4795 + $0x2c] sm:$0xf]
        %v4808 = vld [vmem:[%s4795 + $0x30] sm:$0xf]
        %v4809 = vld [vmem:[%s4795 + $0x34] sm:$0xf]
        %v4810 = vld [vmem:[%s4795 + $0x38] sm:$0xf]
        %v4811 = vld [vmem:[%s4795 + $0x3c] sm:$0xf]
        %v4812 = vld [vmem:[%s4795 + $0x40] sm:$0xf]
        %v4813 = vld [vmem:[%s4795 + $0x44] sm:$0xf]
        %v4814 = vld [vmem:[%s4795 + $0x48] sm:$0xf]
        %v4815 = vld [vmem:[%s4795 + $0x4c] sm:$0xf]
        %v4816 = vld [vmem:[%s4795 + $0x50] sm:$0xf]
        %v4817 = vld [vmem:[%s4795 + $0x54] sm:$0xf]
        %v4818 = vld [vmem:[%s4795 + $0x58] sm:$0xf]
        %v4819 = vld [vmem:[%s4795 + $0x5c] sm:$0xf]
        %v4820 = vld [vmem:[%s4795 + $0x60] sm:$0xf]
        %v4821 = vld [vmem:[%s4795 + $0x64] sm:$0xf]
        %v4822 = vld [vmem:[%s4795 + $0x68] sm:$0xf]
        %v4823 = vld [vmem:[%s4795 + $0x6c] sm:$0xf]
        %v4824 = vld [vmem:[%s4795 + $0x70] sm:$0xf]
        %v4825 = vld [vmem:[%s4795 + $0x74] sm:$0xf]
        %v4826 = vld [vmem:[%s4795 + $0x78] sm:$0xf]
        %v4827 = vld [vmem:[%s4795 + $0x7c] sm:$0xf]
        %v4828 = vld [vmem:[%s4795 + $0x80] sm:$0xf]
        %v4829 = vld [vmem:[%s4795 + $0x84] sm:$0xf]
        %v4830 = vld [vmem:[%s4795 + $0x88] sm:$0xf]
        %v4831 = vld [vmem:[%s4795 + $0x8c] sm:$0xf]
        %v4832 = vld [vmem:[%s4795 + $0x90] sm:$0xf]
        %v4833 = vld [vmem:[%s4795 + $0x94] sm:$0xf]
        %v4834 = vld [vmem:[%s4795 + $0x98] sm:$0xf]
        %v4835 = vld [vmem:[%s4795 + $0x9c] sm:$0xf]
        %v4836 = vld [vmem:[%s4795 + $0xa0] sm:$0xf]
        %v4837 = vld [vmem:[%s4795 + $0xa4] sm:$0xf]
        %v4838 = vld [vmem:[%s4795 + $0xa8] sm:$0xf]
        %v4839 = vld [vmem:[%s4795 + $0xac] sm:$0xf]
        %v4840 = vld [vmem:[%s4795 + $0xb0] sm:$0xf]
        %v4841 = vld [vmem:[%s4795 + $0xb4] sm:$0xf]
        %v4842 = vld [vmem:[%s4795 + $0xb8] sm:$0xf]
        %v4843 = vld [vmem:[%s4795 + $0xbc] sm:$0xf]
        %v4844 = vld [vmem:[%s4795 + $0xc0] sm:$0xf]
        %v4845 = vld [vmem:[%s4795 + $0xc4] sm:$0xf]
        %v4846 = vld [vmem:[%s4795 + $0xc8] sm:$0xf]
        %v4847 = vld [vmem:[%s4795 + $0xcc] sm:$0xf]
        %v4848 = vld [vmem:[%s4795 + $0xd0] sm:$0xf]
        %v4849 = vld [vmem:[%s4795 + $0xd4] sm:$0xf]
        %v4850 = vld [vmem:[%s4795 + $0xd8] sm:$0xf]
        %v4851 = vld [vmem:[%s4795 + $0xdc] sm:$0xf]
        %v4852 = vld [vmem:[%s4795 + $0xe0] sm:$0xf]
        %v4853 = vld [vmem:[%s4795 + $0xe4] sm:$0xf]
        %v4854 = vld [vmem:[%s4795 + $0xe8] sm:$0xf]
        %v4855 = vld [vmem:[%s4795 + $0xec] sm:$0xf]
        %v4856 = vld [vmem:[%s4795 + $0xf0] sm:$0xf]
        %v4857 = vld [vmem:[%s4795 + $0xf4] sm:$0xf]
        %v4858 = vld [vmem:[%s4795 + $0xf8] sm:$0xf]
        %v4859 = vld [vmem:[%s4795 + $0xfc] sm:$0xf]
        %v4860 = vld [vmem:[%s4795 + $0x100] sm:$0xf]
        %v4861 = vld [vmem:[%s4795 + $0x104] sm:$0xf]
        %v4862 = vld [vmem:[%s4795 + $0x108] sm:$0xf]
        %v4863 = vld [vmem:[%s4795 + $0x10c] sm:$0xf]
        %v4864 = vld [vmem:[%s4795 + $0x110] sm:$0xf]
        %v4865 = vld [vmem:[%s4795 + $0x114] sm:$0xf]
        %v4866 = vld [vmem:[%s4795 + $0x118] sm:$0xf]
        %v4867 = vld [vmem:[%s4795 + $0x11c] sm:$0xf]
        %v4868 = vld [vmem:[%s4795 + $0x120] sm:$0xf]
        %v4869 = vld [vmem:[%s4795 + $0x124] sm:$0xf]
        %v4870 = vld [vmem:[%s4795 + $0x128] sm:$0xf]
        %v4871 = vld [vmem:[%s4795 + $0x12c] sm:$0xf]
        %v4872 = vld [vmem:[%s4795 + $0x130] sm:$0xf]
        %v4873 = vld [vmem:[%s4795 + $0x134] sm:$0xf]
        %v4874 = vld [vmem:[%s4795 + $0x138] sm:$0xf]
        %v4875 = vld [vmem:[%s4795 + $0x13c] sm:$0xf]
        %v4956 = vunpack.c.l.b16 %v4796
        %v4957 = vunpack.c.l.b16 %v4797
        %v4958 = vunpack.c.l.b16 %v4798
        %v4959 = vunpack.c.l.b16 %v4799
        %v4960 = vunpack.c.l.b16 %v4800
        %v4961 = vunpack.c.l.b16 %v4801
        %v4962 = vunpack.c.l.b16 %v4802
        %v4963 = vunpack.c.l.b16 %v4803
        %v4964 = vunpack.c.l.b16 %v4804
        %v4965 = vunpack.c.l.b16 %v4805
        %v4966 = vunpack.c.l.b16 %v4806
        %v4967 = vunpack.c.l.b16 %v4807
        %v4968 = vunpack.c.l.b16 %v4808
        %v4969 = vunpack.c.l.b16 %v4809
        %v4970 = vunpack.c.l.b16 %v4810
        %v4971 = vunpack.c.l.b16 %v4811
        %v4972 = vunpack.c.l.b16 %v4812
        %v4973 = vunpack.c.l.b16 %v4813
        %v4974 = vunpack.c.l.b16 %v4814
        %v4975 = vunpack.c.l.b16 %v4815
        %v4976 = vunpack.c.l.b16 %v4816
        %v4977 = vunpack.c.l.b16 %v4817
        %v4978 = vunpack.c.l.b16 %v4818
        %v4979 = vunpack.c.l.b16 %v4819
        %v4980 = vunpack.c.l.b16 %v4820
        %v4981 = vunpack.c.l.b16 %v4821
        %v4982 = vunpack.c.l.b16 %v4822
        %v4983 = vunpack.c.l.b16 %v4823
        %v4984 = vunpack.c.l.b16 %v4824
        %v4985 = vunpack.c.l.b16 %v4825
        %v4986 = vunpack.c.l.b16 %v4826
        %v4987 = vunpack.c.l.b16 %v4827
        %v4988 = vunpack.c.l.b16 %v4828
        %v4989 = vunpack.c.l.b16 %v4829
        %v4990 = vunpack.c.l.b16 %v4830
        %v4991 = vunpack.c.l.b16 %v4831
        %v4992 = vunpack.c.l.b16 %v4832
        %v4993 = vunpack.c.l.b16 %v4833
        %v4994 = vunpack.c.l.b16 %v4834
        %v4995 = vunpack.c.l.b16 %v4835
        %v4996 = vunpack.c.l.b16 %v4836
        %v4997 = vunpack.c.l.b16 %v4837
        %v4998 = vunpack.c.l.b16 %v4838
        %v4999 = vunpack.c.l.b16 %v4839
        %v5000 = vunpack.c.l.b16 %v4840
        %v5001 = vunpack.c.l.b16 %v4841
        %v5002 = vunpack.c.l.b16 %v4842
        %v5003 = vunpack.c.l.b16 %v4843
        %v5004 = vunpack.c.l.b16 %v4844
        %v5005 = vunpack.c.l.b16 %v4845
        %v5006 = vunpack.c.l.b16 %v4846
        %v5007 = vunpack.c.l.b16 %v4847
        %v5008 = vunpack.c.l.b16 %v4848
        %v5009 = vunpack.c.l.b16 %v4849
        %v5010 = vunpack.c.l.b16 %v4850
        %v5011 = vunpack.c.l.b16 %v4851
        %v5012 = vunpack.c.l.b16 %v4852
        %v5013 = vunpack.c.l.b16 %v4853
        %v5014 = vunpack.c.l.b16 %v4854
        %v5015 = vunpack.c.l.b16 %v4855
        %v5016 = vunpack.c.l.b16 %v4856
        %v5017 = vunpack.c.l.b16 %v4857
        %v5018 = vunpack.c.l.b16 %v4858
        %v5019 = vunpack.c.l.b16 %v4859
        %v5020 = vunpack.c.l.b16 %v4860
        %v5021 = vunpack.c.l.b16 %v4861
        %v5022 = vunpack.c.l.b16 %v4862
        %v5023 = vunpack.c.l.b16 %v4863
        %v5024 = vunpack.c.l.b16 %v4864
        %v5025 = vunpack.c.l.b16 %v4865
        %v5026 = vunpack.c.l.b16 %v4866
        %v5027 = vunpack.c.l.b16 %v4867
        %v5028 = vunpack.c.l.b16 %v4868
        %v5029 = vunpack.c.l.b16 %v4869
        %v5030 = vunpack.c.l.b16 %v4870
        %v5031 = vunpack.c.l.b16 %v4871
        %v5032 = vunpack.c.l.b16 %v4872
        %v5033 = vunpack.c.l.b16 %v4873
        %v5034 = vunpack.c.l.b16 %v4874
        %v5035 = vunpack.c.l.b16 %v4875
        %v5036 = vpack.c.b16 %v4957, %v4956
        %v5037 = vpack.c.b16 %v4959, %v4958
        %v5038 = vpack.c.b16 %v4961, %v4960
        %v5039 = vpack.c.b16 %v4963, %v4962
        %v5040 = vpack.c.b16 %v4965, %v4964
        %v5041 = vpack.c.b16 %v4967, %v4966
        %v5042 = vpack.c.b16 %v4969, %v4968
        %v5043 = vpack.c.b16 %v4971, %v4970
        %v5044 = vpack.c.b16 %v4973, %v4972
        %v5045 = vpack.c.b16 %v4975, %v4974
        %v5046 = vpack.c.b16 %v4977, %v4976
        %v5047 = vpack.c.b16 %v4979, %v4978
        %v5048 = vpack.c.b16 %v4981, %v4980
        %v5049 = vpack.c.b16 %v4983, %v4982
        %v5050 = vpack.c.b16 %v4985, %v4984
        %v5051 = vpack.c.b16 %v4987, %v4986
        %v5052 = vpack.c.b16 %v4989, %v4988
        %v5053 = vpack.c.b16 %v4991, %v4990
        %v5054 = vpack.c.b16 %v4993, %v4992
        %v5055 = vpack.c.b16 %v4995, %v4994
        %v5056 = vpack.c.b16 %v4997, %v4996
        %v5057 = vpack.c.b16 %v4999, %v4998
        %v5058 = vpack.c.b16 %v5001, %v5000
        %v5059 = vpack.c.b16 %v5003, %v5002
        %v5060 = vpack.c.b16 %v5005, %v5004
        %v5061 = vpack.c.b16 %v5007, %v5006
        %v5062 = vpack.c.b16 %v5009, %v5008
        %v5063 = vpack.c.b16 %v5011, %v5010
        %v5064 = vpack.c.b16 %v5013, %v5012
        %v5065 = vpack.c.b16 %v5015, %v5014
        %v5066 = vpack.c.b16 %v5017, %v5016
        %v5067 = vpack.c.b16 %v5019, %v5018
        %v5068 = vpack.c.b16 %v5021, %v5020
        %v5069 = vpack.c.b16 %v5023, %v5022
        %v5070 = vpack.c.b16 %v5025, %v5024
        %v5071 = vpack.c.b16 %v5027, %v5026
        %v5072 = vpack.c.b16 %v5029, %v5028
        %v5073 = vpack.c.b16 %v5031, %v5030
        %v5074 = vpack.c.b16 %v5033, %v5032
        %v5075 = vpack.c.b16 %v5035, %v5034
        %5116 = vmatprep.subr.bf16.mxu0 0
        %5117 = vmatpush1.bf16.msra.mxu0 %v5036
        %5118 = vmatprep.subr.bf16.mxu0 0
        %5119 = vmatpush1.bf16.msra.mxu0 %v5037
        %5120 = vmatprep.subr.bf16.mxu0 0
        %5121 = vmatpush1.bf16.msra.mxu0 %v5038
        %5122 = vmatprep.subr.bf16.mxu0 0
        %5123 = vmatpush1.bf16.msra.mxu0 %v5039
        %5124 = vmatprep.subr.bf16.mxu0 0
        %5125 = vmatpush1.bf16.msra.mxu0 %v5040
        %5126 = vmatprep.subr.bf16.mxu0 0
        %5127 = vmatpush1.bf16.msra.mxu0 %v5041
        %5128 = vmatprep.subr.bf16.mxu0 0
        %5129 = vmatpush1.bf16.msra.mxu0 %v5042
        %5130 = vmatprep.subr.bf16.mxu0 0
        %5131 = vmatpush1.bf16.msra.mxu0 %v5043
        %5132 = vmatprep.subr.bf16.mxu0 0
        %5133 = vmatpush1.bf16.msra.mxu0 %v5044
        %5134 = vmatprep.subr.bf16.mxu0 0
        %5135 = vmatpush1.bf16.msra.mxu0 %v5045
        %5136 = vmatprep.subr.bf16.mxu0 0
        %5137 = vmatpush1.bf16.msra.mxu0 %v5046
        %5138 = vmatprep.subr.bf16.mxu0 0
        %5139 = vmatpush1.bf16.msra.mxu0 %v5047
        %5140 = vmatprep.subr.bf16.mxu0 0
        %5141 = vmatpush1.bf16.msra.mxu0 %v5048
        %5142 = vmatprep.subr.bf16.mxu0 0
        %5143 = vmatpush1.bf16.msra.mxu0 %v5049
        %5144 = vmatprep.subr.bf16.mxu0 0
        %5145 = vmatpush1.bf16.msra.mxu0 %v5050
        %5146 = vmatprep.subr.bf16.mxu0 0
        %5147 = vmatpush1.bf16.msra.mxu0 %v5051
        %5148 = vmatprep.mubr.bf16.mxu0 %v4778
        %5149 = vmatmul.mubr.bf16.gmra.mrb[0].mxu0 %v4773
        %v5150 = vpop.f32.mrb[0].mxu0
        %v5151 = vadd.f32 0.0, %v5150
        %v5152 = vpop.f32.mrb[0].mxu0
        %v5153 = vpop.f32.mrb[0].mxu0
        %v5154 = vadd.f32 0.0, %v5153
        %v5155 = vpop.f32.mrb[0].mxu0
        %5156 = vmatprep.mubr.bf16.mxu0 %v4779
        %5157 = vmatmul.mubr.bf16.gmra.mrb[0].mxu0 %v4774
        %v5158 = vpop.f32.mrb[0].mxu0
        %v5159 = vadd.f32 0.0, %v5158
        %v5160 = vpop.f32.mrb[0].mxu0
        %v5161 = vpop.f32.mrb[0].mxu0
        %v5162 = vpop.f32.mrb[0].mxu0
        %5163 = vdwg.mxu0
        %5164 = vmatprep.subr.bf16.mxu0 0
        %5165 = vmatpush1.bf16.msra.mxu0 %v5052
        %5166 = vmatprep.subr.bf16.mxu0 0
        %5167 = vmatpush1.bf16.msra.mxu0 %v5053
        %5168 = vmatprep.subr.bf16.mxu0 0
        %5169 = vmatpush1.bf16.msra.mxu0 %v5054
        %5170 = vmatprep.subr.bf16.mxu0 0
        %5171 = vmatpush1.bf16.msra.mxu0 %v5055
        %5172 = vmatprep.subr.bf16.mxu0 0
        %5173 = vmatpush1.bf16.msra.mxu0 %v5056
        %5174 = vmatprep.subr.bf16.mxu0 0
        %5175 = vmatpush1.bf16.msra.mxu0 %v5057
        %5176 = vmatprep.subr.bf16.mxu0 0
        %5177 = vmatpush1.bf16.msra.mxu0 %v5058
        %5178 = vmatprep.subr.bf16.mxu0 0
        %5179 = vmatpush1.bf16.msra.mxu0 %v5059
        %5180 = vmatprep.subr.bf16.mxu0 0
        %5181 = vmatpush1.bf16.msra.mxu0 %v5060
        %5182 = vmatprep.subr.bf16.mxu0 0
        %5183 = vmatpush1.bf16.msra.mxu0 %v5061
        %5184 = vmatprep.subr.bf16.mxu0 0
        %5185 = vmatpush1.bf16.msra.mxu0 %v5062
        %5186 = vmatprep.subr.bf16.mxu0 0
        %5187 = vmatpush1.bf16.msra.mxu0 %v5063
        %5188 = vmatprep.subr.bf16.mxu0 0
        %5189 = vmatpush1.bf16.msra.mxu0 %v5064
        %5190 = vmatprep.subr.bf16.mxu0 0
        %5191 = vmatpush1.bf16.msra.mxu0 %v5065
        %5192 = vmatprep.subr.bf16.mxu0 0
        %5193 = vmatpush1.bf16.msra.mxu0 %v5066
        %5194 = vmatprep.subr.bf16.mxu0 0
        %5195 = vmatpush1.bf16.msra.mxu0 %v5067
        %5196 = vmatprep.mubr.bf16.mxu0 %v4788
        %5197 = vmatmul.mubr.bf16.gmra.mrb[0].mxu0 %v4783
        %v5198 = vpop.f32.mrb[0].mxu0
        %v5199 = vadd.f32 %v5151, %v5198
        %v5200 = vpop.f32.mrb[0].mxu0
        %v5201 = vpop.f32.mrb[0].mxu0
        %v5202 = vadd.f32 %v5154, %v5201
        %v5203 = vpop.f32.mrb[0].mxu0
        %5204 = vmatprep.mubr.bf16.mxu0 %v4789
        %5205 = vmatmul.mubr.bf16.gmra.mrb[0].mxu0 %v4784
        %v5206 = vpop.f32.mrb[0].mxu0
        %v5207 = vadd.f32 %v5159, %v5206
        %v5208 = vpop.f32.mrb[0].mxu0
        %v5209 = vpop.f32.mrb[0].mxu0
        %v5210 = vpop.f32.mrb[0].mxu0
        %5211 = vdwg.mxu0
        %5212 = vmatprep.subr.bf16.mxu0 0
        %5213 = vmatpush1.bf16.msra.mxu0 %v5068
        %5214 = vmatprep.subr.bf16.mxu0 0
        %5215 = vmatpush1.bf16.msra.mxu0 %v5069
        %5216 = vmatprep.subr.bf16.mxu0 0
        %5217 = vmatpush1.bf16.msra.mxu0 %v5070
        %5218 = vmatprep.subr.bf16.mxu0 0
        %5219 = vmatpush1.bf16.msra.mxu0 %v5071
        %5220 = vmatprep.subr.bf16.mxu0 0
        %5221 = vmatpush1.bf16.msra.mxu0 %v5072
        %5222 = vmatprep.subr.bf16.mxu0 0
        %5223 = vmatpush1.bf16.msra.mxu0 %v5073
        %5224 = vmatprep.subr.bf16.mxu0 0
        %5225 = vmatpush1.bf16.msra.mxu0 %v5074
        %5226 = vmatprep.subr.bf16.mxu0 0
        %5227 = vmatpush1.bf16.msra.mxu0 %v5075
        %5228 = vmatprep.subr.bf16.mxu0 0
        %5229 = vmatpush1.bf16.msra.mxu0 0
        %5230 = vmatprep.subr.bf16.mxu0 0
        %5231 = vmatpush1.bf16.msra.mxu0 0
        %5232 = vmatprep.subr.bf16.mxu0 0
        %5233 = vmatpush1.bf16.msra.mxu0 0
        %5234 = vmatprep.subr.bf16.mxu0 0
        %5235 = vmatpush1.bf16.msra.mxu0 0
        %5236 = vmatprep.subr.bf16.mxu0 0
        %5237 = vmatpush1.bf16.msra.mxu0 0
        %5238 = vmatprep.subr.bf16.mxu0 0
        %5239 = vmatpush1.bf16.msra.mxu0 0
        %5240 = vmatprep.subr.bf16.mxu0 0
        %5241 = vmatpush1.bf16.msra.mxu0 0
        %5242 = vmatprep.subr.bf16.mxu0 0
        %5243 = vmatpush1.bf16.msra.mxu0 0
        %5244 = vmatprep.mubr.bf16.mxu0 0
        %5245 = vmatmul.mubr.bf16.gmra.mrb[0].mxu0 %v4793
        %v5246 = vpop.f32.mrb[0].mxu0
        %v5247 = vadd.f32 %v5199, %v5246
        %v5248 = vpop.f32.mrb[0].mxu0
        %v5249 = vpop.f32.mrb[0].mxu0
        %v5250 = vadd.f32 %v5202, %v5249
        %v5251 = vpop.f32.mrb[0].mxu0
        %5252 = vmatprep.mubr.bf16.mxu0 0
        %5253 = vmatmul.mubr.bf16.gmra.mrb[0].mxu0 %v4794
        %v5254 = vpop.f32.mrb[0].mxu0
        %v5255 = vadd.f32 %v5207, %v5254
        %v5256 = vpop.f32.mrb[0].mxu0
        %v5257 = vpop.f32.mrb[0].mxu0
        %v5258 = vpop.f32.mrb[0].mxu0
        %5259 = vdwg.mxu0
        %v5340 = vunpack.c.l.b16 %v4691
        %v5341 = vunpack.c.l.b16 %v4692
        %v5342 = vunpack.c.l.b16 %v4693
        %v5343 = vunpack.c.l.b16 %v4694
        %v5344 = vunpack.c.l.b16 %v4695
        %v5345 = vunpack.c.l.b16 %v4696
        %v5346 = vunpack.c.l.b16 %v4697
        %v5347 = vunpack.c.l.b16 %v4698
        %v5348 = vunpack.c.l.b16 %v4699
        %v5349 = vunpack.c.l.b16 %v4700
        %v5350 = vunpack.c.l.b16 %v4701
        %v5351 = vunpack.c.l.b16 %v4702
        %v5352 = vunpack.c.l.b16 %v4703
        %v5353 = vunpack.c.l.b16 %v4704
        %v5354 = vunpack.c.l.b16 %v4705
        %v5355 = vunpack.c.l.b16 %v4706
        %v5356 = vunpack.c.l.b16 %v4707
        %v5357 = vunpack.c.l.b16 %v4708
        %v5358 = vunpack.c.l.b16 %v4709
        %v5359 = vunpack.c.l.b16 %v4710
        %v5360 = vunpack.c.l.b16 %v4711
        %v5361 = vunpack.c.l.b16 %v4712
        %v5362 = vunpack.c.l.b16 %v4713
        %v5363 = vunpack.c.l.b16 %v4714
        %v5364 = vunpack.c.l.b16 %v4715
        %v5365 = vunpack.c.l.b16 %v4716
        %v5366 = vunpack.c.l.b16 %v4717
        %v5367 = vunpack.c.l.b16 %v4718
        %v5368 = vunpack.c.l.b16 %v4719
        %v5369 = vunpack.c.l.b16 %v4720
        %v5370 = vunpack.c.l.b16 %v4721
        %v5371 = vunpack.c.l.b16 %v4722
        %v5372 = vunpack.c.l.b16 %v4723
        %v5373 = vunpack.c.l.b16 %v4724
        %v5374 = vunpack.c.l.b16 %v4725
        %v5375 = vunpack.c.l.b16 %v4726
        %v5376 = vunpack.c.l.b16 %v4727
        %v5377 = vunpack.c.l.b16 %v4728
        %v5378 = vunpack.c.l.b16 %v4729
        %v5379 = vunpack.c.l.b16 %v4730
        %v5380 = vunpack.c.l.b16 %v4731
        %v5381 = vunpack.c.l.b16 %v4732
        %v5382 = vunpack.c.l.b16 %v4733
        %v5383 = vunpack.c.l.b16 %v4734
        %v5384 = vunpack.c.l.b16 %v4735
        %v5385 = vunpack.c.l.b16 %v4736
        %v5386 = vunpack.c.l.b16 %v4737
        %v5387 = vunpack.c.l.b16 %v4738
        %v5388 = vunpack.c.l.b16 %v4739
        %v5389 = vunpack.c.l.b16 %v4740
        %v5390 = vunpack.c.l.b16 %v4741
        %v5391 = vunpack.c.l.b16 %v4742
        %v5392 = vunpack.c.l.b16 %v4743
        %v5393 = vunpack.c.l.b16 %v4744
        %v5394 = vunpack.c.l.b16 %v4745
        %v5395 = vunpack.c.l.b16 %v4746
        %v5396 = vunpack.c.l.b16 %v4747
        %v5397 = vunpack.c.l.b16 %v4748
        %v5398 = vunpack.c.l.b16 %v4749
        %v5399 = vunpack.c.l.b16 %v4750
        %v5400 = vunpack.c.l.b16 %v4751
        %v5401 = vunpack.c.l.b16 %v4752
        %v5402 = vunpack.c.l.b16 %v4753
        %v5403 = vunpack.c.l.b16 %v4754
        %v5404 = vunpack.c.l.b16 %v4755
        %v5405 = vunpack.c.l.b16 %v4756
        %v5406 = vunpack.c.l.b16 %v4757
        %v5407 = vunpack.c.l.b16 %v4758
        %v5408 = vunpack.c.l.b16 %v4759
        %v5409 = vunpack.c.l.b16 %v4760
        %v5410 = vunpack.c.l.b16 %v4761
        %v5411 = vunpack.c.l.b16 %v4762
        %v5412 = vunpack.c.l.b16 %v4763
        %v5413 = vunpack.c.l.b16 %v4764
        %v5414 = vunpack.c.l.b16 %v4765
        %v5415 = vunpack.c.l.b16 %v4766
        %v5416 = vunpack.c.l.b16 %v4767
        %v5417 = vunpack.c.l.b16 %v4768
        %v5418 = vunpack.c.l.b16 %v4769
        %v5419 = vunpack.c.l.b16 %v4770
        %v5420 = vpack.c.b16 %v5341, %v5340
        %v5421 = vpack.c.b16 %v5343, %v5342
        %v5422 = vpack.c.b16 %v5345, %v5344
        %v5423 = vpack.c.b16 %v5347, %v5346
        %v5424 = vpack.c.b16 %v5349, %v5348
        %v5425 = vpack.c.b16 %v5351, %v5350
        %v5426 = vpack.c.b16 %v5353, %v5352
        %v5427 = vpack.c.b16 %v5355, %v5354
        %v5428 = vpack.c.b16 %v5357, %v5356
        %v5429 = vpack.c.b16 %v5359, %v5358
        %v5430 = vpack.c.b16 %v5361, %v5360
        %v5431 = vpack.c.b16 %v5363, %v5362
        %v5432 = vpack.c.b16 %v5365, %v5364
        %v5433 = vpack.c.b16 %v5367, %v5366
        %v5434 = vpack.c.b16 %v5369, %v5368
        %v5435 = vpack.c.b16 %v5371, %v5370
        %v5436 = vpack.c.b16 %v5373, %v5372
        %v5437 = vpack.c.b16 %v5375, %v5374
        %v5438 = vpack.c.b16 %v5377, %v5376
        %v5439 = vpack.c.b16 %v5379, %v5378
        %v5440 = vpack.c.b16 %v5381, %v5380
        %v5441 = vpack.c.b16 %v5383, %v5382
        %v5442 = vpack.c.b16 %v5385, %v5384
        %v5443 = vpack.c.b16 %v5387, %v5386
        %v5444 = vpack.c.b16 %v5389, %v5388
        %v5445 = vpack.c.b16 %v5391, %v5390
        %v5446 = vpack.c.b16 %v5393, %v5392
        %v5447 = vpack.c.b16 %v5395, %v5394
        %v5448 = vpack.c.b16 %v5397, %v5396
        %v5449 = vpack.c.b16 %v5399, %v5398
        %v5450 = vpack.c.b16 %v5401, %v5400
        %v5451 = vpack.c.b16 %v5403, %v5402
        %v5452 = vpack.c.b16 %v5405, %v5404
        %v5453 = vpack.c.b16 %v5407, %v5406
        %v5454 = vpack.c.b16 %v5409, %v5408
        %v5455 = vpack.c.b16 %v5411, %v5410
        %v5456 = vpack.c.b16 %v5413, %v5412
        %v5457 = vpack.c.b16 %v5415, %v5414
        %v5458 = vpack.c.b16 %v5417, %v5416
        %v5459 = vpack.c.b16 %v5419, %v5418
        %5500 = vmatprep.subr.bf16.mxu0 0
        %5501 = vmatpush1.bf16.msra.mxu0 %v5420
        %5502 = vmatprep.subr.bf16.mxu0 0
        %5503 = vmatpush1.bf16.msra.mxu0 %v5421
        %5504 = vmatprep.subr.bf16.mxu0 0
        %5505 = vmatpush1.bf16.msra.mxu0 %v5422
        %5506 = vmatprep.subr.bf16.mxu0 0
        %5507 = vmatpush1.bf16.msra.mxu0 %v5423
        %5508 = vmatprep.subr.bf16.mxu0 0
        %5509 = vmatpush1.bf16.msra.mxu0 %v5424
        %5510 = vmatprep.subr.bf16.mxu0 0
        %5511 = vmatpush1.bf16.msra.mxu0 %v5425
        %5512 = vmatprep.subr.bf16.mxu0 0
        %5513 = vmatpush1.bf16.msra.mxu0 %v5426
        %5514 = vmatprep.subr.bf16.mxu0 0
        %5515 = vmatpush1.bf16.msra.mxu0 %v5427
        %5516 = vmatprep.subr.bf16.mxu0 0
        %5517 = vmatpush1.bf16.msra.mxu0 %v5428
        %5518 = vmatprep.subr.bf16.mxu0 0
        %5519 = vmatpush1.bf16.msra.mxu0 %v5429
        %5520 = vmatprep.subr.bf16.mxu0 0
        %5521 = vmatpush1.bf16.msra.mxu0 %v5430
        %5522 = vmatprep.subr.bf16.mxu0 0
        %5523 = vmatpush1.bf16.msra.mxu0 %v5431
        %5524 = vmatprep.subr.bf16.mxu0 0
        %5525 = vmatpush1.bf16.msra.mxu0 %v5432
        %5526 = vmatprep.subr.bf16.mxu0 0
        %5527 = vmatpush1.bf16.msra.mxu0 %v5433
        %5528 = vmatprep.subr.bf16.mxu0 0
        %5529 = vmatpush1.bf16.msra.mxu0 %v5434
        %5530 = vmatprep.subr.bf16.mxu0 0
        %5531 = vmatpush1.bf16.msra.mxu0 %v5435
        %5532 = vmatprep.mubr.bf16.mxu0 %v4674
        %5533 = vmatmul.mubr.bf16.gmra.mrb[0].mxu0 %v4669
        %v5534 = vpop.f32.mrb[0].mxu0
        %v5535 = vadd.f32 %v5247, %v5534
        %v5536 = vpop.f32.mrb[0].mxu0
        %v5537 = vpop.f32.mrb[0].mxu0
        %v5538 = vadd.f32 %v5250, %v5537
        %v5539 = vpop.f32.mrb[0].mxu0
        %5540 = vmatprep.mubr.bf16.mxu0 %v4675
        %5541 = vmatmul.mubr.bf16.gmra.mrb[0].mxu0 %v4670
        %v5542 = vpop.f32.mrb[0].mxu0
        %v5543 = vadd.f32 %v5255, %v5542
        %v5544 = vpop.f32.mrb[0].mxu0
        %v5545 = vpop.f32.mrb[0].mxu0
        %v5546 = vpop.f32.mrb[0].mxu0
        %5547 = vdwg.mxu0
        %5548 = vmatprep.subr.bf16.mxu0 0
        %5549 = vmatpush1.bf16.msra.mxu0 %v5436
        %5550 = vmatprep.subr.bf16.mxu0 0
        %5551 = vmatpush1.bf16.msra.mxu0 %v5437
        %5552 = vmatprep.subr.bf16.mxu0 0
        %5553 = vmatpush1.bf16.msra.mxu0 %v5438
        %5554 = vmatprep.subr.bf16.mxu0 0
        %5555 = vmatpush1.bf16.msra.mxu0 %v5439
        %5556 = vmatprep.subr.bf16.mxu0 0
        %5557 = vmatpush1.bf16.msra.mxu0 %v5440
        %5558 = vmatprep.subr.bf16.mxu0 0
        %5559 = vmatpush1.bf16.msra.mxu0 %v5441
        %5560 = vmatprep.subr.bf16.mxu0 0
        %5561 = vmatpush1.bf16.msra.mxu0 %v5442
        %5562 = vmatprep.subr.bf16.mxu0 0
        %5563 = vmatpush1.bf16.msra.mxu0 %v5443
        %5564 = vmatprep.subr.bf16.mxu0 0
        %5565 = vmatpush1.bf16.msra.mxu0 %v5444
        %5566 = vmatprep.subr.bf16.mxu0 0
        %5567 = vmatpush1.bf16.msra.mxu0 %v5445
        %5568 = vmatprep.subr.bf16.mxu0 0
        %5569 = vmatpush1.bf16.msra.mxu0 %v5446
        %5570 = vmatprep.subr.bf16.mxu0 0
        %5571 = vmatpush1.bf16.msra.mxu0 %v5447
        %5572 = vmatprep.subr.bf16.mxu0 0
        %5573 = vmatpush1.bf16.msra.mxu0 %v5448
        %5574 = vmatprep.subr.bf16.mxu0 0
        %5575 = vmatpush1.bf16.msra.mxu0 %v5449
        %5576 = vmatprep.subr.bf16.mxu0 0
        %5577 = vmatpush1.bf16.msra.mxu0 %v5450
        %5578 = vmatprep.subr.bf16.mxu0 0
        %5579 = vmatpush1.bf16.msra.mxu0 %v5451
        %5580 = vmatprep.mubr.bf16.mxu0 %v4684
        %5581 = vmatmul.mubr.bf16.gmra.mrb[0].mxu0 %v4679
        %v5582 = vpop.f32.mrb[0].mxu0
        %v5583 = vadd.f32 %v5535, %v5582
        %v5584 = vpop.f32.mrb[0].mxu0
        %v5585 = vpop.f32.mrb[0].mxu0
        %v5586 = vadd.f32 %v5538, %v5585
        %v5587 = vpop.f32.mrb[0].mxu0
        %5588 = vmatprep.mubr.bf16.mxu0 %v4685
        %5589 = vmatmul.mubr.bf16.gmra.mrb[0].mxu0 %v4680
        %v5590 = vpop.f32.mrb[0].mxu0
        %v5591 = vadd.f32 %v5543, %v5590
        %v5592 = vpop.f32.mrb[0].mxu0
        %v5593 = vpop.f32.mrb[0].mxu0
        %v5594 = vpop.f32.mrb[0].mxu0
        %5595 = vdwg.mxu0
        %5596 = vmatprep.subr.bf16.mxu0 0
        %5597 = vmatpush1.bf16.msra.mxu0 %v5452
        %5598 = vmatprep.subr.bf16.mxu0 0
        %5599 = vmatpush1.bf16.msra.mxu0 %v5453
        %5600 = vmatprep.subr.bf16.mxu0 0
        %5601 = vmatpush1.bf16.msra.mxu0 %v5454
        %5602 = vmatprep.subr.bf16.mxu0 0
        %5603 = vmatpush1.bf16.msra.mxu0 %v5455
        %5604 = vmatprep.subr.bf16.mxu0 0
        %5605 = vmatpush1.bf16.msra.mxu0 %v5456
        %5606 = vmatprep.subr.bf16.mxu0 0
        %5607 = vmatpush1.bf16.msra.mxu0 %v5457
        %5608 = vmatprep.subr.bf16.mxu0 0
        %5609 = vmatpush1.bf16.msra.mxu0 %v5458
        %5610 = vmatprep.subr.bf16.mxu0 0
        %5611 = vmatpush1.bf16.msra.mxu0 %v5459
        %5612 = vmatprep.subr.bf16.mxu0 0
        %5613 = vmatpush1.bf16.msra.mxu0 0
        %5614 = vmatprep.subr.bf16.mxu0 0
        %5615 = vmatpush1.bf16.msra.mxu0 0
        %5616 = vmatprep.subr.bf16.mxu0 0
        %5617 = vmatpush1.bf16.msra.mxu0 0
        %5618 = vmatprep.subr.bf16.mxu0 0
        %5619 = vmatpush1.bf16.msra.mxu0 0
        %5620 = vmatprep.subr.bf16.mxu0 0
        %5621 = vmatpush1.bf16.msra.mxu0 0
        %5622 = vmatprep.subr.bf16.mxu0 0
        %5623 = vmatpush1.bf16.msra.mxu0 0
        %5624 = vmatprep.subr.bf16.mxu0 0
        %5625 = vmatpush1.bf16.msra.mxu0 0
        %5626 = vmatprep.subr.bf16.mxu0 0
        %5627 = vmatpush1.bf16.msra.mxu0 0
        %5628 = vmatprep.mubr.bf16.mxu0 0
        %5629 = vmatmul.mubr.bf16.gmra.mrb[0].mxu0 %v4689
        %v5630 = vpop.f32.mrb[0].mxu0
        %v5631 = vadd.f32 %v5583, %v5630
        %v5632 = vpop.f32.mrb[0].mxu0
        %v5633 = vpop.f32.mrb[0].mxu0
        %v5634 = vadd.f32 %v5586, %v5633
        %v5635 = vpop.f32.mrb[0].mxu0
        %5636 = vmatprep.mubr.bf16.mxu0 0
        %5637 = vmatmul.mubr.bf16.gmra.mrb[0].mxu0 %v4690
        %v5638 = vpop.f32.mrb[0].mxu0
        %v5639 = vadd.f32 %v5591, %v5638
        %v5640 = vpop.f32.mrb[0].mxu0
        %v5641 = vpop.f32.mrb[0].mxu0
        %v5642 = vpop.f32.mrb[0].mxu0
        %5643 = vdwg.mxu0
        %v5644 = vld [vmem:[#allocation4 + $0x18] sm:$0xff]
        %v5645 = vld [vmem:[#allocation4 + $0x20] sm:$0xff]
        %v5646 = vld [vmem:[#allocation4 + $0x28] sm:$0xf]
        %v5647 = vpack.c.bf16 %v5645, %v5644
        %v5648 = vpack.c.bf16 %v5646, %v5646
        %v5649 = vld [vmem:[#allocation4 + $0x19] sm:$0xff]
        %v5650 = vld [vmem:[#allocation4 + $0x21] sm:$0xff]
        %v5651 = vld [vmem:[#allocation4 + $0x29] sm:$0xf]
        %v5652 = vpack.c.bf16 %v5650, %v5649
        %v5653 = vpack.c.bf16 %v5651, %v5651
        %v5654 = vld [vmem:[#allocation4 + $0x1a] sm:$0xff]
        %v5655 = vld [vmem:[#allocation4 + $0x22] sm:$0xff]
        %v5656 = vld [vmem:[#allocation4 + $0x2a] sm:$0xf]
        %v5657 = vpack.c.bf16 %v5655, %v5654
        %v5658 = vpack.c.bf16 %v5656, %v5656
        %v5659 = vld [vmem:[#allocation4 + $0x1b] sm:$0xff]
        %v5660 = vld [vmem:[#allocation4 + $0x23] sm:$0xff]
        %v5661 = vld [vmem:[#allocation4 + $0x2b] sm:$0xf]
        %v5662 = vpack.c.bf16 %v5660, %v5659
        %v5663 = vpack.c.bf16 %v5661, %v5661
        %v5664 = vld [vmem:[#allocation4 + $0x1c] sm:$0xff]
        %v5665 = vld [vmem:[#allocation4 + $0x24] sm:$0xff]
        %v5666 = vld [vmem:[#allocation4 + $0x2c] sm:$0xf]
        %v5667 = vpack.c.bf16 %v5665, %v5664
        %v5668 = vpack.c.bf16 %v5666, %v5666
        %s5669 = scalar_lea.vmem [#allocation17], 640
        %v5670 = vld [vmem:[%s5669] sm:$0xf]
        %v5671 = vld [vmem:[%s5669 + $0x4] sm:$0xf]
        %v5672 = vld [vmem:[%s5669 + $0x8] sm:$0xf]
        %v5673 = vld [vmem:[%s5669 + $0xc] sm:$0xf]
        %v5674 = vld [vmem:[%s5669 + $0x10] sm:$0xf]
        %v5675 = vld [vmem:[%s5669 + $0x14] sm:$0xf]
        %v5676 = vld [vmem:[%s5669 + $0x18] sm:$0xf]
        %v5677 = vld [vmem:[%s5669 + $0x1c] sm:$0xf]
        %v5678 = vld [vmem:[%s5669 + $0x20] sm:$0xf]
        %v5679 = vld [vmem:[%s5669 + $0x24] sm:$0xf]
        %v5680 = vld [vmem:[%s5669 + $0x28] sm:$0xf]
        %v5681 = vld [vmem:[%s5669 + $0x2c] sm:$0xf]
        %v5682 = vld [vmem:[%s5669 + $0x30] sm:$0xf]
        %v5683 = vld [vmem:[%s5669 + $0x34] sm:$0xf]
        %v5684 = vld [vmem:[%s5669 + $0x38] sm:$0xf]
        %v5685 = vld [vmem:[%s5669 + $0x3c] sm:$0xf]
        %v5686 = vld [vmem:[%s5669 + $0x40] sm:$0xf]
        %v5687 = vld [vmem:[%s5669 + $0x44] sm:$0xf]
        %v5688 = vld [vmem:[%s5669 + $0x48] sm:$0xf]
        %v5689 = vld [vmem:[%s5669 + $0x4c] sm:$0xf]
        %v5690 = vld [vmem:[%s5669 + $0x50] sm:$0xf]
        %v5691 = vld [vmem:[%s5669 + $0x54] sm:$0xf]
        %v5692 = vld [vmem:[%s5669 + $0x58] sm:$0xf]
        %v5693 = vld [vmem:[%s5669 + $0x5c] sm:$0xf]
        %v5694 = vld [vmem:[%s5669 + $0x60] sm:$0xf]
        %v5695 = vld [vmem:[%s5669 + $0x64] sm:$0xf]
        %v5696 = vld [vmem:[%s5669 + $0x68] sm:$0xf]
        %v5697 = vld [vmem:[%s5669 + $0x6c] sm:$0xf]
        %v5698 = vld [vmem:[%s5669 + $0x70] sm:$0xf]
        %v5699 = vld [vmem:[%s5669 + $0x74] sm:$0xf]
        %v5700 = vld [vmem:[%s5669 + $0x78] sm:$0xf]
        %v5701 = vld [vmem:[%s5669 + $0x7c] sm:$0xf]
        %v5702 = vld [vmem:[%s5669 + $0x80] sm:$0xf]
        %v5703 = vld [vmem:[%s5669 + $0x84] sm:$0xf]
        %v5704 = vld [vmem:[%s5669 + $0x88] sm:$0xf]
        %v5705 = vld [vmem:[%s5669 + $0x8c] sm:$0xf]
        %v5706 = vld [vmem:[%s5669 + $0x90] sm:$0xf]
        %v5707 = vld [vmem:[%s5669 + $0x94] sm:$0xf]
        %v5708 = vld [vmem:[%s5669 + $0x98] sm:$0xf]
        %v5709 = vld [vmem:[%s5669 + $0x9c] sm:$0xf]
        %v5710 = vld [vmem:[%s5669 + $0xa0] sm:$0xf]
        %v5711 = vld [vmem:[%s5669 + $0xa4] sm:$0xf]
        %v5712 = vld [vmem:[%s5669 + $0xa8] sm:$0xf]
        %v5713 = vld [vmem:[%s5669 + $0xac] sm:$0xf]
        %v5714 = vld [vmem:[%s5669 + $0xb0] sm:$0xf]
        %v5715 = vld [vmem:[%s5669 + $0xb4] sm:$0xf]
        %v5716 = vld [vmem:[%s5669 + $0xb8] sm:$0xf]
        %v5717 = vld [vmem:[%s5669 + $0xbc] sm:$0xf]
        %v5718 = vld [vmem:[%s5669 + $0xc0] sm:$0xf]
        %v5719 = vld [vmem:[%s5669 + $0xc4] sm:$0xf]
        %v5720 = vld [vmem:[%s5669 + $0xc8] sm:$0xf]
        %v5721 = vld [vmem:[%s5669 + $0xcc] sm:$0xf]
        %v5722 = vld [vmem:[%s5669 + $0xd0] sm:$0xf]
        %v5723 = vld [vmem:[%s5669 + $0xd4] sm:$0xf]
        %v5724 = vld [vmem:[%s5669 + $0xd8] sm:$0xf]
        %v5725 = vld [vmem:[%s5669 + $0xdc] sm:$0xf]
        %v5726 = vld [vmem:[%s5669 + $0xe0] sm:$0xf]
        %v5727 = vld [vmem:[%s5669 + $0xe4] sm:$0xf]
        %v5728 = vld [vmem:[%s5669 + $0xe8] sm:$0xf]
        %v5729 = vld [vmem:[%s5669 + $0xec] sm:$0xf]
        %v5730 = vld [vmem:[%s5669 + $0xf0] sm:$0xf]
        %v5731 = vld [vmem:[%s5669 + $0xf4] sm:$0xf]
        %v5732 = vld [vmem:[%s5669 + $0xf8] sm:$0xf]
        %v5733 = vld [vmem:[%s5669 + $0xfc] sm:$0xf]
        %v5734 = vld [vmem:[%s5669 + $0x100] sm:$0xf]
        %v5735 = vld [vmem:[%s5669 + $0x104] sm:$0xf]
        %v5736 = vld [vmem:[%s5669 + $0x108] sm:$0xf]
        %v5737 = vld [vmem:[%s5669 + $0x10c] sm:$0xf]
        %v5738 = vld [vmem:[%s5669 + $0x110] sm:$0xf]
        %v5739 = vld [vmem:[%s5669 + $0x114] sm:$0xf]
        %v5740 = vld [vmem:[%s5669 + $0x118] sm:$0xf]
        %v5741 = vld [vmem:[%s5669 + $0x11c] sm:$0xf]
        %v5742 = vld [vmem:[%s5669 + $0x120] sm:$0xf]
        %v5743 = vld [vmem:[%s5669 + $0x124] sm:$0xf]
        %v5744 = vld [vmem:[%s5669 + $0x128] sm:$0xf]
        %v5745 = vld [vmem:[%s5669 + $0x12c] sm:$0xf]
        %v5746 = vld [vmem:[%s5669 + $0x130] sm:$0xf]
        %v5747 = vld [vmem:[%s5669 + $0x134] sm:$0xf]
        %v5748 = vld [vmem:[%s5669 + $0x138] sm:$0xf]
        %v5749 = vld [vmem:[%s5669 + $0x13c] sm:$0xf]
        %v5830 = vunpack.c.l.b16 %v5670
        %v5831 = vunpack.c.l.b16 %v5671
        %v5832 = vunpack.c.l.b16 %v5672
        %v5833 = vunpack.c.l.b16 %v5673
        %v5834 = vunpack.c.l.b16 %v5674
        %v5835 = vunpack.c.l.b16 %v5675
        %v5836 = vunpack.c.l.b16 %v5676
        %v5837 = vunpack.c.l.b16 %v5677
        %v5838 = vunpack.c.l.b16 %v5678
        %v5839 = vunpack.c.l.b16 %v5679
        %v5840 = vunpack.c.l.b16 %v5680
        %v5841 = vunpack.c.l.b16 %v5681
        %v5842 = vunpack.c.l.b16 %v5682
        %v5843 = vunpack.c.l.b16 %v5683
        %v5844 = vunpack.c.l.b16 %v5684
        %v5845 = vunpack.c.l.b16 %v5685
        %v5846 = vunpack.c.l.b16 %v5686
        %v5847 = vunpack.c.l.b16 %v5687
        %v5848 = vunpack.c.l.b16 %v5688
        %v5849 = vunpack.c.l.b16 %v5689
        %v5850 = vunpack.c.l.b16 %v5690
        %v5851 = vunpack.c.l.b16 %v5691
        %v5852 = vunpack.c.l.b16 %v5692
        %v5853 = vunpack.c.l.b16 %v5693
        %v5854 = vunpack.c.l.b16 %v5694
        %v5855 = vunpack.c.l.b16 %v5695
        %v5856 = vunpack.c.l.b16 %v5696
        %v5857 = vunpack.c.l.b16 %v5697
        %v5858 = vunpack.c.l.b16 %v5698
        %v5859 = vunpack.c.l.b16 %v5699
        %v5860 = vunpack.c.l.b16 %v5700
        %v5861 = vunpack.c.l.b16 %v5701
        %v5862 = vunpack.c.l.b16 %v5702
        %v5863 = vunpack.c.l.b16 %v5703
        %v5864 = vunpack.c.l.b16 %v5704
        %v5865 = vunpack.c.l.b16 %v5705
        %v5866 = vunpack.c.l.b16 %v5706
        %v5867 = vunpack.c.l.b16 %v5707
        %v5868 = vunpack.c.l.b16 %v5708
        %v5869 = vunpack.c.l.b16 %v5709
        %v5870 = vunpack.c.l.b16 %v5710
        %v5871 = vunpack.c.l.b16 %v5711
        %v5872 = vunpack.c.l.b16 %v5712
        %v5873 = vunpack.c.l.b16 %v5713
        %v5874 = vunpack.c.l.b16 %v5714
        %v5875 = vunpack.c.l.b16 %v5715
        %v5876 = vunpack.c.l.b16 %v5716
        %v5877 = vunpack.c.l.b16 %v5717
        %v5878 = vunpack.c.l.b16 %v5718
        %v5879 = vunpack.c.l.b16 %v5719
        %v5880 = vunpack.c.l.b16 %v5720
        %v5881 = vunpack.c.l.b16 %v5721
        %v5882 = vunpack.c.l.b16 %v5722
        %v5883 = vunpack.c.l.b16 %v5723
        %v5884 = vunpack.c.l.b16 %v5724
        %v5885 = vunpack.c.l.b16 %v5725
        %v5886 = vunpack.c.l.b16 %v5726
        %v5887 = vunpack.c.l.b16 %v5727
        %v5888 = vunpack.c.l.b16 %v5728
        %v5889 = vunpack.c.l.b16 %v5729
        %v5890 = vunpack.c.l.b16 %v5730
        %v5891 = vunpack.c.l.b16 %v5731
        %v5892 = vunpack.c.l.b16 %v5732
        %v5893 = vunpack.c.l.b16 %v5733
        %v5894 = vunpack.c.l.b16 %v5734
        %v5895 = vunpack.c.l.b16 %v5735
        %v5896 = vunpack.c.l.b16 %v5736
        %v5897 = vunpack.c.l.b16 %v5737
        %v5898 = vunpack.c.l.b16 %v5738
        %v5899 = vunpack.c.l.b16 %v5739
        %v5900 = vunpack.c.l.b16 %v5740
        %v5901 = vunpack.c.l.b16 %v5741
        %v5902 = vunpack.c.l.b16 %v5742
        %v5903 = vunpack.c.l.b16 %v5743
        %v5904 = vunpack.c.l.b16 %v5744
        %v5905 = vunpack.c.l.b16 %v5745
        %v5906 = vunpack.c.l.b16 %v5746
        %v5907 = vunpack.c.l.b16 %v5747
        %v5908 = vunpack.c.l.b16 %v5748
        %v5909 = vunpack.c.l.b16 %v5749
        %v5910 = vpack.c.b16 %v5831, %v5830
        %v5911 = vpack.c.b16 %v5833, %v5832
        %v5912 = vpack.c.b16 %v5835, %v5834
        %v5913 = vpack.c.b16 %v5837, %v5836
        %v5914 = vpack.c.b16 %v5839, %v5838
        %v5915 = vpack.c.b16 %v5841, %v5840
        %v5916 = vpack.c.b16 %v5843, %v5842
        %v5917 = vpack.c.b16 %v5845, %v5844
        %v5918 = vpack.c.b16 %v5847, %v5846
        %v5919 = vpack.c.b16 %v5849, %v5848
        %v5920 = vpack.c.b16 %v5851, %v5850
        %v5921 = vpack.c.b16 %v5853, %v5852
        %v5922 = vpack.c.b16 %v5855, %v5854
        %v5923 = vpack.c.b16 %v5857, %v5856
        %v5924 = vpack.c.b16 %v5859, %v5858
        %v5925 = vpack.c.b16 %v5861, %v5860
        %v5926 = vpack.c.b16 %v5863, %v5862
        %v5927 = vpack.c.b16 %v5865, %v5864
        %v5928 = vpack.c.b16 %v5867, %v5866
        %v5929 = vpack.c.b16 %v5869, %v5868
        %v5930 = vpack.c.b16 %v5871, %v5870
        %v5931 = vpack.c.b16 %v5873, %v5872
        %v5932 = vpack.c.b16 %v5875, %v5874
        %v5933 = vpack.c.b16 %v5877, %v5876
        %v5934 = vpack.c.b16 %v5879, %v5878
        %v5935 = vpack.c.b16 %v5881, %v5880
        %v5936 = vpack.c.b16 %v5883, %v5882
        %v5937 = vpack.c.b16 %v5885, %v5884
        %v5938 = vpack.c.b16 %v5887, %v5886
        %v5939 = vpack.c.b16 %v5889, %v5888
        %v5940 = vpack.c.b16 %v5891, %v5890
        %v5941 = vpack.c.b16 %v5893, %v5892
        %v5942 = vpack.c.b16 %v5895, %v5894
        %v5943 = vpack.c.b16 %v5897, %v5896
        %v5944 = vpack.c.b16 %v5899, %v5898
        %v5945 = vpack.c.b16 %v5901, %v5900
        %v5946 = vpack.c.b16 %v5903, %v5902
        %v5947 = vpack.c.b16 %v5905, %v5904
        %v5948 = vpack.c.b16 %v5907, %v5906
        %v5949 = vpack.c.b16 %v5909, %v5908
        %5990 = vmatprep.subr.bf16.mxu0 0
        %5991 = vmatpush1.bf16.msra.mxu0 %v5910
        %5992 = vmatprep.subr.bf16.mxu0 0
        %5993 = vmatpush1.bf16.msra.mxu0 %v5911
        %5994 = vmatprep.subr.bf16.mxu0 0
        %5995 = vmatpush1.bf16.msra.mxu0 %v5912
        %5996 = vmatprep.subr.bf16.mxu0 0
        %5997 = vmatpush1.bf16.msra.mxu0 %v5913
        %5998 = vmatprep.subr.bf16.mxu0 0
        %5999 = vmatpush1.bf16.msra.mxu0 %v5914
        %6000 = vmatprep.subr.bf16.mxu0 0
        %6001 = vmatpush1.bf16.msra.mxu0 %v5915
        %6002 = vmatprep.subr.bf16.mxu0 0
        %6003 = vmatpush1.bf16.msra.mxu0 %v5916
        %6004 = vmatprep.subr.bf16.mxu0 0
        %6005 = vmatpush1.bf16.msra.mxu0 %v5917
        %6006 = vmatprep.subr.bf16.mxu0 0
        %6007 = vmatpush1.bf16.msra.mxu0 %v5918
        %6008 = vmatprep.subr.bf16.mxu0 0
        %6009 = vmatpush1.bf16.msra.mxu0 %v5919
        %6010 = vmatprep.subr.bf16.mxu0 0
        %6011 = vmatpush1.bf16.msra.mxu0 %v5920
        %6012 = vmatprep.subr.bf16.mxu0 0
        %6013 = vmatpush1.bf16.msra.mxu0 %v5921
        %6014 = vmatprep.subr.bf16.mxu0 0
        %6015 = vmatpush1.bf16.msra.mxu0 %v5922
        %6016 = vmatprep.subr.bf16.mxu0 0
        %6017 = vmatpush1.bf16.msra.mxu0 %v5923
        %6018 = vmatprep.subr.bf16.mxu0 0
        %6019 = vmatpush1.bf16.msra.mxu0 %v5924
        %6020 = vmatprep.subr.bf16.mxu0 0
        %6021 = vmatpush1.bf16.msra.mxu0 %v5925
        %6022 = vmatprep.mubr.bf16.mxu0 %v5652
        %6023 = vmatmul.mubr.bf16.gmra.mrb[0].mxu0 %v5647
        %v6024 = vpop.f32.mrb[0].mxu0
        %v6025 = vadd.f32 0.0, %v6024
        %v6026 = vpop.f32.mrb[0].mxu0
        %v6027 = vpop.f32.mrb[0].mxu0
        %v6028 = vadd.f32 0.0, %v6027
        %v6029 = vpop.f32.mrb[0].mxu0
        %6030 = vmatprep.mubr.bf16.mxu0 %v5653
        %6031 = vmatmul.mubr.bf16.gmra.mrb[0].mxu0 %v5648
        %v6032 = vpop.f32.mrb[0].mxu0
        %v6033 = vadd.f32 0.0, %v6032
        %v6034 = vpop.f32.mrb[0].mxu0
        %v6035 = vpop.f32.mrb[0].mxu0
        %v6036 = vpop.f32.mrb[0].mxu0
        %6037 = vdwg.mxu0
        %6038 = vmatprep.subr.bf16.mxu0 0
        %6039 = vmatpush1.bf16.msra.mxu0 %v5926
        %6040 = vmatprep.subr.bf16.mxu0 0
        %6041 = vmatpush1.bf16.msra.mxu0 %v5927
        %6042 = vmatprep.subr.bf16.mxu0 0
        %6043 = vmatpush1.bf16.msra.mxu0 %v5928
        %6044 = vmatprep.subr.bf16.mxu0 0
        %6045 = vmatpush1.bf16.msra.mxu0 %v5929
        %6046 = vmatprep.subr.bf16.mxu0 0
        %6047 = vmatpush1.bf16.msra.mxu0 %v5930
        %6048 = vmatprep.subr.bf16.mxu0 0
        %6049 = vmatpush1.bf16.msra.mxu0 %v5931
        %6050 = vmatprep.subr.bf16.mxu0 0
        %6051 = vmatpush1.bf16.msra.mxu0 %v5932
        %6052 = vmatprep.subr.bf16.mxu0 0
        %6053 = vmatpush1.bf16.msra.mxu0 %v5933
        %6054 = vmatprep.subr.bf16.mxu0 0
        %6055 = vmatpush1.bf16.msra.mxu0 %v5934
        %6056 = vmatprep.subr.bf16.mxu0 0
        %6057 = vmatpush1.bf16.msra.mxu0 %v5935
        %6058 = vmatprep.subr.bf16.mxu0 0
        %6059 = vmatpush1.bf16.msra.mxu0 %v5936
        %6060 = vmatprep.subr.bf16.mxu0 0
        %6061 = vmatpush1.bf16.msra.mxu0 %v5937
        %6062 = vmatprep.subr.bf16.mxu0 0
        %6063 = vmatpush1.bf16.msra.mxu0 %v5938
        %6064 = vmatprep.subr.bf16.mxu0 0
        %6065 = vmatpush1.bf16.msra.mxu0 %v5939
        %6066 = vmatprep.subr.bf16.mxu0 0
        %6067 = vmatpush1.bf16.msra.mxu0 %v5940
        %6068 = vmatprep.subr.bf16.mxu0 0
        %6069 = vmatpush1.bf16.msra.mxu0 %v5941
        %6070 = vmatprep.mubr.bf16.mxu0 %v5662
        %6071 = vmatmul.mubr.bf16.gmra.mrb[0].mxu0 %v5657
        %v6072 = vpop.f32.mrb[0].mxu0
        %v6073 = vadd.f32 %v6025, %v6072
        %v6074 = vpop.f32.mrb[0].mxu0
        %v6075 = vpop.f32.mrb[0].mxu0
        %v6076 = vadd.f32 %v6028, %v6075
        %v6077 = vpop.f32.mrb[0].mxu0
        %6078 = vmatprep.mubr.bf16.mxu0 %v5663
        %6079 = vmatmul.mubr.bf16.gmra.mrb[0].mxu0 %v5658
        %v6080 = vpop.f32.mrb[0].mxu0
        %v6081 = vadd.f32 %v6033, %v6080
        %v6082 = vpop.f32.mrb[0].mxu0
        %v6083 = vpop.f32.mrb[0].mxu0
        %v6084 = vpop.f32.mrb[0].mxu0
        %6085 = vdwg.mxu0
        %6086 = vmatprep.subr.bf16.mxu0 0
        %6087 = vmatpush1.bf16.msra.mxu0 %v5942
        %6088 = vmatprep.subr.bf16.mxu0 0
        %6089 = vmatpush1.bf16.msra.mxu0 %v5943
        %6090 = vmatprep.subr.bf16.mxu0 0
        %6091 = vmatpush1.bf16.msra.mxu0 %v5944
        %6092 = vmatprep.subr.bf16.mxu0 0
        %6093 = vmatpush1.bf16.msra.mxu0 %v5945
        %6094 = vmatprep.subr.bf16.mxu0 0
        %6095 = vmatpush1.bf16.msra.mxu0 %v5946
        %6096 = vmatprep.subr.bf16.mxu0 0
        %6097 = vmatpush1.bf16.msra.mxu0 %v5947
        %6098 = vmatprep.subr.bf16.mxu0 0
        %6099 = vmatpush1.bf16.msra.mxu0 %v5948
        %6100 = vmatprep.subr.bf16.mxu0 0
        %6101 = vmatpush1.bf16.msra.mxu0 %v5949
        %6102 = vmatprep.subr.bf16.mxu0 0
        %6103 = vmatpush1.bf16.msra.mxu0 0
        %6104 = vmatprep.subr.bf16.mxu0 0
        %6105 = vmatpush1.bf16.msra.mxu0 0
        %6106 = vmatprep.subr.bf16.mxu0 0
        %6107 = vmatpush1.bf16.msra.mxu0 0
        %6108 = vmatprep.subr.bf16.mxu0 0
        %6109 = vmatpush1.bf16.msra.mxu0 0
        %6110 = vmatprep.subr.bf16.mxu0 0
        %6111 = vmatpush1.bf16.msra.mxu0 0
        %6112 = vmatprep.subr.bf16.mxu0 0
        %6113 = vmatpush1.bf16.msra.mxu0 0
        %6114 = vmatprep.subr.bf16.mxu0 0
        %6115 = vmatpush1.bf16.msra.mxu0 0
        %6116 = vmatprep.subr.bf16.mxu0 0
        %6117 = vmatpush1.bf16.msra.mxu0 0
        %6118 = vmatprep.mubr.bf16.mxu0 0
        %6119 = vmatmul.mubr.bf16.gmra.mrb[0].mxu0 %v5667
        %v6120 = vpop.f32.mrb[0].mxu0
        %v6121 = vadd.f32 %v6073, %v6120
        %v6122 = vpop.f32.mrb[0].mxu0
        %v6123 = vpop.f32.mrb[0].mxu0
        %v6124 = vadd.f32 %v6076, %v6123
        %v6125 = vpop.f32.mrb[0].mxu0
        %6126 = vmatprep.mubr.bf16.mxu0 0
        %6127 = vmatmul.mubr.bf16.gmra.mrb[0].mxu0 %v5668
        %v6128 = vpop.f32.mrb[0].mxu0
        %v6129 = vadd.f32 %v6081, %v6128
        %v6130 = vpop.f32.mrb[0].mxu0
        %v6131 = vpop.f32.mrb[0].mxu0
        %v6132 = vpop.f32.mrb[0].mxu0
        %6133 = vdwg.mxu0
        %v6134 = vadd.f32 %v5631, %v6121
        %v6135 = vadd.f32 %v5634, %v6124
        %v6136 = vadd.f32 %v5639, %v6129
        %v6137 = vmax.f32 %v6134, 0.0
        %v6138 = vmax.f32 %v6135, 0.0
        %v6139 = vmax.f32 %v6136, 0.0
        %6140 = vst [vmem:[#allocation5 + $0x2] sm:$0xff] %v6137
        %6141 = vst [vmem:[#allocation5 + $0xa] sm:$0xf0] %v6138
        %6142 = vst [vmem:[#allocation5 + $0x12] sm:$0xf] %v6139
        %v6143 = vld [vmem:[#allocation5] sm:$0xff]
        %v6144 = vpack.c.bf16 %v6143, %v6143
        %v6145 = vld [vmem:[#allocation5 + $0x1] sm:$0xff]
        %v6146 = vpack.c.bf16 %v6145, %v6145
        %v6147 = vld [vmem:[#allocation5 + $0x2] sm:$0xff]
        %v6148 = vpack.c.bf16 %v6147, %v6147
        %v6149 = vld [vmem:[#allocation5 + $0x3] sm:$0xff]
        %v6150 = vpack.c.bf16 %v6149, %v6149
        %v6151 = vld [vmem:[#allocation5 + $0x4] sm:$0xff]
        %v6152 = vpack.c.bf16 %v6151, %v6151
        %v6153 = vld [vmem:[#allocation19] sm:$0xf]
        %v6154 = vld [vmem:[#allocation19 + $0x4] sm:$0xf]
        %v6155 = vld [vmem:[#allocation19 + $0x8] sm:$0xf]
        %v6156 = vld [vmem:[#allocation19 + $0xc] sm:$0xf]
        %v6157 = vld [vmem:[#allocation19 + $0x10] sm:$0xf]
        %v6158 = vld [vmem:[#allocation19 + $0x14] sm:$0xf]
        %v6159 = vld [vmem:[#allocation19 + $0x18] sm:$0xf]
        %v6160 = vld [vmem:[#allocation19 + $0x1c] sm:$0xf]
        %v6161 = vld [vmem:[#allocation19 + $0x20] sm:$0xf]
        %v6162 = vld [vmem:[#allocation19 + $0x24] sm:$0xf]
        %v6163 = vld [vmem:[#allocation19 + $0x28] sm:$0xf]
        %v6164 = vld [vmem:[#allocation19 + $0x2c] sm:$0xf]
        %v6165 = vld [vmem:[#allocation19 + $0x30] sm:$0xf]
        %v6166 = vld [vmem:[#allocation19 + $0x34] sm:$0xf]
        %v6167 = vld [vmem:[#allocation19 + $0x38] sm:$0xf]
        %v6168 = vld [vmem:[#allocation19 + $0x3c] sm:$0xf]
        %v6169 = vld [vmem:[#allocation19 + $0x40] sm:$0xf]
        %v6170 = vld [vmem:[#allocation19 + $0x44] sm:$0xf]
        %v6171 = vld [vmem:[#allocation19 + $0x48] sm:$0xf]
        %v6172 = vld [vmem:[#allocation19 + $0x4c] sm:$0xf]
        %v6173 = vld [vmem:[#allocation19 + $0x50] sm:$0xf]
        %v6174 = vld [vmem:[#allocation19 + $0x54] sm:$0xf]
        %v6175 = vld [vmem:[#allocation19 + $0x58] sm:$0xf]
        %v6176 = vld [vmem:[#allocation19 + $0x5c] sm:$0xf]
        %v6177 = vld [vmem:[#allocation19 + $0x60] sm:$0xf]
        %v6178 = vld [vmem:[#allocation19 + $0x64] sm:$0xf]
        %v6179 = vld [vmem:[#allocation19 + $0x68] sm:$0xf]
        %v6180 = vld [vmem:[#allocation19 + $0x6c] sm:$0xf]
        %v6181 = vld [vmem:[#allocation19 + $0x70] sm:$0xf]
        %v6182 = vld [vmem:[#allocation19 + $0x74] sm:$0xf]
        %v6183 = vld [vmem:[#allocation19 + $0x78] sm:$0xf]
        %v6184 = vld [vmem:[#allocation19 + $0x7c] sm:$0xf]
        %v6185 = vld [vmem:[#allocation19 + $0x80] sm:$0xf]
        %v6186 = vld [vmem:[#allocation19 + $0x84] sm:$0xf]
        %v6187 = vld [vmem:[#allocation19 + $0x88] sm:$0xf]
        %v6188 = vld [vmem:[#allocation19 + $0x8c] sm:$0xf]
        %v6189 = vld [vmem:[#allocation19 + $0x90] sm:$0xf]
        %v6190 = vld [vmem:[#allocation19 + $0x94] sm:$0xf]
        %v6191 = vld [vmem:[#allocation19 + $0x98] sm:$0xf]
        %v6192 = vld [vmem:[#allocation19 + $0x9c] sm:$0xf]
        %v6193 = vld [vmem:[#allocation19 + $0xa0] sm:$0xf]
        %v6194 = vld [vmem:[#allocation19 + $0xa4] sm:$0xf]
        %v6195 = vld [vmem:[#allocation19 + $0xa8] sm:$0xf]
        %v6196 = vld [vmem:[#allocation19 + $0xac] sm:$0xf]
        %v6197 = vld [vmem:[#allocation19 + $0xb0] sm:$0xf]
        %v6198 = vld [vmem:[#allocation19 + $0xb4] sm:$0xf]
        %v6199 = vld [vmem:[#allocation19 + $0xb8] sm:$0xf]
        %v6200 = vld [vmem:[#allocation19 + $0xbc] sm:$0xf]
        %v6201 = vld [vmem:[#allocation19 + $0xc0] sm:$0xf]
        %v6202 = vld [vmem:[#allocation19 + $0xc4] sm:$0xf]
        %v6203 = vld [vmem:[#allocation19 + $0xc8] sm:$0xf]
        %v6204 = vld [vmem:[#allocation19 + $0xcc] sm:$0xf]
        %v6205 = vld [vmem:[#allocation19 + $0xd0] sm:$0xf]
        %v6206 = vld [vmem:[#allocation19 + $0xd4] sm:$0xf]
        %v6207 = vld [vmem:[#allocation19 + $0xd8] sm:$0xf]
        %v6208 = vld [vmem:[#allocation19 + $0xdc] sm:$0xf]
        %v6209 = vld [vmem:[#allocation19 + $0xe0] sm:$0xf]
        %v6210 = vld [vmem:[#allocation19 + $0xe4] sm:$0xf]
        %v6211 = vld [vmem:[#allocation19 + $0xe8] sm:$0xf]
        %v6212 = vld [vmem:[#allocation19 + $0xec] sm:$0xf]
        %v6213 = vld [vmem:[#allocation19 + $0xf0] sm:$0xf]
        %v6214 = vld [vmem:[#allocation19 + $0xf4] sm:$0xf]
        %v6215 = vld [vmem:[#allocation19 + $0xf8] sm:$0xf]
        %v6216 = vld [vmem:[#allocation19 + $0xfc] sm:$0xf]
        %v6217 = vld [vmem:[#allocation19 + $0x100] sm:$0xf]
        %v6218 = vld [vmem:[#allocation19 + $0x104] sm:$0xf]
        %v6219 = vld [vmem:[#allocation19 + $0x108] sm:$0xf]
        %v6220 = vld [vmem:[#allocation19 + $0x10c] sm:$0xf]
        %v6221 = vld [vmem:[#allocation19 + $0x110] sm:$0xf]
        %v6222 = vld [vmem:[#allocation19 + $0x114] sm:$0xf]
        %v6223 = vld [vmem:[#allocation19 + $0x118] sm:$0xf]
        %v6224 = vld [vmem:[#allocation19 + $0x11c] sm:$0xf]
        %v6225 = vld [vmem:[#allocation19 + $0x120] sm:$0xf]
        %v6226 = vld [vmem:[#allocation19 + $0x124] sm:$0xf]
        %v6227 = vld [vmem:[#allocation19 + $0x128] sm:$0xf]
        %v6228 = vld [vmem:[#allocation19 + $0x12c] sm:$0xf]
        %v6229 = vld [vmem:[#allocation19 + $0x130] sm:$0xf]
        %v6230 = vld [vmem:[#allocation19 + $0x134] sm:$0xf]
        %v6231 = vld [vmem:[#allocation19 + $0x138] sm:$0xf]
        %v6232 = vld [vmem:[#allocation19 + $0x13c] sm:$0xf]
        %v6233 = vld [vmem:[#allocation5 + $0xc] sm:$0xff]
        %v6234 = vpack.c.bf16 %v6233, %v6233
        %v6235 = vld [vmem:[#allocation5 + $0xd] sm:$0xff]
        %v6236 = vpack.c.bf16 %v6235, %v6235
        %v6237 = vld [vmem:[#allocation5 + $0xe] sm:$0xff]
        %v6238 = vpack.c.bf16 %v6237, %v6237
        %v6239 = vld [vmem:[#allocation5 + $0xf] sm:$0xff]
        %v6240 = vpack.c.bf16 %v6239, %v6239
        %v6241 = vld [vmem:[#allocation5 + $0x10] sm:$0xff]
        %v6242 = vpack.c.bf16 %v6241, %v6241
        %s6243 = scalar_lea.vmem [#allocation19], 320
        %v6244 = vld [vmem:[%s6243] sm:$0xf]
        %v6245 = vld [vmem:[%s6243 + $0x4] sm:$0xf]
        %v6246 = vld [vmem:[%s6243 + $0x8] sm:$0xf]
        %v6247 = vld [vmem:[%s6243 + $0xc] sm:$0xf]
        %v6248 = vld [vmem:[%s6243 + $0x10] sm:$0xf]
        %v6249 = vld [vmem:[%s6243 + $0x14] sm:$0xf]
        %v6250 = vld [vmem:[%s6243 + $0x18] sm:$0xf]
        %v6251 = vld [vmem:[%s6243 + $0x1c] sm:$0xf]
        %v6252 = vld [vmem:[%s6243 + $0x20] sm:$0xf]
        %v6253 = vld [vmem:[%s6243 + $0x24] sm:$0xf]
        %v6254 = vld [vmem:[%s6243 + $0x28] sm:$0xf]
        %v6255 = vld [vmem:[%s6243 + $0x2c] sm:$0xf]
        %v6256 = vld [vmem:[%s6243 + $0x30] sm:$0xf]
        %v6257 = vld [vmem:[%s6243 + $0x34] sm:$0xf]
        %v6258 = vld [vmem:[%s6243 + $0x38] sm:$0xf]
        %v6259 = vld [vmem:[%s6243 + $0x3c] sm:$0xf]
        %v6260 = vld [vmem:[%s6243 + $0x40] sm:$0xf]
        %v6261 = vld [vmem:[%s6243 + $0x44] sm:$0xf]
        %v6262 = vld [vmem:[%s6243 + $0x48] sm:$0xf]
        %v6263 = vld [vmem:[%s6243 + $0x4c] sm:$0xf]
        %v6264 = vld [vmem:[%s6243 + $0x50] sm:$0xf]
        %v6265 = vld [vmem:[%s6243 + $0x54] sm:$0xf]
        %v6266 = vld [vmem:[%s6243 + $0x58] sm:$0xf]
        %v6267 = vld [vmem:[%s6243 + $0x5c] sm:$0xf]
        %v6268 = vld [vmem:[%s6243 + $0x60] sm:$0xf]
        %v6269 = vld [vmem:[%s6243 + $0x64] sm:$0xf]
        %v6270 = vld [vmem:[%s6243 + $0x68] sm:$0xf]
        %v6271 = vld [vmem:[%s6243 + $0x6c] sm:$0xf]
        %v6272 = vld [vmem:[%s6243 + $0x70] sm:$0xf]
        %v6273 = vld [vmem:[%s6243 + $0x74] sm:$0xf]
        %v6274 = vld [vmem:[%s6243 + $0x78] sm:$0xf]
        %v6275 = vld [vmem:[%s6243 + $0x7c] sm:$0xf]
        %v6276 = vld [vmem:[%s6243 + $0x80] sm:$0xf]
        %v6277 = vld [vmem:[%s6243 + $0x84] sm:$0xf]
        %v6278 = vld [vmem:[%s6243 + $0x88] sm:$0xf]
        %v6279 = vld [vmem:[%s6243 + $0x8c] sm:$0xf]
        %v6280 = vld [vmem:[%s6243 + $0x90] sm:$0xf]
        %v6281 = vld [vmem:[%s6243 + $0x94] sm:$0xf]
        %v6282 = vld [vmem:[%s6243 + $0x98] sm:$0xf]
        %v6283 = vld [vmem:[%s6243 + $0x9c] sm:$0xf]
        %v6284 = vld [vmem:[%s6243 + $0xa0] sm:$0xf]
        %v6285 = vld [vmem:[%s6243 + $0xa4] sm:$0xf]
        %v6286 = vld [vmem:[%s6243 + $0xa8] sm:$0xf]
        %v6287 = vld [vmem:[%s6243 + $0xac] sm:$0xf]
        %v6288 = vld [vmem:[%s6243 + $0xb0] sm:$0xf]
        %v6289 = vld [vmem:[%s6243 + $0xb4] sm:$0xf]
        %v6290 = vld [vmem:[%s6243 + $0xb8] sm:$0xf]
        %v6291 = vld [vmem:[%s6243 + $0xbc] sm:$0xf]
        %v6292 = vld [vmem:[%s6243 + $0xc0] sm:$0xf]
        %v6293 = vld [vmem:[%s6243 + $0xc4] sm:$0xf]
        %v6294 = vld [vmem:[%s6243 + $0xc8] sm:$0xf]
        %v6295 = vld [vmem:[%s6243 + $0xcc] sm:$0xf]
        %v6296 = vld [vmem:[%s6243 + $0xd0] sm:$0xf]
        %v6297 = vld [vmem:[%s6243 + $0xd4] sm:$0xf]
        %v6298 = vld [vmem:[%s6243 + $0xd8] sm:$0xf]
        %v6299 = vld [vmem:[%s6243 + $0xdc] sm:$0xf]
        %v6300 = vld [vmem:[%s6243 + $0xe0] sm:$0xf]
        %v6301 = vld [vmem:[%s6243 + $0xe4] sm:$0xf]
        %v6302 = vld [vmem:[%s6243 + $0xe8] sm:$0xf]
        %v6303 = vld [vmem:[%s6243 + $0xec] sm:$0xf]
        %v6304 = vld [vmem:[%s6243 + $0xf0] sm:$0xf]
        %v6305 = vld [vmem:[%s6243 + $0xf4] sm:$0xf]
        %v6306 = vld [vmem:[%s6243 + $0xf8] sm:$0xf]
        %v6307 = vld [vmem:[%s6243 + $0xfc] sm:$0xf]
        %v6308 = vld [vmem:[%s6243 + $0x100] sm:$0xf]
        %v6309 = vld [vmem:[%s6243 + $0x104] sm:$0xf]
        %v6310 = vld [vmem:[%s6243 + $0x108] sm:$0xf]
        %v6311 = vld [vmem:[%s6243 + $0x10c] sm:$0xf]
        %v6312 = vld [vmem:[%s6243 + $0x110] sm:$0xf]
        %v6313 = vld [vmem:[%s6243 + $0x114] sm:$0xf]
        %v6314 = vld [vmem:[%s6243 + $0x118] sm:$0xf]
        %v6315 = vld [vmem:[%s6243 + $0x11c] sm:$0xf]
        %v6316 = vld [vmem:[%s6243 + $0x120] sm:$0xf]
        %v6317 = vld [vmem:[%s6243 + $0x124] sm:$0xf]
        %v6318 = vld [vmem:[%s6243 + $0x128] sm:$0xf]
        %v6319 = vld [vmem:[%s6243 + $0x12c] sm:$0xf]
        %v6320 = vld [vmem:[%s6243 + $0x130] sm:$0xf]
        %v6321 = vld [vmem:[%s6243 + $0x134] sm:$0xf]
        %v6322 = vld [vmem:[%s6243 + $0x138] sm:$0xf]
        %v6323 = vld [vmem:[%s6243 + $0x13c] sm:$0xf]
        %v6404 = vunpack.c.l.b16 %v6244
        %v6405 = vunpack.c.l.b16 %v6245
        %v6406 = vunpack.c.l.b16 %v6246
        %v6407 = vunpack.c.l.b16 %v6247
        %v6408 = vunpack.c.l.b16 %v6248
        %v6409 = vunpack.c.l.b16 %v6249
        %v6410 = vunpack.c.l.b16 %v6250
        %v6411 = vunpack.c.l.b16 %v6251
        %v6412 = vunpack.c.l.b16 %v6252
        %v6413 = vunpack.c.l.b16 %v6253
        %v6414 = vunpack.c.l.b16 %v6254
        %v6415 = vunpack.c.l.b16 %v6255
        %v6416 = vunpack.c.l.b16 %v6256
        %v6417 = vunpack.c.l.b16 %v6257
        %v6418 = vunpack.c.l.b16 %v6258
        %v6419 = vunpack.c.l.b16 %v6259
        %v6420 = vunpack.c.l.b16 %v6260
        %v6421 = vunpack.c.l.b16 %v6261
        %v6422 = vunpack.c.l.b16 %v6262
        %v6423 = vunpack.c.l.b16 %v6263
        %v6424 = vunpack.c.l.b16 %v6264
        %v6425 = vunpack.c.l.b16 %v6265
        %v6426 = vunpack.c.l.b16 %v6266
        %v6427 = vunpack.c.l.b16 %v6267
        %v6428 = vunpack.c.l.b16 %v6268
        %v6429 = vunpack.c.l.b16 %v6269
        %v6430 = vunpack.c.l.b16 %v6270
        %v6431 = vunpack.c.l.b16 %v6271
        %v6432 = vunpack.c.l.b16 %v6272
        %v6433 = vunpack.c.l.b16 %v6273
        %v6434 = vunpack.c.l.b16 %v6274
        %v6435 = vunpack.c.l.b16 %v6275
        %v6436 = vunpack.c.l.b16 %v6276
        %v6437 = vunpack.c.l.b16 %v6277
        %v6438 = vunpack.c.l.b16 %v6278
        %v6439 = vunpack.c.l.b16 %v6279
        %v6440 = vunpack.c.l.b16 %v6280
        %v6441 = vunpack.c.l.b16 %v6281
        %v6442 = vunpack.c.l.b16 %v6282
        %v6443 = vunpack.c.l.b16 %v6283
        %v6444 = vunpack.c.l.b16 %v6284
        %v6445 = vunpack.c.l.b16 %v6285
        %v6446 = vunpack.c.l.b16 %v6286
        %v6447 = vunpack.c.l.b16 %v6287
        %v6448 = vunpack.c.l.b16 %v6288
        %v6449 = vunpack.c.l.b16 %v6289
        %v6450 = vunpack.c.l.b16 %v6290
        %v6451 = vunpack.c.l.b16 %v6291
        %v6452 = vunpack.c.l.b16 %v6292
        %v6453 = vunpack.c.l.b16 %v6293
        %v6454 = vunpack.c.l.b16 %v6294
        %v6455 = vunpack.c.l.b16 %v6295
        %v6456 = vunpack.c.l.b16 %v6296
        %v6457 = vunpack.c.l.b16 %v6297
        %v6458 = vunpack.c.l.b16 %v6298
        %v6459 = vunpack.c.l.b16 %v6299
        %v6460 = vunpack.c.l.b16 %v6300
        %v6461 = vunpack.c.l.b16 %v6301
        %v6462 = vunpack.c.l.b16 %v6302
        %v6463 = vunpack.c.l.b16 %v6303
        %v6464 = vunpack.c.l.b16 %v6304
        %v6465 = vunpack.c.l.b16 %v6305
        %v6466 = vunpack.c.l.b16 %v6306
        %v6467 = vunpack.c.l.b16 %v6307
        %v6468 = vunpack.c.l.b16 %v6308
        %v6469 = vunpack.c.l.b16 %v6309
        %v6470 = vunpack.c.l.b16 %v6310
        %v6471 = vunpack.c.l.b16 %v6311
        %v6472 = vunpack.c.l.b16 %v6312
        %v6473 = vunpack.c.l.b16 %v6313
        %v6474 = vunpack.c.l.b16 %v6314
        %v6475 = vunpack.c.l.b16 %v6315
        %v6476 = vunpack.c.l.b16 %v6316
        %v6477 = vunpack.c.l.b16 %v6317
        %v6478 = vunpack.c.l.b16 %v6318
        %v6479 = vunpack.c.l.b16 %v6319
        %v6480 = vunpack.c.l.b16 %v6320
        %v6481 = vunpack.c.l.b16 %v6321
        %v6482 = vunpack.c.l.b16 %v6322
        %v6483 = vunpack.c.l.b16 %v6323
        %v6484 = vpack.c.b16 %v6405, %v6404
        %v6485 = vpack.c.b16 %v6407, %v6406
        %v6486 = vpack.c.b16 %v6409, %v6408
        %v6487 = vpack.c.b16 %v6411, %v6410
        %v6488 = vpack.c.b16 %v6413, %v6412
        %v6489 = vpack.c.b16 %v6415, %v6414
        %v6490 = vpack.c.b16 %v6417, %v6416
        %v6491 = vpack.c.b16 %v6419, %v6418
        %v6492 = vpack.c.b16 %v6421, %v6420
        %v6493 = vpack.c.b16 %v6423, %v6422
        %v6494 = vpack.c.b16 %v6425, %v6424
        %v6495 = vpack.c.b16 %v6427, %v6426
        %v6496 = vpack.c.b16 %v6429, %v6428
        %v6497 = vpack.c.b16 %v6431, %v6430
        %v6498 = vpack.c.b16 %v6433, %v6432
        %v6499 = vpack.c.b16 %v6435, %v6434
        %v6500 = vpack.c.b16 %v6437, %v6436
        %v6501 = vpack.c.b16 %v6439, %v6438
        %v6502 = vpack.c.b16 %v6441, %v6440
        %v6503 = vpack.c.b16 %v6443, %v6442
        %v6504 = vpack.c.b16 %v6445, %v6444
        %v6505 = vpack.c.b16 %v6447, %v6446
        %v6506 = vpack.c.b16 %v6449, %v6448
        %v6507 = vpack.c.b16 %v6451, %v6450
        %v6508 = vpack.c.b16 %v6453, %v6452
        %v6509 = vpack.c.b16 %v6455, %v6454
        %v6510 = vpack.c.b16 %v6457, %v6456
        %v6511 = vpack.c.b16 %v6459, %v6458
        %v6512 = vpack.c.b16 %v6461, %v6460
        %v6513 = vpack.c.b16 %v6463, %v6462
        %v6514 = vpack.c.b16 %v6465, %v6464
        %v6515 = vpack.c.b16 %v6467, %v6466
        %v6516 = vpack.c.b16 %v6469, %v6468
        %v6517 = vpack.c.b16 %v6471, %v6470
        %v6518 = vpack.c.b16 %v6473, %v6472
        %v6519 = vpack.c.b16 %v6475, %v6474
        %v6520 = vpack.c.b16 %v6477, %v6476
        %v6521 = vpack.c.b16 %v6479, %v6478
        %v6522 = vpack.c.b16 %v6481, %v6480
        %v6523 = vpack.c.b16 %v6483, %v6482
        %6564 = vmatprep.subr.bf16.mxu0 0
        %6565 = vmatpush1.bf16.msra.mxu0 %v6484
        %6566 = vmatprep.subr.bf16.mxu0 0
        %6567 = vmatpush1.bf16.msra.mxu0 %v6485
        %6568 = vmatprep.subr.bf16.mxu0 0
        %6569 = vmatpush1.bf16.msra.mxu0 %v6486
        %6570 = vmatprep.subr.bf16.mxu0 0
        %6571 = vmatpush1.bf16.msra.mxu0 %v6487
        %6572 = vmatprep.subr.bf16.mxu0 0
        %6573 = vmatpush1.bf16.msra.mxu0 %v6488
        %6574 = vmatprep.subr.bf16.mxu0 0
        %6575 = vmatpush1.bf16.msra.mxu0 %v6489
        %6576 = vmatprep.subr.bf16.mxu0 0
        %6577 = vmatpush1.bf16.msra.mxu0 %v6490
        %6578 = vmatprep.subr.bf16.mxu0 0
        %6579 = vmatpush1.bf16.msra.mxu0 %v6491
        %6580 = vmatprep.subr.bf16.mxu0 0
        %6581 = vmatpush1.bf16.msra.mxu0 %v6492
        %6582 = vmatprep.subr.bf16.mxu0 0
        %6583 = vmatpush1.bf16.msra.mxu0 %v6493
        %6584 = vmatprep.subr.bf16.mxu0 0
        %6585 = vmatpush1.bf16.msra.mxu0 %v6494
        %6586 = vmatprep.subr.bf16.mxu0 0
        %6587 = vmatpush1.bf16.msra.mxu0 %v6495
        %6588 = vmatprep.subr.bf16.mxu0 0
        %6589 = vmatpush1.bf16.msra.mxu0 %v6496
        %6590 = vmatprep.subr.bf16.mxu0 0
        %6591 = vmatpush1.bf16.msra.mxu0 %v6497
        %6592 = vmatprep.subr.bf16.mxu0 0
        %6593 = vmatpush1.bf16.msra.mxu0 %v6498
        %6594 = vmatprep.subr.bf16.mxu0 0
        %6595 = vmatpush1.bf16.msra.mxu0 %v6499
        %6596 = vmatprep.mubr.bf16.mxu0 %v6236
        %6597 = vmatmul.mubr.bf16.gmra.mrb[0].mxu0 %v6234
        %v6598 = vpop.f32.mrb[0].mxu0
        %v6599 = vadd.f32 0.0, %v6598
        %v6600 = vpop.f32.mrb[0].mxu0
        %v6601 = vpop.f32.mrb[0].mxu0
        %v6602 = vpop.f32.mrb[0].mxu0
        %6603 = vdwg.mxu0
        %6604 = vmatprep.subr.bf16.mxu0 0
        %6605 = vmatpush1.bf16.msra.mxu0 %v6500
        %6606 = vmatprep.subr.bf16.mxu0 0
        %6607 = vmatpush1.bf16.msra.mxu0 %v6501
        %6608 = vmatprep.subr.bf16.mxu0 0
        %6609 = vmatpush1.bf16.msra.mxu0 %v6502
        %6610 = vmatprep.subr.bf16.mxu0 0
        %6611 = vmatpush1.bf16.msra.mxu0 %v6503
        %6612 = vmatprep.subr.bf16.mxu0 0
        %6613 = vmatpush1.bf16.msra.mxu0 %v6504
        %6614 = vmatprep.subr.bf16.mxu0 0
        %6615 = vmatpush1.bf16.msra.mxu0 %v6505
        %6616 = vmatprep.subr.bf16.mxu0 0
        %6617 = vmatpush1.bf16.msra.mxu0 %v6506
        %6618 = vmatprep.subr.bf16.mxu0 0
        %6619 = vmatpush1.bf16.msra.mxu0 %v6507
        %6620 = vmatprep.subr.bf16.mxu0 0
        %6621 = vmatpush1.bf16.msra.mxu0 %v6508
        %6622 = vmatprep.subr.bf16.mxu0 0
        %6623 = vmatpush1.bf16.msra.mxu0 %v6509
        %6624 = vmatprep.subr.bf16.mxu0 0
        %6625 = vmatpush1.bf16.msra.mxu0 %v6510
        %6626 = vmatprep.subr.bf16.mxu0 0
        %6627 = vmatpush1.bf16.msra.mxu0 %v6511
        %6628 = vmatprep.subr.bf16.mxu0 0
        %6629 = vmatpush1.bf16.msra.mxu0 %v6512
        %6630 = vmatprep.subr.bf16.mxu0 0
        %6631 = vmatpush1.bf16.msra.mxu0 %v6513
        %6632 = vmatprep.subr.bf16.mxu0 0
        %6633 = vmatpush1.bf16.msra.mxu0 %v6514
        %6634 = vmatprep.subr.bf16.mxu0 0
        %6635 = vmatpush1.bf16.msra.mxu0 %v6515
        %6636 = vmatprep.mubr.bf16.mxu0 %v6240
        %6637 = vmatmul.mubr.bf16.gmra.mrb[0].mxu0 %v6238
        %v6638 = vpop.f32.mrb[0].mxu0
        %v6639 = vadd.f32 %v6599, %v6638
        %v6640 = vpop.f32.mrb[0].mxu0
        %v6641 = vpop.f32.mrb[0].mxu0
        %v6642 = vpop.f32.mrb[0].mxu0
        %6643 = vdwg.mxu0
        %6644 = vmatprep.subr.bf16.mxu0 0
        %6645 = vmatpush1.bf16.msra.mxu0 %v6516
        %6646 = vmatprep.subr.bf16.mxu0 0
        %6647 = vmatpush1.bf16.msra.mxu0 %v6517
        %6648 = vmatprep.subr.bf16.mxu0 0
        %6649 = vmatpush1.bf16.msra.mxu0 %v6518
        %6650 = vmatprep.subr.bf16.mxu0 0
        %6651 = vmatpush1.bf16.msra.mxu0 %v6519
        %6652 = vmatprep.subr.bf16.mxu0 0
        %6653 = vmatpush1.bf16.msra.mxu0 %v6520
        %6654 = vmatprep.subr.bf16.mxu0 0
        %6655 = vmatpush1.bf16.msra.mxu0 %v6521
        %6656 = vmatprep.subr.bf16.mxu0 0
        %6657 = vmatpush1.bf16.msra.mxu0 %v6522
        %6658 = vmatprep.subr.bf16.mxu0 0
        %6659 = vmatpush1.bf16.msra.mxu0 %v6523
        %6660 = vmatprep.subr.bf16.mxu0 0
        %6661 = vmatpush1.bf16.msra.mxu0 0
        %6662 = vmatprep.subr.bf16.mxu0 0
        %6663 = vmatpush1.bf16.msra.mxu0 0
        %6664 = vmatprep.subr.bf16.mxu0 0
        %6665 = vmatpush1.bf16.msra.mxu0 0
        %6666 = vmatprep.subr.bf16.mxu0 0
        %6667 = vmatpush1.bf16.msra.mxu0 0
        %6668 = vmatprep.subr.bf16.mxu0 0
        %6669 = vmatpush1.bf16.msra.mxu0 0
        %6670 = vmatprep.subr.bf16.mxu0 0
        %6671 = vmatpush1.bf16.msra.mxu0 0
        %6672 = vmatprep.subr.bf16.mxu0 0
        %6673 = vmatpush1.bf16.msra.mxu0 0
        %6674 = vmatprep.subr.bf16.mxu0 0
        %6675 = vmatpush1.bf16.msra.mxu0 0
        %6676 = vmatprep.mubr.bf16.mxu0 0
        %6677 = vmatmul.mubr.bf16.gmra.mrb[0].mxu0 %v6242
        %v6678 = vpop.f32.mrb[0].mxu0
        %v6679 = vadd.f32 %v6639, %v6678
        %v6680 = vpop.f32.mrb[0].mxu0
        %v6681 = vpop.f32.mrb[0].mxu0
        %v6682 = vpop.f32.mrb[0].mxu0
        %6683 = vdwg.mxu0
        %v6764 = vunpack.c.l.b16 %v6153
        %v6765 = vunpack.c.l.b16 %v6154
        %v6766 = vunpack.c.l.b16 %v6155
        %v6767 = vunpack.c.l.b16 %v6156
        %v6768 = vunpack.c.l.b16 %v6157
        %v6769 = vunpack.c.l.b16 %v6158
        %v6770 = vunpack.c.l.b16 %v6159
        %v6771 = vunpack.c.l.b16 %v6160
        %v6772 = vunpack.c.l.b16 %v6161
        %v6773 = vunpack.c.l.b16 %v6162
        %v6774 = vunpack.c.l.b16 %v6163
        %v6775 = vunpack.c.l.b16 %v6164
        %v6776 = vunpack.c.l.b16 %v6165
        %v6777 = vunpack.c.l.b16 %v6166
        %v6778 = vunpack.c.l.b16 %v6167
        %v6779 = vunpack.c.l.b16 %v6168
        %v6780 = vunpack.c.l.b16 %v6169
        %v6781 = vunpack.c.l.b16 %v6170
        %v6782 = vunpack.c.l.b16 %v6171
        %v6783 = vunpack.c.l.b16 %v6172
        %v6784 = vunpack.c.l.b16 %v6173
        %v6785 = vunpack.c.l.b16 %v6174
        %v6786 = vunpack.c.l.b16 %v6175
        %v6787 = vunpack.c.l.b16 %v6176
        %v6788 = vunpack.c.l.b16 %v6177
        %v6789 = vunpack.c.l.b16 %v6178
        %v6790 = vunpack.c.l.b16 %v6179
        %v6791 = vunpack.c.l.b16 %v6180
        %v6792 = vunpack.c.l.b16 %v6181
        %v6793 = vunpack.c.l.b16 %v6182
        %v6794 = vunpack.c.l.b16 %v6183
        %v6795 = vunpack.c.l.b16 %v6184
        %v6796 = vunpack.c.l.b16 %v6185
        %v6797 = vunpack.c.l.b16 %v6186
        %v6798 = vunpack.c.l.b16 %v6187
        %v6799 = vunpack.c.l.b16 %v6188
        %v6800 = vunpack.c.l.b16 %v6189
        %v6801 = vunpack.c.l.b16 %v6190
        %v6802 = vunpack.c.l.b16 %v6191
        %v6803 = vunpack.c.l.b16 %v6192
        %v6804 = vunpack.c.l.b16 %v6193
        %v6805 = vunpack.c.l.b16 %v6194
        %v6806 = vunpack.c.l.b16 %v6195
        %v6807 = vunpack.c.l.b16 %v6196
        %v6808 = vunpack.c.l.b16 %v6197
        %v6809 = vunpack.c.l.b16 %v6198
        %v6810 = vunpack.c.l.b16 %v6199
        %v6811 = vunpack.c.l.b16 %v6200
        %v6812 = vunpack.c.l.b16 %v6201
        %v6813 = vunpack.c.l.b16 %v6202
        %v6814 = vunpack.c.l.b16 %v6203
        %v6815 = vunpack.c.l.b16 %v6204
        %v6816 = vunpack.c.l.b16 %v6205
        %v6817 = vunpack.c.l.b16 %v6206
        %v6818 = vunpack.c.l.b16 %v6207
        %v6819 = vunpack.c.l.b16 %v6208
        %v6820 = vunpack.c.l.b16 %v6209
        %v6821 = vunpack.c.l.b16 %v6210
        %v6822 = vunpack.c.l.b16 %v6211
        %v6823 = vunpack.c.l.b16 %v6212
        %v6824 = vunpack.c.l.b16 %v6213
        %v6825 = vunpack.c.l.b16 %v6214
        %v6826 = vunpack.c.l.b16 %v6215
        %v6827 = vunpack.c.l.b16 %v6216
        %v6828 = vunpack.c.l.b16 %v6217
        %v6829 = vunpack.c.l.b16 %v6218
        %v6830 = vunpack.c.l.b16 %v6219
        %v6831 = vunpack.c.l.b16 %v6220
        %v6832 = vunpack.c.l.b16 %v6221
        %v6833 = vunpack.c.l.b16 %v6222
        %v6834 = vunpack.c.l.b16 %v6223
        %v6835 = vunpack.c.l.b16 %v6224
        %v6836 = vunpack.c.l.b16 %v6225
        %v6837 = vunpack.c.l.b16 %v6226
        %v6838 = vunpack.c.l.b16 %v6227
        %v6839 = vunpack.c.l.b16 %v6228
        %v6840 = vunpack.c.l.b16 %v6229
        %v6841 = vunpack.c.l.b16 %v6230
        %v6842 = vunpack.c.l.b16 %v6231
        %v6843 = vunpack.c.l.b16 %v6232
        %v6844 = vpack.c.b16 %v6765, %v6764
        %v6845 = vpack.c.b16 %v6767, %v6766
        %v6846 = vpack.c.b16 %v6769, %v6768
        %v6847 = vpack.c.b16 %v6771, %v6770
        %v6848 = vpack.c.b16 %v6773, %v6772
        %v6849 = vpack.c.b16 %v6775, %v6774
        %v6850 = vpack.c.b16 %v6777, %v6776
        %v6851 = vpack.c.b16 %v6779, %v6778
        %v6852 = vpack.c.b16 %v6781, %v6780
        %v6853 = vpack.c.b16 %v6783, %v6782
        %v6854 = vpack.c.b16 %v6785, %v6784
        %v6855 = vpack.c.b16 %v6787, %v6786
        %v6856 = vpack.c.b16 %v6789, %v6788
        %v6857 = vpack.c.b16 %v6791, %v6790
        %v6858 = vpack.c.b16 %v6793, %v6792
        %v6859 = vpack.c.b16 %v6795, %v6794
        %v6860 = vpack.c.b16 %v6797, %v6796
        %v6861 = vpack.c.b16 %v6799, %v6798
        %v6862 = vpack.c.b16 %v6801, %v6800
        %v6863 = vpack.c.b16 %v6803, %v6802
        %v6864 = vpack.c.b16 %v6805, %v6804
        %v6865 = vpack.c.b16 %v6807, %v6806
        %v6866 = vpack.c.b16 %v6809, %v6808
        %v6867 = vpack.c.b16 %v6811, %v6810
        %v6868 = vpack.c.b16 %v6813, %v6812
        %v6869 = vpack.c.b16 %v6815, %v6814
        %v6870 = vpack.c.b16 %v6817, %v6816
        %v6871 = vpack.c.b16 %v6819, %v6818
        %v6872 = vpack.c.b16 %v6821, %v6820
        %v6873 = vpack.c.b16 %v6823, %v6822
        %v6874 = vpack.c.b16 %v6825, %v6824
        %v6875 = vpack.c.b16 %v6827, %v6826
        %v6876 = vpack.c.b16 %v6829, %v6828
        %v6877 = vpack.c.b16 %v6831, %v6830
        %v6878 = vpack.c.b16 %v6833, %v6832
        %v6879 = vpack.c.b16 %v6835, %v6834
        %v6880 = vpack.c.b16 %v6837, %v6836
        %v6881 = vpack.c.b16 %v6839, %v6838
        %v6882 = vpack.c.b16 %v6841, %v6840
        %v6883 = vpack.c.b16 %v6843, %v6842
        %6924 = vmatprep.subr.bf16.mxu0 0
        %6925 = vmatpush1.bf16.msra.mxu0 %v6844
        %6926 = vmatprep.subr.bf16.mxu0 0
        %6927 = vmatpush1.bf16.msra.mxu0 %v6845
        %6928 = vmatprep.subr.bf16.mxu0 0
        %6929 = vmatpush1.bf16.msra.mxu0 %v6846
        %6930 = vmatprep.subr.bf16.mxu0 0
        %6931 = vmatpush1.bf16.msra.mxu0 %v6847
        %6932 = vmatprep.subr.bf16.mxu0 0
        %6933 = vmatpush1.bf16.msra.mxu0 %v6848
        %6934 = vmatprep.subr.bf16.mxu0 0
        %6935 = vmatpush1.bf16.msra.mxu0 %v6849
        %6936 = vmatprep.subr.bf16.mxu0 0
        %6937 = vmatpush1.bf16.msra.mxu0 %v6850
        %6938 = vmatprep.subr.bf16.mxu0 0
        %6939 = vmatpush1.bf16.msra.mxu0 %v6851
        %6940 = vmatprep.subr.bf16.mxu0 0
        %6941 = vmatpush1.bf16.msra.mxu0 %v6852
        %6942 = vmatprep.subr.bf16.mxu0 0
        %6943 = vmatpush1.bf16.msra.mxu0 %v6853
        %6944 = vmatprep.subr.bf16.mxu0 0
        %6945 = vmatpush1.bf16.msra.mxu0 %v6854
        %6946 = vmatprep.subr.bf16.mxu0 0
        %6947 = vmatpush1.bf16.msra.mxu0 %v6855
        %6948 = vmatprep.subr.bf16.mxu0 0
        %6949 = vmatpush1.bf16.msra.mxu0 %v6856
        %6950 = vmatprep.subr.bf16.mxu0 0
        %6951 = vmatpush1.bf16.msra.mxu0 %v6857
        %6952 = vmatprep.subr.bf16.mxu0 0
        %6953 = vmatpush1.bf16.msra.mxu0 %v6858
        %6954 = vmatprep.subr.bf16.mxu0 0
        %6955 = vmatpush1.bf16.msra.mxu0 %v6859
        %6956 = vmatprep.mubr.bf16.mxu0 %v6146
        %6957 = vmatmul.mubr.bf16.gmra.mrb[0].mxu0 %v6144
        %v6958 = vpop.f32.mrb[0].mxu0
        %v6959 = vadd.f32 %v6679, %v6958
        %v6960 = vpop.f32.mrb[0].mxu0
        %v6961 = vpop.f32.mrb[0].mxu0
        %v6962 = vpop.f32.mrb[0].mxu0
        %6963 = vdwg.mxu0
        %6964 = vmatprep.subr.bf16.mxu0 0
        %6965 = vmatpush1.bf16.msra.mxu0 %v6860
        %6966 = vmatprep.subr.bf16.mxu0 0
        %6967 = vmatpush1.bf16.msra.mxu0 %v6861
        %6968 = vmatprep.subr.bf16.mxu0 0
        %6969 = vmatpush1.bf16.msra.mxu0 %v6862
        %6970 = vmatprep.subr.bf16.mxu0 0
        %6971 = vmatpush1.bf16.msra.mxu0 %v6863
        %6972 = vmatprep.subr.bf16.mxu0 0
        %6973 = vmatpush1.bf16.msra.mxu0 %v6864
        %6974 = vmatprep.subr.bf16.mxu0 0
        %6975 = vmatpush1.bf16.msra.mxu0 %v6865
        %6976 = vmatprep.subr.bf16.mxu0 0
        %6977 = vmatpush1.bf16.msra.mxu0 %v6866
        %6978 = vmatprep.subr.bf16.mxu0 0
        %6979 = vmatpush1.bf16.msra.mxu0 %v6867
        %6980 = vmatprep.subr.bf16.mxu0 0
        %6981 = vmatpush1.bf16.msra.mxu0 %v6868
        %6982 = vmatprep.subr.bf16.mxu0 0
        %6983 = vmatpush1.bf16.msra.mxu0 %v6869
        %6984 = vmatprep.subr.bf16.mxu0 0
        %6985 = vmatpush1.bf16.msra.mxu0 %v6870
        %6986 = vmatprep.subr.bf16.mxu0 0
        %6987 = vmatpush1.bf16.msra.mxu0 %v6871
        %6988 = vmatprep.subr.bf16.mxu0 0
        %6989 = vmatpush1.bf16.msra.mxu0 %v6872
        %6990 = vmatprep.subr.bf16.mxu0 0
        %6991 = vmatpush1.bf16.msra.mxu0 %v6873
        %6992 = vmatprep.subr.bf16.mxu0 0
        %6993 = vmatpush1.bf16.msra.mxu0 %v6874
        %6994 = vmatprep.subr.bf16.mxu0 0
        %6995 = vmatpush1.bf16.msra.mxu0 %v6875
        %6996 = vmatprep.mubr.bf16.mxu0 %v6150
        %6997 = vmatmul.mubr.bf16.gmra.mrb[0].mxu0 %v6148
        %v6998 = vpop.f32.mrb[0].mxu0
        %v6999 = vadd.f32 %v6959, %v6998
        %v7000 = vpop.f32.mrb[0].mxu0
        %v7001 = vpop.f32.mrb[0].mxu0
        %v7002 = vpop.f32.mrb[0].mxu0
        %7003 = vdwg.mxu0
        %7004 = vmatprep.subr.bf16.mxu0 0
        %7005 = vmatpush1.bf16.msra.mxu0 %v6876
        %7006 = vmatprep.subr.bf16.mxu0 0
        %7007 = vmatpush1.bf16.msra.mxu0 %v6877
        %7008 = vmatprep.subr.bf16.mxu0 0
        %7009 = vmatpush1.bf16.msra.mxu0 %v6878
        %7010 = vmatprep.subr.bf16.mxu0 0
        %7011 = vmatpush1.bf16.msra.mxu0 %v6879
        %7012 = vmatprep.subr.bf16.mxu0 0
        %7013 = vmatpush1.bf16.msra.mxu0 %v6880
        %7014 = vmatprep.subr.bf16.mxu0 0
        %7015 = vmatpush1.bf16.msra.mxu0 %v6881
        %7016 = vmatprep.subr.bf16.mxu0 0
        %7017 = vmatpush1.bf16.msra.mxu0 %v6882
        %7018 = vmatprep.subr.bf16.mxu0 0
        %7019 = vmatpush1.bf16.msra.mxu0 %v6883
        %7020 = vmatprep.subr.bf16.mxu0 0
        %7021 = vmatpush1.bf16.msra.mxu0 0
        %7022 = vmatprep.subr.bf16.mxu0 0
        %7023 = vmatpush1.bf16.msra.mxu0 0
        %7024 = vmatprep.subr.bf16.mxu0 0
        %7025 = vmatpush1.bf16.msra.mxu0 0
        %7026 = vmatprep.subr.bf16.mxu0 0
        %7027 = vmatpush1.bf16.msra.mxu0 0
        %7028 = vmatprep.subr.bf16.mxu0 0
        %7029 = vmatpush1.bf16.msra.mxu0 0
        %7030 = vmatprep.subr.bf16.mxu0 0
        %7031 = vmatpush1.bf16.msra.mxu0 0
        %7032 = vmatprep.subr.bf16.mxu0 0
        %7033 = vmatpush1.bf16.msra.mxu0 0
        %7034 = vmatprep.subr.bf16.mxu0 0
        %7035 = vmatpush1.bf16.msra.mxu0 0
        %7036 = vmatprep.mubr.bf16.mxu0 0
        %7037 = vmatmul.mubr.bf16.gmra.mrb[0].mxu0 %v6152
        %v7038 = vpop.f32.mrb[0].mxu0
        %v7039 = vadd.f32 %v6999, %v7038
        %v7040 = vpop.f32.mrb[0].mxu0
        %v7041 = vpop.f32.mrb[0].mxu0
        %v7042 = vpop.f32.mrb[0].mxu0
        %7043 = vdwg.mxu0
        %v7044 = vmax.f32 %v7039, 0.0
        %7045 = vst [vmem:[#allocation6 + $0x4] sm:$0xff] %v7044
        %v7046 = vld [vmem:[#allocation6] sm:$0xff]
        %v7047 = vld [vmem:[#allocation6 + $0x8] sm:$0xf]
        %v7048 = vpack.c.bf16 %v7047, %v7046
        %v7049 = vld [vmem:[#allocation6 + $0x1] sm:$0xff]
        %v7050 = vld [vmem:[#allocation6 + $0x9] sm:$0xf]
        %v7051 = vpack.c.bf16 %v7050, %v7049
        %v7052 = vld [vmem:[#allocation6 + $0x2] sm:$0xff]
        %v7053 = vld [vmem:[#allocation6 + $0xa] sm:$0xf]
        %v7054 = vpack.c.bf16 %v7053, %v7052
        %v7055 = vld [vmem:[#allocation6 + $0x3] sm:$0xff]
        %v7056 = vld [vmem:[#allocation6 + $0xb] sm:$0xf]
        %v7057 = vpack.c.bf16 %v7056, %v7055
        %v7058 = vld [vmem:[#allocation6 + $0x4] sm:$0xff]
        %v7059 = vld [vmem:[#allocation6 + $0xc] sm:$0xf]
        %v7060 = vpack.c.bf16 %v7059, %v7058
        %v7061 = vld [vmem:[%s9] sm:$0xf]
        %v7062 = vld [vmem:[%s9 + $0x4] sm:$0xf]
        %v7063 = vld [vmem:[%s9 + $0x8] sm:$0xf]
        %v7064 = vld [vmem:[%s9 + $0xc] sm:$0xf]
        %v7065 = vld [vmem:[%s9 + $0x10] sm:$0xf]
        %v7066 = vld [vmem:[%s9 + $0x14] sm:$0xf]
        %v7067 = vld [vmem:[%s9 + $0x18] sm:$0xf]
        %v7068 = vld [vmem:[%s9 + $0x1c] sm:$0xf]
        %v7069 = vld [vmem:[%s9 + $0x20] sm:$0xf]
        %v7070 = vld [vmem:[%s9 + $0x24] sm:$0xf]
        %v7071 = vld [vmem:[%s9 + $0x28] sm:$0xf]
        %v7072 = vld [vmem:[%s9 + $0x2c] sm:$0xf]
        %v7073 = vld [vmem:[%s9 + $0x30] sm:$0xf]
        %v7074 = vld [vmem:[%s9 + $0x34] sm:$0xf]
        %v7075 = vld [vmem:[%s9 + $0x38] sm:$0xf]
        %v7076 = vld [vmem:[%s9 + $0x3c] sm:$0xf]
        %v7077 = vld [vmem:[%s9 + $0x40] sm:$0xf]
        %v7078 = vld [vmem:[%s9 + $0x44] sm:$0xf]
        %v7079 = vld [vmem:[%s9 + $0x48] sm:$0xf]
        %v7080 = vld [vmem:[%s9 + $0x4c] sm:$0xf]
        %v7081 = vld [vmem:[%s9 + $0x50] sm:$0xf]
        %v7082 = vld [vmem:[%s9 + $0x54] sm:$0xf]
        %v7083 = vld [vmem:[%s9 + $0x58] sm:$0xf]
        %v7084 = vld [vmem:[%s9 + $0x5c] sm:$0xf]
        %v7085 = vld [vmem:[%s9 + $0x60] sm:$0xf]
        %v7086 = vld [vmem:[%s9 + $0x64] sm:$0xf]
        %v7087 = vld [vmem:[%s9 + $0x68] sm:$0xf]
        %v7088 = vld [vmem:[%s9 + $0x6c] sm:$0xf]
        %v7089 = vld [vmem:[%s9 + $0x70] sm:$0xf]
        %v7090 = vld [vmem:[%s9 + $0x74] sm:$0xf]
        %v7091 = vld [vmem:[%s9 + $0x78] sm:$0xf]
        %v7092 = vld [vmem:[%s9 + $0x7c] sm:$0xf]
        %v7093 = vld [vmem:[%s9 + $0x80] sm:$0xf]
        %v7094 = vld [vmem:[%s9 + $0x84] sm:$0xf]
        %v7095 = vld [vmem:[%s9 + $0x88] sm:$0xf]
        %v7096 = vld [vmem:[%s9 + $0x8c] sm:$0xf]
        %v7097 = vld [vmem:[%s9 + $0x90] sm:$0xf]
        %v7098 = vld [vmem:[%s9 + $0x94] sm:$0xf]
        %v7099 = vld [vmem:[%s9 + $0x98] sm:$0xf]
        %v7100 = vld [vmem:[%s9 + $0x9c] sm:$0xf]
        %v7101 = vld [vmem:[%s9 + $0xa0] sm:$0xf]
        %v7102 = vld [vmem:[%s9 + $0xa4] sm:$0xf]
        %v7103 = vld [vmem:[%s9 + $0xa8] sm:$0xf]
        %v7104 = vld [vmem:[%s9 + $0xac] sm:$0xf]
        %v7105 = vld [vmem:[%s9 + $0xb0] sm:$0xf]
        %v7106 = vld [vmem:[%s9 + $0xb4] sm:$0xf]
        %v7107 = vld [vmem:[%s9 + $0xb8] sm:$0xf]
        %v7108 = vld [vmem:[%s9 + $0xbc] sm:$0xf]
        %v7109 = vld [vmem:[%s9 + $0xc0] sm:$0xf]
        %v7110 = vld [vmem:[%s9 + $0xc4] sm:$0xf]
        %v7111 = vld [vmem:[%s9 + $0xc8] sm:$0xf]
        %v7112 = vld [vmem:[%s9 + $0xcc] sm:$0xf]
        %v7113 = vld [vmem:[%s9 + $0xd0] sm:$0xf]
        %v7114 = vld [vmem:[%s9 + $0xd4] sm:$0xf]
        %v7115 = vld [vmem:[%s9 + $0xd8] sm:$0xf]
        %v7116 = vld [vmem:[%s9 + $0xdc] sm:$0xf]
        %v7117 = vld [vmem:[%s9 + $0xe0] sm:$0xf]
        %v7118 = vld [vmem:[%s9 + $0xe4] sm:$0xf]
        %v7119 = vld [vmem:[%s9 + $0xe8] sm:$0xf]
        %v7120 = vld [vmem:[%s9 + $0xec] sm:$0xf]
        %v7121 = vld [vmem:[%s9 + $0xf0] sm:$0xf]
        %v7122 = vld [vmem:[%s9 + $0xf4] sm:$0xf]
        %v7123 = vld [vmem:[%s9 + $0xf8] sm:$0xf]
        %v7124 = vld [vmem:[%s9 + $0xfc] sm:$0xf]
        %v7125 = vld [vmem:[%s9 + $0x100] sm:$0xf]
        %v7126 = vld [vmem:[%s9 + $0x104] sm:$0xf]
        %v7127 = vld [vmem:[%s9 + $0x108] sm:$0xf]
        %v7128 = vld [vmem:[%s9 + $0x10c] sm:$0xf]
        %v7129 = vld [vmem:[%s9 + $0x110] sm:$0xf]
        %v7130 = vld [vmem:[%s9 + $0x114] sm:$0xf]
        %v7131 = vld [vmem:[%s9 + $0x118] sm:$0xf]
        %v7132 = vld [vmem:[%s9 + $0x11c] sm:$0xf]
        %v7133 = vld [vmem:[%s9 + $0x120] sm:$0xf]
        %v7134 = vld [vmem:[%s9 + $0x124] sm:$0xf]
        %v7135 = vld [vmem:[%s9 + $0x128] sm:$0xf]
        %v7136 = vld [vmem:[%s9 + $0x12c] sm:$0xf]
        %v7137 = vld [vmem:[%s9 + $0x130] sm:$0xf]
        %v7138 = vld [vmem:[%s9 + $0x134] sm:$0xf]
        %v7139 = vld [vmem:[%s9 + $0x138] sm:$0xf]
        %v7140 = vld [vmem:[%s9 + $0x13c] sm:$0xf]
        %v7221 = vunpack.c.l.b16 %v7061
        %v7222 = vunpack.c.l.b16 %v7062
        %v7223 = vunpack.c.l.b16 %v7063
        %v7224 = vunpack.c.l.b16 %v7064
        %v7225 = vunpack.c.l.b16 %v7065
        %v7226 = vunpack.c.l.b16 %v7066
        %v7227 = vunpack.c.l.b16 %v7067
        %v7228 = vunpack.c.l.b16 %v7068
        %v7229 = vunpack.c.l.b16 %v7069
        %v7230 = vunpack.c.l.b16 %v7070
        %v7231 = vunpack.c.l.b16 %v7071
        %v7232 = vunpack.c.l.b16 %v7072
        %v7233 = vunpack.c.l.b16 %v7073
        %v7234 = vunpack.c.l.b16 %v7074
        %v7235 = vunpack.c.l.b16 %v7075
        %v7236 = vunpack.c.l.b16 %v7076
        %v7237 = vunpack.c.l.b16 %v7077
        %v7238 = vunpack.c.l.b16 %v7078
        %v7239 = vunpack.c.l.b16 %v7079
        %v7240 = vunpack.c.l.b16 %v7080
        %v7241 = vunpack.c.l.b16 %v7081
        %v7242 = vunpack.c.l.b16 %v7082
        %v7243 = vunpack.c.l.b16 %v7083
        %v7244 = vunpack.c.l.b16 %v7084
        %v7245 = vunpack.c.l.b16 %v7085
        %v7246 = vunpack.c.l.b16 %v7086
        %v7247 = vunpack.c.l.b16 %v7087
        %v7248 = vunpack.c.l.b16 %v7088
        %v7249 = vunpack.c.l.b16 %v7089
        %v7250 = vunpack.c.l.b16 %v7090
        %v7251 = vunpack.c.l.b16 %v7091
        %v7252 = vunpack.c.l.b16 %v7092
        %v7253 = vunpack.c.l.b16 %v7093
        %v7254 = vunpack.c.l.b16 %v7094
        %v7255 = vunpack.c.l.b16 %v7095
        %v7256 = vunpack.c.l.b16 %v7096
        %v7257 = vunpack.c.l.b16 %v7097
        %v7258 = vunpack.c.l.b16 %v7098
        %v7259 = vunpack.c.l.b16 %v7099
        %v7260 = vunpack.c.l.b16 %v7100
        %v7261 = vunpack.c.l.b16 %v7101
        %v7262 = vunpack.c.l.b16 %v7102
        %v7263 = vunpack.c.l.b16 %v7103
        %v7264 = vunpack.c.l.b16 %v7104
        %v7265 = vunpack.c.l.b16 %v7105
        %v7266 = vunpack.c.l.b16 %v7106
        %v7267 = vunpack.c.l.b16 %v7107
        %v7268 = vunpack.c.l.b16 %v7108
        %v7269 = vunpack.c.l.b16 %v7109
        %v7270 = vunpack.c.l.b16 %v7110
        %v7271 = vunpack.c.l.b16 %v7111
        %v7272 = vunpack.c.l.b16 %v7112
        %v7273 = vunpack.c.l.b16 %v7113
        %v7274 = vunpack.c.l.b16 %v7114
        %v7275 = vunpack.c.l.b16 %v7115
        %v7276 = vunpack.c.l.b16 %v7116
        %v7277 = vunpack.c.l.b16 %v7117
        %v7278 = vunpack.c.l.b16 %v7118
        %v7279 = vunpack.c.l.b16 %v7119
        %v7280 = vunpack.c.l.b16 %v7120
        %v7281 = vunpack.c.l.b16 %v7121
        %v7282 = vunpack.c.l.b16 %v7122
        %v7283 = vunpack.c.l.b16 %v7123
        %v7284 = vunpack.c.l.b16 %v7124
        %v7285 = vunpack.c.l.b16 %v7125
        %v7286 = vunpack.c.l.b16 %v7126
        %v7287 = vunpack.c.l.b16 %v7127
        %v7288 = vunpack.c.l.b16 %v7128
        %v7289 = vunpack.c.l.b16 %v7129
        %v7290 = vunpack.c.l.b16 %v7130
        %v7291 = vunpack.c.l.b16 %v7131
        %v7292 = vunpack.c.l.b16 %v7132
        %v7293 = vunpack.c.l.b16 %v7133
        %v7294 = vunpack.c.l.b16 %v7134
        %v7295 = vunpack.c.l.b16 %v7135
        %v7296 = vunpack.c.l.b16 %v7136
        %v7297 = vunpack.c.l.b16 %v7137
        %v7298 = vunpack.c.l.b16 %v7138
        %v7299 = vunpack.c.l.b16 %v7139
        %v7300 = vunpack.c.l.b16 %v7140
        %v7301 = vpack.c.b16 %v7222, %v7221
        %v7302 = vpack.c.b16 %v7224, %v7223
        %v7303 = vpack.c.b16 %v7226, %v7225
        %v7304 = vpack.c.b16 %v7228, %v7227
        %v7305 = vpack.c.b16 %v7230, %v7229
        %v7306 = vpack.c.b16 %v7232, %v7231
        %v7307 = vpack.c.b16 %v7234, %v7233
        %v7308 = vpack.c.b16 %v7236, %v7235
        %v7309 = vpack.c.b16 %v7238, %v7237
        %v7310 = vpack.c.b16 %v7240, %v7239
        %v7311 = vpack.c.b16 %v7242, %v7241
        %v7312 = vpack.c.b16 %v7244, %v7243
        %v7313 = vpack.c.b16 %v7246, %v7245
        %v7314 = vpack.c.b16 %v7248, %v7247
        %v7315 = vpack.c.b16 %v7250, %v7249
        %v7316 = vpack.c.b16 %v7252, %v7251
        %v7317 = vpack.c.b16 %v7254, %v7253
        %v7318 = vpack.c.b16 %v7256, %v7255
        %v7319 = vpack.c.b16 %v7258, %v7257
        %v7320 = vpack.c.b16 %v7260, %v7259
        %v7321 = vpack.c.b16 %v7262, %v7261
        %v7322 = vpack.c.b16 %v7264, %v7263
        %v7323 = vpack.c.b16 %v7266, %v7265
        %v7324 = vpack.c.b16 %v7268, %v7267
        %v7325 = vpack.c.b16 %v7270, %v7269
        %v7326 = vpack.c.b16 %v7272, %v7271
        %v7327 = vpack.c.b16 %v7274, %v7273
        %v7328 = vpack.c.b16 %v7276, %v7275
        %v7329 = vpack.c.b16 %v7278, %v7277
        %v7330 = vpack.c.b16 %v7280, %v7279
        %v7331 = vpack.c.b16 %v7282, %v7281
        %v7332 = vpack.c.b16 %v7284, %v7283
        %v7333 = vpack.c.b16 %v7286, %v7285
        %v7334 = vpack.c.b16 %v7288, %v7287
        %v7335 = vpack.c.b16 %v7290, %v7289
        %v7336 = vpack.c.b16 %v7292, %v7291
        %v7337 = vpack.c.b16 %v7294, %v7293
        %v7338 = vpack.c.b16 %v7296, %v7295
        %v7339 = vpack.c.b16 %v7298, %v7297
        %v7340 = vpack.c.b16 %v7300, %v7299
        %7381 = vmatprep.subr.bf16.mxu0 0
        %7382 = vmatpush1.bf16.msra.mxu0 %v7301
        %7383 = vmatprep.subr.bf16.mxu0 0
        %7384 = vmatpush1.bf16.msra.mxu0 %v7302
        %7385 = vmatprep.subr.bf16.mxu0 0
        %7386 = vmatpush1.bf16.msra.mxu0 %v7303
        %7387 = vmatprep.subr.bf16.mxu0 0
        %7388 = vmatpush1.bf16.msra.mxu0 %v7304
        %7389 = vmatprep.subr.bf16.mxu0 0
        %7390 = vmatpush1.bf16.msra.mxu0 %v7305
        %7391 = vmatprep.subr.bf16.mxu0 0
        %7392 = vmatpush1.bf16.msra.mxu0 %v7306
        %7393 = vmatprep.subr.bf16.mxu0 0
        %7394 = vmatpush1.bf16.msra.mxu0 %v7307
        %7395 = vmatprep.subr.bf16.mxu0 0
        %7396 = vmatpush1.bf16.msra.mxu0 %v7308
        %7397 = vmatprep.subr.bf16.mxu0 0
        %7398 = vmatpush1.bf16.msra.mxu0 %v7309
        %7399 = vmatprep.subr.bf16.mxu0 0
        %7400 = vmatpush1.bf16.msra.mxu0 %v7310
        %7401 = vmatprep.subr.bf16.mxu0 0
        %7402 = vmatpush1.bf16.msra.mxu0 %v7311
        %7403 = vmatprep.subr.bf16.mxu0 0
        %7404 = vmatpush1.bf16.msra.mxu0 %v7312
        %7405 = vmatprep.subr.bf16.mxu0 0
        %7406 = vmatpush1.bf16.msra.mxu0 %v7313
        %7407 = vmatprep.subr.bf16.mxu0 0
        %7408 = vmatpush1.bf16.msra.mxu0 %v7314
        %7409 = vmatprep.subr.bf16.mxu0 0
        %7410 = vmatpush1.bf16.msra.mxu0 %v7315
        %7411 = vmatprep.subr.bf16.mxu0 0
        %7412 = vmatpush1.bf16.msra.mxu0 %v7316
        %7413 = vmatprep.mubr.bf16.mxu0 %v7051
        %7414 = vmatmul.mubr.bf16.gmra.mrb[0].mxu0 %v7048
        %v7415 = vpop.f32.mrb[0].mxu0
        %v7416 = vadd.f32 0.0, %v7415
        %v7417 = vpop.f32.mrb[0].mxu0
        %v7418 = vpop.f32.mrb[0].mxu0
        %v7419 = vadd.f32 0.0, %v7418
        %v7420 = vpop.f32.mrb[0].mxu0
        %7421 = vdwg.mxu0
        %7422 = vmatprep.subr.bf16.mxu0 0
        %7423 = vmatpush1.bf16.msra.mxu0 %v7317
        %7424 = vmatprep.subr.bf16.mxu0 0
        %7425 = vmatpush1.bf16.msra.mxu0 %v7318
        %7426 = vmatprep.subr.bf16.mxu0 0
        %7427 = vmatpush1.bf16.msra.mxu0 %v7319
        %7428 = vmatprep.subr.bf16.mxu0 0
        %7429 = vmatpush1.bf16.msra.mxu0 %v7320
        %7430 = vmatprep.subr.bf16.mxu0 0
        %7431 = vmatpush1.bf16.msra.mxu0 %v7321
        %7432 = vmatprep.subr.bf16.mxu0 0
        %7433 = vmatpush1.bf16.msra.mxu0 %v7322
        %7434 = vmatprep.subr.bf16.mxu0 0
        %7435 = vmatpush1.bf16.msra.mxu0 %v7323
        %7436 = vmatprep.subr.bf16.mxu0 0
        %7437 = vmatpush1.bf16.msra.mxu0 %v7324
        %7438 = vmatprep.subr.bf16.mxu0 0
        %7439 = vmatpush1.bf16.msra.mxu0 %v7325
        %7440 = vmatprep.subr.bf16.mxu0 0
        %7441 = vmatpush1.bf16.msra.mxu0 %v7326
        %7442 = vmatprep.subr.bf16.mxu0 0
        %7443 = vmatpush1.bf16.msra.mxu0 %v7327
        %7444 = vmatprep.subr.bf16.mxu0 0
        %7445 = vmatpush1.bf16.msra.mxu0 %v7328
        %7446 = vmatprep.subr.bf16.mxu0 0
        %7447 = vmatpush1.bf16.msra.mxu0 %v7329
        %7448 = vmatprep.subr.bf16.mxu0 0
        %7449 = vmatpush1.bf16.msra.mxu0 %v7330
        %7450 = vmatprep.subr.bf16.mxu0 0
        %7451 = vmatpush1.bf16.msra.mxu0 %v7331
        %7452 = vmatprep.subr.bf16.mxu0 0
        %7453 = vmatpush1.bf16.msra.mxu0 %v7332
        %7454 = vmatprep.mubr.bf16.mxu0 %v7057
        %7455 = vmatmul.mubr.bf16.gmra.mrb[0].mxu0 %v7054
        %v7456 = vpop.f32.mrb[0].mxu0
        %v7457 = vadd.f32 %v7416, %v7456
        %v7458 = vpop.f32.mrb[0].mxu0
        %v7459 = vpop.f32.mrb[0].mxu0
        %v7460 = vadd.f32 %v7419, %v7459
        %v7461 = vpop.f32.mrb[0].mxu0
        %7462 = vdwg.mxu0
        %7463 = vmatprep.subr.bf16.mxu0 0
        %7464 = vmatpush1.bf16.msra.mxu0 %v7333
        %7465 = vmatprep.subr.bf16.mxu0 0
        %7466 = vmatpush1.bf16.msra.mxu0 %v7334
        %7467 = vmatprep.subr.bf16.mxu0 0
        %7468 = vmatpush1.bf16.msra.mxu0 %v7335
        %7469 = vmatprep.subr.bf16.mxu0 0
        %7470 = vmatpush1.bf16.msra.mxu0 %v7336
        %7471 = vmatprep.subr.bf16.mxu0 0
        %7472 = vmatpush1.bf16.msra.mxu0 %v7337
        %7473 = vmatprep.subr.bf16.mxu0 0
        %7474 = vmatpush1.bf16.msra.mxu0 %v7338
        %7475 = vmatprep.subr.bf16.mxu0 0
        %7476 = vmatpush1.bf16.msra.mxu0 %v7339
        %7477 = vmatprep.subr.bf16.mxu0 0
        %7478 = vmatpush1.bf16.msra.mxu0 %v7340
        %7479 = vmatprep.subr.bf16.mxu0 0
        %7480 = vmatpush1.bf16.msra.mxu0 0
        %7481 = vmatprep.subr.bf16.mxu0 0
        %7482 = vmatpush1.bf16.msra.mxu0 0
        %7483 = vmatprep.subr.bf16.mxu0 0
        %7484 = vmatpush1.bf16.msra.mxu0 0
        %7485 = vmatprep.subr.bf16.mxu0 0
        %7486 = vmatpush1.bf16.msra.mxu0 0
        %7487 = vmatprep.subr.bf16.mxu0 0
        %7488 = vmatpush1.bf16.msra.mxu0 0
        %7489 = vmatprep.subr.bf16.mxu0 0
        %7490 = vmatpush1.bf16.msra.mxu0 0
        %7491 = vmatprep.subr.bf16.mxu0 0
        %7492 = vmatpush1.bf16.msra.mxu0 0
        %7493 = vmatprep.subr.bf16.mxu0 0
        %7494 = vmatpush1.bf16.msra.mxu0 0
        %7495 = vmatprep.mubr.bf16.mxu0 0
        %7496 = vmatmul.mubr.bf16.gmra.mrb[0].mxu0 %v7060
        %v7497 = vpop.f32.mrb[0].mxu0
        %v7498 = vadd.f32 %v7457, %v7497
        %v7499 = vpop.f32.mrb[0].mxu0
        %v7500 = vpop.f32.mrb[0].mxu0
        %v7501 = vadd.f32 %v7460, %v7500
        %v7502 = vpop.f32.mrb[0].mxu0
        %7503 = vdwg.mxu0
        %v7504 = vmax.f32 %v7498, 0.0
        %v7505 = vmax.f32 %v7501, 0.0
        %7506 = vst [vmem:[#allocation7 + $0x2] sm:$0xff] %v7504
        %7507 = vst [vmem:[#allocation7 + $0xa] sm:$0xf] %v7505
        %v7508 = vld [vmem:[#allocation7] sm:$0xff]
        %v7509 = vld [vmem:[#allocation7 + $0x8] sm:$0xf]
        %v7510 = vpack.c.bf16 %v7509, %v7508
        %v7511 = vld [vmem:[#allocation7 + $0x1] sm:$0xff]
        %v7512 = vld [vmem:[#allocation7 + $0x9] sm:$0xf]
        %v7513 = vpack.c.bf16 %v7512, %v7511
        %v7514 = vld [vmem:[#allocation7 + $0x2] sm:$0xff]
        %v7515 = vld [vmem:[#allocation7 + $0xa] sm:$0xf]
        %v7516 = vpack.c.bf16 %v7515, %v7514
        %v7517 = vld [vmem:[#allocation7 + $0x3] sm:$0xff]
        %v7518 = vld [vmem:[#allocation7 + $0xb] sm:$0xf]
        %v7519 = vpack.c.bf16 %v7518, %v7517
        %v7520 = vld [vmem:[#allocation7 + $0x4] sm:$0xff]
        %v7521 = vld [vmem:[#allocation7 + $0xc] sm:$0xf]
        %v7522 = vpack.c.bf16 %v7521, %v7520
        %v7523 = vld [vmem:[#allocation20] sm:$0xf]
        %v7524 = vld [vmem:[#allocation20 + $0x4] sm:$0xf]
        %v7525 = vld [vmem:[#allocation20 + $0x8] sm:$0xf]
        %v7526 = vld [vmem:[#allocation20 + $0xc] sm:$0xf]
        %v7527 = vld [vmem:[#allocation20 + $0x10] sm:$0xf]
        %v7528 = vld [vmem:[#allocation20 + $0x14] sm:$0xf]
        %v7529 = vld [vmem:[#allocation20 + $0x18] sm:$0xf]
        %v7530 = vld [vmem:[#allocation20 + $0x1c] sm:$0xf]
        %v7531 = vld [vmem:[#allocation20 + $0x20] sm:$0xf]
        %v7532 = vld [vmem:[#allocation20 + $0x24] sm:$0xf]
        %v7533 = vld [vmem:[#allocation20 + $0x28] sm:$0xf]
        %v7534 = vld [vmem:[#allocation20 + $0x2c] sm:$0xf]
        %v7535 = vld [vmem:[#allocation20 + $0x30] sm:$0xf]
        %v7536 = vld [vmem:[#allocation20 + $0x34] sm:$0xf]
        %v7537 = vld [vmem:[#allocation20 + $0x38] sm:$0xf]
        %v7538 = vld [vmem:[#allocation20 + $0x3c] sm:$0xf]
        %v7539 = vld [vmem:[#allocation20 + $0x40] sm:$0xf]
        %v7540 = vld [vmem:[#allocation20 + $0x44] sm:$0xf]
        %v7541 = vld [vmem:[#allocation20 + $0x48] sm:$0xf]
        %v7542 = vld [vmem:[#allocation20 + $0x4c] sm:$0xf]
        %v7543 = vld [vmem:[#allocation20 + $0x50] sm:$0xf]
        %v7544 = vld [vmem:[#allocation20 + $0x54] sm:$0xf]
        %v7545 = vld [vmem:[#allocation20 + $0x58] sm:$0xf]
        %v7546 = vld [vmem:[#allocation20 + $0x5c] sm:$0xf]
        %v7547 = vld [vmem:[#allocation20 + $0x60] sm:$0xf]
        %v7548 = vld [vmem:[#allocation20 + $0x64] sm:$0xf]
        %v7549 = vld [vmem:[#allocation20 + $0x68] sm:$0xf]
        %v7550 = vld [vmem:[#allocation20 + $0x6c] sm:$0xf]
        %v7551 = vld [vmem:[#allocation20 + $0x70] sm:$0xf]
        %v7552 = vld [vmem:[#allocation20 + $0x74] sm:$0xf]
        %v7553 = vld [vmem:[#allocation20 + $0x78] sm:$0xf]
        %v7554 = vld [vmem:[#allocation20 + $0x7c] sm:$0xf]
        %v7555 = vld [vmem:[#allocation20 + $0x80] sm:$0xf]
        %v7556 = vld [vmem:[#allocation20 + $0x84] sm:$0xf]
        %v7557 = vld [vmem:[#allocation20 + $0x88] sm:$0xf]
        %v7558 = vld [vmem:[#allocation20 + $0x8c] sm:$0xf]
        %v7559 = vld [vmem:[#allocation20 + $0x90] sm:$0xf]
        %v7560 = vld [vmem:[#allocation20 + $0x94] sm:$0xf]
        %v7561 = vld [vmem:[#allocation20 + $0x98] sm:$0xf]
        %v7562 = vld [vmem:[#allocation20 + $0x9c] sm:$0xf]
        %v7563 = vld [vmem:[#allocation20 + $0xa0] sm:$0xf]
        %v7564 = vld [vmem:[#allocation20 + $0xa4] sm:$0xf]
        %v7565 = vld [vmem:[#allocation20 + $0xa8] sm:$0xf]
        %v7566 = vld [vmem:[#allocation20 + $0xac] sm:$0xf]
        %v7567 = vld [vmem:[#allocation20 + $0xb0] sm:$0xf]
        %v7568 = vld [vmem:[#allocation20 + $0xb4] sm:$0xf]
        %v7569 = vld [vmem:[#allocation20 + $0xb8] sm:$0xf]
        %v7570 = vld [vmem:[#allocation20 + $0xbc] sm:$0xf]
        %v7571 = vld [vmem:[#allocation20 + $0xc0] sm:$0xf]
        %v7572 = vld [vmem:[#allocation20 + $0xc4] sm:$0xf]
        %v7573 = vld [vmem:[#allocation20 + $0xc8] sm:$0xf]
        %v7574 = vld [vmem:[#allocation20 + $0xcc] sm:$0xf]
        %v7575 = vld [vmem:[#allocation20 + $0xd0] sm:$0xf]
        %v7576 = vld [vmem:[#allocation20 + $0xd4] sm:$0xf]
        %v7577 = vld [vmem:[#allocation20 + $0xd8] sm:$0xf]
        %v7578 = vld [vmem:[#allocation20 + $0xdc] sm:$0xf]
        %v7579 = vld [vmem:[#allocation20 + $0xe0] sm:$0xf]
        %v7580 = vld [vmem:[#allocation20 + $0xe4] sm:$0xf]
        %v7581 = vld [vmem:[#allocation20 + $0xe8] sm:$0xf]
        %v7582 = vld [vmem:[#allocation20 + $0xec] sm:$0xf]
        %v7583 = vld [vmem:[#allocation20 + $0xf0] sm:$0xf]
        %v7584 = vld [vmem:[#allocation20 + $0xf4] sm:$0xf]
        %v7585 = vld [vmem:[#allocation20 + $0xf8] sm:$0xf]
        %v7586 = vld [vmem:[#allocation20 + $0xfc] sm:$0xf]
        %v7587 = vld [vmem:[#allocation20 + $0x100] sm:$0xf]
        %v7588 = vld [vmem:[#allocation20 + $0x104] sm:$0xf]
        %v7589 = vld [vmem:[#allocation20 + $0x108] sm:$0xf]
        %v7590 = vld [vmem:[#allocation20 + $0x10c] sm:$0xf]
        %v7591 = vld [vmem:[#allocation20 + $0x110] sm:$0xf]
        %v7592 = vld [vmem:[#allocation20 + $0x114] sm:$0xf]
        %v7593 = vld [vmem:[#allocation20 + $0x118] sm:$0xf]
        %v7594 = vld [vmem:[#allocation20 + $0x11c] sm:$0xf]
        %v7595 = vld [vmem:[#allocation20 + $0x120] sm:$0xf]
        %v7596 = vld [vmem:[#allocation20 + $0x124] sm:$0xf]
        %v7597 = vld [vmem:[#allocation20 + $0x128] sm:$0xf]
        %v7598 = vld [vmem:[#allocation20 + $0x12c] sm:$0xf]
        %v7599 = vld [vmem:[#allocation20 + $0x130] sm:$0xf]
        %v7600 = vld [vmem:[#allocation20 + $0x134] sm:$0xf]
        %v7601 = vld [vmem:[#allocation20 + $0x138] sm:$0xf]
        %v7602 = vld [vmem:[#allocation20 + $0x13c] sm:$0xf]
        %v7683 = vunpack.c.l.b16 %v7523
        %v7684 = vunpack.c.l.b16 %v7524
        %v7685 = vunpack.c.l.b16 %v7525
        %v7686 = vunpack.c.l.b16 %v7526
        %v7687 = vunpack.c.l.b16 %v7527
        %v7688 = vunpack.c.l.b16 %v7528
        %v7689 = vunpack.c.l.b16 %v7529
        %v7690 = vunpack.c.l.b16 %v7530
        %v7691 = vunpack.c.l.b16 %v7531
        %v7692 = vunpack.c.l.b16 %v7532
        %v7693 = vunpack.c.l.b16 %v7533
        %v7694 = vunpack.c.l.b16 %v7534
        %v7695 = vunpack.c.l.b16 %v7535
        %v7696 = vunpack.c.l.b16 %v7536
        %v7697 = vunpack.c.l.b16 %v7537
        %v7698 = vunpack.c.l.b16 %v7538
        %v7699 = vunpack.c.l.b16 %v7539
        %v7700 = vunpack.c.l.b16 %v7540
        %v7701 = vunpack.c.l.b16 %v7541
        %v7702 = vunpack.c.l.b16 %v7542
        %v7703 = vunpack.c.l.b16 %v7543
        %v7704 = vunpack.c.l.b16 %v7544
        %v7705 = vunpack.c.l.b16 %v7545
        %v7706 = vunpack.c.l.b16 %v7546
        %v7707 = vunpack.c.l.b16 %v7547
        %v7708 = vunpack.c.l.b16 %v7548
        %v7709 = vunpack.c.l.b16 %v7549
        %v7710 = vunpack.c.l.b16 %v7550
        %v7711 = vunpack.c.l.b16 %v7551
        %v7712 = vunpack.c.l.b16 %v7552
        %v7713 = vunpack.c.l.b16 %v7553
        %v7714 = vunpack.c.l.b16 %v7554
        %v7715 = vunpack.c.l.b16 %v7555
        %v7716 = vunpack.c.l.b16 %v7556
        %v7717 = vunpack.c.l.b16 %v7557
        %v7718 = vunpack.c.l.b16 %v7558
        %v7719 = vunpack.c.l.b16 %v7559
        %v7720 = vunpack.c.l.b16 %v7560
        %v7721 = vunpack.c.l.b16 %v7561
        %v7722 = vunpack.c.l.b16 %v7562
        %v7723 = vunpack.c.l.b16 %v7563
        %v7724 = vunpack.c.l.b16 %v7564
        %v7725 = vunpack.c.l.b16 %v7565
        %v7726 = vunpack.c.l.b16 %v7566
        %v7727 = vunpack.c.l.b16 %v7567
        %v7728 = vunpack.c.l.b16 %v7568
        %v7729 = vunpack.c.l.b16 %v7569
        %v7730 = vunpack.c.l.b16 %v7570
        %v7731 = vunpack.c.l.b16 %v7571
        %v7732 = vunpack.c.l.b16 %v7572
        %v7733 = vunpack.c.l.b16 %v7573
        %v7734 = vunpack.c.l.b16 %v7574
        %v7735 = vunpack.c.l.b16 %v7575
        %v7736 = vunpack.c.l.b16 %v7576
        %v7737 = vunpack.c.l.b16 %v7577
        %v7738 = vunpack.c.l.b16 %v7578
        %v7739 = vunpack.c.l.b16 %v7579
        %v7740 = vunpack.c.l.b16 %v7580
        %v7741 = vunpack.c.l.b16 %v7581
        %v7742 = vunpack.c.l.b16 %v7582
        %v7743 = vunpack.c.l.b16 %v7583
        %v7744 = vunpack.c.l.b16 %v7584
        %v7745 = vunpack.c.l.b16 %v7585
        %v7746 = vunpack.c.l.b16 %v7586
        %v7747 = vunpack.c.l.b16 %v7587
        %v7748 = vunpack.c.l.b16 %v7588
        %v7749 = vunpack.c.l.b16 %v7589
        %v7750 = vunpack.c.l.b16 %v7590
        %v7751 = vunpack.c.l.b16 %v7591
        %v7752 = vunpack.c.l.b16 %v7592
        %v7753 = vunpack.c.l.b16 %v7593
        %v7754 = vunpack.c.l.b16 %v7594
        %v7755 = vunpack.c.l.b16 %v7595
        %v7756 = vunpack.c.l.b16 %v7596
        %v7757 = vunpack.c.l.b16 %v7597
        %v7758 = vunpack.c.l.b16 %v7598
        %v7759 = vunpack.c.l.b16 %v7599
        %v7760 = vunpack.c.l.b16 %v7600
        %v7761 = vunpack.c.l.b16 %v7601
        %v7762 = vunpack.c.l.b16 %v7602
        %v7763 = vpack.c.b16 %v7684, %v7683
        %v7764 = vpack.c.b16 %v7686, %v7685
        %v7765 = vpack.c.b16 %v7688, %v7687
        %v7766 = vpack.c.b16 %v7690, %v7689
        %v7767 = vpack.c.b16 %v7692, %v7691
        %v7768 = vpack.c.b16 %v7694, %v7693
        %v7769 = vpack.c.b16 %v7696, %v7695
        %v7770 = vpack.c.b16 %v7698, %v7697
        %v7771 = vpack.c.b16 %v7700, %v7699
        %v7772 = vpack.c.b16 %v7702, %v7701
        %v7773 = vpack.c.b16 %v7704, %v7703
        %v7774 = vpack.c.b16 %v7706, %v7705
        %v7775 = vpack.c.b16 %v7708, %v7707
        %v7776 = vpack.c.b16 %v7710, %v7709
        %v7777 = vpack.c.b16 %v7712, %v7711
        %v7778 = vpack.c.b16 %v7714, %v7713
        %v7779 = vpack.c.b16 %v7716, %v7715
        %v7780 = vpack.c.b16 %v7718, %v7717
        %v7781 = vpack.c.b16 %v7720, %v7719
        %v7782 = vpack.c.b16 %v7722, %v7721
        %v7783 = vpack.c.b16 %v7724, %v7723
        %v7784 = vpack.c.b16 %v7726, %v7725
        %v7785 = vpack.c.b16 %v7728, %v7727
        %v7786 = vpack.c.b16 %v7730, %v7729
        %v7787 = vpack.c.b16 %v7732, %v7731
        %v7788 = vpack.c.b16 %v7734, %v7733
        %v7789 = vpack.c.b16 %v7736, %v7735
        %v7790 = vpack.c.b16 %v7738, %v7737
        %v7791 = vpack.c.b16 %v7740, %v7739
        %v7792 = vpack.c.b16 %v7742, %v7741
        %v7793 = vpack.c.b16 %v7744, %v7743
        %v7794 = vpack.c.b16 %v7746, %v7745
        %v7795 = vpack.c.b16 %v7748, %v7747
        %v7796 = vpack.c.b16 %v7750, %v7749
        %v7797 = vpack.c.b16 %v7752, %v7751
        %v7798 = vpack.c.b16 %v7754, %v7753
        %v7799 = vpack.c.b16 %v7756, %v7755
        %v7800 = vpack.c.b16 %v7758, %v7757
        %v7801 = vpack.c.b16 %v7760, %v7759
        %v7802 = vpack.c.b16 %v7762, %v7761
        %7843 = vmatprep.subr.bf16.mxu0 0
        %7844 = vmatpush1.bf16.msra.mxu0 %v7763
        %7845 = vmatprep.subr.bf16.mxu0 0
        %7846 = vmatpush1.bf16.msra.mxu0 %v7764
        %7847 = vmatprep.subr.bf16.mxu0 0
        %7848 = vmatpush1.bf16.msra.mxu0 %v7765
        %7849 = vmatprep.subr.bf16.mxu0 0
        %7850 = vmatpush1.bf16.msra.mxu0 %v7766
        %7851 = vmatprep.subr.bf16.mxu0 0
        %7852 = vmatpush1.bf16.msra.mxu0 %v7767
        %7853 = vmatprep.subr.bf16.mxu0 0
        %7854 = vmatpush1.bf16.msra.mxu0 %v7768
        %7855 = vmatprep.subr.bf16.mxu0 0
        %7856 = vmatpush1.bf16.msra.mxu0 %v7769
        %7857 = vmatprep.subr.bf16.mxu0 0
        %7858 = vmatpush1.bf16.msra.mxu0 %v7770
        %7859 = vmatprep.subr.bf16.mxu0 0
        %7860 = vmatpush1.bf16.msra.mxu0 %v7771
        %7861 = vmatprep.subr.bf16.mxu0 0
        %7862 = vmatpush1.bf16.msra.mxu0 %v7772
        %7863 = vmatprep.subr.bf16.mxu0 0
        %7864 = vmatpush1.bf16.msra.mxu0 %v7773
        %7865 = vmatprep.subr.bf16.mxu0 0
        %7866 = vmatpush1.bf16.msra.mxu0 %v7774
        %7867 = vmatprep.subr.bf16.mxu0 0
        %7868 = vmatpush1.bf16.msra.mxu0 %v7775
        %7869 = vmatprep.subr.bf16.mxu0 0
        %7870 = vmatpush1.bf16.msra.mxu0 %v7776
        %7871 = vmatprep.subr.bf16.mxu0 0
        %7872 = vmatpush1.bf16.msra.mxu0 %v7777
        %7873 = vmatprep.subr.bf16.mxu0 0
        %7874 = vmatpush1.bf16.msra.mxu0 %v7778
        %7875 = vmatprep.mubr.bf16.mxu0 %v7513
        %7876 = vmatmul.mubr.bf16.gmra.mrb[0].mxu0 %v7510
        %v7877 = vpop.f32.mrb[0].mxu0
        %v7878 = vadd.f32 0.0, %v7877
        %v7879 = vpop.f32.mrb[0].mxu0
        %v7880 = vpop.f32.mrb[0].mxu0
        %v7881 = vadd.f32 0.0, %v7880
        %v7882 = vpop.f32.mrb[0].mxu0
        %7883 = vdwg.mxu0
        %7884 = vmatprep.subr.bf16.mxu0 0
        %7885 = vmatpush1.bf16.msra.mxu0 %v7779
        %7886 = vmatprep.subr.bf16.mxu0 0
        %7887 = vmatpush1.bf16.msra.mxu0 %v7780
        %7888 = vmatprep.subr.bf16.mxu0 0
        %7889 = vmatpush1.bf16.msra.mxu0 %v7781
        %7890 = vmatprep.subr.bf16.mxu0 0
        %7891 = vmatpush1.bf16.msra.mxu0 %v7782
        %7892 = vmatprep.subr.bf16.mxu0 0
        %7893 = vmatpush1.bf16.msra.mxu0 %v7783
        %7894 = vmatprep.subr.bf16.mxu0 0
        %7895 = vmatpush1.bf16.msra.mxu0 %v7784
        %7896 = vmatprep.subr.bf16.mxu0 0
        %7897 = vmatpush1.bf16.msra.mxu0 %v7785
        %7898 = vmatprep.subr.bf16.mxu0 0
        %7899 = vmatpush1.bf16.msra.mxu0 %v7786
        %7900 = vmatprep.subr.bf16.mxu0 0
        %7901 = vmatpush1.bf16.msra.mxu0 %v7787
        %7902 = vmatprep.subr.bf16.mxu0 0
        %7903 = vmatpush1.bf16.msra.mxu0 %v7788
        %7904 = vmatprep.subr.bf16.mxu0 0
        %7905 = vmatpush1.bf16.msra.mxu0 %v7789
        %7906 = vmatprep.subr.bf16.mxu0 0
        %7907 = vmatpush1.bf16.msra.mxu0 %v7790
        %7908 = vmatprep.subr.bf16.mxu0 0
        %7909 = vmatpush1.bf16.msra.mxu0 %v7791
        %7910 = vmatprep.subr.bf16.mxu0 0
        %7911 = vmatpush1.bf16.msra.mxu0 %v7792
        %7912 = vmatprep.subr.bf16.mxu0 0
        %7913 = vmatpush1.bf16.msra.mxu0 %v7793
        %7914 = vmatprep.subr.bf16.mxu0 0
        %7915 = vmatpush1.bf16.msra.mxu0 %v7794
        %7916 = vmatprep.mubr.bf16.mxu0 %v7519
        %7917 = vmatmul.mubr.bf16.gmra.mrb[0].mxu0 %v7516
        %v7918 = vpop.f32.mrb[0].mxu0
        %v7919 = vadd.f32 %v7878, %v7918
        %v7920 = vpop.f32.mrb[0].mxu0
        %v7921 = vpop.f32.mrb[0].mxu0
        %v7922 = vadd.f32 %v7881, %v7921
        %v7923 = vpop.f32.mrb[0].mxu0
        %7924 = vdwg.mxu0
        %7925 = vmatprep.subr.bf16.mxu0 0
        %7926 = vmatpush1.bf16.msra.mxu0 %v7795
        %7927 = vmatprep.subr.bf16.mxu0 0
        %7928 = vmatpush1.bf16.msra.mxu0 %v7796
        %7929 = vmatprep.subr.bf16.mxu0 0
        %7930 = vmatpush1.bf16.msra.mxu0 %v7797
        %7931 = vmatprep.subr.bf16.mxu0 0
        %7932 = vmatpush1.bf16.msra.mxu0 %v7798
        %7933 = vmatprep.subr.bf16.mxu0 0
        %7934 = vmatpush1.bf16.msra.mxu0 %v7799
        %7935 = vmatprep.subr.bf16.mxu0 0
        %7936 = vmatpush1.bf16.msra.mxu0 %v7800
        %7937 = vmatprep.subr.bf16.mxu0 0
        %7938 = vmatpush1.bf16.msra.mxu0 %v7801
        %7939 = vmatprep.subr.bf16.mxu0 0
        %7940 = vmatpush1.bf16.msra.mxu0 %v7802
        %7941 = vmatprep.subr.bf16.mxu0 0
        %7942 = vmatpush1.bf16.msra.mxu0 0
        %7943 = vmatprep.subr.bf16.mxu0 0
        %7944 = vmatpush1.bf16.msra.mxu0 0
        %7945 = vmatprep.subr.bf16.mxu0 0
        %7946 = vmatpush1.bf16.msra.mxu0 0
        %7947 = vmatprep.subr.bf16.mxu0 0
        %7948 = vmatpush1.bf16.msra.mxu0 0
        %7949 = vmatprep.subr.bf16.mxu0 0
        %7950 = vmatpush1.bf16.msra.mxu0 0
        %7951 = vmatprep.subr.bf16.mxu0 0
        %7952 = vmatpush1.bf16.msra.mxu0 0
        %7953 = vmatprep.subr.bf16.mxu0 0
        %7954 = vmatpush1.bf16.msra.mxu0 0
        %7955 = vmatprep.subr.bf16.mxu0 0
        %7956 = vmatpush1.bf16.msra.mxu0 0
        %7957 = vmatprep.mubr.bf16.mxu0 0
        %7958 = vmatmul.mubr.bf16.gmra.mrb[0].mxu0 %v7522
        %v7959 = vpop.f32.mrb[0].mxu0
        %v7960 = vadd.f32 %v7919, %v7959
        %v7961 = vpop.f32.mrb[0].mxu0
        %v7962 = vpop.f32.mrb[0].mxu0
        %v7963 = vadd.f32 %v7922, %v7962
        %v7964 = vpop.f32.mrb[0].mxu0
        %7965 = vdwg.mxu0
        %v7966 = vmax.f32 %v7960, 0.0
        %v7967 = vmax.f32 %v7963, 0.0
        %7968 = vst [vmem:[#allocation8 + $0x4] sm:$0xff] %v7966
        %7969 = vst [vmem:[#allocation8 + $0xc] sm:$0xf] %v7967
        %v7970 = vld [vmem:[#allocation8] sm:$0xff]
        %v7971 = vld [vmem:[#allocation8 + $0x8] sm:$0xff]
        %v7972 = vpack.c.bf16 %v7971, %v7970
        %v7973 = vld [vmem:[#allocation8 + $0x1] sm:$0xff]
        %v7974 = vld [vmem:[#allocation8 + $0x9] sm:$0xff]
        %v7975 = vpack.c.bf16 %v7974, %v7973
        %v7976 = vld [vmem:[#allocation8 + $0x2] sm:$0xff]
        %v7977 = vld [vmem:[#allocation8 + $0xa] sm:$0xff]
        %v7978 = vpack.c.bf16 %v7977, %v7976
        %v7979 = vld [vmem:[#allocation8 + $0x3] sm:$0xff]
        %v7980 = vld [vmem:[#allocation8 + $0xb] sm:$0xff]
        %v7981 = vpack.c.bf16 %v7980, %v7979
        %v7982 = vld [vmem:[#allocation8 + $0x4] sm:$0xff]
        %v7983 = vld [vmem:[#allocation8 + $0xc] sm:$0xff]
        %v7984 = vpack.c.bf16 %v7983, %v7982
        %v7985 = vld [vmem:[#allocation22] sm:$0xf]
        %v7986 = vld [vmem:[#allocation22 + $0x4] sm:$0xf]
        %v7987 = vld [vmem:[#allocation22 + $0x8] sm:$0xf]
        %v7988 = vld [vmem:[#allocation22 + $0xc] sm:$0xf]
        %v7989 = vld [vmem:[#allocation22 + $0x10] sm:$0xf]
        %v7990 = vld [vmem:[#allocation22 + $0x14] sm:$0xf]
        %v7991 = vld [vmem:[#allocation22 + $0x18] sm:$0xf]
        %v7992 = vld [vmem:[#allocation22 + $0x1c] sm:$0xf]
        %v7993 = vld [vmem:[#allocation22 + $0x20] sm:$0xf]
        %v7994 = vld [vmem:[#allocation22 + $0x24] sm:$0xf]
        %v7995 = vld [vmem:[#allocation22 + $0x28] sm:$0xf]
        %v7996 = vld [vmem:[#allocation22 + $0x2c] sm:$0xf]
        %v7997 = vld [vmem:[#allocation22 + $0x30] sm:$0xf]
        %v7998 = vld [vmem:[#allocation22 + $0x34] sm:$0xf]
        %v7999 = vld [vmem:[#allocation22 + $0x38] sm:$0xf]
        %v8000 = vld [vmem:[#allocation22 + $0x3c] sm:$0xf]
        %v8001 = vld [vmem:[#allocation22 + $0x40] sm:$0xf]
        %v8002 = vld [vmem:[#allocation22 + $0x44] sm:$0xf]
        %v8003 = vld [vmem:[#allocation22 + $0x48] sm:$0xf]
        %v8004 = vld [vmem:[#allocation22 + $0x4c] sm:$0xf]
        %v8005 = vld [vmem:[#allocation22 + $0x50] sm:$0xf]
        %v8006 = vld [vmem:[#allocation22 + $0x54] sm:$0xf]
        %v8007 = vld [vmem:[#allocation22 + $0x58] sm:$0xf]
        %v8008 = vld [vmem:[#allocation22 + $0x5c] sm:$0xf]
        %v8009 = vld [vmem:[#allocation22 + $0x60] sm:$0xf]
        %v8010 = vld [vmem:[#allocation22 + $0x64] sm:$0xf]
        %v8011 = vld [vmem:[#allocation22 + $0x68] sm:$0xf]
        %v8012 = vld [vmem:[#allocation22 + $0x6c] sm:$0xf]
        %v8013 = vld [vmem:[#allocation22 + $0x70] sm:$0xf]
        %v8014 = vld [vmem:[#allocation22 + $0x74] sm:$0xf]
        %v8015 = vld [vmem:[#allocation22 + $0x78] sm:$0xf]
        %v8016 = vld [vmem:[#allocation22 + $0x7c] sm:$0xf]
        %v8017 = vld [vmem:[#allocation22 + $0x80] sm:$0xf]
        %v8018 = vld [vmem:[#allocation22 + $0x84] sm:$0xf]
        %v8019 = vld [vmem:[#allocation22 + $0x88] sm:$0xf]
        %v8020 = vld [vmem:[#allocation22 + $0x8c] sm:$0xf]
        %v8021 = vld [vmem:[#allocation22 + $0x90] sm:$0xf]
        %v8022 = vld [vmem:[#allocation22 + $0x94] sm:$0xf]
        %v8023 = vld [vmem:[#allocation22 + $0x98] sm:$0xf]
        %v8024 = vld [vmem:[#allocation22 + $0x9c] sm:$0xf]
        %v8025 = vld [vmem:[#allocation22 + $0xa0] sm:$0xf]
        %v8026 = vld [vmem:[#allocation22 + $0xa4] sm:$0xf]
        %v8027 = vld [vmem:[#allocation22 + $0xa8] sm:$0xf]
        %v8028 = vld [vmem:[#allocation22 + $0xac] sm:$0xf]
        %v8029 = vld [vmem:[#allocation22 + $0xb0] sm:$0xf]
        %v8030 = vld [vmem:[#allocation22 + $0xb4] sm:$0xf]
        %v8031 = vld [vmem:[#allocation22 + $0xb8] sm:$0xf]
        %v8032 = vld [vmem:[#allocation22 + $0xbc] sm:$0xf]
        %v8033 = vld [vmem:[#allocation22 + $0xc0] sm:$0xf]
        %v8034 = vld [vmem:[#allocation22 + $0xc4] sm:$0xf]
        %v8035 = vld [vmem:[#allocation22 + $0xc8] sm:$0xf]
        %v8036 = vld [vmem:[#allocation22 + $0xcc] sm:$0xf]
        %v8037 = vld [vmem:[#allocation22 + $0xd0] sm:$0xf]
        %v8038 = vld [vmem:[#allocation22 + $0xd4] sm:$0xf]
        %v8039 = vld [vmem:[#allocation22 + $0xd8] sm:$0xf]
        %v8040 = vld [vmem:[#allocation22 + $0xdc] sm:$0xf]
        %v8041 = vld [vmem:[#allocation22 + $0xe0] sm:$0xf]
        %v8042 = vld [vmem:[#allocation22 + $0xe4] sm:$0xf]
        %v8043 = vld [vmem:[#allocation22 + $0xe8] sm:$0xf]
        %v8044 = vld [vmem:[#allocation22 + $0xec] sm:$0xf]
        %v8045 = vld [vmem:[#allocation22 + $0xf0] sm:$0xf]
        %v8046 = vld [vmem:[#allocation22 + $0xf4] sm:$0xf]
        %v8047 = vld [vmem:[#allocation22 + $0xf8] sm:$0xf]
        %v8048 = vld [vmem:[#allocation22 + $0xfc] sm:$0xf]
        %v8049 = vld [vmem:[#allocation22 + $0x100] sm:$0xf]
        %v8050 = vld [vmem:[#allocation22 + $0x104] sm:$0xf]
        %v8051 = vld [vmem:[#allocation22 + $0x108] sm:$0xf]
        %v8052 = vld [vmem:[#allocation22 + $0x10c] sm:$0xf]
        %v8053 = vld [vmem:[#allocation22 + $0x110] sm:$0xf]
        %v8054 = vld [vmem:[#allocation22 + $0x114] sm:$0xf]
        %v8055 = vld [vmem:[#allocation22 + $0x118] sm:$0xf]
        %v8056 = vld [vmem:[#allocation22 + $0x11c] sm:$0xf]
        %v8057 = vld [vmem:[#allocation22 + $0x120] sm:$0xf]
        %v8058 = vld [vmem:[#allocation22 + $0x124] sm:$0xf]
        %v8059 = vld [vmem:[#allocation22 + $0x128] sm:$0xf]
        %v8060 = vld [vmem:[#allocation22 + $0x12c] sm:$0xf]
        %v8061 = vld [vmem:[#allocation22 + $0x130] sm:$0xf]
        %v8062 = vld [vmem:[#allocation22 + $0x134] sm:$0xf]
        %v8063 = vld [vmem:[#allocation22 + $0x138] sm:$0xf]
        %v8064 = vld [vmem:[#allocation22 + $0x13c] sm:$0xf]
        %v8145 = vunpack.c.l.b16 %v7985
        %v8146 = vunpack.c.l.b16 %v7986
        %v8147 = vunpack.c.l.b16 %v7987
        %v8148 = vunpack.c.l.b16 %v7988
        %v8149 = vunpack.c.l.b16 %v7989
        %v8150 = vunpack.c.l.b16 %v7990
        %v8151 = vunpack.c.l.b16 %v7991
        %v8152 = vunpack.c.l.b16 %v7992
        %v8153 = vunpack.c.l.b16 %v7993
        %v8154 = vunpack.c.l.b16 %v7994
        %v8155 = vunpack.c.l.b16 %v7995
        %v8156 = vunpack.c.l.b16 %v7996
        %v8157 = vunpack.c.l.b16 %v7997
        %v8158 = vunpack.c.l.b16 %v7998
        %v8159 = vunpack.c.l.b16 %v7999
        %v8160 = vunpack.c.l.b16 %v8000
        %v8161 = vunpack.c.l.b16 %v8001
        %v8162 = vunpack.c.l.b16 %v8002
        %v8163 = vunpack.c.l.b16 %v8003
        %v8164 = vunpack.c.l.b16 %v8004
        %v8165 = vunpack.c.l.b16 %v8005
        %v8166 = vunpack.c.l.b16 %v8006
        %v8167 = vunpack.c.l.b16 %v8007
        %v8168 = vunpack.c.l.b16 %v8008
        %v8169 = vunpack.c.l.b16 %v8009
        %v8170 = vunpack.c.l.b16 %v8010
        %v8171 = vunpack.c.l.b16 %v8011
        %v8172 = vunpack.c.l.b16 %v8012
        %v8173 = vunpack.c.l.b16 %v8013
        %v8174 = vunpack.c.l.b16 %v8014
        %v8175 = vunpack.c.l.b16 %v8015
        %v8176 = vunpack.c.l.b16 %v8016
        %v8177 = vunpack.c.l.b16 %v8017
        %v8178 = vunpack.c.l.b16 %v8018
        %v8179 = vunpack.c.l.b16 %v8019
        %v8180 = vunpack.c.l.b16 %v8020
        %v8181 = vunpack.c.l.b16 %v8021
        %v8182 = vunpack.c.l.b16 %v8022
        %v8183 = vunpack.c.l.b16 %v8023
        %v8184 = vunpack.c.l.b16 %v8024
        %v8185 = vunpack.c.l.b16 %v8025
        %v8186 = vunpack.c.l.b16 %v8026
        %v8187 = vunpack.c.l.b16 %v8027
        %v8188 = vunpack.c.l.b16 %v8028
        %v8189 = vunpack.c.l.b16 %v8029
        %v8190 = vunpack.c.l.b16 %v8030
        %v8191 = vunpack.c.l.b16 %v8031
        %v8192 = vunpack.c.l.b16 %v8032
        %v8193 = vunpack.c.l.b16 %v8033
        %v8194 = vunpack.c.l.b16 %v8034
        %v8195 = vunpack.c.l.b16 %v8035
        %v8196 = vunpack.c.l.b16 %v8036
        %v8197 = vunpack.c.l.b16 %v8037
        %v8198 = vunpack.c.l.b16 %v8038
        %v8199 = vunpack.c.l.b16 %v8039
        %v8200 = vunpack.c.l.b16 %v8040
        %v8201 = vunpack.c.l.b16 %v8041
        %v8202 = vunpack.c.l.b16 %v8042
        %v8203 = vunpack.c.l.b16 %v8043
        %v8204 = vunpack.c.l.b16 %v8044
        %v8205 = vunpack.c.l.b16 %v8045
        %v8206 = vunpack.c.l.b16 %v8046
        %v8207 = vunpack.c.l.b16 %v8047
        %v8208 = vunpack.c.l.b16 %v8048
        %v8209 = vunpack.c.l.b16 %v8049
        %v8210 = vunpack.c.l.b16 %v8050
        %v8211 = vunpack.c.l.b16 %v8051
        %v8212 = vunpack.c.l.b16 %v8052
        %v8213 = vunpack.c.l.b16 %v8053
        %v8214 = vunpack.c.l.b16 %v8054
        %v8215 = vunpack.c.l.b16 %v8055
        %v8216 = vunpack.c.l.b16 %v8056
        %v8217 = vunpack.c.l.b16 %v8057
        %v8218 = vunpack.c.l.b16 %v8058
        %v8219 = vunpack.c.l.b16 %v8059
        %v8220 = vunpack.c.l.b16 %v8060
        %v8221 = vunpack.c.l.b16 %v8061
        %v8222 = vunpack.c.l.b16 %v8062
        %v8223 = vunpack.c.l.b16 %v8063
        %v8224 = vunpack.c.l.b16 %v8064
        %v8225 = vpack.c.b16 %v8146, %v8145
        %v8226 = vpack.c.b16 %v8148, %v8147
        %v8227 = vpack.c.b16 %v8150, %v8149
        %v8228 = vpack.c.b16 %v8152, %v8151
        %v8229 = vpack.c.b16 %v8154, %v8153
        %v8230 = vpack.c.b16 %v8156, %v8155
        %v8231 = vpack.c.b16 %v8158, %v8157
        %v8232 = vpack.c.b16 %v8160, %v8159
        %v8233 = vpack.c.b16 %v8162, %v8161
        %v8234 = vpack.c.b16 %v8164, %v8163
        %v8235 = vpack.c.b16 %v8166, %v8165
        %v8236 = vpack.c.b16 %v8168, %v8167
        %v8237 = vpack.c.b16 %v8170, %v8169
        %v8238 = vpack.c.b16 %v8172, %v8171
        %v8239 = vpack.c.b16 %v8174, %v8173
        %v8240 = vpack.c.b16 %v8176, %v8175
        %v8241 = vpack.c.b16 %v8178, %v8177
        %v8242 = vpack.c.b16 %v8180, %v8179
        %v8243 = vpack.c.b16 %v8182, %v8181
        %v8244 = vpack.c.b16 %v8184, %v8183
        %v8245 = vpack.c.b16 %v8186, %v8185
        %v8246 = vpack.c.b16 %v8188, %v8187
        %v8247 = vpack.c.b16 %v8190, %v8189
        %v8248 = vpack.c.b16 %v8192, %v8191
        %v8249 = vpack.c.b16 %v8194, %v8193
        %v8250 = vpack.c.b16 %v8196, %v8195
        %v8251 = vpack.c.b16 %v8198, %v8197
        %v8252 = vpack.c.b16 %v8200, %v8199
        %v8253 = vpack.c.b16 %v8202, %v8201
        %v8254 = vpack.c.b16 %v8204, %v8203
        %v8255 = vpack.c.b16 %v8206, %v8205
        %v8256 = vpack.c.b16 %v8208, %v8207
        %v8257 = vpack.c.b16 %v8210, %v8209
        %v8258 = vpack.c.b16 %v8212, %v8211
        %v8259 = vpack.c.b16 %v8214, %v8213
        %v8260 = vpack.c.b16 %v8216, %v8215
        %v8261 = vpack.c.b16 %v8218, %v8217
        %v8262 = vpack.c.b16 %v8220, %v8219
        %v8263 = vpack.c.b16 %v8222, %v8221
        %v8264 = vpack.c.b16 %v8224, %v8223
        %8305 = vmatprep.subr.bf16.mxu0 0
        %8306 = vmatpush1.bf16.msra.mxu0 %v8225
        %8307 = vmatprep.subr.bf16.mxu0 0
        %8308 = vmatpush1.bf16.msra.mxu0 %v8226
        %8309 = vmatprep.subr.bf16.mxu0 0
        %8310 = vmatpush1.bf16.msra.mxu0 %v8227
        %8311 = vmatprep.subr.bf16.mxu0 0
        %8312 = vmatpush1.bf16.msra.mxu0 %v8228
        %8313 = vmatprep.subr.bf16.mxu0 0
        %8314 = vmatpush1.bf16.msra.mxu0 %v8229
        %8315 = vmatprep.subr.bf16.mxu0 0
        %8316 = vmatpush1.bf16.msra.mxu0 %v8230
        %8317 = vmatprep.subr.bf16.mxu0 0
        %8318 = vmatpush1.bf16.msra.mxu0 %v8231
        %8319 = vmatprep.subr.bf16.mxu0 0
        %8320 = vmatpush1.bf16.msra.mxu0 %v8232
        %8321 = vmatprep.subr.bf16.mxu0 0
        %8322 = vmatpush1.bf16.msra.mxu0 %v8233
        %8323 = vmatprep.subr.bf16.mxu0 0
        %8324 = vmatpush1.bf16.msra.mxu0 %v8234
        %8325 = vmatprep.subr.bf16.mxu0 0
        %8326 = vmatpush1.bf16.msra.mxu0 %v8235
        %8327 = vmatprep.subr.bf16.mxu0 0
        %8328 = vmatpush1.bf16.msra.mxu0 %v8236
        %8329 = vmatprep.subr.bf16.mxu0 0
        %8330 = vmatpush1.bf16.msra.mxu0 %v8237
        %8331 = vmatprep.subr.bf16.mxu0 0
        %8332 = vmatpush1.bf16.msra.mxu0 %v8238
        %8333 = vmatprep.subr.bf16.mxu0 0
        %8334 = vmatpush1.bf16.msra.mxu0 %v8239
        %8335 = vmatprep.subr.bf16.mxu0 0
        %8336 = vmatpush1.bf16.msra.mxu0 %v8240
        %8337 = vmatprep.mubr.bf16.mxu0 %v7975
        %8338 = vmatmul.mubr.bf16.gmra.mrb[0].mxu0 %v7972
        %v8339 = vpop.f32.mrb[0].mxu0
        %v8340 = vadd.f32 0.0, %v8339
        %v8341 = vpop.f32.mrb[0].mxu0
        %v8342 = vpop.f32.mrb[0].mxu0
        %v8343 = vadd.f32 0.0, %v8342
        %v8344 = vpop.f32.mrb[0].mxu0
        %8345 = vdwg.mxu0
        %8346 = vmatprep.subr.bf16.mxu0 0
        %8347 = vmatpush1.bf16.msra.mxu0 %v8241
        %8348 = vmatprep.subr.bf16.mxu0 0
        %8349 = vmatpush1.bf16.msra.mxu0 %v8242
        %8350 = vmatprep.subr.bf16.mxu0 0
        %8351 = vmatpush1.bf16.msra.mxu0 %v8243
        %8352 = vmatprep.subr.bf16.mxu0 0
        %8353 = vmatpush1.bf16.msra.mxu0 %v8244
        %8354 = vmatprep.subr.bf16.mxu0 0
        %8355 = vmatpush1.bf16.msra.mxu0 %v8245
        %8356 = vmatprep.subr.bf16.mxu0 0
        %8357 = vmatpush1.bf16.msra.mxu0 %v8246
        %8358 = vmatprep.subr.bf16.mxu0 0
        %8359 = vmatpush1.bf16.msra.mxu0 %v8247
        %8360 = vmatprep.subr.bf16.mxu0 0
        %8361 = vmatpush1.bf16.msra.mxu0 %v8248
        %8362 = vmatprep.subr.bf16.mxu0 0
        %8363 = vmatpush1.bf16.msra.mxu0 %v8249
        %8364 = vmatprep.subr.bf16.mxu0 0
        %8365 = vmatpush1.bf16.msra.mxu0 %v8250
        %8366 = vmatprep.subr.bf16.mxu0 0
        %8367 = vmatpush1.bf16.msra.mxu0 %v8251
        %8368 = vmatprep.subr.bf16.mxu0 0
        %8369 = vmatpush1.bf16.msra.mxu0 %v8252
        %8370 = vmatprep.subr.bf16.mxu0 0
        %8371 = vmatpush1.bf16.msra.mxu0 %v8253
        %8372 = vmatprep.subr.bf16.mxu0 0
        %8373 = vmatpush1.bf16.msra.mxu0 %v8254
        %8374 = vmatprep.subr.bf16.mxu0 0
        %8375 = vmatpush1.bf16.msra.mxu0 %v8255
        %8376 = vmatprep.subr.bf16.mxu0 0
        %8377 = vmatpush1.bf16.msra.mxu0 %v8256
        %8378 = vmatprep.mubr.bf16.mxu0 %v7981
        %8379 = vmatmul.mubr.bf16.gmra.mrb[0].mxu0 %v7978
        %v8380 = vpop.f32.mrb[0].mxu0
        %v8381 = vadd.f32 %v8340, %v8380
        %v8382 = vpop.f32.mrb[0].mxu0
        %v8383 = vpop.f32.mrb[0].mxu0
        %v8384 = vadd.f32 %v8343, %v8383
        %v8385 = vpop.f32.mrb[0].mxu0
        %8386 = vdwg.mxu0
        %8387 = vmatprep.subr.bf16.mxu0 0
        %8388 = vmatpush1.bf16.msra.mxu0 %v8257
        %8389 = vmatprep.subr.bf16.mxu0 0
        %8390 = vmatpush1.bf16.msra.mxu0 %v8258
        %8391 = vmatprep.subr.bf16.mxu0 0
        %8392 = vmatpush1.bf16.msra.mxu0 %v8259
        %8393 = vmatprep.subr.bf16.mxu0 0
        %8394 = vmatpush1.bf16.msra.mxu0 %v8260
        %8395 = vmatprep.subr.bf16.mxu0 0
        %8396 = vmatpush1.bf16.msra.mxu0 %v8261
        %8397 = vmatprep.subr.bf16.mxu0 0
        %8398 = vmatpush1.bf16.msra.mxu0 %v8262
        %8399 = vmatprep.subr.bf16.mxu0 0
        %8400 = vmatpush1.bf16.msra.mxu0 %v8263
        %8401 = vmatprep.subr.bf16.mxu0 0
        %8402 = vmatpush1.bf16.msra.mxu0 %v8264
        %8403 = vmatprep.subr.bf16.mxu0 0
        %8404 = vmatpush1.bf16.msra.mxu0 0
        %8405 = vmatprep.subr.bf16.mxu0 0
        %8406 = vmatpush1.bf16.msra.mxu0 0
        %8407 = vmatprep.subr.bf16.mxu0 0
        %8408 = vmatpush1.bf16.msra.mxu0 0
        %8409 = vmatprep.subr.bf16.mxu0 0
        %8410 = vmatpush1.bf16.msra.mxu0 0
        %8411 = vmatprep.subr.bf16.mxu0 0
        %8412 = vmatpush1.bf16.msra.mxu0 0
        %8413 = vmatprep.subr.bf16.mxu0 0
        %8414 = vmatpush1.bf16.msra.mxu0 0
        %8415 = vmatprep.subr.bf16.mxu0 0
        %8416 = vmatpush1.bf16.msra.mxu0 0
        %8417 = vmatprep.subr.bf16.mxu0 0
        %8418 = vmatpush1.bf16.msra.mxu0 0
        %8419 = vmatprep.mubr.bf16.mxu0 0
        %8420 = vmatmul.mubr.bf16.gmra.mrb[0].mxu0 %v7984
        %v8421 = vpop.f32.mrb[0].mxu0
        %v8422 = vadd.f32 %v8381, %v8421
        %v8423 = vpop.f32.mrb[0].mxu0
        %v8424 = vpop.f32.mrb[0].mxu0
        %v8425 = vadd.f32 %v8384, %v8424
        %v8426 = vpop.f32.mrb[0].mxu0
        %8427 = vdwg.mxu0
        %v8428 = vmax.f32 %v8422, 0.0
        %v8429 = vmax.f32 %v8425, 0.0
        %8430 = vst [vmem:[#allocation9 + $0x2] sm:$0xff] %v8428
        %8431 = vst [vmem:[#allocation9 + $0xa] sm:$0xff] %v8429
        %v8432 = vld [vmem:[#allocation9] sm:$0xff]
        %v8433 = vld [vmem:[#allocation9 + $0x8] sm:$0xff]
        %v8434 = vpack.c.bf16 %v8433, %v8432
        %v8435 = vld [vmem:[#allocation9 + $0x1] sm:$0xff]
        %v8436 = vld [vmem:[#allocation9 + $0x9] sm:$0xff]
        %v8437 = vpack.c.bf16 %v8436, %v8435
        %v8438 = vld [vmem:[#allocation9 + $0x2] sm:$0xff]
        %v8439 = vld [vmem:[#allocation9 + $0xa] sm:$0xff]
        %v8440 = vpack.c.bf16 %v8439, %v8438
        %v8441 = vld [vmem:[#allocation9 + $0x3] sm:$0xff]
        %v8442 = vld [vmem:[#allocation9 + $0xb] sm:$0xff]
        %v8443 = vpack.c.bf16 %v8442, %v8441
        %v8444 = vld [vmem:[#allocation9 + $0x4] sm:$0xff]
        %v8445 = vld [vmem:[#allocation9 + $0xc] sm:$0xff]
        %v8446 = vpack.c.bf16 %v8445, %v8444
        %v8447 = vld [vmem:[#allocation23] sm:$0xf]
        %v8448 = vld [vmem:[#allocation23 + $0x4] sm:$0xf]
        %v8449 = vld [vmem:[#allocation23 + $0x8] sm:$0xf]
        %v8450 = vld [vmem:[#allocation23 + $0xc] sm:$0xf]
        %v8451 = vld [vmem:[#allocation23 + $0x10] sm:$0xf]
        %v8452 = vld [vmem:[#allocation23 + $0x14] sm:$0xf]
        %v8453 = vld [vmem:[#allocation23 + $0x18] sm:$0xf]
        %v8454 = vld [vmem:[#allocation23 + $0x1c] sm:$0xf]
        %v8455 = vld [vmem:[#allocation23 + $0x20] sm:$0xf]
        %v8456 = vld [vmem:[#allocation23 + $0x24] sm:$0xf]
        %v8457 = vld [vmem:[#allocation23 + $0x28] sm:$0xf]
        %v8458 = vld [vmem:[#allocation23 + $0x2c] sm:$0xf]
        %v8459 = vld [vmem:[#allocation23 + $0x30] sm:$0xf]
        %v8460 = vld [vmem:[#allocation23 + $0x34] sm:$0xf]
        %v8461 = vld [vmem:[#allocation23 + $0x38] sm:$0xf]
        %v8462 = vld [vmem:[#allocation23 + $0x3c] sm:$0xf]
        %v8463 = vld [vmem:[#allocation23 + $0x40] sm:$0xf]
        %v8464 = vld [vmem:[#allocation23 + $0x44] sm:$0xf]
        %v8465 = vld [vmem:[#allocation23 + $0x48] sm:$0xf]
        %v8466 = vld [vmem:[#allocation23 + $0x4c] sm:$0xf]
        %v8467 = vld [vmem:[#allocation23 + $0x50] sm:$0xf]
        %v8468 = vld [vmem:[#allocation23 + $0x54] sm:$0xf]
        %v8469 = vld [vmem:[#allocation23 + $0x58] sm:$0xf]
        %v8470 = vld [vmem:[#allocation23 + $0x5c] sm:$0xf]
        %v8471 = vld [vmem:[#allocation23 + $0x60] sm:$0xf]
        %v8472 = vld [vmem:[#allocation23 + $0x64] sm:$0xf]
        %v8473 = vld [vmem:[#allocation23 + $0x68] sm:$0xf]
        %v8474 = vld [vmem:[#allocation23 + $0x6c] sm:$0xf]
        %v8475 = vld [vmem:[#allocation23 + $0x70] sm:$0xf]
        %v8476 = vld [vmem:[#allocation23 + $0x74] sm:$0xf]
        %v8477 = vld [vmem:[#allocation23 + $0x78] sm:$0xf]
        %v8478 = vld [vmem:[#allocation23 + $0x7c] sm:$0xf]
        %v8479 = vld [vmem:[#allocation23 + $0x80] sm:$0xf]
        %v8480 = vld [vmem:[#allocation23 + $0x84] sm:$0xf]
        %v8481 = vld [vmem:[#allocation23 + $0x88] sm:$0xf]
        %v8482 = vld [vmem:[#allocation23 + $0x8c] sm:$0xf]
        %v8483 = vld [vmem:[#allocation23 + $0x90] sm:$0xf]
        %v8484 = vld [vmem:[#allocation23 + $0x94] sm:$0xf]
        %v8485 = vld [vmem:[#allocation23 + $0x98] sm:$0xf]
        %v8486 = vld [vmem:[#allocation23 + $0x9c] sm:$0xf]
        %v8487 = vld [vmem:[#allocation23 + $0xa0] sm:$0xf]
        %v8488 = vld [vmem:[#allocation23 + $0xa4] sm:$0xf]
        %v8489 = vld [vmem:[#allocation23 + $0xa8] sm:$0xf]
        %v8490 = vld [vmem:[#allocation23 + $0xac] sm:$0xf]
        %v8491 = vld [vmem:[#allocation23 + $0xb0] sm:$0xf]
        %v8492 = vld [vmem:[#allocation23 + $0xb4] sm:$0xf]
        %v8493 = vld [vmem:[#allocation23 + $0xb8] sm:$0xf]
        %v8494 = vld [vmem:[#allocation23 + $0xbc] sm:$0xf]
        %v8495 = vld [vmem:[#allocation23 + $0xc0] sm:$0xf]
        %v8496 = vld [vmem:[#allocation23 + $0xc4] sm:$0xf]
        %v8497 = vld [vmem:[#allocation23 + $0xc8] sm:$0xf]
        %v8498 = vld [vmem:[#allocation23 + $0xcc] sm:$0xf]
        %v8499 = vld [vmem:[#allocation23 + $0xd0] sm:$0xf]
        %v8500 = vld [vmem:[#allocation23 + $0xd4] sm:$0xf]
        %v8501 = vld [vmem:[#allocation23 + $0xd8] sm:$0xf]
        %v8502 = vld [vmem:[#allocation23 + $0xdc] sm:$0xf]
        %v8503 = vld [vmem:[#allocation23 + $0xe0] sm:$0xf]
        %v8504 = vld [vmem:[#allocation23 + $0xe4] sm:$0xf]
        %v8505 = vld [vmem:[#allocation23 + $0xe8] sm:$0xf]
        %v8506 = vld [vmem:[#allocation23 + $0xec] sm:$0xf]
        %v8507 = vld [vmem:[#allocation23 + $0xf0] sm:$0xf]
        %v8508 = vld [vmem:[#allocation23 + $0xf4] sm:$0xf]
        %v8509 = vld [vmem:[#allocation23 + $0xf8] sm:$0xf]
        %v8510 = vld [vmem:[#allocation23 + $0xfc] sm:$0xf]
        %v8511 = vld [vmem:[#allocation23 + $0x100] sm:$0xf]
        %v8512 = vld [vmem:[#allocation23 + $0x104] sm:$0xf]
        %v8513 = vld [vmem:[#allocation23 + $0x108] sm:$0xf]
        %v8514 = vld [vmem:[#allocation23 + $0x10c] sm:$0xf]
        %v8515 = vld [vmem:[#allocation23 + $0x110] sm:$0xf]
        %v8516 = vld [vmem:[#allocation23 + $0x114] sm:$0xf]
        %v8517 = vld [vmem:[#allocation23 + $0x118] sm:$0xf]
        %v8518 = vld [vmem:[#allocation23 + $0x11c] sm:$0xf]
        %v8519 = vld [vmem:[#allocation23 + $0x120] sm:$0xf]
        %v8520 = vld [vmem:[#allocation23 + $0x124] sm:$0xf]
        %v8521 = vld [vmem:[#allocation23 + $0x128] sm:$0xf]
        %v8522 = vld [vmem:[#allocation23 + $0x12c] sm:$0xf]
        %v8523 = vld [vmem:[#allocation23 + $0x130] sm:$0xf]
        %v8524 = vld [vmem:[#allocation23 + $0x134] sm:$0xf]
        %v8525 = vld [vmem:[#allocation23 + $0x138] sm:$0xf]
        %v8526 = vld [vmem:[#allocation23 + $0x13c] sm:$0xf]
        %v8607 = vunpack.c.l.b16 %v8447
        %v8608 = vunpack.c.l.b16 %v8448
        %v8609 = vunpack.c.l.b16 %v8449
        %v8610 = vunpack.c.l.b16 %v8450
        %v8611 = vunpack.c.l.b16 %v8451
        %v8612 = vunpack.c.l.b16 %v8452
        %v8613 = vunpack.c.l.b16 %v8453
        %v8614 = vunpack.c.l.b16 %v8454
        %v8615 = vunpack.c.l.b16 %v8455
        %v8616 = vunpack.c.l.b16 %v8456
        %v8617 = vunpack.c.l.b16 %v8457
        %v8618 = vunpack.c.l.b16 %v8458
        %v8619 = vunpack.c.l.b16 %v8459
        %v8620 = vunpack.c.l.b16 %v8460
        %v8621 = vunpack.c.l.b16 %v8461
        %v8622 = vunpack.c.l.b16 %v8462
        %v8623 = vunpack.c.l.b16 %v8463
        %v8624 = vunpack.c.l.b16 %v8464
        %v8625 = vunpack.c.l.b16 %v8465
        %v8626 = vunpack.c.l.b16 %v8466
        %v8627 = vunpack.c.l.b16 %v8467
        %v8628 = vunpack.c.l.b16 %v8468
        %v8629 = vunpack.c.l.b16 %v8469
        %v8630 = vunpack.c.l.b16 %v8470
        %v8631 = vunpack.c.l.b16 %v8471
        %v8632 = vunpack.c.l.b16 %v8472
        %v8633 = vunpack.c.l.b16 %v8473
        %v8634 = vunpack.c.l.b16 %v8474
        %v8635 = vunpack.c.l.b16 %v8475
        %v8636 = vunpack.c.l.b16 %v8476
        %v8637 = vunpack.c.l.b16 %v8477
        %v8638 = vunpack.c.l.b16 %v8478
        %v8639 = vunpack.c.l.b16 %v8479
        %v8640 = vunpack.c.l.b16 %v8480
        %v8641 = vunpack.c.l.b16 %v8481
        %v8642 = vunpack.c.l.b16 %v8482
        %v8643 = vunpack.c.l.b16 %v8483
        %v8644 = vunpack.c.l.b16 %v8484
        %v8645 = vunpack.c.l.b16 %v8485
        %v8646 = vunpack.c.l.b16 %v8486
        %v8647 = vunpack.c.l.b16 %v8487
        %v8648 = vunpack.c.l.b16 %v8488
        %v8649 = vunpack.c.l.b16 %v8489
        %v8650 = vunpack.c.l.b16 %v8490
        %v8651 = vunpack.c.l.b16 %v8491
        %v8652 = vunpack.c.l.b16 %v8492
        %v8653 = vunpack.c.l.b16 %v8493
        %v8654 = vunpack.c.l.b16 %v8494
        %v8655 = vunpack.c.l.b16 %v8495
        %v8656 = vunpack.c.l.b16 %v8496
        %v8657 = vunpack.c.l.b16 %v8497
        %v8658 = vunpack.c.l.b16 %v8498
        %v8659 = vunpack.c.l.b16 %v8499
        %v8660 = vunpack.c.l.b16 %v8500
        %v8661 = vunpack.c.l.b16 %v8501
        %v8662 = vunpack.c.l.b16 %v8502
        %v8663 = vunpack.c.l.b16 %v8503
        %v8664 = vunpack.c.l.b16 %v8504
        %v8665 = vunpack.c.l.b16 %v8505
        %v8666 = vunpack.c.l.b16 %v8506
        %v8667 = vunpack.c.l.b16 %v8507
        %v8668 = vunpack.c.l.b16 %v8508
        %v8669 = vunpack.c.l.b16 %v8509
        %v8670 = vunpack.c.l.b16 %v8510
        %v8671 = vunpack.c.l.b16 %v8511
        %v8672 = vunpack.c.l.b16 %v8512
        %v8673 = vunpack.c.l.b16 %v8513
        %v8674 = vunpack.c.l.b16 %v8514
        %v8675 = vunpack.c.l.b16 %v8515
        %v8676 = vunpack.c.l.b16 %v8516
        %v8677 = vunpack.c.l.b16 %v8517
        %v8678 = vunpack.c.l.b16 %v8518
        %v8679 = vunpack.c.l.b16 %v8519
        %v8680 = vunpack.c.l.b16 %v8520
        %v8681 = vunpack.c.l.b16 %v8521
        %v8682 = vunpack.c.l.b16 %v8522
        %v8683 = vunpack.c.l.b16 %v8523
        %v8684 = vunpack.c.l.b16 %v8524
        %v8685 = vunpack.c.l.b16 %v8525
        %v8686 = vunpack.c.l.b16 %v8526
        %v8687 = vpack.c.b16 %v8608, %v8607
        %v8688 = vpack.c.b16 %v8610, %v8609
        %v8689 = vpack.c.b16 %v8612, %v8611
        %v8690 = vpack.c.b16 %v8614, %v8613
        %v8691 = vpack.c.b16 %v8616, %v8615
        %v8692 = vpack.c.b16 %v8618, %v8617
        %v8693 = vpack.c.b16 %v8620, %v8619
        %v8694 = vpack.c.b16 %v8622, %v8621
        %v8695 = vpack.c.b16 %v8624, %v8623
        %v8696 = vpack.c.b16 %v8626, %v8625
        %v8697 = vpack.c.b16 %v8628, %v8627
        %v8698 = vpack.c.b16 %v8630, %v8629
        %v8699 = vpack.c.b16 %v8632, %v8631
        %v8700 = vpack.c.b16 %v8634, %v8633
        %v8701 = vpack.c.b16 %v8636, %v8635
        %v8702 = vpack.c.b16 %v8638, %v8637
        %v8703 = vpack.c.b16 %v8640, %v8639
        %v8704 = vpack.c.b16 %v8642, %v8641
        %v8705 = vpack.c.b16 %v8644, %v8643
        %v8706 = vpack.c.b16 %v8646, %v8645
        %v8707 = vpack.c.b16 %v8648, %v8647
        %v8708 = vpack.c.b16 %v8650, %v8649
        %v8709 = vpack.c.b16 %v8652, %v8651
        %v8710 = vpack.c.b16 %v8654, %v8653
        %v8711 = vpack.c.b16 %v8656, %v8655
        %v8712 = vpack.c.b16 %v8658, %v8657
        %v8713 = vpack.c.b16 %v8660, %v8659
        %v8714 = vpack.c.b16 %v8662, %v8661
        %v8715 = vpack.c.b16 %v8664, %v8663
        %v8716 = vpack.c.b16 %v8666, %v8665
        %v8717 = vpack.c.b16 %v8668, %v8667
        %v8718 = vpack.c.b16 %v8670, %v8669
        %v8719 = vpack.c.b16 %v8672, %v8671
        %v8720 = vpack.c.b16 %v8674, %v8673
        %v8721 = vpack.c.b16 %v8676, %v8675
        %v8722 = vpack.c.b16 %v8678, %v8677
        %v8723 = vpack.c.b16 %v8680, %v8679
        %v8724 = vpack.c.b16 %v8682, %v8681
        %v8725 = vpack.c.b16 %v8684, %v8683
        %v8726 = vpack.c.b16 %v8686, %v8685
        %8767 = vmatprep.subr.bf16.mxu0 0
        %8768 = vmatpush1.bf16.msra.mxu0 %v8687
        %8769 = vmatprep.subr.bf16.mxu0 0
        %8770 = vmatpush1.bf16.msra.mxu0 %v8688
        %8771 = vmatprep.subr.bf16.mxu0 0
        %8772 = vmatpush1.bf16.msra.mxu0 %v8689
        %8773 = vmatprep.subr.bf16.mxu0 0
        %8774 = vmatpush1.bf16.msra.mxu0 %v8690
        %8775 = vmatprep.subr.bf16.mxu0 0
        %8776 = vmatpush1.bf16.msra.mxu0 %v8691
        %8777 = vmatprep.subr.bf16.mxu0 0
        %8778 = vmatpush1.bf16.msra.mxu0 %v8692
        %8779 = vmatprep.subr.bf16.mxu0 0
        %8780 = vmatpush1.bf16.msra.mxu0 %v8693
        %8781 = vmatprep.subr.bf16.mxu0 0
        %8782 = vmatpush1.bf16.msra.mxu0 %v8694
        %8783 = vmatprep.subr.bf16.mxu0 0
        %8784 = vmatpush1.bf16.msra.mxu0 %v8695
        %8785 = vmatprep.subr.bf16.mxu0 0
        %8786 = vmatpush1.bf16.msra.mxu0 %v8696
        %8787 = vmatprep.subr.bf16.mxu0 0
        %8788 = vmatpush1.bf16.msra.mxu0 %v8697
        %8789 = vmatprep.subr.bf16.mxu0 0
        %8790 = vmatpush1.bf16.msra.mxu0 %v8698
        %8791 = vmatprep.subr.bf16.mxu0 0
        %8792 = vmatpush1.bf16.msra.mxu0 %v8699
        %8793 = vmatprep.subr.bf16.mxu0 0
        %8794 = vmatpush1.bf16.msra.mxu0 %v8700
        %8795 = vmatprep.subr.bf16.mxu0 0
        %8796 = vmatpush1.bf16.msra.mxu0 %v8701
        %8797 = vmatprep.subr.bf16.mxu0 0
        %8798 = vmatpush1.bf16.msra.mxu0 %v8702
        %8799 = vmatprep.mubr.bf16.mxu0 %v8437
        %8800 = vmatmul.mubr.bf16.gmra.mrb[0].mxu0 %v8434
        %v8801 = vpop.f32.mrb[0].mxu0
        %v8802 = vadd.f32 0.0, %v8801
        %v8803 = vpop.f32.mrb[0].mxu0
        %v8804 = vpop.f32.mrb[0].mxu0
        %v8805 = vadd.f32 0.0, %v8804
        %v8806 = vpop.f32.mrb[0].mxu0
        %8807 = vdwg.mxu0
        %8808 = vmatprep.subr.bf16.mxu0 0
        %8809 = vmatpush1.bf16.msra.mxu0 %v8703
        %8810 = vmatprep.subr.bf16.mxu0 0
        %8811 = vmatpush1.bf16.msra.mxu0 %v8704
        %8812 = vmatprep.subr.bf16.mxu0 0
        %8813 = vmatpush1.bf16.msra.mxu0 %v8705
        %8814 = vmatprep.subr.bf16.mxu0 0
        %8815 = vmatpush1.bf16.msra.mxu0 %v8706
        %8816 = vmatprep.subr.bf16.mxu0 0
        %8817 = vmatpush1.bf16.msra.mxu0 %v8707
        %8818 = vmatprep.subr.bf16.mxu0 0
        %8819 = vmatpush1.bf16.msra.mxu0 %v8708
        %8820 = vmatprep.subr.bf16.mxu0 0
        %8821 = vmatpush1.bf16.msra.mxu0 %v8709
        %8822 = vmatprep.subr.bf16.mxu0 0
        %8823 = vmatpush1.bf16.msra.mxu0 %v8710
        %8824 = vmatprep.subr.bf16.mxu0 0
        %8825 = vmatpush1.bf16.msra.mxu0 %v8711
        %8826 = vmatprep.subr.bf16.mxu0 0
        %8827 = vmatpush1.bf16.msra.mxu0 %v8712
        %8828 = vmatprep.subr.bf16.mxu0 0
        %8829 = vmatpush1.bf16.msra.mxu0 %v8713
        %8830 = vmatprep.subr.bf16.mxu0 0
        %8831 = vmatpush1.bf16.msra.mxu0 %v8714
        %8832 = vmatprep.subr.bf16.mxu0 0
        %8833 = vmatpush1.bf16.msra.mxu0 %v8715
        %8834 = vmatprep.subr.bf16.mxu0 0
        %8835 = vmatpush1.bf16.msra.mxu0 %v8716
        %8836 = vmatprep.subr.bf16.mxu0 0
        %8837 = vmatpush1.bf16.msra.mxu0 %v8717
        %8838 = vmatprep.subr.bf16.mxu0 0
        %8839 = vmatpush1.bf16.msra.mxu0 %v8718
        %8840 = vmatprep.mubr.bf16.mxu0 %v8443
        %8841 = vmatmul.mubr.bf16.gmra.mrb[0].mxu0 %v8440
        %v8842 = vpop.f32.mrb[0].mxu0
        %v8843 = vadd.f32 %v8802, %v8842
        %v8844 = vpop.f32.mrb[0].mxu0
        %v8845 = vpop.f32.mrb[0].mxu0
        %v8846 = vadd.f32 %v8805, %v8845
        %v8847 = vpop.f32.mrb[0].mxu0
        %8848 = vdwg.mxu0
        %8849 = vmatprep.subr.bf16.mxu0 0
        %8850 = vmatpush1.bf16.msra.mxu0 %v8719
        %8851 = vmatprep.subr.bf16.mxu0 0
        %8852 = vmatpush1.bf16.msra.mxu0 %v8720
        %8853 = vmatprep.subr.bf16.mxu0 0
        %8854 = vmatpush1.bf16.msra.mxu0 %v8721
        %8855 = vmatprep.subr.bf16.mxu0 0
        %8856 = vmatpush1.bf16.msra.mxu0 %v8722
        %8857 = vmatprep.subr.bf16.mxu0 0
        %8858 = vmatpush1.bf16.msra.mxu0 %v8723
        %8859 = vmatprep.subr.bf16.mxu0 0
        %8860 = vmatpush1.bf16.msra.mxu0 %v8724
        %8861 = vmatprep.subr.bf16.mxu0 0
        %8862 = vmatpush1.bf16.msra.mxu0 %v8725
        %8863 = vmatprep.subr.bf16.mxu0 0
        %8864 = vmatpush1.bf16.msra.mxu0 %v8726
        %8865 = vmatprep.subr.bf16.mxu0 0
        %8866 = vmatpush1.bf16.msra.mxu0 0
        %8867 = vmatprep.subr.bf16.mxu0 0
        %8868 = vmatpush1.bf16.msra.mxu0 0
        %8869 = vmatprep.subr.bf16.mxu0 0
        %8870 = vmatpush1.bf16.msra.mxu0 0
        %8871 = vmatprep.subr.bf16.mxu0 0
        %8872 = vmatpush1.bf16.msra.mxu0 0
        %8873 = vmatprep.subr.bf16.mxu0 0
        %8874 = vmatpush1.bf16.msra.mxu0 0
        %8875 = vmatprep.subr.bf16.mxu0 0
        %8876 = vmatpush1.bf16.msra.mxu0 0
        %8877 = vmatprep.subr.bf16.mxu0 0
        %8878 = vmatpush1.bf16.msra.mxu0 0
        %8879 = vmatprep.subr.bf16.mxu0 0
        %8880 = vmatpush1.bf16.msra.mxu0 0
        %8881 = vmatprep.mubr.bf16.mxu0 0
        %8882 = vmatmul.mubr.bf16.gmra.mrb[0].mxu0 %v8446
        %v8883 = vpop.f32.mrb[0].mxu0
        %v8884 = vadd.f32 %v8843, %v8883
        %v8885 = vpop.f32.mrb[0].mxu0
        %v8886 = vpop.f32.mrb[0].mxu0
        %v8887 = vadd.f32 %v8846, %v8886
        %v8888 = vpop.f32.mrb[0].mxu0
        %8889 = vdwg.mxu0
        %v8890 = vmax.f32 %v8884, 0.0
        %v8891 = vmax.f32 %v8887, 0.0
        %8892 = vst [vmem:[#allocation10 + $0x1] sm:$0xff] %v8890
        %8893 = vst [vmem:[#allocation10 + $0x9] sm:$0xff] %v8891
        %v8894 = vld [vmem:[#allocation10] sm:$0xff]
        %v8895 = vld [vmem:[#allocation10 + $0x8] sm:$0xff]
        %v8896 = vpack.c.bf16 %v8895, %v8894
        %v8897 = vld [vmem:[#allocation10 + $0x1] sm:$0xff]
        %v8898 = vld [vmem:[#allocation10 + $0x9] sm:$0xff]
        %v8899 = vpack.c.bf16 %v8898, %v8897
        %v8900 = vld [vmem:[#allocation10 + $0x2] sm:$0xff]
        %v8901 = vld [vmem:[#allocation10 + $0xa] sm:$0xff]
        %v8902 = vpack.c.bf16 %v8901, %v8900
        %v8903 = vld [vmem:[#allocation25] sm:$0xf]
        %v8904 = vld [vmem:[#allocation25 + $0x4] sm:$0xf]
        %v8905 = vld [vmem:[#allocation25 + $0x8] sm:$0xf]
        %v8906 = vld [vmem:[#allocation25 + $0xc] sm:$0xf]
        %v8907 = vld [vmem:[#allocation25 + $0x10] sm:$0xf]
        %v8908 = vld [vmem:[#allocation25 + $0x14] sm:$0xf]
        %v8909 = vld [vmem:[#allocation25 + $0x18] sm:$0xf]
        %v8910 = vld [vmem:[#allocation25 + $0x1c] sm:$0xf]
        %v8911 = vld [vmem:[#allocation25 + $0x20] sm:$0xf]
        %v8912 = vld [vmem:[#allocation25 + $0x24] sm:$0xf]
        %v8913 = vld [vmem:[#allocation25 + $0x28] sm:$0xf]
        %v8914 = vld [vmem:[#allocation25 + $0x2c] sm:$0xf]
        %v8915 = vld [vmem:[#allocation25 + $0x30] sm:$0xf]
        %v8916 = vld [vmem:[#allocation25 + $0x34] sm:$0xf]
        %v8917 = vld [vmem:[#allocation25 + $0x38] sm:$0xf]
        %v8918 = vld [vmem:[#allocation25 + $0x3c] sm:$0xf]
        %v8919 = vld [vmem:[#allocation25 + $0x40] sm:$0xf]
        %v8920 = vld [vmem:[#allocation25 + $0x44] sm:$0xf]
        %v8921 = vld [vmem:[#allocation25 + $0x48] sm:$0xf]
        %v8922 = vld [vmem:[#allocation25 + $0x4c] sm:$0xf]
        %v8923 = vld [vmem:[#allocation25 + $0x50] sm:$0xf]
        %v8924 = vld [vmem:[#allocation25 + $0x54] sm:$0xf]
        %v8925 = vld [vmem:[#allocation25 + $0x58] sm:$0xf]
        %v8926 = vld [vmem:[#allocation25 + $0x5c] sm:$0xf]
        %v8927 = vld [vmem:[#allocation25 + $0x60] sm:$0xf]
        %v8928 = vld [vmem:[#allocation25 + $0x64] sm:$0xf]
        %v8929 = vld [vmem:[#allocation25 + $0x68] sm:$0xf]
        %v8930 = vld [vmem:[#allocation25 + $0x6c] sm:$0xf]
        %v8931 = vld [vmem:[#allocation25 + $0x70] sm:$0xf]
        %v8932 = vld [vmem:[#allocation25 + $0x74] sm:$0xf]
        %v8933 = vld [vmem:[#allocation25 + $0x78] sm:$0xf]
        %v8934 = vld [vmem:[#allocation25 + $0x7c] sm:$0xf]
        %v8935 = vld [vmem:[#allocation25 + $0x80] sm:$0xf]
        %v8936 = vld [vmem:[#allocation25 + $0x84] sm:$0xf]
        %v8937 = vld [vmem:[#allocation25 + $0x88] sm:$0xf]
        %v8938 = vld [vmem:[#allocation25 + $0x8c] sm:$0xf]
        %v8939 = vld [vmem:[#allocation25 + $0x90] sm:$0xf]
        %v8940 = vld [vmem:[#allocation25 + $0x94] sm:$0xf]
        %v8941 = vld [vmem:[#allocation25 + $0x98] sm:$0xf]
        %v8942 = vld [vmem:[#allocation25 + $0x9c] sm:$0xf]
        %v8943 = vld [vmem:[#allocation25 + $0xa0] sm:$0xf]
        %v8944 = vld [vmem:[#allocation25 + $0xa4] sm:$0xf]
        %v8945 = vld [vmem:[#allocation25 + $0xa8] sm:$0xf]
        %v8946 = vld [vmem:[#allocation25 + $0xac] sm:$0xf]
        %v8947 = vld [vmem:[#allocation25 + $0xb0] sm:$0xf]
        %v8948 = vld [vmem:[#allocation25 + $0xb4] sm:$0xf]
        %v8949 = vld [vmem:[#allocation25 + $0xb8] sm:$0xf]
        %v8950 = vld [vmem:[#allocation25 + $0xbc] sm:$0xf]
        %v8999 = vunpack.c.l.b16 %v8903
        %v9000 = vunpack.c.l.b16 %v8904
        %v9001 = vunpack.c.l.b16 %v8905
        %v9002 = vunpack.c.l.b16 %v8906
        %v9003 = vunpack.c.l.b16 %v8907
        %v9004 = vunpack.c.l.b16 %v8908
        %v9005 = vunpack.c.l.b16 %v8909
        %v9006 = vunpack.c.l.b16 %v8910
        %v9007 = vunpack.c.l.b16 %v8911
        %v9008 = vunpack.c.l.b16 %v8912
        %v9009 = vunpack.c.l.b16 %v8913
        %v9010 = vunpack.c.l.b16 %v8914
        %v9011 = vunpack.c.l.b16 %v8915
        %v9012 = vunpack.c.l.b16 %v8916
        %v9013 = vunpack.c.l.b16 %v8917
        %v9014 = vunpack.c.l.b16 %v8918
        %v9015 = vunpack.c.l.b16 %v8919
        %v9016 = vunpack.c.l.b16 %v8920
        %v9017 = vunpack.c.l.b16 %v8921
        %v9018 = vunpack.c.l.b16 %v8922
        %v9019 = vunpack.c.l.b16 %v8923
        %v9020 = vunpack.c.l.b16 %v8924
        %v9021 = vunpack.c.l.b16 %v8925
        %v9022 = vunpack.c.l.b16 %v8926
        %v9023 = vunpack.c.l.b16 %v8927
        %v9024 = vunpack.c.l.b16 %v8928
        %v9025 = vunpack.c.l.b16 %v8929
        %v9026 = vunpack.c.l.b16 %v8930
        %v9027 = vunpack.c.l.b16 %v8931
        %v9028 = vunpack.c.l.b16 %v8932
        %v9029 = vunpack.c.l.b16 %v8933
        %v9030 = vunpack.c.l.b16 %v8934
        %v9031 = vunpack.c.l.b16 %v8935
        %v9032 = vunpack.c.l.b16 %v8936
        %v9033 = vunpack.c.l.b16 %v8937
        %v9034 = vunpack.c.l.b16 %v8938
        %v9035 = vunpack.c.l.b16 %v8939
        %v9036 = vunpack.c.l.b16 %v8940
        %v9037 = vunpack.c.l.b16 %v8941
        %v9038 = vunpack.c.l.b16 %v8942
        %v9039 = vunpack.c.l.b16 %v8943
        %v9040 = vunpack.c.l.b16 %v8944
        %v9041 = vunpack.c.l.b16 %v8945
        %v9042 = vunpack.c.l.b16 %v8946
        %v9043 = vunpack.c.l.b16 %v8947
        %v9044 = vunpack.c.l.b16 %v8948
        %v9045 = vunpack.c.l.b16 %v8949
        %v9046 = vunpack.c.l.b16 %v8950
        %v9047 = vpack.c.b16 %v9000, %v8999
        %v9048 = vpack.c.b16 %v9002, %v9001
        %v9049 = vpack.c.b16 %v9004, %v9003
        %v9050 = vpack.c.b16 %v9006, %v9005
        %v9051 = vpack.c.b16 %v9008, %v9007
        %v9052 = vpack.c.b16 %v9010, %v9009
        %v9053 = vpack.c.b16 %v9012, %v9011
        %v9054 = vpack.c.b16 %v9014, %v9013
        %v9055 = vpack.c.b16 %v9016, %v9015
        %v9056 = vpack.c.b16 %v9018, %v9017
        %v9057 = vpack.c.b16 %v9020, %v9019
        %v9058 = vpack.c.b16 %v9022, %v9021
        %v9059 = vpack.c.b16 %v9024, %v9023
        %v9060 = vpack.c.b16 %v9026, %v9025
        %v9061 = vpack.c.b16 %v9028, %v9027
        %v9062 = vpack.c.b16 %v9030, %v9029
        %v9063 = vpack.c.b16 %v9032, %v9031
        %v9064 = vpack.c.b16 %v9034, %v9033
        %v9065 = vpack.c.b16 %v9036, %v9035
        %v9066 = vpack.c.b16 %v9038, %v9037
        %v9067 = vpack.c.b16 %v9040, %v9039
        %v9068 = vpack.c.b16 %v9042, %v9041
        %v9069 = vpack.c.b16 %v9044, %v9043
        %v9070 = vpack.c.b16 %v9046, %v9045
        %9095 = vmatprep.subr.bf16.mxu0 0
        %9096 = vmatpush1.bf16.msra.mxu0 %v9047
        %9097 = vmatprep.subr.bf16.mxu0 0
        %9098 = vmatpush1.bf16.msra.mxu0 %v9048
        %9099 = vmatprep.subr.bf16.mxu0 0
        %9100 = vmatpush1.bf16.msra.mxu0 %v9049
        %9101 = vmatprep.subr.bf16.mxu0 0
        %9102 = vmatpush1.bf16.msra.mxu0 %v9050
        %9103 = vmatprep.subr.bf16.mxu0 0
        %9104 = vmatpush1.bf16.msra.mxu0 %v9051
        %9105 = vmatprep.subr.bf16.mxu0 0
        %9106 = vmatpush1.bf16.msra.mxu0 %v9052
        %9107 = vmatprep.subr.bf16.mxu0 0
        %9108 = vmatpush1.bf16.msra.mxu0 %v9053
        %9109 = vmatprep.subr.bf16.mxu0 0
        %9110 = vmatpush1.bf16.msra.mxu0 %v9054
        %9111 = vmatprep.subr.bf16.mxu0 0
        %9112 = vmatpush1.bf16.msra.mxu0 %v9055
        %9113 = vmatprep.subr.bf16.mxu0 0
        %9114 = vmatpush1.bf16.msra.mxu0 %v9056
        %9115 = vmatprep.subr.bf16.mxu0 0
        %9116 = vmatpush1.bf16.msra.mxu0 %v9057
        %9117 = vmatprep.subr.bf16.mxu0 0
        %9118 = vmatpush1.bf16.msra.mxu0 %v9058
        %9119 = vmatprep.subr.bf16.mxu0 0
        %9120 = vmatpush1.bf16.msra.mxu0 %v9059
        %9121 = vmatprep.subr.bf16.mxu0 0
        %9122 = vmatpush1.bf16.msra.mxu0 %v9060
        %9123 = vmatprep.subr.bf16.mxu0 0
        %9124 = vmatpush1.bf16.msra.mxu0 %v9061
        %9125 = vmatprep.subr.bf16.mxu0 0
        %9126 = vmatpush1.bf16.msra.mxu0 %v9062
        %9127 = vmatprep.mubr.bf16.mxu0 %v8899
        %9128 = vmatmul.mubr.bf16.gmra.mrb[0].mxu0 %v8896
        %v9129 = vpop.f32.mrb[0].mxu0
        %v9130 = vadd.f32 0.0, %v9129
        %v9131 = vpop.f32.mrb[0].mxu0
        %v9132 = vpop.f32.mrb[0].mxu0
        %v9133 = vadd.f32 0.0, %v9132
        %v9134 = vpop.f32.mrb[0].mxu0
        %9135 = vdwg.mxu0
        %9136 = vmatprep.subr.bf16.mxu0 0
        %9137 = vmatpush1.bf16.msra.mxu0 %v9063
        %9138 = vmatprep.subr.bf16.mxu0 0
        %9139 = vmatpush1.bf16.msra.mxu0 %v9064
        %9140 = vmatprep.subr.bf16.mxu0 0
        %9141 = vmatpush1.bf16.msra.mxu0 %v9065
        %9142 = vmatprep.subr.bf16.mxu0 0
        %9143 = vmatpush1.bf16.msra.mxu0 %v9066
        %9144 = vmatprep.subr.bf16.mxu0 0
        %9145 = vmatpush1.bf16.msra.mxu0 %v9067
        %9146 = vmatprep.subr.bf16.mxu0 0
        %9147 = vmatpush1.bf16.msra.mxu0 %v9068
        %9148 = vmatprep.subr.bf16.mxu0 0
        %9149 = vmatpush1.bf16.msra.mxu0 %v9069
        %9150 = vmatprep.subr.bf16.mxu0 0
        %9151 = vmatpush1.bf16.msra.mxu0 %v9070
        %9152 = vmatprep.subr.bf16.mxu0 0
        %9153 = vmatpush1.bf16.msra.mxu0 0
        %9154 = vmatprep.subr.bf16.mxu0 0
        %9155 = vmatpush1.bf16.msra.mxu0 0
        %9156 = vmatprep.subr.bf16.mxu0 0
        %9157 = vmatpush1.bf16.msra.mxu0 0
        %9158 = vmatprep.subr.bf16.mxu0 0
        %9159 = vmatpush1.bf16.msra.mxu0 0
        %9160 = vmatprep.subr.bf16.mxu0 0
        %9161 = vmatpush1.bf16.msra.mxu0 0
        %9162 = vmatprep.subr.bf16.mxu0 0
        %9163 = vmatpush1.bf16.msra.mxu0 0
        %9164 = vmatprep.subr.bf16.mxu0 0
        %9165 = vmatpush1.bf16.msra.mxu0 0
        %9166 = vmatprep.subr.bf16.mxu0 0
        %9167 = vmatpush1.bf16.msra.mxu0 0
        %9168 = vmatprep.mubr.bf16.mxu0 0
        %9169 = vmatmul.mubr.bf16.gmra.mrb[0].mxu0 %v8902
        %v9170 = vpop.f32.mrb[0].mxu0
        %v9171 = vadd.f32 %v9130, %v9170
        %v9172 = vpop.f32.mrb[0].mxu0
        %v9173 = vpop.f32.mrb[0].mxu0
        %v9174 = vadd.f32 %v9133, %v9173
        %v9175 = vpop.f32.mrb[0].mxu0
        %9176 = vdwg.mxu0
        %9177 = vst [vmem:[#allocation11 + $0x1] sm:$0xff] %v9171
        %9178 = vst [vmem:[#allocation11 + $0x9] sm:$0xff] %v9174
        %v9179 = vld [vmem:[#allocation11] sm:$0xff]
        %v9180 = vld [vmem:[#allocation11 + $0x8] sm:$0xff]
        %v9181 = vpack.c.bf16 %v9180, %v9179
        %v9182 = vld [vmem:[#allocation11 + $0x1] sm:$0xff]
        %v9183 = vld [vmem:[#allocation11 + $0x9] sm:$0xff]
        %v9184 = vpack.c.bf16 %v9183, %v9182
        %v9185 = vld [vmem:[#allocation11 + $0x2] sm:$0xff]
        %v9186 = vld [vmem:[#allocation11 + $0xa] sm:$0xff]
        %v9187 = vpack.c.bf16 %v9186, %v9185
        %v9188 = vld [vmem:[#allocation26] sm:$0xf]
        %v9189 = vld [vmem:[#allocation26 + $0x4] sm:$0xf]
        %v9190 = vld [vmem:[#allocation26 + $0x8] sm:$0xf]
        %v9191 = vld [vmem:[#allocation26 + $0xc] sm:$0xf]
        %v9192 = vld [vmem:[#allocation26 + $0x10] sm:$0xf]
        %v9193 = vld [vmem:[#allocation26 + $0x14] sm:$0xf]
        %v9194 = vld [vmem:[#allocation26 + $0x18] sm:$0xf]
        %v9195 = vld [vmem:[#allocation26 + $0x1c] sm:$0xf]
        %v9196 = vld [vmem:[#allocation26 + $0x20] sm:$0xf]
        %v9197 = vld [vmem:[#allocation26 + $0x24] sm:$0xf]
        %v9198 = vld [vmem:[#allocation26 + $0x28] sm:$0xf]
        %v9199 = vld [vmem:[#allocation26 + $0x2c] sm:$0xf]
        %v9200 = vld [vmem:[#allocation26 + $0x30] sm:$0xf]
        %v9201 = vld [vmem:[#allocation26 + $0x34] sm:$0xf]
        %v9202 = vld [vmem:[#allocation26 + $0x38] sm:$0xf]
        %v9203 = vld [vmem:[#allocation26 + $0x3c] sm:$0xf]
        %v9204 = vld [vmem:[#allocation26 + $0x40] sm:$0xf]
        %v9205 = vld [vmem:[#allocation26 + $0x44] sm:$0xf]
        %v9206 = vld [vmem:[#allocation26 + $0x48] sm:$0xf]
        %v9207 = vld [vmem:[#allocation26 + $0x4c] sm:$0xf]
        %v9208 = vld [vmem:[#allocation26 + $0x50] sm:$0xf]
        %v9209 = vld [vmem:[#allocation26 + $0x54] sm:$0xf]
        %v9210 = vld [vmem:[#allocation26 + $0x58] sm:$0xf]
        %v9211 = vld [vmem:[#allocation26 + $0x5c] sm:$0xf]
        %v9212 = vld [vmem:[#allocation26 + $0x60] sm:$0xf]
        %v9213 = vld [vmem:[#allocation26 + $0x64] sm:$0xf]
        %v9214 = vld [vmem:[#allocation26 + $0x68] sm:$0xf]
        %v9215 = vld [vmem:[#allocation26 + $0x6c] sm:$0xf]
        %v9216 = vld [vmem:[#allocation26 + $0x70] sm:$0xf]
        %v9217 = vld [vmem:[#allocation26 + $0x74] sm:$0xf]
        %v9218 = vld [vmem:[#allocation26 + $0x78] sm:$0xf]
        %v9219 = vld [vmem:[#allocation26 + $0x7c] sm:$0xf]
        %v9220 = vld [vmem:[#allocation26 + $0x80] sm:$0xf]
        %v9221 = vld [vmem:[#allocation26 + $0x84] sm:$0xf]
        %v9222 = vld [vmem:[#allocation26 + $0x88] sm:$0xf]
        %v9223 = vld [vmem:[#allocation26 + $0x8c] sm:$0xf]
        %v9224 = vld [vmem:[#allocation26 + $0x90] sm:$0xf]
        %v9225 = vld [vmem:[#allocation26 + $0x94] sm:$0xf]
        %v9226 = vld [vmem:[#allocation26 + $0x98] sm:$0xf]
        %v9227 = vld [vmem:[#allocation26 + $0x9c] sm:$0xf]
        %v9228 = vld [vmem:[#allocation26 + $0xa0] sm:$0xf]
        %v9229 = vld [vmem:[#allocation26 + $0xa4] sm:$0xf]
        %v9230 = vld [vmem:[#allocation26 + $0xa8] sm:$0xf]
        %v9231 = vld [vmem:[#allocation26 + $0xac] sm:$0xf]
        %v9232 = vld [vmem:[#allocation26 + $0xb0] sm:$0xf]
        %v9233 = vld [vmem:[#allocation26 + $0xb4] sm:$0xf]
        %v9234 = vld [vmem:[#allocation26 + $0xb8] sm:$0xf]
        %v9235 = vld [vmem:[#allocation26 + $0xbc] sm:$0xf]
        %v9284 = vunpack.c.l.b16 %v9188
        %v9285 = vunpack.c.l.b16 %v9189
        %v9286 = vunpack.c.l.b16 %v9190
        %v9287 = vunpack.c.l.b16 %v9191
        %v9288 = vunpack.c.l.b16 %v9192
        %v9289 = vunpack.c.l.b16 %v9193
        %v9290 = vunpack.c.l.b16 %v9194
        %v9291 = vunpack.c.l.b16 %v9195
        %v9292 = vunpack.c.l.b16 %v9196
        %v9293 = vunpack.c.l.b16 %v9197
        %v9294 = vunpack.c.l.b16 %v9198
        %v9295 = vunpack.c.l.b16 %v9199
        %v9296 = vunpack.c.l.b16 %v9200
        %v9297 = vunpack.c.l.b16 %v9201
        %v9298 = vunpack.c.l.b16 %v9202
        %v9299 = vunpack.c.l.b16 %v9203
        %v9300 = vunpack.c.l.b16 %v9204
        %v9301 = vunpack.c.l.b16 %v9205
        %v9302 = vunpack.c.l.b16 %v9206
        %v9303 = vunpack.c.l.b16 %v9207
        %v9304 = vunpack.c.l.b16 %v9208
        %v9305 = vunpack.c.l.b16 %v9209
        %v9306 = vunpack.c.l.b16 %v9210
        %v9307 = vunpack.c.l.b16 %v9211
        %v9308 = vunpack.c.l.b16 %v9212
        %v9309 = vunpack.c.l.b16 %v9213
        %v9310 = vunpack.c.l.b16 %v9214
        %v9311 = vunpack.c.l.b16 %v9215
        %v9312 = vunpack.c.l.b16 %v9216
        %v9313 = vunpack.c.l.b16 %v9217
        %v9314 = vunpack.c.l.b16 %v9218
        %v9315 = vunpack.c.l.b16 %v9219
        %v9316 = vunpack.c.l.b16 %v9220
        %v9317 = vunpack.c.l.b16 %v9221
        %v9318 = vunpack.c.l.b16 %v9222
        %v9319 = vunpack.c.l.b16 %v9223
        %v9320 = vunpack.c.l.b16 %v9224
        %v9321 = vunpack.c.l.b16 %v9225
        %v9322 = vunpack.c.l.b16 %v9226
        %v9323 = vunpack.c.l.b16 %v9227
        %v9324 = vunpack.c.l.b16 %v9228
        %v9325 = vunpack.c.l.b16 %v9229
        %v9326 = vunpack.c.l.b16 %v9230
        %v9327 = vunpack.c.l.b16 %v9231
        %v9328 = vunpack.c.l.b16 %v9232
        %v9329 = vunpack.c.l.b16 %v9233
        %v9330 = vunpack.c.l.b16 %v9234
        %v9331 = vunpack.c.l.b16 %v9235
        %v9332 = vpack.c.b16 %v9285, %v9284
        %v9333 = vpack.c.b16 %v9287, %v9286
        %v9334 = vpack.c.b16 %v9289, %v9288
        %v9335 = vpack.c.b16 %v9291, %v9290
        %v9336 = vpack.c.b16 %v9293, %v9292
        %v9337 = vpack.c.b16 %v9295, %v9294
        %v9338 = vpack.c.b16 %v9297, %v9296
        %v9339 = vpack.c.b16 %v9299, %v9298
        %v9340 = vpack.c.b16 %v9301, %v9300
        %v9341 = vpack.c.b16 %v9303, %v9302
        %v9342 = vpack.c.b16 %v9305, %v9304
        %v9343 = vpack.c.b16 %v9307, %v9306
        %v9344 = vpack.c.b16 %v9309, %v9308
        %v9345 = vpack.c.b16 %v9311, %v9310
        %v9346 = vpack.c.b16 %v9313, %v9312
        %v9347 = vpack.c.b16 %v9315, %v9314
        %v9348 = vpack.c.b16 %v9317, %v9316
        %v9349 = vpack.c.b16 %v9319, %v9318
        %v9350 = vpack.c.b16 %v9321, %v9320
        %v9351 = vpack.c.b16 %v9323, %v9322
        %v9352 = vpack.c.b16 %v9325, %v9324
        %v9353 = vpack.c.b16 %v9327, %v9326
        %v9354 = vpack.c.b16 %v9329, %v9328
        %v9355 = vpack.c.b16 %v9331, %v9330
        %9380 = vmatprep.subr.bf16.mxu0 0
        %9381 = vmatpush1.bf16.msra.mxu0 %v9332
        %9382 = vmatprep.subr.bf16.mxu0 0
        %9383 = vmatpush1.bf16.msra.mxu0 %v9333
        %9384 = vmatprep.subr.bf16.mxu0 0
        %9385 = vmatpush1.bf16.msra.mxu0 %v9334
        %9386 = vmatprep.subr.bf16.mxu0 0
        %9387 = vmatpush1.bf16.msra.mxu0 %v9335
        %9388 = vmatprep.subr.bf16.mxu0 0
        %9389 = vmatpush1.bf16.msra.mxu0 %v9336
        %9390 = vmatprep.subr.bf16.mxu0 0
        %9391 = vmatpush1.bf16.msra.mxu0 %v9337
        %9392 = vmatprep.subr.bf16.mxu0 0
        %9393 = vmatpush1.bf16.msra.mxu0 %v9338
        %9394 = vmatprep.subr.bf16.mxu0 0
        %9395 = vmatpush1.bf16.msra.mxu0 %v9339
        %9396 = vmatprep.subr.bf16.mxu0 0
        %9397 = vmatpush1.bf16.msra.mxu0 %v9340
        %9398 = vmatprep.subr.bf16.mxu0 0
        %9399 = vmatpush1.bf16.msra.mxu0 %v9341
        %9400 = vmatprep.subr.bf16.mxu0 0
        %9401 = vmatpush1.bf16.msra.mxu0 %v9342
        %9402 = vmatprep.subr.bf16.mxu0 0
        %9403 = vmatpush1.bf16.msra.mxu0 %v9343
        %9404 = vmatprep.subr.bf16.mxu0 0
        %9405 = vmatpush1.bf16.msra.mxu0 %v9344
        %9406 = vmatprep.subr.bf16.mxu0 0
        %9407 = vmatpush1.bf16.msra.mxu0 %v9345
        %9408 = vmatprep.subr.bf16.mxu0 0
        %9409 = vmatpush1.bf16.msra.mxu0 %v9346
        %9410 = vmatprep.subr.bf16.mxu0 0
        %9411 = vmatpush1.bf16.msra.mxu0 %v9347
        %9412 = vmatprep.mubr.bf16.mxu0 %v9184
        %9413 = vmatmul.mubr.bf16.gmra.mrb[0].mxu0 %v9181
        %v9414 = vpop.f32.mrb[0].mxu0
        %v9415 = vadd.f32 0.0, %v9414
        %v9416 = vpop.f32.mrb[0].mxu0
        %v9417 = vpop.f32.mrb[0].mxu0
        %v9418 = vadd.f32 0.0, %v9417
        %v9419 = vpop.f32.mrb[0].mxu0
        %9420 = vdwg.mxu0
        %9421 = vmatprep.subr.bf16.mxu0 0
        %9422 = vmatpush1.bf16.msra.mxu0 %v9348
        %9423 = vmatprep.subr.bf16.mxu0 0
        %9424 = vmatpush1.bf16.msra.mxu0 %v9349
        %9425 = vmatprep.subr.bf16.mxu0 0
        %9426 = vmatpush1.bf16.msra.mxu0 %v9350
        %9427 = vmatprep.subr.bf16.mxu0 0
        %9428 = vmatpush1.bf16.msra.mxu0 %v9351
        %9429 = vmatprep.subr.bf16.mxu0 0
        %9430 = vmatpush1.bf16.msra.mxu0 %v9352
        %9431 = vmatprep.subr.bf16.mxu0 0
        %9432 = vmatpush1.bf16.msra.mxu0 %v9353
        %9433 = vmatprep.subr.bf16.mxu0 0
        %9434 = vmatpush1.bf16.msra.mxu0 %v9354
        %9435 = vmatprep.subr.bf16.mxu0 0
        %9436 = vmatpush1.bf16.msra.mxu0 %v9355
        %9437 = vmatprep.subr.bf16.mxu0 0
        %9438 = vmatpush1.bf16.msra.mxu0 0
        %9439 = vmatprep.subr.bf16.mxu0 0
        %9440 = vmatpush1.bf16.msra.mxu0 0
        %9441 = vmatprep.subr.bf16.mxu0 0
        %9442 = vmatpush1.bf16.msra.mxu0 0
        %9443 = vmatprep.subr.bf16.mxu0 0
        %9444 = vmatpush1.bf16.msra.mxu0 0
        %9445 = vmatprep.subr.bf16.mxu0 0
        %9446 = vmatpush1.bf16.msra.mxu0 0
        %9447 = vmatprep.subr.bf16.mxu0 0
        %9448 = vmatpush1.bf16.msra.mxu0 0
        %9449 = vmatprep.subr.bf16.mxu0 0
        %9450 = vmatpush1.bf16.msra.mxu0 0
        %9451 = vmatprep.subr.bf16.mxu0 0
        %9452 = vmatpush1.bf16.msra.mxu0 0
        %9453 = vmatprep.mubr.bf16.mxu0 0
        %9454 = vmatmul.mubr.bf16.gmra.mrb[0].mxu0 %v9187
        %v9455 = vpop.f32.mrb[0].mxu0
        %v9456 = vadd.f32 %v9415, %v9455
        %v9457 = vpop.f32.mrb[0].mxu0
        %v9458 = vpop.f32.mrb[0].mxu0
        %v9459 = vadd.f32 %v9418, %v9458
        %v9460 = vpop.f32.mrb[0].mxu0
        %9461 = vdwg.mxu0
        %v9462 = vmax.f32 %v9456, 0.0
        %v9463 = vmax.f32 %v9459, 0.0
        %v9464 = vld [vmem:[#allocation16] sm:$0xff]
        %v9465 = vld [vmem:[#allocation16 + $0x8] sm:$0xff]
        %v9466 = vld [vmem:[#allocation16 + $0x10] sm:$0xff]
        %v9467 = vld [vmem:[#allocation16 + $0x18] sm:$0xff]
        %v9468 = vld [vmem:[#allocation16 + $0x20] sm:$0xff]
        %v9469 = vld [vmem:[#allocation16 + $0x28] sm:$0xff]
        %v9470 = vld [vmem:[#allocation16 + $0x30] sm:$0xff]
        %v9471 = vld [vmem:[#allocation16 + $0x38] sm:$0xff]
        %v9472 = vld [vmem:[#allocation16 + $0x40] sm:$0xff]
        %v9473 = vld [vmem:[#allocation16 + $0x48] sm:$0xff]
        %v9474 = vld [vmem:[#allocation16 + $0x50] sm:$0xff]
        %v9475 = vld [vmem:[#allocation16 + $0x58] sm:$0xff]
        %v9476 = vld [vmem:[#allocation16 + $0x60] sm:$0xff]
        %v9477 = vld [vmem:[#allocation16 + $0x68] sm:$0xff]
        %v9478 = vld [vmem:[#allocation16 + $0x70] sm:$0xff]
        %v9479 = vld [vmem:[#allocation16 + $0x78] sm:$0xff]
        %9480 = vmatprep.subr.mxu0 0.0
        %9481 = vmatpush1.msra.mxu0 %v9464
        %9482 = vmatprep.subr.mxu0 0.0
        %9483 = vmatpush1.msra.mxu0 %v9465
        %9484 = vmatprep.subr.mxu0 0.0
        %9485 = vmatpush1.msra.mxu0 %v9466
        %9486 = vmatprep.subr.mxu0 0.0
        %9487 = vmatpush1.msra.mxu0 %v9467
        %9488 = vmatprep.subr.mxu0 0.0
        %9489 = vmatpush1.msra.mxu0 %v9468
        %9490 = vmatprep.subr.mxu0 0.0
        %9491 = vmatpush1.msra.mxu0 %v9469
        %9492 = vmatprep.subr.mxu0 0.0
        %9493 = vmatpush1.msra.mxu0 %v9470
        %9494 = vmatprep.subr.mxu0 0.0
        %9495 = vmatpush1.msra.mxu0 %v9471
        %9496 = vmatprep.subr.mxu0 0.0
        %9497 = vmatpush1.msra.mxu0 %v9472
        %9498 = vmatprep.subr.mxu0 0.0
        %9499 = vmatpush1.msra.mxu0 %v9473
        %9500 = vmatprep.subr.mxu0 0.0
        %9501 = vmatpush1.msra.mxu0 %v9474
        %9502 = vmatprep.subr.mxu0 0.0
        %9503 = vmatpush1.msra.mxu0 %v9475
        %9504 = vmatprep.subr.mxu0 0.0
        %9505 = vmatpush1.msra.mxu0 %v9476
        %9506 = vmatprep.subr.mxu0 0.0
        %9507 = vmatpush1.msra.mxu0 %v9477
        %9508 = vmatprep.subr.mxu0 0.0
        %9509 = vmatpush1.msra.mxu0 %v9478
        %9510 = vmatprep.subr.mxu0 0.0
        %9511 = vmatpush1.msra.mxu0 %v9479
        %9512 = vmatprep.subr.mxu0 0.0
        %9513 = vmatpush1.msra.mxu0 0.0
        %9514 = vmatprep.subr.mxu0 0.0
        %9515 = vmatpush1.msra.mxu0 0.0
        %9516 = vmatprep.subr.mxu0 0.0
        %9517 = vmatpush1.msra.mxu0 0.0
        %9518 = vmatprep.subr.mxu0 0.0
        %9519 = vmatpush1.msra.mxu0 0.0
        %9520 = vmatprep.subr.mxu0 0.0
        %9521 = vmatpush1.msra.mxu0 0.0
        %9522 = vmatprep.subr.mxu0 0.0
        %9523 = vmatpush1.msra.mxu0 0.0
        %9524 = vmatprep.subr.mxu0 0.0
        %9525 = vmatpush1.msra.mxu0 0.0
        %9526 = vmatprep.subr.mxu0 0.0
        %9527 = vmatpush1.msra.mxu0 0.0
        %9528 = vmatprep.subr.mxu0 0.0
        %9529 = vmatpush1.msra.mxu0 0.0
        %9530 = vmatprep.subr.mxu0 0.0
        %9531 = vmatpush1.msra.mxu0 0.0
        %9532 = vmatprep.subr.mxu0 0.0
        %9533 = vmatpush1.msra.mxu0 0.0
        %9534 = vmatprep.subr.mxu0 0.0
        %9535 = vmatpush1.msra.mxu0 0.0
        %9536 = vmatprep.subr.mxu0 0.0
        %9537 = vmatpush1.msra.mxu0 0.0
        %9538 = vmatprep.subr.mxu0 0.0
        %9539 = vmatpush1.msra.mxu0 0.0
        %9540 = vmatprep.subr.mxu0 0.0
        %9541 = vmatpush1.msra.mxu0 0.0
        %9542 = vmatprep.subr.mxu0 0.0
        %9543 = vmatpush1.msra.mxu0 0.0
        %9544 = vmatprep.mubr.f32.mxu0 0.0
        %9545 = vmatmul.mubr.f32.gmra.mrb[0].mxu0 %v9462
        %v9546 = vpop.f32.mrb[0].mxu0
        %v9547 = vadd.f32 0.0, %v9546
        %v9548 = vpop.f32.mrb[0].mxu0
        %9549 = vmatprep.mubr.f32.mxu0 0.0
        %9550 = vmatmul.mubr.f32.gmra.mrb[0].mxu0 %v9463
        %v9551 = vpop.f32.mrb[0].mxu0
        %v9552 = vadd.f32 0.0, %v9551
        %v9553 = vpop.f32.mrb[0].mxu0
        %9554 = vdwg.mxu0
        %v9555 = vld [vmem:[%s4] sm:$0xff]
        %v9556 = vld [vmem:[%s4 + $0x8] sm:$0xff]
        %vm9557 = vcmask 130048
        %v9559 = vsel %vm9557, %v9555, 0
        %v9562 = vsel %vm9557, %v9556, 0
        %9564 = vmatprep.subr.mxu0 0.0
        %9565 = vmatpush1.msra.mxu0 %v9547
        %9566 = vmatprep.subr.mxu0 0.0
        %9567 = vmatpush1.msra.mxu0 %v9552
        %9568 = vmatprep.subr.mxu0 0.0
        %9569 = vmatpush1.msra.mxu0 0.0
        %9570 = vmatprep.subr.mxu0 0.0
        %9571 = vmatpush1.msra.mxu0 0.0
        %9572 = vmatprep.subr.mxu0 0.0
        %9573 = vmatpush1.msra.mxu0 0.0
        %9574 = vmatprep.subr.mxu0 0.0
        %9575 = vmatpush1.msra.mxu0 0.0
        %9576 = vmatprep.subr.mxu0 0.0
        %9577 = vmatpush1.msra.mxu0 0.0
        %9578 = vmatprep.subr.mxu0 0.0
        %9579 = vmatpush1.msra.mxu0 0.0
        %9580 = vmatprep.subr.mxu0 0.0
        %9581 = vmatpush1.msra.mxu0 0.0
        %9582 = vmatprep.subr.mxu0 0.0
        %9583 = vmatpush1.msra.mxu0 0.0
        %9584 = vmatprep.subr.mxu0 0.0
        %9585 = vmatpush1.msra.mxu0 0.0
        %9586 = vmatprep.subr.mxu0 0.0
        %9587 = vmatpush1.msra.mxu0 0.0
        %9588 = vmatprep.subr.mxu0 0.0
        %9589 = vmatpush1.msra.mxu0 0.0
        %9590 = vmatprep.subr.mxu0 0.0
        %9591 = vmatpush1.msra.mxu0 0.0
        %9592 = vmatprep.subr.mxu0 0.0
        %9593 = vmatpush1.msra.mxu0 0.0
        %9594 = vmatprep.subr.mxu0 0.0
        %9595 = vmatpush1.msra.mxu0 0.0
        %9596 = vmatprep.subr.mxu0 0.0
        %9597 = vmatpush1.msra.mxu0 0.0
        %9598 = vmatprep.subr.mxu0 0.0
        %9599 = vmatpush1.msra.mxu0 0.0
        %9600 = vmatprep.subr.mxu0 0.0
        %9601 = vmatpush1.msra.mxu0 0.0
        %9602 = vmatprep.subr.mxu0 0.0
        %9603 = vmatpush1.msra.mxu0 0.0
        %9604 = vmatprep.subr.mxu0 0.0
        %9605 = vmatpush1.msra.mxu0 0.0
        %9606 = vmatprep.subr.mxu0 0.0
        %9607 = vmatpush1.msra.mxu0 0.0
        %9608 = vmatprep.subr.mxu0 0.0
        %9609 = vmatpush1.msra.mxu0 0.0
        %9610 = vmatprep.subr.mxu0 0.0
        %9611 = vmatpush1.msra.mxu0 0.0
        %9612 = vmatprep.subr.mxu0 0.0
        %9613 = vmatpush1.msra.mxu0 0.0
        %9614 = vmatprep.subr.mxu0 0.0
        %9615 = vmatpush1.msra.mxu0 0.0
        %9616 = vmatprep.subr.mxu0 0.0
        %9617 = vmatpush1.msra.mxu0 0.0
        %9618 = vmatprep.subr.mxu0 0.0
        %9619 = vmatpush1.msra.mxu0 0.0
        %9620 = vmatprep.subr.mxu0 0.0
        %9621 = vmatpush1.msra.mxu0 0.0
        %9622 = vmatprep.subr.mxu0 0.0
        %9623 = vmatpush1.msra.mxu0 0.0
        %9624 = vmatprep.subr.mxu0 0.0
        %9625 = vmatpush1.msra.mxu0 0.0
        %9626 = vmatprep.subr.mxu0 0.0
        %9627 = vmatpush1.msra.mxu0 0.0
        %9628 = vmatprep.mubr.f32.mxu0 0.0
        %9629 = vmatmul.mubr.f32.gmra.mrb[0].mxu0 %v9559
        %v9630 = vpop.f32.mrb[0].mxu0
        %v9631 = vadd.f32 0.0, %v9630
        %v9632 = vpop.f32.mrb[0].mxu0
        %9633 = vmatprep.mubr.f32.mxu0 0.0
        %9634 = vmatmul.mubr.f32.gmra.mrb[0].mxu0 %v9562
        %v9635 = vpop.f32.mrb[0].mxu0
        %v9636 = vadd.f32 0.0, %v9635
        %v9637 = vpop.f32.mrb[0].mxu0
        %9638 = vdwg.mxu0
        %9639 = vst [vmem:[%s640] sm:$0xff] %v9631
        %9640 = vst [vmem:[%s640 + $0x8] sm:$0xff] %v9636
        %p9641 = scmp.lt.s32.totalorder %s32, 1
        %s9642 = scalar_select %p9641, %s32, 1
        %s9643 = smul.addr %s9642, 2
        %s9644 = smul.addr %s9643, 8
        %s9645 = scalar_lea.vmem %s15, %s9644
        // Predicated region
        $region121: #{prediction_model_forward.1} parent=79 // pred_check
          %p9646 = pneg %p370
        $region122: #{prediction_model_forward.1} parent=79 // pred_check_branch
          %9648 = sbr.rel (%p9646) target = $region124
        $region123: #{prediction_model_forward.1} parent=79 // pred_region
          _
        $region124: #{prediction_model_forward.1} parent=79 // pred_fallthru
          _
      $region80: #{prediction_model_forward.1} parent=5 // pred_fallthru
        _
      %p9649 = scmp.le.s32.totalorder 2, %s27
      // Predicated region
      $region125: #{prediction_model_forward.1} parent=5 // pred_check
        %p9650 = pneg %p9649
      $region126: #{prediction_model_forward.1} parent=5 // pred_check_branch
        %9652 = sbr.rel (%p9650) target = $region128
      $region127: #{prediction_model_forward.1} parent=5 // pred_region
        %s9653 = ssub.s32 %s27, 2
        // Predicated region
        $region129: #{prediction_model_forward.1} parent=127 // pred_check
          %p9654 = pneg %p376
        $region130: #{prediction_model_forward.1} parent=127 // pred_check_branch
          %9656 = sbr.rel (%p9654) target = $region132
        $region131: #{prediction_model_forward.1} parent=127 // pred_region
          %p9657 = scmp.lt.s32.totalorder %s33, 1
          %s9658 = scalar_select %p9657, %s33, 1
          %s9659 = smul.addr %s9658, 2
          %s9660 = smul.addr %s9659, 8
          %s9661 = scalar_lea.vmem %s15, %s9660
        $region132: #{prediction_model_forward.1} parent=127 // pred_fallthru
          _
      $region128: #{prediction_model_forward.1} parent=5 // pred_fallthru
        _
    $region6: #{prediction_model_forward.1} parent=1 // loop_footer
      %s31 = sadd.s32 1, %s27
    $region7: #{prediction_model_forward.1} parent=1 // loop_footer_branch
      %26 = sbr.rel target = $region3
    $region8: #{prediction_model_forward.1} parent=1 // loop_exit
      _
    %9662 = vsyncpa [#allocation13], 1
    %s9663 = scalar_lea.sflag [#allocation13], 1
    %9664 = vsyncpa %s9663, 1
    %9665 = vsyncpa [#allocation15], 1
    %9666 = vsyncpa [#allocation18], 1
    %9667 = vsyncpa [#allocation21], 1
    %9668 = vsyncpa [#allocation24], 1
    %9669 = vsyncpa [#allocation27], 1

</llo_original>
